<compile_context>
chip_gen: v7x
topology: tpu7x:2x2x1
jax: 0.10.0
libtpu: 0.0.40
codegen_flags: <defaults>
</compile_context>

<pallas_src>
import functools

import jax
import jax.numpy as jnp
from jax.experimental import pallas as pl
from jax.experimental.pallas import tpu as pltpu

SIZE_EMBEDDING = 16
NB_CLASSES = 2
LANE = 128                    # lane-padded width for the predictor weight slab


# ---------------------------------------------------------------------------
# Fused SAGE-layer kernel: grid = (num_edge_blocks,), TE edges per block.
# ---------------------------------------------------------------------------
def _sage_layer_kernel(src_ref, dst_ref, ef_ref, h_ref,
                       wmh_ref, wme_ref, bm_ref,
                       wah_ref, wan_ref, ba_ref, inv_ref,
                       out_ref, acc_ref, *, n_nodes):
    eb = pl.program_id(0)

    @pl.when(eb == 0)
    def _init():
        acc_ref[...] = jnp.zeros_like(acc_ref)

    te = src_ref.shape[0]

    # 1) One-hot source gather on the MXU: (TE, N) @ (N, K*Fin).
    src = src_ref[...]                                               # (TE, 1) int32
    lane_nodes = jax.lax.broadcasted_iota(jnp.int32, (te, n_nodes), 1)
    onehot_src = jnp.where(src == lane_nodes, 1.0, 0.0)              # (TE, N) f32
    h_src = jnp.dot(onehot_src, h_ref[...],
                    preferred_element_type=jnp.float32)              # (TE, K*Fin)

    # 2) Messages for the block: W_msg(cat([h_src, efeat], -1)) with block-diag weights.
    m = (jnp.dot(h_src, wmh_ref[...], preferred_element_type=jnp.float32)
         + jnp.dot(ef_ref[...], wme_ref[...], preferred_element_type=jnp.float32)
         + bm_ref[...])                                              # (TE, K*Dout)

    # 3) Segment-sum scatter on the MXU: (N+1, TE) @ (TE, K*Dout).
    #    Padded edges carry dst == n_nodes and land in the dump row.
    dst = dst_ref[...]                                               # (1, TE) int32
    sub_nodes = jax.lax.broadcasted_iota(jnp.int32, (n_nodes + 1, te), 0)
    onehot_dst_t = jnp.where(sub_nodes == dst, 1.0, 0.0)             # (N+1, TE)
    acc_ref[...] += jnp.dot(onehot_dst_t, m, preferred_element_type=jnp.float32)

    # 4) Finalize once, on the last edge block: mean + W_apply + ReLU.
    @pl.when(eb == pl.num_programs(0) - 1)
    def _finalize():
        h_neigh = acc_ref[0:n_nodes, :] * inv_ref[...]               # (N, K*Dout)
        y = (jnp.dot(h_ref[...], wah_ref[...], preferred_element_type=jnp.float32)
             + jnp.dot(h_neigh, wan_ref[...], preferred_element_type=jnp.float32)
             + ba_ref[...])
        out_ref[...] = jnp.maximum(y, 0.0)


def sage_layer_forward(layer_params, src_col, dst_row, h2, ef2, inv,
                       *, n_nodes, K, TE):
    N, KFin = h2.shape
    E_pad, KFe = ef2.shape
    n_blocks = E_pad // TE
    Fin = KFin // K

    wm, bm = layer_params["W_msg"]          # (Fin+Fe, Dout), (1, Dout)
    wa, ba = layer_params["W_apply"]        # (Fin+Dout, Dout), (1, Dout)
    Dout = wm.shape[1]
    KDout = K * Dout

    # Per-K block-diagonal weights so the packed (.., K*F) layout needs no in-kernel reshape.
    eye_k = jnp.eye(K, dtype=jnp.float32)
    wmh = jnp.kron(eye_k, wm[:Fin])         # (K*Fin, K*Dout)
    wme = jnp.kron(eye_k, wm[Fin:])         # (K*Fe,  K*Dout)
    wah = jnp.kron(eye_k, wa[:Fin])         # (K*Fin, K*Dout)
    wan = jnp.kron(eye_k, wa[Fin:])         # (K*Dout,K*Dout)
    bm_t = jnp.tile(bm, (1, K))             # (1, K*Dout)
    ba_t = jnp.tile(ba, (1, K))

    kern = functools.partial(_sage_layer_kernel, n_nodes=n_nodes)
    grid_spec = pltpu.PrefetchScalarGridSpec(
        num_scalar_prefetch=0,
        grid=(n_blocks,),
        in_specs=[
            pl.BlockSpec((TE, 1),        lambda eb: (eb, 0)),    # src indices (column)
            pl.BlockSpec((1, TE),        lambda eb: (0, eb)),    # dst indices (row)
            pl.BlockSpec((TE, KFe),      lambda eb: (eb, 0)),    # edge-feature block
            pl.BlockSpec((N, KFin),      lambda eb: (0, 0)),     # node features (resident)
            pl.BlockSpec((KFin, KDout),  lambda eb: (0, 0)),     # W_msg (h part, block-diag)
            pl.BlockSpec((KFe, KDout),   lambda eb: (0, 0)),     # W_msg (e part)
            pl.BlockSpec((1, KDout),     lambda eb: (0, 0)),     # b_msg
            pl.BlockSpec((KFin, KDout),  lambda eb: (0, 0)),     # W_apply (h part)
            pl.BlockSpec((KDout, KDout), lambda eb: (0, 0)),     # W_apply (neigh part)
            pl.BlockSpec((1, KDout),     lambda eb: (0, 0)),     # b_apply
            pl.BlockSpec((N, 1),         lambda eb: (0, 0)),     # 1 / in-degree per node
        ],
        out_specs=pl.BlockSpec((N, KDout), lambda eb: (0, 0)),
        scratch_shapes=[pltpu.VMEM((n_nodes + 1, KDout), jnp.float32)],
    )
    flops = (2 * E_pad * n_nodes * (KFin + KDout)          # one-hot gather + scatter
             + 2 * E_pad * (KFin + KFe) * KDout            # messages
             + 2 * N * (KFin + KDout) * KDout)             # apply
    bytes_acc = 4 * (E_pad * (KFe + 2) + N * (KFin + KDout + 1)
                     + (2 * KFin + KFe + KDout + 2) * KDout)
    return pl.pallas_call(
        kern,
        out_shape=jax.ShapeDtypeStruct((N, KDout), jnp.float32),
        grid_spec=grid_spec,
        compiler_params=pltpu.CompilerParams(
            dimension_semantics=("arbitrary",),             # sequential scatter accumulation
            vmem_limit_bytes=32 * 1024 * 1024,
        ),
        cost_estimate=pl.CostEstimate(flops=flops, transcendentals=0,
                                      bytes_accessed=bytes_acc),
    )(src_col, dst_row, ef2, h2, wmh, wme, bm_t, wah, wan, ba_t, inv)


# ---------------------------------------------------------------------------
# Fused predictor kernel: per-edge endpoint gather (one-hot MXU) + MLP logits.
# ---------------------------------------------------------------------------
def _predictor_kernel(src_ref, dst_ref, hs_ref, wpu_ref, wpv_ref, bp_ref,
                      out_ref, *, n_nodes):
    te = src_ref.shape[0]
    lane_nodes = jax.lax.broadcasted_iota(jnp.int32, (te, n_nodes), 1)
    onehot_u = jnp.where(src_ref[...] == lane_nodes, 1.0, 0.0)       # (TE, N)
    onehot_v = jnp.where(dst_ref[...] == lane_nodes, 1.0, 0.0)
    hu = jnp.dot(onehot_u, hs_ref[...], preferred_element_type=jnp.float32)
    hv = jnp.dot(onehot_v, hs_ref[...], preferred_element_type=jnp.float32)
    y = (jnp.dot(hu, wpu_ref[...], preferred_element_type=jnp.float32)
         + jnp.dot(hv, wpv_ref[...], preferred_element_type=jnp.float32)
         + bp_ref[...])                                              # (TE, LANE)
    out_ref[...] = y[:, :out_ref.shape[1]]                           # only real classes to HBM


def predictor_forward(pred_params, src_col, dst_col, hs, *, TE):
    N, D = hs.shape
    E_pad = src_col.shape[0]
    n_blocks = E_pad // TE

    wp, bp = pred_params                    # (2*D, NB_CLASSES), (1, NB_CLASSES)
    wpu = jnp.zeros((D, LANE), jnp.float32).at[:, :NB_CLASSES].set(wp[:D])
    wpv = jnp.zeros((D, LANE), jnp.float32).at[:, :NB_CLASSES].set(wp[D:])
    bp_p = jnp.zeros((1, LANE), jnp.float32).at[:, :NB_CLASSES].set(bp)

    kern = functools.partial(_predictor_kernel, n_nodes=N)
    grid_spec = pltpu.PrefetchScalarGridSpec(
        num_scalar_prefetch=0,
        grid=(n_blocks,),
        in_specs=[
            pl.BlockSpec((TE, 1),   lambda eb: (eb, 0)),
            pl.BlockSpec((TE, 1),   lambda eb: (eb, 0)),
            pl.BlockSpec((N, D),    lambda eb: (0, 0)),
            pl.BlockSpec((D, LANE), lambda eb: (0, 0)),
            pl.BlockSpec((D, LANE), lambda eb: (0, 0)),
            pl.BlockSpec((1, LANE), lambda eb: (0, 0)),
        ],
        out_specs=pl.BlockSpec((TE, NB_CLASSES), lambda eb: (eb, 0)),
    )
    return pl.pallas_call(
        kern,
        out_shape=jax.ShapeDtypeStruct((E_pad, NB_CLASSES), jnp.float32),
        grid_spec=grid_spec,
        compiler_params=pltpu.CompilerParams(
            dimension_semantics=("parallel",),              # independent edge blocks
        ),
    )(src_col, dst_col, hs, wpu, wpv, bp_p)


# ---------------------------------------------------------------------------
# Parameter init (PyTorch nn.Linear-style uniform bounds; weights stored (in, out)).
# ---------------------------------------------------------------------------
def init_linear(key, in_f, out_f):
    k_w, k_b = jax.random.split(key)
    bound = 1.0 / jnp.sqrt(jnp.float32(in_f))
    w = jax.random.uniform(k_w, (in_f, out_f), jnp.float32, -bound, bound)
    b = jax.random.uniform(k_b, (1, out_f), jnp.float32, -bound, bound)
    return w, b


def init_model_params(key, ndim_in, ndim_out, edim):
    keys = jax.random.split(key, 7)
    layer_dims = [(ndim_in, SIZE_EMBEDDING),
                  (SIZE_EMBEDDING, SIZE_EMBEDDING),
                  (SIZE_EMBEDDING, ndim_out)]
    layers = []
    for i, (din, dout) in enumerate(layer_dims):
        w_msg, b_msg = init_linear(keys[2 * i], din + edim, dout)
        w_app, b_app = init_linear(keys[2 * i + 1], din + dout, dout)
        layers.append(dict(W_msg=(w_msg, b_msg), W_apply=(w_app, b_app)))
    w_pred, b_pred = init_linear(keys[6], ndim_out * 2, NB_CLASSES)
    return dict(layers=layers, pred=(w_pred, b_pred))


# ---------------------------------------------------------------------------
# Model forward (graph preprocessing in plain JAX, hot path in fused Pallas kernels).
# ---------------------------------------------------------------------------
def model_forward(params, src, dst, nfeats, efeats, TE=128):
    N, K, Fin = nfeats.shape
    E, _, Fe = efeats.shape
    n_blocks = max(1, -(-E // TE))           # at least one block so finalize always runs
    E_pad = n_blocks * TE
    pad = E_pad - E

    src = src.astype(jnp.int32)
    dst = dst.astype(jnp.int32)
    src_pad = jnp.concatenate([src, jnp.zeros((pad,), jnp.int32)])
    dst_dump = jnp.concatenate([dst, jnp.full((pad,), N, jnp.int32)])   # padded -> dump row N
    dst_pad = jnp.concatenate([dst, jnp.zeros((pad,), jnp.int32)])

    src_col = src_pad[:, None]               # (E_pad, 1)
    dst_row = dst_dump[None, :]              # (1, E_pad)
    dst_col = dst_pad[:, None]               # (E_pad, 1)

    ef2 = jnp.concatenate(
        [efeats.reshape(E, K * Fe), jnp.zeros((pad, K * Fe), jnp.float32)], axis=0)

    # Graph preprocessing (plain JAX): in-degree -> 1/max(deg, 1).
    indeg = jnp.zeros((N,), jnp.float32).at[dst].add(1.0)
    inv = (1.0 / jnp.maximum(indeg, 1.0))[:, None]                      # (N, 1)

    h2 = nfeats.reshape(N, K * Fin)          # node-major, K packed into the lane axis
    for layer_params in params["layers"]:
        # TODO(synk): nn.Dropout between layers is eval-mode identity here.
        h2 = sage_layer_forward(layer_params, src_col, dst_row, h2, ef2, inv,
                                n_nodes=N, K=K, TE=TE)

    D = h2.shape[1] // K
    hs = h2.reshape(N, K, D).sum(axis=1)                                # sum over K, once
    scores = predictor_forward(params["pred"], src_col, dst_col, hs, TE=TE)
    return scores[:E]


# ---------------------------------------------------------------------------
# Pure-JAX reference (for correctness check only).
# ---------------------------------------------------------------------------
def reference_forward(params, src, dst, nfeats, efeats):
    N, K, _ = nfeats.shape
    indeg = jnp.zeros((N,), jnp.float32).at[dst].add(1.0)
    inv = 1.0 / jnp.maximum(indeg, 1.0)
    h = nfeats
    for lp in params["layers"]:
        wm, bm = lp["W_msg"]
        wa, ba = lp["W_apply"]
        m = jnp.concatenate([h[src], efeats], axis=2) @ wm + bm
        agg = jnp.zeros((N, K, m.shape[-1]), jnp.float32).at[dst].add(m)
        h_neigh = agg * inv[:, None, None]
        h = jax.nn.relu(jnp.concatenate([h, h_neigh], axis=2) @ wa + ba)
    hs = h.sum(1)
    wp, bp = params["pred"]
    return jnp.concatenate([hs[src], hs[dst]], axis=1) @ wp + bp


# ---------------------------------------------------------------------------
if __name__ == "__main__":
    key = jax.random.PRNGKey(0)
    k_graph, k_nf, k_ef, k_params = jax.random.split(key, 4)

    # Small synthetic graph / features (several edge blocks at TE=128).
    N, E, K = 40, 300, 2                 # nodes, edges, middle ("copy") dim
    ndim_in, edim, ndim_out = 8, 8, 8

    k_src, k_dst = jax.random.split(k_graph)
    src = jax.random.randint(k_src, (E,), 0, N)
    dst = jax.random.randint(k_dst, (E,), 0, N)

    nfeats = jax.random.normal(k_nf, (N, K, ndim_in), dtype=jnp.float32)
    efeats = jax.random.normal(k_ef, (E, K, edim), dtype=jnp.float32)

    params = init_model_params(k_params, ndim_in, ndim_out, edim)

    fwd = jax.jit(model_forward)
    scores = jax.block_until_ready(fwd(params, src, dst, nfeats, efeats))
    assert scores.shape == (E, NB_CLASSES)

    ref = reference_forward(params, src, dst, nfeats, efeats)
    # One-hot MXU gather/scatter reorders the float accumulation (and its operand
    # rounding depends on the generation's f32 matmul pass count), so compare at a
    # modest tolerance rather than bitwise.
    assert jnp.allclose(scores, ref, rtol=2e-2, atol=2e-2), "Pallas vs JAX reference mismatch"

    print("KERNEL_OK")
</pallas_src>

<mosaic_0001>
module attributes {stable_mosaic.version = 11 : i64} {
  func.func @_sage_layer_kernel(%arg0: i32, %arg1: memref<128x1xi32, #tpu.memory_space<vmem>>, %arg2: memref<1x128xi32, #tpu.memory_space<vmem>>, %arg3: memref<128x16xf32, #tpu.memory_space<vmem>>, %arg4: memref<40x32xf32, #tpu.memory_space<vmem>>, %arg5: memref<32x16xf32, #tpu.memory_space<vmem>>, %arg6: memref<16x16xf32, #tpu.memory_space<vmem>>, %arg7: memref<1x16xf32, #tpu.memory_space<vmem>>, %arg8: memref<32x16xf32, #tpu.memory_space<vmem>>, %arg9: memref<16x16xf32, #tpu.memory_space<vmem>>, %arg10: memref<1x16xf32, #tpu.memory_space<vmem>>, %arg11: memref<40x1xf32, #tpu.memory_space<vmem>>, %arg12: memref<40x16xf32, #tpu.memory_space<vmem>>, %arg13: memref<41x16xf32, #tpu.memory_space<vmem>>) attributes {dimension_semantics = [#tpu.dimension_semantics<arbitrary>], iteration_bounds = array<i64: 3>, scalar_prefetch = 0 : i64, scratch_operands = 1 : i64, tpu.core_type = #tpu.core_type<tc>, window_params = [{transform_indices = @transform_0, window_bounds = array<i64: 128, 1>}, {transform_indices = @transform_1, window_bounds = array<i64: 1, 128>}, {transform_indices = @transform_2, window_bounds = array<i64: 128, 16>}, {pipeline_mode = #tpu.pipeline_mode<synchronous>, transform_indices = @transform_3, window_bounds = array<i64: 40, 32>}, {pipeline_mode = #tpu.pipeline_mode<synchronous>, transform_indices = @transform_4, window_bounds = array<i64: 32, 16>}, {pipeline_mode = #tpu.pipeline_mode<synchronous>, transform_indices = @transform_5, window_bounds = array<i64: 16, 16>}, {pipeline_mode = #tpu.pipeline_mode<synchronous>, transform_indices = @transform_6, window_bounds = array<i64: 1, 16>}, {pipeline_mode = #tpu.pipeline_mode<synchronous>, transform_indices = @transform_7, window_bounds = array<i64: 32, 16>}, {pipeline_mode = #tpu.pipeline_mode<synchronous>, transform_indices = @transform_8, window_bounds = array<i64: 16, 16>}, {pipeline_mode = #tpu.pipeline_mode<synchronous>, transform_indices = @transform_9, window_bounds = array<i64: 1, 16>}, {pipeline_mode = #tpu.pipeline_mode<synchronous>, transform_indices = @transform_10, window_bounds = array<i64: 40, 1>}, {pipeline_mode = #tpu.pipeline_mode<synchronous>, transform_indices = @transform_11, window_bounds = array<i64: 40, 16>}]} {
    %c0_i32 = arith.constant 0 : i32
    %0 = arith.cmpi eq, %arg0, %c0_i32 : i32
    %1 = arith.extui %0 : i1 to i32
    %c0_i32_0 = arith.constant 0 : i32
    %2 = arith.cmpi ne, %1, %c0_i32_0 : i32
    scf.if %2 {
      %cst_26 = arith.constant 0.000000e+00 : f32
      %35 = vector.broadcast %cst_26 : f32 to vector<41x16xf32>
      %c0_27 = arith.constant 0 : index
      %c0_28 = arith.constant 0 : index
      %36 = vector.load %arg13[%c0_27, %c0_28] : memref<41x16xf32, #tpu.memory_space<vmem>>, vector<41x16xf32>
      tpu.vector_store %arg13[%c0_27, %c0_28], %35 {strides = array<i32>} : memref<41x16xf32, #tpu.memory_space<vmem>>, vector<41x16xf32>,
    } else {
    }
    %c0 = arith.constant 0 : index
    %c0_1 = arith.constant 0 : index
    %3 = vector.load %arg1[%c0, %c0_1] : memref<128x1xi32, #tpu.memory_space<vmem>>, vector<128x1xi32>
    %4 = tpu.iota {dimensions = array<i32: 1>} : vector<128x40xi32>
    %5 = vector.broadcast %3 : vector<128x1xi32> to vector<128x40xi32>
    %6 = arith.cmpi eq, %5, %4 : vector<128x40xi32>
    %cst = arith.constant 1.000000e+00 : f32
    %cst_2 = arith.constant 0.000000e+00 : f32
    %7 = vector.broadcast %cst : f32 to vector<128x40xf32>
    %8 = vector.broadcast %cst_2 : f32 to vector<128x40xf32>
    %9 = arith.select %6, %7, %8 : vector<128x40xi1>, vector<128x40xf32>
    %c0_3 = arith.constant 0 : index
    %c0_4 = arith.constant 0 : index
    %10 = vector.load %arg4[%c0_3, %c0_4] : memref<40x32xf32, #tpu.memory_space<vmem>>, vector<40x32xf32>
    %cst_5 = arith.constant dense<0.000000e+00> : vector<128x32xf32>
    %11 = tpu.matmul %9, %10, %cst_5 {dimension_numbers = #tpu.dot_dimension_numbers<[1], [0], [0], [1], [0, 0, 1, 1], [], []>} : vector<128x40xf32>, vector<40x32xf32>, vector<128x32xf32> -> vector<128x32xf32>
    %c0_6 = arith.constant 0 : index
    %c0_7 = arith.constant 0 : index
    %12 = vector.load %arg5[%c0_6, %c0_7] : memref<32x16xf32, #tpu.memory_space<vmem>>, vector<32x16xf32>
    %cst_8 = arith.constant dense<0.000000e+00> : vector<128x16xf32>
    %13 = tpu.matmul %11, %12, %cst_8 {dimension_numbers = #tpu.dot_dimension_numbers<[1], [0], [0], [1], [0, 0, 1, 1], [], []>} : vector<128x32xf32>, vector<32x16xf32>, vector<128x16xf32> -> vector<128x16xf32>
    %c0_9 = arith.constant 0 : index
    %c0_10 = arith.constant 0 : index
    %14 = vector.load %arg3[%c0_9, %c0_10] : memref<128x16xf32, #tpu.memory_space<vmem>>, vector<128x16xf32>
    %c0_11 = arith.constant 0 : index
    %c0_12 = arith.constant 0 : index
    %15 = vector.load %arg6[%c0_11, %c0_12] : memref<16x16xf32, #tpu.memory_space<vmem>>, vector<16x16xf32>
    %cst_13 = arith.constant dense<0.000000e+00> : vector<128x16xf32>
    %16 = tpu.matmul %14, %15, %cst_13 {dimension_numbers = #tpu.dot_dimension_numbers<[1], [0], [0], [1], [0, 0, 1, 1], [], []>} : vector<128x16xf32>, vector<16x16xf32>, vector<128x16xf32> -> vector<128x16xf32>
    %17 = arith.addf %13, %16 : vector<128x16xf32>
    %c0_14 = arith.constant 0 : index
    %c0_15 = arith.constant 0 : index
    %18 = vector.load %arg7[%c0_14, %c0_15] : memref<1x16xf32, #tpu.memory_space<vmem>>, vector<1x16xf32>
    %19 = vector.broadcast %18 : vector<1x16xf32> to vector<128x16xf32>
    %20 = arith.addf %17, %19 : vector<128x16xf32>
    %c0_16 = arith.constant 0 : index
    %c0_17 = arith.constant 0 : index
    %21 = vector.load %arg2[%c0_16, %c0_17] : memref<1x128xi32, #tpu.memory_space<vmem>>, vector<1x128xi32>
    %22 = tpu.iota {dimensions = array<i32: 0>} : vector<41x128xi32>
    %23 = vector.broadcast %21 : vector<1x128xi32> to vector<41x128xi32>
    %24 = arith.cmpi eq, %22, %23 : vector<41x128xi32>
    %cst_18 = arith.constant 1.000000e+00 : f32
    %cst_19 = arith.constant 0.000000e+00 : f32
    %25 = vector.broadcast %cst_18 : f32 to vector<41x128xf32>
    %26 = vector.broadcast %cst_19 : f32 to vector<41x128xf32>
    %27 = arith.select %24, %25, %26 : vector<41x128xi1>, vector<41x128xf32>
    %c0_20 = arith.constant 0 : index
    %c0_21 = arith.constant 0 : index
    %28 = vector.load %arg13[%c0_20, %c0_21] : memref<41x16xf32, #tpu.memory_space<vmem>>, vector<41x16xf32>
    %cst_22 = arith.constant dense<0.000000e+00> : vector<41x16xf32>
    %29 = tpu.matmul %27, %20, %cst_22 {dimension_numbers = #tpu.dot_dimension_numbers<[1], [0], [0], [1], [0, 0, 1, 1], [], []>} : vector<41x128xf32>, vector<128x16xf32>, vector<41x16xf32> -> vector<41x16xf32>
    %30 = arith.addf %28, %29 : vector<41x16xf32>
    %c0_23 = arith.constant 0 : index
    %c0_24 = arith.constant 0 : index
    %31 = vector.load %arg13[%c0_23, %c0_24] : memref<41x16xf32, #tpu.memory_space<vmem>>, vector<41x16xf32>
    tpu.vector_store %arg13[%c0_23, %c0_24], %30 {strides = array<i32>} : memref<41x16xf32, #tpu.memory_space<vmem>>, vector<41x16xf32>,
    %c2_i32 = arith.constant 2 : i32
    %32 = arith.cmpi eq, %arg0, %c2_i32 : i32
    %33 = arith.extui %32 : i1 to i32
    %c0_i32_25 = arith.constant 0 : i32
    %34 = arith.cmpi ne, %33, %c0_i32_25 : i32
    scf.if %34 {
      %c0_26 = arith.constant 0 : index
      %c0_27 = arith.constant 0 : index
      %35 = vector.load %arg13[%c0_26, %c0_27] : memref<41x16xf32, #tpu.memory_space<vmem>>, vector<40x16xf32>
      %c0_28 = arith.constant 0 : index
      %c0_29 = arith.constant 0 : index
      %36 = vector.load %arg11[%c0_28, %c0_29] : memref<40x1xf32, #tpu.memory_space<vmem>>, vector<40x1xf32>
      %37 = vector.broadcast %36 : vector<40x1xf32> to vector<40x16xf32>
      %38 = arith.mulf %35, %37 : vector<40x16xf32>
      %c0_30 = arith.constant 0 : index
      %c0_31 = arith.constant 0 : index
      %39 = vector.load %arg4[%c0_30, %c0_31] : memref<40x32xf32, #tpu.memory_space<vmem>>, vector<40x32xf32>
      %c0_32 = arith.constant 0 : index
      %c0_33 = arith.constant 0 : index
      %40 = vector.load %arg8[%c0_32, %c0_33] : memref<32x16xf32, #tpu.memory_space<vmem>>, vector<32x16xf32>
      %cst_34 = arith.constant dense<0.000000e+00> : vector<40x16xf32>
      %41 = tpu.matmul %39, %40, %cst_34 {dimension_numbers = #tpu.dot_dimension_numbers<[1], [0], [0], [1], [0, 0, 1, 1], [], []>} : vector<40x32xf32>, vector<32x16xf32>, vector<40x16xf32> -> vector<40x16xf32>
      %c0_35 = arith.constant 0 : index
      %c0_36 = arith.constant 0 : index
      %42 = vector.load %arg9[%c0_35, %c0_36] : memref<16x16xf32, #tpu.memory_space<vmem>>, vector<16x16xf32>
      %cst_37 = arith.constant dense<0.000000e+00> : vector<40x16xf32>
      %43 = tpu.matmul %38, %42, %cst_37 {dimension_numbers = #tpu.dot_dimension_numbers<[1], [0], [0], [1], [0, 0, 1, 1], [], []>} : vector<40x16xf32>, vector<16x16xf32>, vector<40x16xf32> -> vector<40x16xf32>
      %44 = arith.addf %41, %43 : vector<40x16xf32>
      %c0_38 = arith.constant 0 : index
      %c0_39 = arith.constant 0 : index
      %45 = vector.load %arg10[%c0_38, %c0_39] : memref<1x16xf32, #tpu.memory_space<vmem>>, vector<1x16xf32>
      %46 = vector.broadcast %45 : vector<1x16xf32> to vector<40x16xf32>
      %47 = arith.addf %44, %46 : vector<40x16xf32>
      %cst_40 = arith.constant 0.000000e+00 : f32
      %48 = vector.broadcast %cst_40 : f32 to vector<40x16xf32>
      %49 = arith.maximumf %47, %48 : vector<40x16xf32>
      %c0_41 = arith.constant 0 : index
      %c0_42 = arith.constant 0 : index
      %50 = vector.load %arg12[%c0_41, %c0_42] : memref<40x16xf32, #tpu.memory_space<vmem>>, vector<40x16xf32>
      tpu.vector_store %arg12[%c0_41, %c0_42], %49 {strides = array<i32>} : memref<40x16xf32, #tpu.memory_space<vmem>>, vector<40x16xf32>,
    } else {
    }
    return
  }
  func.func @transform_0(%arg0: i32) -> (i32, i32) {
    %c0_i32 = arith.constant 0 : i32
    %c0_i32_0 = arith.constant 0 : i32
    return %arg0, %c0_i32 : i32, i32
  }
  func.func @transform_1(%arg0: i32) -> (i32, i32) {
    %c0_i32 = arith.constant 0 : i32
    %c0_i32_0 = arith.constant 0 : i32
    return %c0_i32, %arg0 : i32, i32
  }
  func.func @transform_2(%arg0: i32) -> (i32, i32) {
    %c0_i32 = arith.constant 0 : i32
    %c0_i32_0 = arith.constant 0 : i32
    return %arg0, %c0_i32 : i32, i32
  }
  func.func @transform_3(%arg0: i32) -> (i32, i32) {
    %c0_i32 = arith.constant 0 : i32
    %c0_i32_0 = arith.constant 0 : i32
    %c0_i32_1 = arith.constant 0 : i32
    return %c0_i32, %c0_i32_0 : i32, i32
  }
  func.func @transform_4(%arg0: i32) -> (i32, i32) {
    %c0_i32 = arith.constant 0 : i32
    %c0_i32_0 = arith.constant 0 : i32
    %c0_i32_1 = arith.constant 0 : i32
    return %c0_i32, %c0_i32_0 : i32, i32
  }
  func.func @transform_5(%arg0: i32) -> (i32, i32) {
    %c0_i32 = arith.constant 0 : i32
    %c0_i32_0 = arith.constant 0 : i32
    %c0_i32_1 = arith.constant 0 : i32
    return %c0_i32, %c0_i32_0 : i32, i32
  }
  func.func @transform_6(%arg0: i32) -> (i32, i32) {
    %c0_i32 = arith.constant 0 : i32
    %c0_i32_0 = arith.constant 0 : i32
    %c0_i32_1 = arith.constant 0 : i32
    return %c0_i32, %c0_i32_0 : i32, i32
  }
  func.func @transform_7(%arg0: i32) -> (i32, i32) {
    %c0_i32 = arith.constant 0 : i32
    %c0_i32_0 = arith.constant 0 : i32
    %c0_i32_1 = arith.constant 0 : i32
    return %c0_i32, %c0_i32_0 : i32, i32
  }
  func.func @transform_8(%arg0: i32) -> (i32, i32) {
    %c0_i32 = arith.constant 0 : i32
    %c0_i32_0 = arith.constant 0 : i32
    %c0_i32_1 = arith.constant 0 : i32
    return %c0_i32, %c0_i32_0 : i32, i32
  }
  func.func @transform_9(%arg0: i32) -> (i32, i32) {
    %c0_i32 = arith.constant 0 : i32
    %c0_i32_0 = arith.constant 0 : i32
    %c0_i32_1 = arith.constant 0 : i32
    return %c0_i32, %c0_i32_0 : i32, i32
  }
  func.func @transform_10(%arg0: i32) -> (i32, i32) {
    %c0_i32 = arith.constant 0 : i32
    %c0_i32_0 = arith.constant 0 : i32
    %c0_i32_1 = arith.constant 0 : i32
    return %c0_i32, %c0_i32_0 : i32, i32
  }
  func.func @transform_11(%arg0: i32) -> (i32, i32) {
    %c0_i32 = arith.constant 0 : i32
    %c0_i32_0 = arith.constant 0 : i32
    %c0_i32_1 = arith.constant 0 : i32
    return %c0_i32, %c0_i32_0 : i32, i32
  }
}

module attributes {stable_mosaic.version = 11 : i64} {
  func.func @_sage_layer_kernel(%arg0: i32, %arg1: memref<128x1xi32, #tpu.memory_space<vmem>>, %arg2: memref<1x128xi32, #tpu.memory_space<vmem>>, %arg3: memref<128x16xf32, #tpu.memory_space<vmem>>, %arg4: memref<40x16xf32, #tpu.memory_space<vmem>>, %arg5: memref<16x32xf32, #tpu.memory_space<vmem>>, %arg6: memref<16x32xf32, #tpu.memory_space<vmem>>, %arg7: memref<1x32xf32, #tpu.memory_space<vmem>>, %arg8: memref<16x32xf32, #tpu.memory_space<vmem>>, %arg9: memref<32x32xf32, #tpu.memory_space<vmem>>, %arg10: memref<1x32xf32, #tpu.memory_space<vmem>>, %arg11: memref<40x1xf32, #tpu.memory_space<vmem>>, %arg12: memref<40x32xf32, #tpu.memory_space<vmem>>, %arg13: memref<41x32xf32, #tpu.memory_space<vmem>>) attributes {dimension_semantics = [#tpu.dimension_semantics<arbitrary>], iteration_bounds = array<i64: 3>, scalar_prefetch = 0 : i64, scratch_operands = 1 : i64, tpu.core_type = #tpu.core_type<tc>, window_params = [{transform_indices = @transform_0, window_bounds = array<i64: 128, 1>}, {transform_indices = @transform_1, window_bounds = array<i64: 1, 128>}, {transform_indices = @transform_2, window_bounds = array<i64: 128, 16>}, {pipeline_mode = #tpu.pipeline_mode<synchronous>, transform_indices = @transform_3, window_bounds = array<i64: 40, 16>}, {pipeline_mode = #tpu.pipeline_mode<synchronous>, transform_indices = @transform_4, window_bounds = array<i64: 16, 32>}, {pipeline_mode = #tpu.pipeline_mode<synchronous>, transform_indices = @transform_5, window_bounds = array<i64: 16, 32>}, {pipeline_mode = #tpu.pipeline_mode<synchronous>, transform_indices = @transform_6, window_bounds = array<i64: 1, 32>}, {pipeline_mode = #tpu.pipeline_mode<synchronous>, transform_indices = @transform_7, window_bounds = array<i64: 16, 32>}, {pipeline_mode = #tpu.pipeline_mode<synchronous>, transform_indices = @transform_8, window_bounds = array<i64: 32, 32>}, {pipeline_mode = #tpu.pipeline_mode<synchronous>, transform_indices = @transform_9, window_bounds = array<i64: 1, 32>}, {pipeline_mode = #tpu.pipeline_mode<synchronous>, transform_indices = @transform_10, window_bounds = array<i64: 40, 1>}, {pipeline_mode = #tpu.pipeline_mode<synchronous>, transform_indices = @transform_11, window_bounds = array<i64: 40, 32>}]} {
    %c0_i32 = arith.constant 0 : i32
    %0 = arith.cmpi eq, %arg0, %c0_i32 : i32
    %1 = arith.extui %0 : i1 to i32
    %c0_i32_0 = arith.constant 0 : i32
    %2 = arith.cmpi ne, %1, %c0_i32_0 : i32
    scf.if %2 {
      %cst_26 = arith.constant 0.000000e+00 : f32
      %35 = vector.broadcast %cst_26 : f32 to vector<41x32xf32>
      %c0_27 = arith.constant 0 : index
      %c0_28 = arith.constant 0 : index
      %36 = vector.load %arg13[%c0_27, %c0_28] : memref<41x32xf32, #tpu.memory_space<vmem>>, vector<41x32xf32>
      tpu.vector_store %arg13[%c0_27, %c0_28], %35 {strides = array<i32>} : memref<41x32xf32, #tpu.memory_space<vmem>>, vector<41x32xf32>,
    } else {
    }
    %c0 = arith.constant 0 : index
    %c0_1 = arith.constant 0 : index
    %3 = vector.load %arg1[%c0, %c0_1] : memref<128x1xi32, #tpu.memory_space<vmem>>, vector<128x1xi32>
    %4 = tpu.iota {dimensions = array<i32: 1>} : vector<128x40xi32>
    %5 = vector.broadcast %3 : vector<128x1xi32> to vector<128x40xi32>
    %6 = arith.cmpi eq, %5, %4 : vector<128x40xi32>
    %cst = arith.constant 1.000000e+00 : f32
    %cst_2 = arith.constant 0.000000e+00 : f32
    %7 = vector.broadcast %cst : f32 to vector<128x40xf32>
    %8 = vector.broadcast %cst_2 : f32 to vector<128x40xf32>
    %9 = arith.select %6, %7, %8 : vector<128x40xi1>, vector<128x40xf32>
    %c0_3 = arith.constant 0 : index
    %c0_4 = arith.constant 0 : index
    %10 = vector.load %arg4[%c0_3, %c0_4] : memref<40x16xf32, #tpu.memory_space<vmem>>, vector<40x16xf32>
    %cst_5 = arith.constant dense<0.000000e+00> : vector<128x16xf32>
    %11 = tpu.matmul %9, %10, %cst_5 {dimension_numbers = #tpu.dot_dimension_numbers<[1], [0], [0], [1], [0, 0, 1, 1], [], []>} : vector<128x40xf32>, vector<40x16xf32>, vector<128x16xf32> -> vector<128x16xf32>
    %c0_6 = arith.constant 0 : index
    %c0_7 = arith.constant 0 : index
    %12 = vector.load %arg5[%c0_6, %c0_7] : memref<16x32xf32, #tpu.memory_space<vmem>>, vector<16x32xf32>
    %cst_8 = arith.constant dense<0.000000e+00> : vector<128x32xf32>
    %13 = tpu.matmul %11, %12, %cst_8 {dimension_numbers = #tpu.dot_dimension_numbers<[1], [0], [0], [1], [0, 0, 1, 1], [], []>} : vector<128x16xf32>, vector<16x32xf32>, vector<128x32xf32> -> vector<128x32xf32>
    %c0_9 = arith.constant 0 : index
    %c0_10 = arith.constant 0 : index
    %14 = vector.load %arg3[%c0_9, %c0_10] : memref<128x16xf32, #tpu.memory_space<vmem>>, vector<128x16xf32>
    %c0_11 = arith.constant 0 : index
    %c0_12 = arith.constant 0 : index
    %15 = vector.load %arg6[%c0_11, %c0_12] : memref<16x32xf32, #tpu.memory_space<vmem>>, vector<16x32xf32>
    %cst_13 = arith.constant dense<0.000000e+00> : vector<128x32xf32>
    %16 = tpu.matmul %14, %15, %cst_13 {dimension_numbers = #tpu.dot_dimension_numbers<[1], [0], [0], [1], [0, 0, 1, 1], [], []>} : vector<128x16xf32>, vector<16x32xf32>, vector<128x32xf32> -> vector<128x32xf32>
    %17 = arith.addf %13, %16 : vector<128x32xf32>
    %c0_14 = arith.constant 0 : index
    %c0_15 = arith.constant 0 : index
    %18 = vector.load %arg7[%c0_14, %c0_15] : memref<1x32xf32, #tpu.memory_space<vmem>>, vector<1x32xf32>
    %19 = vector.broadcast %18 : vector<1x32xf32> to vector<128x32xf32>
    %20 = arith.addf %17, %19 : vector<128x32xf32>
    %c0_16 = arith.constant 0 : index
    %c0_17 = arith.constant 0 : index
    %21 = vector.load %arg2[%c0_16, %c0_17] : memref<1x128xi32, #tpu.memory_space<vmem>>, vector<1x128xi32>
    %22 = tpu.iota {dimensions = array<i32: 0>} : vector<41x128xi32>
    %23 = vector.broadcast %21 : vector<1x128xi32> to vector<41x128xi32>
    %24 = arith.cmpi eq, %22, %23 : vector<41x128xi32>
    %cst_18 = arith.constant 1.000000e+00 : f32
    %cst_19 = arith.constant 0.000000e+00 : f32
    %25 = vector.broadcast %cst_18 : f32 to vector<41x128xf32>
    %26 = vector.broadcast %cst_19 : f32 to vector<41x128xf32>
    %27 = arith.select %24, %25, %26 : vector<41x128xi1>, vector<41x128xf32>
    %c0_20 = arith.constant 0 : index
    %c0_21 = arith.constant 0 : index
    %28 = vector.load %arg13[%c0_20, %c0_21] : memref<41x32xf32, #tpu.memory_space<vmem>>, vector<41x32xf32>
    %cst_22 = arith.constant dense<0.000000e+00> : vector<41x32xf32>
    %29 = tpu.matmul %27, %20, %cst_22 {dimension_numbers = #tpu.dot_dimension_numbers<[1], [0], [0], [1], [0, 0, 1, 1], [], []>} : vector<41x128xf32>, vector<128x32xf32>, vector<41x32xf32> -> vector<41x32xf32>
    %30 = arith.addf %28, %29 : vector<41x32xf32>
    %c0_23 = arith.constant 0 : index
    %c0_24 = arith.constant 0 : index
    %31 = vector.load %arg13[%c0_23, %c0_24] : memref<41x32xf32, #tpu.memory_space<vmem>>, vector<41x32xf32>
    tpu.vector_store %arg13[%c0_23, %c0_24], %30 {strides = array<i32>} : memref<41x32xf32, #tpu.memory_space<vmem>>, vector<41x32xf32>,
    %c2_i32 = arith.constant 2 : i32
    %32 = arith.cmpi eq, %arg0, %c2_i32 : i32
    %33 = arith.extui %32 : i1 to i32
    %c0_i32_25 = arith.constant 0 : i32
    %34 = arith.cmpi ne, %33, %c0_i32_25 : i32
    scf.if %34 {
      %c0_26 = arith.constant 0 : index
      %c0_27 = arith.constant 0 : index
      %35 = vector.load %arg13[%c0_26, %c0_27] : memref<41x32xf32, #tpu.memory_space<vmem>>, vector<40x32xf32>
      %c0_28 = arith.constant 0 : index
      %c0_29 = arith.constant 0 : index
      %36 = vector.load %arg11[%c0_28, %c0_29] : memref<40x1xf32, #tpu.memory_space<vmem>>, vector<40x1xf32>
      %37 = vector.broadcast %36 : vector<40x1xf32> to vector<40x32xf32>
      %38 = arith.mulf %35, %37 : vector<40x32xf32>
      %c0_30 = arith.constant 0 : index
      %c0_31 = arith.constant 0 : index
      %39 = vector.load %arg4[%c0_30, %c0_31] : memref<40x16xf32, #tpu.memory_space<vmem>>, vector<40x16xf32>
      %c0_32 = arith.constant 0 : index
      %c0_33 = arith.constant 0 : index
      %40 = vector.load %arg8[%c0_32, %c0_33] : memref<16x32xf32, #tpu.memory_space<vmem>>, vector<16x32xf32>
      %cst_34 = arith.constant dense<0.000000e+00> : vector<40x32xf32>
      %41 = tpu.matmul %39, %40, %cst_34 {dimension_numbers = #tpu.dot_dimension_numbers<[1], [0], [0], [1], [0, 0, 1, 1], [], []>} : vector<40x16xf32>, vector<16x32xf32>, vector<40x32xf32> -> vector<40x32xf32>
      %c0_35 = arith.constant 0 : index
      %c0_36 = arith.constant 0 : index
      %42 = vector.load %arg9[%c0_35, %c0_36] : memref<32x32xf32, #tpu.memory_space<vmem>>, vector<32x32xf32>
      %cst_37 = arith.constant dense<0.000000e+00> : vector<40x32xf32>
      %43 = tpu.matmul %38, %42, %cst_37 {dimension_numbers = #tpu.dot_dimension_numbers<[1], [0], [0], [1], [0, 0, 1, 1], [], []>} : vector<40x32xf32>, vector<32x32xf32>, vector<40x32xf32> -> vector<40x32xf32>
      %44 = arith.addf %41, %43 : vector<40x32xf32>
      %c0_38 = arith.constant 0 : index
      %c0_39 = arith.constant 0 : index
      %45 = vector.load %arg10[%c0_38, %c0_39] : memref<1x32xf32, #tpu.memory_space<vmem>>, vector<1x32xf32>
      %46 = vector.broadcast %45 : vector<1x32xf32> to vector<40x32xf32>
      %47 = arith.addf %44, %46 : vector<40x32xf32>
      %cst_40 = arith.constant 0.000000e+00 : f32
      %48 = vector.broadcast %cst_40 : f32 to vector<40x32xf32>
      %49 = arith.maximumf %47, %48 : vector<40x32xf32>
      %c0_41 = arith.constant 0 : index
      %c0_42 = arith.constant 0 : index
      %50 = vector.load %arg12[%c0_41, %c0_42] : memref<40x32xf32, #tpu.memory_space<vmem>>, vector<40x32xf32>
      tpu.vector_store %arg12[%c0_41, %c0_42], %49 {strides = array<i32>} : memref<40x32xf32, #tpu.memory_space<vmem>>, vector<40x32xf32>,
    } else {
    }
    return
  }
  func.func @transform_0(%arg0: i32) -> (i32, i32) {
    %c0_i32 = arith.constant 0 : i32
    %c0_i32_0 = arith.constant 0 : i32
    return %arg0, %c0_i32 : i32, i32
  }
  func.func @transform_1(%arg0: i32) -> (i32, i32) {
    %c0_i32 = arith.constant 0 : i32
    %c0_i32_0 = arith.constant 0 : i32
    return %c0_i32, %arg0 : i32, i32
  }
  func.func @transform_2(%arg0: i32) -> (i32, i32) {
    %c0_i32 = arith.constant 0 : i32
    %c0_i32_0 = arith.constant 0 : i32
    return %arg0, %c0_i32 : i32, i32
  }
  func.func @transform_3(%arg0: i32) -> (i32, i32) {
    %c0_i32 = arith.constant 0 : i32
    %c0_i32_0 = arith.constant 0 : i32
    %c0_i32_1 = arith.constant 0 : i32
    return %c0_i32, %c0_i32_0 : i32, i32
  }
  func.func @transform_4(%arg0: i32) -> (i32, i32) {
    %c0_i32 = arith.constant 0 : i32
    %c0_i32_0 = arith.constant 0 : i32
    %c0_i32_1 = arith.constant 0 : i32
    return %c0_i32, %c0_i32_0 : i32, i32
  }
  func.func @transform_5(%arg0: i32) -> (i32, i32) {
    %c0_i32 = arith.constant 0 : i32
    %c0_i32_0 = arith.constant 0 : i32
    %c0_i32_1 = arith.constant 0 : i32
    return %c0_i32, %c0_i32_0 : i32, i32
  }
  func.func @transform_6(%arg0: i32) -> (i32, i32) {
    %c0_i32 = arith.constant 0 : i32
    %c0_i32_0 = arith.constant 0 : i32
    %c0_i32_1 = arith.constant 0 : i32
    return %c0_i32, %c0_i32_0 : i32, i32
  }
  func.func @transform_7(%arg0: i32) -> (i32, i32) {
    %c0_i32 = arith.constant 0 : i32
    %c0_i32_0 = arith.constant 0 : i32
    %c0_i32_1 = arith.constant 0 : i32
    return %c0_i32, %c0_i32_0 : i32, i32
  }
  func.func @transform_8(%arg0: i32) -> (i32, i32) {
    %c0_i32 = arith.constant 0 : i32
    %c0_i32_0 = arith.constant 0 : i32
    %c0_i32_1 = arith.constant 0 : i32
    return %c0_i32, %c0_i32_0 : i32, i32
  }
  func.func @transform_9(%arg0: i32) -> (i32, i32) {
    %c0_i32 = arith.constant 0 : i32
    %c0_i32_0 = arith.constant 0 : i32
    %c0_i32_1 = arith.constant 0 : i32
    return %c0_i32, %c0_i32_0 : i32, i32
  }
  func.func @transform_10(%arg0: i32) -> (i32, i32) {
    %c0_i32 = arith.constant 0 : i32
    %c0_i32_0 = arith.constant 0 : i32
    %c0_i32_1 = arith.constant 0 : i32
    return %c0_i32, %c0_i32_0 : i32, i32
  }
  func.func @transform_11(%arg0: i32) -> (i32, i32) {
    %c0_i32 = arith.constant 0 : i32
    %c0_i32_0 = arith.constant 0 : i32
    %c0_i32_1 = arith.constant 0 : i32
    return %c0_i32, %c0_i32_0 : i32, i32
  }
}

module attributes {stable_mosaic.version = 11 : i64} {
  func.func @_sage_layer_kernel(%arg0: i32, %arg1: memref<128x1xi32, #tpu.memory_space<vmem>>, %arg2: memref<1x128xi32, #tpu.memory_space<vmem>>, %arg3: memref<128x16xf32, #tpu.memory_space<vmem>>, %arg4: memref<40x32xf32, #tpu.memory_space<vmem>>, %arg5: memref<32x32xf32, #tpu.memory_space<vmem>>, %arg6: memref<16x32xf32, #tpu.memory_space<vmem>>, %arg7: memref<1x32xf32, #tpu.memory_space<vmem>>, %arg8: memref<32x32xf32, #tpu.memory_space<vmem>>, %arg9: memref<32x32xf32, #tpu.memory_space<vmem>>, %arg10: memref<1x32xf32, #tpu.memory_space<vmem>>, %arg11: memref<40x1xf32, #tpu.memory_space<vmem>>, %arg12: memref<40x32xf32, #tpu.memory_space<vmem>>, %arg13: memref<41x32xf32, #tpu.memory_space<vmem>>) attributes {dimension_semantics = [#tpu.dimension_semantics<arbitrary>], iteration_bounds = array<i64: 3>, scalar_prefetch = 0 : i64, scratch_operands = 1 : i64, tpu.core_type = #tpu.core_type<tc>, window_params = [{transform_indices = @transform_0, window_bounds = array<i64: 128, 1>}, {transform_indices = @transform_1, window_bounds = array<i64: 1, 128>}, {transform_indices = @transform_2, window_bounds = array<i64: 128, 16>}, {pipeline_mode = #tpu.pipeline_mode<synchronous>, transform_indices = @transform_3, window_bounds = array<i64: 40, 32>}, {pipeline_mode = #tpu.pipeline_mode<synchronous>, transform_indices = @transform_4, window_bounds = array<i64: 32, 32>}, {pipeline_mode = #tpu.pipeline_mode<synchronous>, transform_indices = @transform_5, window_bounds = array<i64: 16, 32>}, {pipeline_mode = #tpu.pipeline_mode<synchronous>, transform_indices = @transform_6, window_bounds = array<i64: 1, 32>}, {pipeline_mode = #tpu.pipeline_mode<synchronous>, transform_indices = @transform_7, window_bounds = array<i64: 32, 32>}, {pipeline_mode = #tpu.pipeline_mode<synchronous>, transform_indices = @transform_8, window_bounds = array<i64: 32, 32>}, {pipeline_mode = #tpu.pipeline_mode<synchronous>, transform_indices = @transform_9, window_bounds = array<i64: 1, 32>}, {pipeline_mode = #tpu.pipeline_mode<synchronous>, transform_indices = @transform_10, window_bounds = array<i64: 40, 1>}, {pipeline_mode = #tpu.pipeline_mode<synchronous>, transform_indices = @transform_11, window_bounds = array<i64: 40, 32>}]} {
    %c0_i32 = arith.constant 0 : i32
    %0 = arith.cmpi eq, %arg0, %c0_i32 : i32
    %1 = arith.extui %0 : i1 to i32
    %c0_i32_0 = arith.constant 0 : i32
    %2 = arith.cmpi ne, %1, %c0_i32_0 : i32
    scf.if %2 {
      %cst_26 = arith.constant 0.000000e+00 : f32
      %35 = vector.broadcast %cst_26 : f32 to vector<41x32xf32>
      %c0_27 = arith.constant 0 : index
      %c0_28 = arith.constant 0 : index
      %36 = vector.load %arg13[%c0_27, %c0_28] : memref<41x32xf32, #tpu.memory_space<vmem>>, vector<41x32xf32>
      tpu.vector_store %arg13[%c0_27, %c0_28], %35 {strides = array<i32>} : memref<41x32xf32, #tpu.memory_space<vmem>>, vector<41x32xf32>,
    } else {
    }
    %c0 = arith.constant 0 : index
    %c0_1 = arith.constant 0 : index
    %3 = vector.load %arg1[%c0, %c0_1] : memref<128x1xi32, #tpu.memory_space<vmem>>, vector<128x1xi32>
    %4 = tpu.iota {dimensions = array<i32: 1>} : vector<128x40xi32>
    %5 = vector.broadcast %3 : vector<128x1xi32> to vector<128x40xi32>
    %6 = arith.cmpi eq, %5, %4 : vector<128x40xi32>
    %cst = arith.constant 1.000000e+00 : f32
    %cst_2 = arith.constant 0.000000e+00 : f32
    %7 = vector.broadcast %cst : f32 to vector<128x40xf32>
    %8 = vector.broadcast %cst_2 : f32 to vector<128x40xf32>
    %9 = arith.select %6, %7, %8 : vector<128x40xi1>, vector<128x40xf32>
    %c0_3 = arith.constant 0 : index
    %c0_4 = arith.constant 0 : index
    %10 = vector.load %arg4[%c0_3, %c0_4] : memref<40x32xf32, #tpu.memory_space<vmem>>, vector<40x32xf32>
    %cst_5 = arith.constant dense<0.000000e+00> : vector<128x32xf32>
    %11 = tpu.matmul %9, %10, %cst_5 {dimension_numbers = #tpu.dot_dimension_numbers<[1], [0], [0], [1], [0, 0, 1, 1], [], []>} : vector<128x40xf32>, vector<40x32xf32>, vector<128x32xf32> -> vector<128x32xf32>
    %c0_6 = arith.constant 0 : index
    %c0_7 = arith.constant 0 : index
    %12 = vector.load %arg5[%c0_6, %c0_7] : memref<32x32xf32, #tpu.memory_space<vmem>>, vector<32x32xf32>
    %cst_8 = arith.constant dense<0.000000e+00> : vector<128x32xf32>
    %13 = tpu.matmul %11, %12, %cst_8 {dimension_numbers = #tpu.dot_dimension_numbers<[1], [0], [0], [1], [0, 0, 1, 1], [], []>} : vector<128x32xf32>, vector<32x32xf32>, vector<128x32xf32> -> vector<128x32xf32>
    %c0_9 = arith.constant 0 : index
    %c0_10 = arith.constant 0 : index
    %14 = vector.load %arg3[%c0_9, %c0_10] : memref<128x16xf32, #tpu.memory_space<vmem>>, vector<128x16xf32>
    %c0_11 = arith.constant 0 : index
    %c0_12 = arith.constant 0 : index
    %15 = vector.load %arg6[%c0_11, %c0_12] : memref<16x32xf32, #tpu.memory_space<vmem>>, vector<16x32xf32>
    %cst_13 = arith.constant dense<0.000000e+00> : vector<128x32xf32>
    %16 = tpu.matmul %14, %15, %cst_13 {dimension_numbers = #tpu.dot_dimension_numbers<[1], [0], [0], [1], [0, 0, 1, 1], [], []>} : vector<128x16xf32>, vector<16x32xf32>, vector<128x32xf32> -> vector<128x32xf32>
    %17 = arith.addf %13, %16 : vector<128x32xf32>
    %c0_14 = arith.constant 0 : index
    %c0_15 = arith.constant 0 : index
    %18 = vector.load %arg7[%c0_14, %c0_15] : memref<1x32xf32, #tpu.memory_space<vmem>>, vector<1x32xf32>
    %19 = vector.broadcast %18 : vector<1x32xf32> to vector<128x32xf32>
    %20 = arith.addf %17, %19 : vector<128x32xf32>
    %c0_16 = arith.constant 0 : index
    %c0_17 = arith.constant 0 : index
    %21 = vector.load %arg2[%c0_16, %c0_17] : memref<1x128xi32, #tpu.memory_space<vmem>>, vector<1x128xi32>
    %22 = tpu.iota {dimensions = array<i32: 0>} : vector<41x128xi32>
    %23 = vector.broadcast %21 : vector<1x128xi32> to vector<41x128xi32>
    %24 = arith.cmpi eq, %22, %23 : vector<41x128xi32>
    %cst_18 = arith.constant 1.000000e+00 : f32
    %cst_19 = arith.constant 0.000000e+00 : f32
    %25 = vector.broadcast %cst_18 : f32 to vector<41x128xf32>
    %26 = vector.broadcast %cst_19 : f32 to vector<41x128xf32>
    %27 = arith.select %24, %25, %26 : vector<41x128xi1>, vector<41x128xf32>
    %c0_20 = arith.constant 0 : index
    %c0_21 = arith.constant 0 : index
    %28 = vector.load %arg13[%c0_20, %c0_21] : memref<41x32xf32, #tpu.memory_space<vmem>>, vector<41x32xf32>
    %cst_22 = arith.constant dense<0.000000e+00> : vector<41x32xf32>
    %29 = tpu.matmul %27, %20, %cst_22 {dimension_numbers = #tpu.dot_dimension_numbers<[1], [0], [0], [1], [0, 0, 1, 1], [], []>} : vector<41x128xf32>, vector<128x32xf32>, vector<41x32xf32> -> vector<41x32xf32>
    %30 = arith.addf %28, %29 : vector<41x32xf32>
    %c0_23 = arith.constant 0 : index
    %c0_24 = arith.constant 0 : index
    %31 = vector.load %arg13[%c0_23, %c0_24] : memref<41x32xf32, #tpu.memory_space<vmem>>, vector<41x32xf32>
    tpu.vector_store %arg13[%c0_23, %c0_24], %30 {strides = array<i32>} : memref<41x32xf32, #tpu.memory_space<vmem>>, vector<41x32xf32>,
    %c2_i32 = arith.constant 2 : i32
    %32 = arith.cmpi eq, %arg0, %c2_i32 : i32
    %33 = arith.extui %32 : i1 to i32
    %c0_i32_25 = arith.constant 0 : i32
    %34 = arith.cmpi ne, %33, %c0_i32_25 : i32
    scf.if %34 {
      %c0_26 = arith.constant 0 : index
      %c0_27 = arith.constant 0 : index
      %35 = vector.load %arg13[%c0_26, %c0_27] : memref<41x32xf32, #tpu.memory_space<vmem>>, vector<40x32xf32>
      %c0_28 = arith.constant 0 : index
      %c0_29 = arith.constant 0 : index
      %36 = vector.load %arg11[%c0_28, %c0_29] : memref<40x1xf32, #tpu.memory_space<vmem>>, vector<40x1xf32>
      %37 = vector.broadcast %36 : vector<40x1xf32> to vector<40x32xf32>
      %38 = arith.mulf %35, %37 : vector<40x32xf32>
      %c0_30 = arith.constant 0 : index
      %c0_31 = arith.constant 0 : index
      %39 = vector.load %arg4[%c0_30, %c0_31] : memref<40x32xf32, #tpu.memory_space<vmem>>, vector<40x32xf32>
      %c0_32 = arith.constant 0 : index
      %c0_33 = arith.constant 0 : index
      %40 = vector.load %arg8[%c0_32, %c0_33] : memref<32x32xf32, #tpu.memory_space<vmem>>, vector<32x32xf32>
      %cst_34 = arith.constant dense<0.000000e+00> : vector<40x32xf32>
      %41 = tpu.matmul %39, %40, %cst_34 {dimension_numbers = #tpu.dot_dimension_numbers<[1], [0], [0], [1], [0, 0, 1, 1], [], []>} : vector<40x32xf32>, vector<32x32xf32>, vector<40x32xf32> -> vector<40x32xf32>
      %c0_35 = arith.constant 0 : index
      %c0_36 = arith.constant 0 : index
      %42 = vector.load %arg9[%c0_35, %c0_36] : memref<32x32xf32, #tpu.memory_space<vmem>>, vector<32x32xf32>
      %cst_37 = arith.constant dense<0.000000e+00> : vector<40x32xf32>
      %43 = tpu.matmul %38, %42, %cst_37 {dimension_numbers = #tpu.dot_dimension_numbers<[1], [0], [0], [1], [0, 0, 1, 1], [], []>} : vector<40x32xf32>, vector<32x32xf32>, vector<40x32xf32> -> vector<40x32xf32>
      %44 = arith.addf %41, %43 : vector<40x32xf32>
      %c0_38 = arith.constant 0 : index
      %c0_39 = arith.constant 0 : index
      %45 = vector.load %arg10[%c0_38, %c0_39] : memref<1x32xf32, #tpu.memory_space<vmem>>, vector<1x32xf32>
      %46 = vector.broadcast %45 : vector<1x32xf32> to vector<40x32xf32>
      %47 = arith.addf %44, %46 : vector<40x32xf32>
      %cst_40 = arith.constant 0.000000e+00 : f32
      %48 = vector.broadcast %cst_40 : f32 to vector<40x32xf32>
      %49 = arith.maximumf %47, %48 : vector<40x32xf32>
      %c0_41 = arith.constant 0 : index
      %c0_42 = arith.constant 0 : index
      %50 = vector.load %arg12[%c0_41, %c0_42] : memref<40x32xf32, #tpu.memory_space<vmem>>, vector<40x32xf32>
      tpu.vector_store %arg12[%c0_41, %c0_42], %49 {strides = array<i32>} : memref<40x32xf32, #tpu.memory_space<vmem>>, vector<40x32xf32>,
    } else {
    }
    return
  }
  func.func @transform_0(%arg0: i32) -> (i32, i32) {
    %c0_i32 = arith.constant 0 : i32
    %c0_i32_0 = arith.constant 0 : i32
    return %arg0, %c0_i32 : i32, i32
  }
  func.func @transform_1(%arg0: i32) -> (i32, i32) {
    %c0_i32 = arith.constant 0 : i32
    %c0_i32_0 = arith.constant 0 : i32
    return %c0_i32, %arg0 : i32, i32
  }
  func.func @transform_2(%arg0: i32) -> (i32, i32) {
    %c0_i32 = arith.constant 0 : i32
    %c0_i32_0 = arith.constant 0 : i32
    return %arg0, %c0_i32 : i32, i32
  }
  func.func @transform_3(%arg0: i32) -> (i32, i32) {
    %c0_i32 = arith.constant 0 : i32
    %c0_i32_0 = arith.constant 0 : i32
    %c0_i32_1 = arith.constant 0 : i32
    return %c0_i32, %c0_i32_0 : i32, i32
  }
  func.func @transform_4(%arg0: i32) -> (i32, i32) {
    %c0_i32 = arith.constant 0 : i32
    %c0_i32_0 = arith.constant 0 : i32
    %c0_i32_1 = arith.constant 0 : i32
    return %c0_i32, %c0_i32_0 : i32, i32
  }
  func.func @transform_5(%arg0: i32) -> (i32, i32) {
    %c0_i32 = arith.constant 0 : i32
    %c0_i32_0 = arith.constant 0 : i32
    %c0_i32_1 = arith.constant 0 : i32
    return %c0_i32, %c0_i32_0 : i32, i32
  }
  func.func @transform_6(%arg0: i32) -> (i32, i32) {
    %c0_i32 = arith.constant 0 : i32
    %c0_i32_0 = arith.constant 0 : i32
    %c0_i32_1 = arith.constant 0 : i32
    return %c0_i32, %c0_i32_0 : i32, i32
  }
  func.func @transform_7(%arg0: i32) -> (i32, i32) {
    %c0_i32 = arith.constant 0 : i32
    %c0_i32_0 = arith.constant 0 : i32
    %c0_i32_1 = arith.constant 0 : i32
    return %c0_i32, %c0_i32_0 : i32, i32
  }
  func.func @transform_8(%arg0: i32) -> (i32, i32) {
    %c0_i32 = arith.constant 0 : i32
    %c0_i32_0 = arith.constant 0 : i32
    %c0_i32_1 = arith.constant 0 : i32
    return %c0_i32, %c0_i32_0 : i32, i32
  }
  func.func @transform_9(%arg0: i32) -> (i32, i32) {
    %c0_i32 = arith.constant 0 : i32
    %c0_i32_0 = arith.constant 0 : i32
    %c0_i32_1 = arith.constant 0 : i32
    return %c0_i32, %c0_i32_0 : i32, i32
  }
  func.func @transform_10(%arg0: i32) -> (i32, i32) {
    %c0_i32 = arith.constant 0 : i32
    %c0_i32_0 = arith.constant 0 : i32
    %c0_i32_1 = arith.constant 0 : i32
    return %c0_i32, %c0_i32_0 : i32, i32
  }
  func.func @transform_11(%arg0: i32) -> (i32, i32) {
    %c0_i32 = arith.constant 0 : i32
    %c0_i32_0 = arith.constant 0 : i32
    %c0_i32_1 = arith.constant 0 : i32
    return %c0_i32, %c0_i32_0 : i32, i32
  }
}

module attributes {stable_mosaic.version = 11 : i64} {
  func.func @_predictor_kernel(%arg0: i32, %arg1: memref<128x1xi32, #tpu.memory_space<vmem>>, %arg2: memref<128x1xi32, #tpu.memory_space<vmem>>, %arg3: memref<40x8xf32, #tpu.memory_space<vmem>>, %arg4: memref<8x128xf32, #tpu.memory_space<vmem>>, %arg5: memref<8x128xf32, #tpu.memory_space<vmem>>, %arg6: memref<1x128xf32, #tpu.memory_space<vmem>>, %arg7: memref<128x2xf32, #tpu.memory_space<vmem>>) attributes {dimension_semantics = [#tpu.dimension_semantics<parallel>], iteration_bounds = array<i64: 3>, scalar_prefetch = 0 : i64, scratch_operands = 0 : i64, tpu.core_type = #tpu.core_type<tc>, window_params = [{transform_indices = @transform_0, window_bounds = array<i64: 128, 1>}, {transform_indices = @transform_1, window_bounds = array<i64: 128, 1>}, {pipeline_mode = #tpu.pipeline_mode<synchronous>, transform_indices = @transform_2, window_bounds = array<i64: 40, 8>}, {pipeline_mode = #tpu.pipeline_mode<synchronous>, transform_indices = @transform_3, window_bounds = array<i64: 8, 128>}, {pipeline_mode = #tpu.pipeline_mode<synchronous>, transform_indices = @transform_4, window_bounds = array<i64: 8, 128>}, {pipeline_mode = #tpu.pipeline_mode<synchronous>, transform_indices = @transform_5, window_bounds = array<i64: 1, 128>}, {transform_indices = @transform_6, window_bounds = array<i64: 128, 2>}]} {
    %0 = tpu.iota {dimensions = array<i32: 1>} : vector<128x40xi32>
    %c0 = arith.constant 0 : index
    %c0_0 = arith.constant 0 : index
    %1 = vector.load %arg1[%c0, %c0_0] : memref<128x1xi32, #tpu.memory_space<vmem>>, vector<128x1xi32>
    %2 = vector.broadcast %1 : vector<128x1xi32> to vector<128x40xi32>
    %3 = arith.cmpi eq, %2, %0 : vector<128x40xi32>
    %cst = arith.constant 1.000000e+00 : f32
    %cst_1 = arith.constant 0.000000e+00 : f32
    %4 = vector.broadcast %cst : f32 to vector<128x40xf32>
    %5 = vector.broadcast %cst_1 : f32 to vector<128x40xf32>
    %6 = arith.select %3, %4, %5 : vector<128x40xi1>, vector<128x40xf32>
    %c0_2 = arith.constant 0 : index
    %c0_3 = arith.constant 0 : index
    %7 = vector.load %arg2[%c0_2, %c0_3] : memref<128x1xi32, #tpu.memory_space<vmem>>, vector<128x1xi32>
    %8 = vector.broadcast %7 : vector<128x1xi32> to vector<128x40xi32>
    %9 = arith.cmpi eq, %8, %0 : vector<128x40xi32>
    %cst_4 = arith.constant 1.000000e+00 : f32
    %cst_5 = arith.constant 0.000000e+00 : f32
    %10 = vector.broadcast %cst_4 : f32 to vector<128x40xf32>
    %11 = vector.broadcast %cst_5 : f32 to vector<128x40xf32>
    %12 = arith.select %9, %10, %11 : vector<128x40xi1>, vector<128x40xf32>
    %c0_6 = arith.constant 0 : index
    %c0_7 = arith.constant 0 : index
    %13 = vector.load %arg3[%c0_6, %c0_7] : memref<40x8xf32, #tpu.memory_space<vmem>>, vector<40x8xf32>
    %cst_8 = arith.constant dense<0.000000e+00> : vector<128x8xf32>
    %14 = tpu.matmul %6, %13, %cst_8 {dimension_numbers = #tpu.dot_dimension_numbers<[1], [0], [0], [1], [0, 0, 1, 1], [], []>} : vector<128x40xf32>, vector<40x8xf32>, vector<128x8xf32> -> vector<128x8xf32>
    %c0_9 = arith.constant 0 : index
    %c0_10 = arith.constant 0 : index
    %15 = vector.load %arg3[%c0_9, %c0_10] : memref<40x8xf32, #tpu.memory_space<vmem>>, vector<40x8xf32>
    %cst_11 = arith.constant dense<0.000000e+00> : vector<128x8xf32>
    %16 = tpu.matmul %12, %15, %cst_11 {dimension_numbers = #tpu.dot_dimension_numbers<[1], [0], [0], [1], [0, 0, 1, 1], [], []>} : vector<128x40xf32>, vector<40x8xf32>, vector<128x8xf32> -> vector<128x8xf32>
    %c0_12 = arith.constant 0 : index
    %c0_13 = arith.constant 0 : index
    %17 = vector.load %arg4[%c0_12, %c0_13] : memref<8x128xf32, #tpu.memory_space<vmem>>, vector<8x128xf32>
    %cst_14 = arith.constant dense<0.000000e+00> : vector<128x128xf32>
    %18 = tpu.matmul %14, %17, %cst_14 {dimension_numbers = #tpu.dot_dimension_numbers<[1], [0], [0], [1], [0, 0, 1, 1], [], []>} : vector<128x8xf32>, vector<8x128xf32>, vector<128x128xf32> -> vector<128x128xf32>
    %c0_15 = arith.constant 0 : index
    %c0_16 = arith.constant 0 : index
    %19 = vector.load %arg5[%c0_15, %c0_16] : memref<8x128xf32, #tpu.memory_space<vmem>>, vector<8x128xf32>
    %cst_17 = arith.constant dense<0.000000e+00> : vector<128x128xf32>
    %20 = tpu.matmul %16, %19, %cst_17 {dimension_numbers = #tpu.dot_dimension_numbers<[1], [0], [0], [1], [0, 0, 1, 1], [], []>} : vector<128x8xf32>, vector<8x128xf32>, vector<128x128xf32> -> vector<128x128xf32>
    %21 = arith.addf %18, %20 : vector<128x128xf32>
    %c0_18 = arith.constant 0 : index
    %c0_19 = arith.constant 0 : index
    %22 = vector.load %arg6[%c0_18, %c0_19] : memref<1x128xf32, #tpu.memory_space<vmem>>, vector<1x128xf32>
    %23 = vector.broadcast %22 : vector<1x128xf32> to vector<128x128xf32>
    %24 = arith.addf %21, %23 : vector<128x128xf32>
    %25 = vector.extract_strided_slice %24 {offsets = [0, 0], sizes = [128, 2], strides = [1, 1]} : vector<128x128xf32> to vector<128x2xf32>
    %c0_20 = arith.constant 0 : index
    %c0_21 = arith.constant 0 : index
    %26 = vector.load %arg7[%c0_20, %c0_21] : memref<128x2xf32, #tpu.memory_space<vmem>>, vector<128x2xf32>
    tpu.vector_store %arg7[%c0_20, %c0_21], %25 {strides = array<i32>} : memref<128x2xf32, #tpu.memory_space<vmem>>, vector<128x2xf32>,
    return
  }
  func.func @transform_0(%arg0: i32) -> (i32, i32) {
    %c0_i32 = arith.constant 0 : i32
    %c0_i32_0 = arith.constant 0 : i32
    return %arg0, %c0_i32 : i32, i32
  }
  func.func @transform_1(%arg0: i32) -> (i32, i32) {
    %c0_i32 = arith.constant 0 : i32
    %c0_i32_0 = arith.constant 0 : i32
    return %arg0, %c0_i32 : i32, i32
  }
  func.func @transform_2(%arg0: i32) -> (i32, i32) {
    %c0_i32 = arith.constant 0 : i32
    %c0_i32_0 = arith.constant 0 : i32
    %c0_i32_1 = arith.constant 0 : i32
    return %c0_i32, %c0_i32_0 : i32, i32
  }
  func.func @transform_3(%arg0: i32) -> (i32, i32) {
    %c0_i32 = arith.constant 0 : i32
    %c0_i32_0 = arith.constant 0 : i32
    %c0_i32_1 = arith.constant 0 : i32
    return %c0_i32, %c0_i32_0 : i32, i32
  }
  func.func @transform_4(%arg0: i32) -> (i32, i32) {
    %c0_i32 = arith.constant 0 : i32
    %c0_i32_0 = arith.constant 0 : i32
    %c0_i32_1 = arith.constant 0 : i32
    return %c0_i32, %c0_i32_0 : i32, i32
  }
  func.func @transform_5(%arg0: i32) -> (i32, i32) {
    %c0_i32 = arith.constant 0 : i32
    %c0_i32_0 = arith.constant 0 : i32
    %c0_i32_1 = arith.constant 0 : i32
    return %c0_i32, %c0_i32_0 : i32, i32
  }
  func.func @transform_6(%arg0: i32) -> (i32, i32) {
    %c0_i32 = arith.constant 0 : i32
    %c0_i32_0 = arith.constant 0 : i32
    return %arg0, %c0_i32 : i32, i32
  }
}

</mosaic_0001>

<llo_original>
// kernel: model_forward.6
$region0: #{model_forward.6}
  #allocation0 [shape = 'u32[]', space=smem, size = 0x4, offset = 0x4, fixed_abs, tag = 'smem constant byte address 0x4 - core index']
  #allocation1 [shape = 'u32[144,128]{1,0:T(1,128)}', space=vmem, size = 0x12000, scoped, tag = 'internal scratch']
  #allocation2 [shape = 'f32[41,16]{1,0:T(8,128)}', space=vmem, size = 0x6000, scoped, tag = 'scratch operand']
  %s0 = inlined_call_operand.vmem [shape: s32[384,1], index: 0, kind: input, shape index: {}]
  %s1 = inlined_call_operand.vmem [shape: s32[1,384], index: 1, kind: input, shape index: {}]
  %s2 = inlined_call_operand.vmem [shape: f32[384,16], index: 2, kind: input, shape index: {}]
  %s3 = inlined_call_operand.vmem [shape: f32[40,32], index: 3, kind: input, shape index: {}]
  %s4 = inlined_call_operand.vmem [shape: f32[32,16], index: 4, kind: input, shape index: {}]
  %s5 = inlined_call_operand.vmem [shape: f32[16,16], index: 5, kind: input, shape index: {}]
  %s6 = inlined_call_operand.vmem [shape: f32[1,16], index: 6, kind: input, shape index: {}]
  %s7 = inlined_call_operand.vmem [shape: f32[32,16], index: 7, kind: input, shape index: {}]
  %s8 = inlined_call_operand.vmem [shape: f32[16,16], index: 8, kind: input, shape index: {}]
  %s9 = inlined_call_operand.vmem [shape: f32[1,16], index: 9, kind: input, shape index: {}]
  %s10 = inlined_call_operand.vmem [shape: f32[40,1], index: 10, kind: input, shape index: {}]
  %s11 = inlined_call_operand.vmem [shape: f32[40,16], index: 11, kind: output, shape index: {}]
  %s12 = sld [smem:[#allocation0]]
  $region85: #{model_forward.6} parent=0
    _
  %s14 = ssub.s32 1, %s12
  %s15 = scalar_select 0, %s14, %s12
  loop: start=0, step=1, limit=5
  $region2: #{model_forward.6} parent=0 // loop_pre_header
    _
  $region3: #{model_forward.6} parent=0 // loop_header
    %s17 = sphi 0, %s21
    %p18 = scmp.ge.s32.totalorder %s17, 5
    %s27 = sphi 0, %s29
    %s30 = sphi 0, %s27
    %s31 = sphi 0, %s30
    %s47 = sphi 0, %s31
    %s53 = sphi 0, %s55
    %s56 = sphi 0, %s53
    %s57 = sphi 0, %s56
    %s73 = sphi 0, %s57
    %s79 = sphi 0, %s81
    %s82 = sphi 0, %s79
    %s83 = sphi 0, %s82
    %s99 = sphi 0, %s83
    %s103 = sphi 0, %s103
    %s105 = sphi 0, %s103
    %s106 = sphi 0, %s105
    %s120 = sphi 0, %s106
    %s124 = sphi 0, %s124
    %s126 = sphi 0, %s124
    %s127 = sphi 0, %s126
    %s141 = sphi 0, %s127
    %s145 = sphi 0, %s145
    %s147 = sphi 0, %s145
    %s148 = sphi 0, %s147
    %s162 = sphi 0, %s148
    %s166 = sphi 0, %s166
    %s168 = sphi 0, %s166
    %s169 = sphi 0, %s168
    %s183 = sphi 0, %s169
    %s187 = sphi 0, %s187
    %s189 = sphi 0, %s187
    %s190 = sphi 0, %s189
    %s204 = sphi 0, %s190
    %s208 = sphi 0, %s208
    %s210 = sphi 0, %s208
    %s211 = sphi 0, %s210
    %s225 = sphi 0, %s211
    %s229 = sphi 0, %s229
    %s231 = sphi 0, %s229
    %s232 = sphi 0, %s231
    %s246 = sphi 0, %s232
    %s250 = sphi 0, %s250
    %s252 = sphi 0, %s250
    %s253 = sphi 0, %s252
    %s267 = sphi 0, %s253
    %s271 = sphi 0, %s271
    %s273 = sphi 0, %s271
    %s274 = sphi 0, %s273
    %s288 = sphi 0, %s274
  $region4: #{model_forward.6} parent=0 // loop_header_branch
    %20 = sbr.rel (%p18) target = $region8
  $region5: #{model_forward.6} parent=0 // loop_body
    %s22 = ssub.s32 %s17, 1
    %s23 = ssub.s32 %s17, 2
    %s24 = sadd.s32 %s17, 1
    %s25 = ssub.s32 %s17, %s24
    %p26 = scmp.eq.s32.totalorder %s25, 0
    %s28 = sadd.s32 %s27, 1
    %s29 = scalar_select %p26, %s27, %s28
    %p32 = pneg %p26
    %p33 = scmp.eq.s32.totalorder %s17, 2
    %p34 = por %p32, %p33
    %p35 = scmp.ne.s32.totalorder %s27, %s30
    %p36 = scmp.eq.s32.totalorder %s17, 0
    %p37 = por %p35, %p36
    %p38 = scmp.ne.s32.totalorder %s27, %s30
    %p39 = scmp.eq.s32.totalorder %s22, 2
    %p40 = por %p38, %p39
    %p41 = scmp.ne.s32.totalorder %s30, %s31
    %p42 = scmp.eq.s32.totalorder %s22, 0
    %p43 = por %p41, %p42
    %p44 = scmp.ne.s32.totalorder %s30, %s31
    %p45 = scmp.eq.s32.totalorder %s23, 2
    %p46 = por %p44, %p45
    %p48 = scmp.ne.s32.totalorder %s31, %s47
    %p49 = scmp.eq.s32.totalorder %s23, 0
    %p50 = por %p48, %p49
    %s51 = ssub.s32 %s17, %s24
    %p52 = scmp.eq.s32.totalorder %s51, 0
    %s54 = sadd.s32 %s53, 1
    %s55 = scalar_select %p52, %s53, %s54
    %p58 = pneg %p52
    %p59 = scmp.eq.s32.totalorder %s17, 2
    %p60 = por %p58, %p59
    %p61 = scmp.ne.s32.totalorder %s53, %s56
    %p62 = scmp.eq.s32.totalorder %s17, 0
    %p63 = por %p61, %p62
    %p64 = scmp.ne.s32.totalorder %s53, %s56
    %p65 = scmp.eq.s32.totalorder %s22, 2
    %p66 = por %p64, %p65
    %p67 = scmp.ne.s32.totalorder %s56, %s57
    %p68 = scmp.eq.s32.totalorder %s22, 0
    %p69 = por %p67, %p68
    %p70 = scmp.ne.s32.totalorder %s56, %s57
    %p71 = scmp.eq.s32.totalorder %s23, 2
    %p72 = por %p70, %p71
    %p74 = scmp.ne.s32.totalorder %s57, %s73
    %p75 = scmp.eq.s32.totalorder %s23, 0
    %p76 = por %p74, %p75
    %s77 = ssub.s32 %s17, %s24
    %p78 = scmp.eq.s32.totalorder %s77, 0
    %s80 = sadd.s32 %s79, 1
    %s81 = scalar_select %p78, %s79, %s80
    %p84 = pneg %p78
    %p85 = scmp.eq.s32.totalorder %s17, 2
    %p86 = por %p84, %p85
    %p87 = scmp.ne.s32.totalorder %s79, %s82
    %p88 = scmp.eq.s32.totalorder %s17, 0
    %p89 = por %p87, %p88
    %p90 = scmp.ne.s32.totalorder %s79, %s82
    %p91 = scmp.eq.s32.totalorder %s22, 2
    %p92 = por %p90, %p91
    %p93 = scmp.ne.s32.totalorder %s82, %s83
    %p94 = scmp.eq.s32.totalorder %s22, 0
    %p95 = por %p93, %p94
    %p96 = scmp.ne.s32.totalorder %s82, %s83
    %p97 = scmp.eq.s32.totalorder %s23, 2
    %p98 = por %p96, %p97
    %p100 = scmp.ne.s32.totalorder %s83, %s99
    %p101 = scmp.eq.s32.totalorder %s23, 0
    %p102 = por %p100, %p101
    %s104 = sadd.s32 %s103, 1
    %p107 = scmp.eq.s32.totalorder %s17, 2
    %p108 = scmp.ne.s32.totalorder %s103, %s105
    %p109 = scmp.eq.s32.totalorder %s17, 0
    %p110 = por %p108, %p109
    %p111 = scmp.ne.s32.totalorder %s103, %s105
    %p112 = scmp.eq.s32.totalorder %s22, 2
    %p113 = por %p111, %p112
    %p114 = scmp.ne.s32.totalorder %s105, %s106
    %p115 = scmp.eq.s32.totalorder %s22, 0
    %p116 = por %p114, %p115
    %p117 = scmp.ne.s32.totalorder %s105, %s106
    %p118 = scmp.eq.s32.totalorder %s23, 2
    %p119 = por %p117, %p118
    %p121 = scmp.ne.s32.totalorder %s106, %s120
    %p122 = scmp.eq.s32.totalorder %s23, 0
    %p123 = por %p121, %p122
    %s125 = sadd.s32 %s124, 1
    %p128 = scmp.eq.s32.totalorder %s17, 2
    %p129 = scmp.ne.s32.totalorder %s124, %s126
    %p130 = scmp.eq.s32.totalorder %s17, 0
    %p131 = por %p129, %p130
    %p132 = scmp.ne.s32.totalorder %s124, %s126
    %p133 = scmp.eq.s32.totalorder %s22, 2
    %p134 = por %p132, %p133
    %p135 = scmp.ne.s32.totalorder %s126, %s127
    %p136 = scmp.eq.s32.totalorder %s22, 0
    %p137 = por %p135, %p136
    %p138 = scmp.ne.s32.totalorder %s126, %s127
    %p139 = scmp.eq.s32.totalorder %s23, 2
    %p140 = por %p138, %p139
    %p142 = scmp.ne.s32.totalorder %s127, %s141
    %p143 = scmp.eq.s32.totalorder %s23, 0
    %p144 = por %p142, %p143
    %s146 = sadd.s32 %s145, 1
    %p149 = scmp.eq.s32.totalorder %s17, 2
    %p150 = scmp.ne.s32.totalorder %s145, %s147
    %p151 = scmp.eq.s32.totalorder %s17, 0
    %p152 = por %p150, %p151
    %p153 = scmp.ne.s32.totalorder %s145, %s147
    %p154 = scmp.eq.s32.totalorder %s22, 2
    %p155 = por %p153, %p154
    %p156 = scmp.ne.s32.totalorder %s147, %s148
    %p157 = scmp.eq.s32.totalorder %s22, 0
    %p158 = por %p156, %p157
    %p159 = scmp.ne.s32.totalorder %s147, %s148
    %p160 = scmp.eq.s32.totalorder %s23, 2
    %p161 = por %p159, %p160
    %p163 = scmp.ne.s32.totalorder %s148, %s162
    %p164 = scmp.eq.s32.totalorder %s23, 0
    %p165 = por %p163, %p164
    %s167 = sadd.s32 %s166, 1
    %p170 = scmp.eq.s32.totalorder %s17, 2
    %p171 = scmp.ne.s32.totalorder %s166, %s168
    %p172 = scmp.eq.s32.totalorder %s17, 0
    %p173 = por %p171, %p172
    %p174 = scmp.ne.s32.totalorder %s166, %s168
    %p175 = scmp.eq.s32.totalorder %s22, 2
    %p176 = por %p174, %p175
    %p177 = scmp.ne.s32.totalorder %s168, %s169
    %p178 = scmp.eq.s32.totalorder %s22, 0
    %p179 = por %p177, %p178
    %p180 = scmp.ne.s32.totalorder %s168, %s169
    %p181 = scmp.eq.s32.totalorder %s23, 2
    %p182 = por %p180, %p181
    %p184 = scmp.ne.s32.totalorder %s169, %s183
    %p185 = scmp.eq.s32.totalorder %s23, 0
    %p186 = por %p184, %p185
    %s188 = sadd.s32 %s187, 1
    %p191 = scmp.eq.s32.totalorder %s17, 2
    %p192 = scmp.ne.s32.totalorder %s187, %s189
    %p193 = scmp.eq.s32.totalorder %s17, 0
    %p194 = por %p192, %p193
    %p195 = scmp.ne.s32.totalorder %s187, %s189
    %p196 = scmp.eq.s32.totalorder %s22, 2
    %p197 = por %p195, %p196
    %p198 = scmp.ne.s32.totalorder %s189, %s190
    %p199 = scmp.eq.s32.totalorder %s22, 0
    %p200 = por %p198, %p199
    %p201 = scmp.ne.s32.totalorder %s189, %s190
    %p202 = scmp.eq.s32.totalorder %s23, 2
    %p203 = por %p201, %p202
    %p205 = scmp.ne.s32.totalorder %s190, %s204
    %p206 = scmp.eq.s32.totalorder %s23, 0
    %p207 = por %p205, %p206
    %s209 = sadd.s32 %s208, 1
    %p212 = scmp.eq.s32.totalorder %s17, 2
    %p213 = scmp.ne.s32.totalorder %s208, %s210
    %p214 = scmp.eq.s32.totalorder %s17, 0
    %p215 = por %p213, %p214
    %p216 = scmp.ne.s32.totalorder %s208, %s210
    %p217 = scmp.eq.s32.totalorder %s22, 2
    %p218 = por %p216, %p217
    %p219 = scmp.ne.s32.totalorder %s210, %s211
    %p220 = scmp.eq.s32.totalorder %s22, 0
    %p221 = por %p219, %p220
    %p222 = scmp.ne.s32.totalorder %s210, %s211
    %p223 = scmp.eq.s32.totalorder %s23, 2
    %p224 = por %p222, %p223
    %p226 = scmp.ne.s32.totalorder %s211, %s225
    %p227 = scmp.eq.s32.totalorder %s23, 0
    %p228 = por %p226, %p227
    %s230 = sadd.s32 %s229, 1
    %p233 = scmp.eq.s32.totalorder %s17, 2
    %p234 = scmp.ne.s32.totalorder %s229, %s231
    %p235 = scmp.eq.s32.totalorder %s17, 0
    %p236 = por %p234, %p235
    %p237 = scmp.ne.s32.totalorder %s229, %s231
    %p238 = scmp.eq.s32.totalorder %s22, 2
    %p239 = por %p237, %p238
    %p240 = scmp.ne.s32.totalorder %s231, %s232
    %p241 = scmp.eq.s32.totalorder %s22, 0
    %p242 = por %p240, %p241
    %p243 = scmp.ne.s32.totalorder %s231, %s232
    %p244 = scmp.eq.s32.totalorder %s23, 2
    %p245 = por %p243, %p244
    %p247 = scmp.ne.s32.totalorder %s232, %s246
    %p248 = scmp.eq.s32.totalorder %s23, 0
    %p249 = por %p247, %p248
    %s251 = sadd.s32 %s250, 1
    %p254 = scmp.eq.s32.totalorder %s17, 2
    %p255 = scmp.ne.s32.totalorder %s250, %s252
    %p256 = scmp.eq.s32.totalorder %s17, 0
    %p257 = por %p255, %p256
    %p258 = scmp.ne.s32.totalorder %s250, %s252
    %p259 = scmp.eq.s32.totalorder %s22, 2
    %p260 = por %p258, %p259
    %p261 = scmp.ne.s32.totalorder %s252, %s253
    %p262 = scmp.eq.s32.totalorder %s22, 0
    %p263 = por %p261, %p262
    %p264 = scmp.ne.s32.totalorder %s252, %s253
    %p265 = scmp.eq.s32.totalorder %s23, 2
    %p266 = por %p264, %p265
    %p268 = scmp.ne.s32.totalorder %s253, %s267
    %p269 = scmp.eq.s32.totalorder %s23, 0
    %p270 = por %p268, %p269
    %s272 = sadd.s32 %s271, 1
    %p275 = scmp.eq.s32.totalorder %s17, 2
    %p276 = scmp.ne.s32.totalorder %s271, %s273
    %p277 = scmp.eq.s32.totalorder %s17, 0
    %p278 = por %p276, %p277
    %p279 = scmp.ne.s32.totalorder %s271, %s273
    %p280 = scmp.eq.s32.totalorder %s22, 2
    %p281 = por %p279, %p280
    %p282 = scmp.ne.s32.totalorder %s273, %s274
    %p283 = scmp.eq.s32.totalorder %s22, 0
    %p284 = por %p282, %p283
    %p285 = scmp.ne.s32.totalorder %s273, %s274
    %p286 = scmp.eq.s32.totalorder %s23, 2
    %p287 = por %p285, %p286
    %p289 = scmp.ne.s32.totalorder %s274, %s288
    %p290 = scmp.eq.s32.totalorder %s23, 0
    %p291 = por %p289, %p290
    %p292 = scmp.le.s32.totalorder 1, %s17
    %p293 = scmp.lt.s32.totalorder %s17, 4
    %p294 = pnand %p292, %p293
    %p295 = pneg %p294
    // Predicated region
    $region9: #{model_forward.6} parent=5 // pred_check
      _
    $region10: #{model_forward.6} parent=5 // pred_check_branch
      %297 = sbr.rel (%p294) target = $region12
    $region11: #{model_forward.6} parent=5 // pred_region
      %s298 = ssub.s32 %s17, 1
      // Predicated region
      $region13: #{model_forward.6} parent=11 // pred_check
        %p299 = pneg %p116
      $region14: #{model_forward.6} parent=11 // pred_check_branch
        %301 = sbr.rel (%p299) target = $region16
      $region15: #{model_forward.6} parent=11 // pred_region
        _
      $region16: #{model_forward.6} parent=11 // pred_fallthru
        _
      // Predicated region
      $region17: #{model_forward.6} parent=11 // pred_check
        %p302 = pneg %p137
      $region18: #{model_forward.6} parent=11 // pred_check_branch
        %304 = sbr.rel (%p302) target = $region20
      $region19: #{model_forward.6} parent=11 // pred_region
        _
      $region20: #{model_forward.6} parent=11 // pred_fallthru
        _
      // Predicated region
      $region21: #{model_forward.6} parent=11 // pred_check
        %p305 = pneg %p158
      $region22: #{model_forward.6} parent=11 // pred_check_branch
        %307 = sbr.rel (%p305) target = $region24
      $region23: #{model_forward.6} parent=11 // pred_region
        _
      $region24: #{model_forward.6} parent=11 // pred_fallthru
        _
      // Predicated region
      $region25: #{model_forward.6} parent=11 // pred_check
        %p308 = pneg %p179
      $region26: #{model_forward.6} parent=11 // pred_check_branch
        %310 = sbr.rel (%p308) target = $region28
      $region27: #{model_forward.6} parent=11 // pred_region
        _
      $region28: #{model_forward.6} parent=11 // pred_fallthru
        _
      // Predicated region
      $region29: #{model_forward.6} parent=11 // pred_check
        %p311 = pneg %p200
      $region30: #{model_forward.6} parent=11 // pred_check_branch
        %313 = sbr.rel (%p311) target = $region32
      $region31: #{model_forward.6} parent=11 // pred_region
        _
      $region32: #{model_forward.6} parent=11 // pred_fallthru
        _
      // Predicated region
      $region33: #{model_forward.6} parent=11 // pred_check
        %p314 = pneg %p221
      $region34: #{model_forward.6} parent=11 // pred_check_branch
        %316 = sbr.rel (%p314) target = $region36
      $region35: #{model_forward.6} parent=11 // pred_region
        _
      $region36: #{model_forward.6} parent=11 // pred_fallthru
        _
      // Predicated region
      $region37: #{model_forward.6} parent=11 // pred_check
        %p317 = pneg %p242
      $region38: #{model_forward.6} parent=11 // pred_check_branch
        %319 = sbr.rel (%p317) target = $region40
      $region39: #{model_forward.6} parent=11 // pred_region
        _
      $region40: #{model_forward.6} parent=11 // pred_fallthru
        _
      // Predicated region
      $region41: #{model_forward.6} parent=11 // pred_check
        %p320 = pneg %p263
      $region42: #{model_forward.6} parent=11 // pred_check_branch
        %322 = sbr.rel (%p320) target = $region44
      $region43: #{model_forward.6} parent=11 // pred_region
        _
      $region44: #{model_forward.6} parent=11 // pred_fallthru
        _
    $region12: #{model_forward.6} parent=5 // pred_fallthru
      _
    %p323 = scmp.lt.s32.totalorder %s17, 3
    // Predicated region
    $region45: #{model_forward.6} parent=5 // pred_check
      %p324 = pneg %p323
    $region46: #{model_forward.6} parent=5 // pred_check_branch
      %326 = sbr.rel (%p324) target = $region48
    $region47: #{model_forward.6} parent=5 // pred_region
      // Predicated region
      $region49: #{model_forward.6} parent=47 // pred_check
        %p327 = pneg %p37
      $region50: #{model_forward.6} parent=47 // pred_check_branch
        %329 = sbr.rel (%p327) target = $region52
      $region51: #{model_forward.6} parent=47 // pred_region
        %s330 = smul.u32 16, %s17
        %p331 = scmp.lt.s32.totalorder %s330, 47
        %s332 = scalar_select %p331, %s330, 47
        %s333 = smul.addr %s332, 8
        %s334 = scalar_lea.vmem %s0, %s333
        %s335 = smul.u32 16, %s17
      $region52: #{model_forward.6} parent=47 // pred_fallthru
        _
      // Predicated region
      $region53: #{model_forward.6} parent=47 // pred_check
        %p336 = pneg %p63
      $region54: #{model_forward.6} parent=47 // pred_check_branch
        %338 = sbr.rel (%p336) target = $region56
      $region55: #{model_forward.6} parent=47 // pred_region
        %p339 = scmp.lt.s32.totalorder %s17, 2
        %s340 = scalar_select %p339, %s17, 2
        %s341 = scalar_lea.vmem %s1, %s340
      $region56: #{model_forward.6} parent=47 // pred_fallthru
        _
      // Predicated region
      $region57: #{model_forward.6} parent=47 // pred_check
        %p342 = pneg %p89
      $region58: #{model_forward.6} parent=47 // pred_check_branch
        %344 = sbr.rel (%p342) target = $region60
      $region59: #{model_forward.6} parent=47 // pred_region
        %s345 = smul.u32 16, %s17
        %p346 = scmp.lt.s32.totalorder %s345, 47
        %s347 = scalar_select %p346, %s345, 47
        %s348 = smul.addr %s347, 8
        %s349 = scalar_lea.vmem %s2, %s348
        %s350 = smul.u32 16, %s17
      $region60: #{model_forward.6} parent=47 // pred_fallthru
        _
    $region48: #{model_forward.6} parent=5 // pred_fallthru
      _
    %p351 = scmp.le.s32.totalorder 1, %s17
    %p352 = scmp.lt.s32.totalorder %s17, 4
    %p353 = pnand %p351, %p352
    %p354 = pneg %p353
    // Predicated region
    $region61: #{model_forward.6} parent=5 // pred_check
      _
    $region62: #{model_forward.6} parent=5 // pred_check_branch
      %356 = sbr.rel (%p353) target = $region64
    $region63: #{model_forward.6} parent=5 // pred_region
      %s357 = ssub.s32 %s17, 1
      %s358 = smul.u32 16, %s22
      %p359 = scmp.lt.s32.totalorder %s358, 47
      %s360 = scalar_select %p359, %s358, 47
      %s361 = smul.addr %s360, 8
      %s362 = scalar_lea.vmem %s0, %s361
      %p363 = pneg %p43
      %p364 = pneg %p40
      %p365 = scmp.lt.s32.totalorder %s22, 2
      %s366 = scalar_select %p365, %s22, 2
      %s367 = scalar_lea.vmem %s1, %s366
      %p368 = pneg %p69
      %p369 = pneg %p66
      %s370 = smul.u32 16, %s22
      %p371 = scmp.lt.s32.totalorder %s370, 47
      %s372 = scalar_select %p371, %s370, 47
      %s373 = smul.addr %s372, 8
      %s374 = scalar_lea.vmem %s2, %s373
      %p375 = pneg %p95
      %p376 = pneg %p92
      %p377 = pneg %p116
      %p378 = pneg %p113
      %p379 = pneg %p137
      %p380 = pneg %p134
      %p381 = pneg %p158
      %p382 = pneg %p155
      %p383 = pneg %p179
      %p384 = pneg %p176
      %p385 = pneg %p200
      %p386 = pneg %p197
      %p387 = pneg %p221
      %p388 = pneg %p218
      %p389 = pneg %p242
      %p390 = pneg %p239
      %p391 = pneg %p263
      %p392 = pneg %p260
      %p393 = pneg %p284
      %p394 = pneg %p281
      %s395 = smul.u32 16, %s22
      %p396 = scmp.lt.s32.totalorder %s395, 47
      %s397 = scalar_select %p396, %s395, 47
      %s398 = smul.addr %s397, 8
      %s399 = scalar_lea.vmem %s0, %s398
      %s400 = smul.u32 16, %s22
      %p401 = scmp.lt.s32.totalorder %s22, 2
      %s402 = scalar_select %p401, %s22, 2
      %s403 = scalar_lea.vmem %s1, %s402
      %s404 = smul.u32 16, %s22
      %p405 = scmp.lt.s32.totalorder %s404, 47
      %s406 = scalar_select %p405, %s404, 47
      %s407 = smul.addr %s406, 8
      %s408 = scalar_lea.vmem %s2, %s407
      %s409 = smul.u32 16, %s22
      %p410 = scmp.eq.s32.totalorder %s22, 0
      // Predicated region
      $region65: #{model_forward.6} parent=63 // pred_check
        %p411 = pneg %p410
      $region66: #{model_forward.6} parent=63 // pred_check_branch
        %413 = sbr.rel (%p411) target = $region68
      $region67: #{model_forward.6} parent=63 // pred_region
        %vm414 = vcmask 130048
        %415 = vst.msk [vmem:[#allocation2] sm:$0xff] %vm414, 0.0
        %416 = vst.msk [vmem:[#allocation2 + $0x8] sm:$0xff] %vm414, 0.0
        %417 = vst.msk [vmem:[#allocation2 + $0x10] sm:$0xff] %vm414, 0.0
        %418 = vst.msk [vmem:[#allocation2 + $0x18] sm:$0xff] %vm414, 0.0
        %419 = vst.msk [vmem:[#allocation2 + $0x20] sm:$0xff] %vm414, 0.0
        %vm420 = vcmask 122880
        %421 = vst.msk [vmem:[#allocation2 + $0x28] sm:$0x1] %vm420, 0.0
      $region68: #{model_forward.6} parent=63 // pred_fallthru
        _
      %v422 = vld [vmem:[%s399] sm:$0xff]
      %v423 = vld [vmem:[%s399 + $0x8] sm:$0xff]
      %v424 = vld [vmem:[%s399 + $0x10] sm:$0xff]
      %v425 = vld [vmem:[%s399 + $0x18] sm:$0xff]
      %v426 = vld [vmem:[%s399 + $0x20] sm:$0xff]
      %v427 = vld [vmem:[%s399 + $0x28] sm:$0xff]
      %v428 = vld [vmem:[%s399 + $0x30] sm:$0xff]
      %v429 = vld [vmem:[%s399 + $0x38] sm:$0xff]
      %v430 = vld [vmem:[%s399 + $0x40] sm:$0xff]
      %v431 = vld [vmem:[%s399 + $0x48] sm:$0xff]
      %v432 = vld [vmem:[%s399 + $0x50] sm:$0xff]
      %v433 = vld [vmem:[%s399 + $0x58] sm:$0xff]
      %v434 = vld [vmem:[%s399 + $0x60] sm:$0xff]
      %v435 = vld [vmem:[%s399 + $0x68] sm:$0xff]
      %v436 = vld [vmem:[%s399 + $0x70] sm:$0xff]
      %v437 = vld [vmem:[%s399 + $0x78] sm:$0xff]
      %v438 = vlaneseq
      %v439 = vand.u32 %v438, 127
      %440 = vset.pattern.permute.xlu0 0
      %441 = vperm.xlu0 %440, %v422
      %v442 = vpop.permute.xlu0 %441
      %443 = vset.pattern.permute.xlu0 0
      %444 = vperm.xlu0 %443, %v423
      %v445 = vpop.permute.xlu0 %444
      %446 = vset.pattern.permute.xlu0 0
      %447 = vperm.xlu0 %446, %v424
      %v448 = vpop.permute.xlu0 %447
      %449 = vset.pattern.permute.xlu0 0
      %450 = vperm.xlu0 %449, %v425
      %v451 = vpop.permute.xlu0 %450
      %452 = vset.pattern.permute.xlu0 0
      %453 = vperm.xlu0 %452, %v426
      %v454 = vpop.permute.xlu0 %453
      %455 = vset.pattern.permute.xlu0 0
      %456 = vperm.xlu0 %455, %v427
      %v457 = vpop.permute.xlu0 %456
      %458 = vset.pattern.permute.xlu0 0
      %459 = vperm.xlu0 %458, %v428
      %v460 = vpop.permute.xlu0 %459
      %461 = vset.pattern.permute.xlu0 0
      %462 = vperm.xlu0 %461, %v429
      %v463 = vpop.permute.xlu0 %462
      %464 = vset.pattern.permute.xlu0 0
      %465 = vperm.xlu0 %464, %v430
      %v466 = vpop.permute.xlu0 %465
      %467 = vset.pattern.permute.xlu0 0
      %468 = vperm.xlu0 %467, %v431
      %v469 = vpop.permute.xlu0 %468
      %470 = vset.pattern.permute.xlu0 0
      %471 = vperm.xlu0 %470, %v432
      %v472 = vpop.permute.xlu0 %471
      %473 = vset.pattern.permute.xlu0 0
      %474 = vperm.xlu0 %473, %v433
      %v475 = vpop.permute.xlu0 %474
      %476 = vset.pattern.permute.xlu0 0
      %477 = vperm.xlu0 %476, %v434
      %v478 = vpop.permute.xlu0 %477
      %479 = vset.pattern.permute.xlu0 0
      %480 = vperm.xlu0 %479, %v435
      %v481 = vpop.permute.xlu0 %480
      %482 = vset.pattern.permute.xlu0 0
      %483 = vperm.xlu0 %482, %v436
      %v484 = vpop.permute.xlu0 %483
      %485 = vset.pattern.permute.xlu0 0
      %486 = vperm.xlu0 %485, %v437
      %v487 = vpop.permute.xlu0 %486
      %vm488 = vcmp.eq.s32.totalorder %v442, %v439
      %vm489 = vcmp.eq.s32.totalorder %v445, %v439
      %vm490 = vcmp.eq.s32.totalorder %v448, %v439
      %vm491 = vcmp.eq.s32.totalorder %v451, %v439
      %vm492 = vcmp.eq.s32.totalorder %v454, %v439
      %vm493 = vcmp.eq.s32.totalorder %v457, %v439
      %vm494 = vcmp.eq.s32.totalorder %v460, %v439
      %vm495 = vcmp.eq.s32.totalorder %v463, %v439
      %vm496 = vcmp.eq.s32.totalorder %v466, %v439
      %vm497 = vcmp.eq.s32.totalorder %v469, %v439
      %vm498 = vcmp.eq.s32.totalorder %v472, %v439
      %vm499 = vcmp.eq.s32.totalorder %v475, %v439
      %vm500 = vcmp.eq.s32.totalorder %v478, %v439
      %vm501 = vcmp.eq.s32.totalorder %v481, %v439
      %vm502 = vcmp.eq.s32.totalorder %v484, %v439
      %vm503 = vcmp.eq.s32.totalorder %v487, %v439
      %v504 = vsel %vm488, 1.0, 0.0
      %v505 = vsel %vm489, 1.0, 0.0
      %v506 = vsel %vm490, 1.0, 0.0
      %v507 = vsel %vm491, 1.0, 0.0
      %v508 = vsel %vm492, 1.0, 0.0
      %v509 = vsel %vm493, 1.0, 0.0
      %v510 = vsel %vm494, 1.0, 0.0
      %v511 = vsel %vm495, 1.0, 0.0
      %v512 = vsel %vm496, 1.0, 0.0
      %v513 = vsel %vm497, 1.0, 0.0
      %v514 = vsel %vm498, 1.0, 0.0
      %v515 = vsel %vm499, 1.0, 0.0
      %v516 = vsel %vm500, 1.0, 0.0
      %v517 = vsel %vm501, 1.0, 0.0
      %v518 = vsel %vm502, 1.0, 0.0
      %v519 = vsel %vm503, 1.0, 0.0
      %v520 = vld [vmem:[%s3] sm:$0xff]
      %v521 = vld [vmem:[%s3 + $0x8] sm:$0xff]
      %v522 = vld [vmem:[%s3 + $0x10] sm:$0xff]
      %v523 = vld [vmem:[%s3 + $0x18] sm:$0xff]
      %v524 = vld [vmem:[%s3 + $0x20] sm:$0xff]
      %vm525 = vcmask 326656
      %v527 = vsel %vm525, %v504, 0
      %v530 = vsel %vm525, %v505, 0
      %v533 = vsel %vm525, %v506, 0
      %v536 = vsel %vm525, %v507, 0
      %v539 = vsel %vm525, %v508, 0
      %v542 = vsel %vm525, %v509, 0
      %v545 = vsel %vm525, %v510, 0
      %v548 = vsel %vm525, %v511, 0
      %v551 = vsel %vm525, %v512, 0
      %v554 = vsel %vm525, %v513, 0
      %v557 = vsel %vm525, %v514, 0
      %v560 = vsel %vm525, %v515, 0
      %v563 = vsel %vm525, %v516, 0
      %v566 = vsel %vm525, %v517, 0
      %v569 = vsel %vm525, %v518, 0
      %v572 = vsel %vm525, %v519, 0
      %574 = vmatprep.subr.mxu0 0.0
      %575 = vmatpush1.msra.mxu0 %v520
      %576 = vmatprep.subr.mxu0 0.0
      %577 = vmatpush1.msra.mxu0 %v521
      %578 = vmatprep.subr.mxu0 0.0
      %579 = vmatpush1.msra.mxu0 %v522
      %580 = vmatprep.subr.mxu0 0.0
      %581 = vmatpush1.msra.mxu0 %v523
      %582 = vmatprep.subr.mxu0 0.0
      %583 = vmatpush1.msra.mxu0 %v524
      %584 = vmatprep.subr.mxu0 0.0
      %585 = vmatpush1.msra.mxu0 0.0
      %586 = vmatprep.subr.mxu0 0.0
      %587 = vmatpush1.msra.mxu0 0.0
      %588 = vmatprep.subr.mxu0 0.0
      %589 = vmatpush1.msra.mxu0 0.0
      %590 = vmatprep.subr.mxu0 0.0
      %591 = vmatpush1.msra.mxu0 0.0
      %592 = vmatprep.subr.mxu0 0.0
      %593 = vmatpush1.msra.mxu0 0.0
      %594 = vmatprep.subr.mxu0 0.0
      %595 = vmatpush1.msra.mxu0 0.0
      %596 = vmatprep.subr.mxu0 0.0
      %597 = vmatpush1.msra.mxu0 0.0
      %598 = vmatprep.subr.mxu0 0.0
      %599 = vmatpush1.msra.mxu0 0.0
      %600 = vmatprep.subr.mxu0 0.0
      %601 = vmatpush1.msra.mxu0 0.0
      %602 = vmatprep.subr.mxu0 0.0
      %603 = vmatpush1.msra.mxu0 0.0
      %604 = vmatprep.subr.mxu0 0.0
      %605 = vmatpush1.msra.mxu0 0.0
      %606 = vmatprep.subr.mxu0 0.0
      %607 = vmatpush1.msra.mxu0 0.0
      %608 = vmatprep.subr.mxu0 0.0
      %609 = vmatpush1.msra.mxu0 0.0
      %610 = vmatprep.subr.mxu0 0.0
      %611 = vmatpush1.msra.mxu0 0.0
      %612 = vmatprep.subr.mxu0 0.0
      %613 = vmatpush1.msra.mxu0 0.0
      %614 = vmatprep.subr.mxu0 0.0
      %615 = vmatpush1.msra.mxu0 0.0
      %616 = vmatprep.subr.mxu0 0.0
      %617 = vmatpush1.msra.mxu0 0.0
      %618 = vmatprep.subr.mxu0 0.0
      %619 = vmatpush1.msra.mxu0 0.0
      %620 = vmatprep.subr.mxu0 0.0
      %621 = vmatpush1.msra.mxu0 0.0
      %622 = vmatprep.subr.mxu0 0.0
      %623 = vmatpush1.msra.mxu0 0.0
      %624 = vmatprep.subr.mxu0 0.0
      %625 = vmatpush1.msra.mxu0 0.0
      %626 = vmatprep.subr.mxu0 0.0
      %627 = vmatpush1.msra.mxu0 0.0
      %628 = vmatprep.subr.mxu0 0.0
      %629 = vmatpush1.msra.mxu0 0.0
      %630 = vmatprep.subr.mxu0 0.0
      %631 = vmatpush1.msra.mxu0 0.0
      %632 = vmatprep.subr.mxu0 0.0
      %633 = vmatpush1.msra.mxu0 0.0
      %634 = vmatprep.subr.mxu0 0.0
      %635 = vmatpush1.msra.mxu0 0.0
      %636 = vmatprep.subr.mxu0 0.0
      %637 = vmatpush1.msra.mxu0 0.0
      %638 = vmatprep.mubr.f32.mxu0 0.0
      %639 = vmatmul.mubr.f32.gmra.mrb[0].mxu0 %v527
      %v640 = vpop.f32.mrb[0].mxu0
      %v641 = vadd.f32 0.0, %v640
      %v642 = vpop.f32.mrb[0].mxu0
      %643 = vmatprep.mubr.f32.mxu0 0.0
      %644 = vmatmul.mubr.f32.gmra.mrb[0].mxu0 %v530
      %v645 = vpop.f32.mrb[0].mxu0
      %v646 = vadd.f32 0.0, %v645
      %v647 = vpop.f32.mrb[0].mxu0
      %648 = vmatprep.mubr.f32.mxu0 0.0
      %649 = vmatmul.mubr.f32.gmra.mrb[0].mxu0 %v533
      %v650 = vpop.f32.mrb[0].mxu0
      %v651 = vadd.f32 0.0, %v650
      %v652 = vpop.f32.mrb[0].mxu0
      %653 = vmatprep.mubr.f32.mxu0 0.0
      %654 = vmatmul.mubr.f32.gmra.mrb[0].mxu0 %v536
      %v655 = vpop.f32.mrb[0].mxu0
      %v656 = vadd.f32 0.0, %v655
      %v657 = vpop.f32.mrb[0].mxu0
      %658 = vmatprep.mubr.f32.mxu0 0.0
      %659 = vmatmul.mubr.f32.gmra.mrb[0].mxu0 %v539
      %v660 = vpop.f32.mrb[0].mxu0
      %v661 = vadd.f32 0.0, %v660
      %v662 = vpop.f32.mrb[0].mxu0
      %663 = vmatprep.mubr.f32.mxu0 0.0
      %664 = vmatmul.mubr.f32.gmra.mrb[0].mxu0 %v542
      %v665 = vpop.f32.mrb[0].mxu0
      %v666 = vadd.f32 0.0, %v665
      %v667 = vpop.f32.mrb[0].mxu0
      %668 = vmatprep.mubr.f32.mxu0 0.0
      %669 = vmatmul.mubr.f32.gmra.mrb[0].mxu0 %v545
      %v670 = vpop.f32.mrb[0].mxu0
      %v671 = vadd.f32 0.0, %v670
      %v672 = vpop.f32.mrb[0].mxu0
      %673 = vmatprep.mubr.f32.mxu0 0.0
      %674 = vmatmul.mubr.f32.gmra.mrb[0].mxu0 %v548
      %v675 = vpop.f32.mrb[0].mxu0
      %v676 = vadd.f32 0.0, %v675
      %v677 = vpop.f32.mrb[0].mxu0
      %678 = vmatprep.mubr.f32.mxu0 0.0
      %679 = vmatmul.mubr.f32.gmra.mrb[0].mxu0 %v551
      %v680 = vpop.f32.mrb[0].mxu0
      %v681 = vadd.f32 0.0, %v680
      %v682 = vpop.f32.mrb[0].mxu0
      %683 = vmatprep.mubr.f32.mxu0 0.0
      %684 = vmatmul.mubr.f32.gmra.mrb[0].mxu0 %v554
      %v685 = vpop.f32.mrb[0].mxu0
      %v686 = vadd.f32 0.0, %v685
      %v687 = vpop.f32.mrb[0].mxu0
      %688 = vmatprep.mubr.f32.mxu0 0.0
      %689 = vmatmul.mubr.f32.gmra.mrb[0].mxu0 %v557
      %v690 = vpop.f32.mrb[0].mxu0
      %v691 = vadd.f32 0.0, %v690
      %v692 = vpop.f32.mrb[0].mxu0
      %693 = vmatprep.mubr.f32.mxu0 0.0
      %694 = vmatmul.mubr.f32.gmra.mrb[0].mxu0 %v560
      %v695 = vpop.f32.mrb[0].mxu0
      %v696 = vadd.f32 0.0, %v695
      %v697 = vpop.f32.mrb[0].mxu0
      %698 = vmatprep.mubr.f32.mxu0 0.0
      %699 = vmatmul.mubr.f32.gmra.mrb[0].mxu0 %v563
      %v700 = vpop.f32.mrb[0].mxu0
      %v701 = vadd.f32 0.0, %v700
      %v702 = vpop.f32.mrb[0].mxu0
      %703 = vmatprep.mubr.f32.mxu0 0.0
      %704 = vmatmul.mubr.f32.gmra.mrb[0].mxu0 %v566
      %v705 = vpop.f32.mrb[0].mxu0
      %v706 = vadd.f32 0.0, %v705
      %v707 = vpop.f32.mrb[0].mxu0
      %708 = vmatprep.mubr.f32.mxu0 0.0
      %709 = vmatmul.mubr.f32.gmra.mrb[0].mxu0 %v569
      %v710 = vpop.f32.mrb[0].mxu0
      %v711 = vadd.f32 0.0, %v710
      %v712 = vpop.f32.mrb[0].mxu0
      %713 = vmatprep.mubr.f32.mxu0 0.0
      %714 = vmatmul.mubr.f32.gmra.mrb[0].mxu0 %v572
      %v715 = vpop.f32.mrb[0].mxu0
      %v716 = vadd.f32 0.0, %v715
      %v717 = vpop.f32.mrb[0].mxu0
      %718 = vdwg.mxu0
      %v719 = vld [vmem:[%s4] sm:$0xff]
      %v720 = vld [vmem:[%s4 + $0x8] sm:$0xff]
      %v721 = vld [vmem:[%s4 + $0x10] sm:$0xff]
      %v722 = vld [vmem:[%s4 + $0x18] sm:$0xff]
      %v723 = vld [vmem:[%s408] sm:$0xff]
      %v724 = vld [vmem:[%s408 + $0x8] sm:$0xff]
      %v725 = vld [vmem:[%s408 + $0x10] sm:$0xff]
      %v726 = vld [vmem:[%s408 + $0x18] sm:$0xff]
      %v727 = vld [vmem:[%s408 + $0x20] sm:$0xff]
      %v728 = vld [vmem:[%s408 + $0x28] sm:$0xff]
      %v729 = vld [vmem:[%s408 + $0x30] sm:$0xff]
      %v730 = vld [vmem:[%s408 + $0x38] sm:$0xff]
      %v731 = vld [vmem:[%s408 + $0x40] sm:$0xff]
      %v732 = vld [vmem:[%s408 + $0x48] sm:$0xff]
      %v733 = vld [vmem:[%s408 + $0x50] sm:$0xff]
      %v734 = vld [vmem:[%s408 + $0x58] sm:$0xff]
      %v735 = vld [vmem:[%s408 + $0x60] sm:$0xff]
      %v736 = vld [vmem:[%s408 + $0x68] sm:$0xff]
      %v737 = vld [vmem:[%s408 + $0x70] sm:$0xff]
      %v738 = vld [vmem:[%s408 + $0x78] sm:$0xff]
      %v739 = vld [vmem:[%s5] sm:$0xff]
      %v740 = vld [vmem:[%s5 + $0x8] sm:$0xff]
      %vm741 = vcmask 130048
      %v743 = vsel %vm741, %v723, 0
      %v746 = vsel %vm741, %v724, 0
      %v749 = vsel %vm741, %v725, 0
      %v752 = vsel %vm741, %v726, 0
      %v755 = vsel %vm741, %v727, 0
      %v758 = vsel %vm741, %v728, 0
      %v761 = vsel %vm741, %v729, 0
      %v764 = vsel %vm741, %v730, 0
      %v767 = vsel %vm741, %v731, 0
      %v770 = vsel %vm741, %v732, 0
      %v773 = vsel %vm741, %v733, 0
      %v776 = vsel %vm741, %v734, 0
      %v779 = vsel %vm741, %v735, 0
      %v782 = vsel %vm741, %v736, 0
      %v785 = vsel %vm741, %v737, 0
      %v788 = vsel %vm741, %v738, 0
      %790 = vmatprep.subr.mxu0 0.0
      %791 = vmatpush1.msra.mxu0 %v739
      %792 = vmatprep.subr.mxu0 0.0
      %793 = vmatpush1.msra.mxu0 %v740
      %794 = vmatprep.subr.mxu0 0.0
      %795 = vmatpush1.msra.mxu0 0.0
      %796 = vmatprep.subr.mxu0 0.0
      %797 = vmatpush1.msra.mxu0 0.0
      %798 = vmatprep.subr.mxu0 0.0
      %799 = vmatpush1.msra.mxu0 0.0
      %800 = vmatprep.subr.mxu0 0.0
      %801 = vmatpush1.msra.mxu0 0.0
      %802 = vmatprep.subr.mxu0 0.0
      %803 = vmatpush1.msra.mxu0 0.0
      %804 = vmatprep.subr.mxu0 0.0
      %805 = vmatpush1.msra.mxu0 0.0
      %806 = vmatprep.subr.mxu0 0.0
      %807 = vmatpush1.msra.mxu0 0.0
      %808 = vmatprep.subr.mxu0 0.0
      %809 = vmatpush1.msra.mxu0 0.0
      %810 = vmatprep.subr.mxu0 0.0
      %811 = vmatpush1.msra.mxu0 0.0
      %812 = vmatprep.subr.mxu0 0.0
      %813 = vmatpush1.msra.mxu0 0.0
      %814 = vmatprep.subr.mxu0 0.0
      %815 = vmatpush1.msra.mxu0 0.0
      %816 = vmatprep.subr.mxu0 0.0
      %817 = vmatpush1.msra.mxu0 0.0
      %818 = vmatprep.subr.mxu0 0.0
      %819 = vmatpush1.msra.mxu0 0.0
      %820 = vmatprep.subr.mxu0 0.0
      %821 = vmatpush1.msra.mxu0 0.0
      %822 = vmatprep.subr.mxu0 0.0
      %823 = vmatpush1.msra.mxu0 0.0
      %824 = vmatprep.subr.mxu0 0.0
      %825 = vmatpush1.msra.mxu0 0.0
      %826 = vmatprep.subr.mxu0 0.0
      %827 = vmatpush1.msra.mxu0 0.0
      %828 = vmatprep.subr.mxu0 0.0
      %829 = vmatpush1.msra.mxu0 0.0
      %830 = vmatprep.subr.mxu0 0.0
      %831 = vmatpush1.msra.mxu0 0.0
      %832 = vmatprep.subr.mxu0 0.0
      %833 = vmatpush1.msra.mxu0 0.0
      %834 = vmatprep.subr.mxu0 0.0
      %835 = vmatpush1.msra.mxu0 0.0
      %836 = vmatprep.subr.mxu0 0.0
      %837 = vmatpush1.msra.mxu0 0.0
      %838 = vmatprep.subr.mxu0 0.0
      %839 = vmatpush1.msra.mxu0 0.0
      %840 = vmatprep.subr.mxu0 0.0
      %841 = vmatpush1.msra.mxu0 0.0
      %842 = vmatprep.subr.mxu0 0.0
      %843 = vmatpush1.msra.mxu0 0.0
      %844 = vmatprep.subr.mxu0 0.0
      %845 = vmatpush1.msra.mxu0 0.0
      %846 = vmatprep.subr.mxu0 0.0
      %847 = vmatpush1.msra.mxu0 0.0
      %848 = vmatprep.subr.mxu0 0.0
      %849 = vmatpush1.msra.mxu0 0.0
      %850 = vmatprep.subr.mxu0 0.0
      %851 = vmatpush1.msra.mxu0 0.0
      %852 = vmatprep.subr.mxu0 0.0
      %853 = vmatpush1.msra.mxu0 0.0
      %854 = vmatprep.mubr.f32.mxu0 0.0
      %855 = vmatmul.mubr.f32.gmra.mrb[0].mxu0 %v743
      %v856 = vpop.f32.mrb[0].mxu0
      %v857 = vadd.f32 0.0, %v856
      %v858 = vpop.f32.mrb[0].mxu0
      %859 = vmatprep.mubr.f32.mxu0 0.0
      %860 = vmatmul.mubr.f32.gmra.mrb[0].mxu0 %v746
      %v861 = vpop.f32.mrb[0].mxu0
      %v862 = vadd.f32 0.0, %v861
      %v863 = vpop.f32.mrb[0].mxu0
      %864 = vmatprep.mubr.f32.mxu0 0.0
      %865 = vmatmul.mubr.f32.gmra.mrb[0].mxu0 %v749
      %v866 = vpop.f32.mrb[0].mxu0
      %v867 = vadd.f32 0.0, %v866
      %v868 = vpop.f32.mrb[0].mxu0
      %869 = vmatprep.mubr.f32.mxu0 0.0
      %870 = vmatmul.mubr.f32.gmra.mrb[0].mxu0 %v752
      %v871 = vpop.f32.mrb[0].mxu0
      %v872 = vadd.f32 0.0, %v871
      %v873 = vpop.f32.mrb[0].mxu0
      %874 = vmatprep.mubr.f32.mxu0 0.0
      %875 = vmatmul.mubr.f32.gmra.mrb[0].mxu0 %v755
      %v876 = vpop.f32.mrb[0].mxu0
      %v877 = vadd.f32 0.0, %v876
      %v878 = vpop.f32.mrb[0].mxu0
      %879 = vmatprep.mubr.f32.mxu0 0.0
      %880 = vmatmul.mubr.f32.gmra.mrb[0].mxu0 %v758
      %v881 = vpop.f32.mrb[0].mxu0
      %v882 = vadd.f32 0.0, %v881
      %v883 = vpop.f32.mrb[0].mxu0
      %884 = vmatprep.mubr.f32.mxu0 0.0
      %885 = vmatmul.mubr.f32.gmra.mrb[0].mxu0 %v761
      %v886 = vpop.f32.mrb[0].mxu0
      %v887 = vadd.f32 0.0, %v886
      %v888 = vpop.f32.mrb[0].mxu0
      %889 = vmatprep.mubr.f32.mxu0 0.0
      %890 = vmatmul.mubr.f32.gmra.mrb[0].mxu0 %v764
      %v891 = vpop.f32.mrb[0].mxu0
      %v892 = vadd.f32 0.0, %v891
      %v893 = vpop.f32.mrb[0].mxu0
      %894 = vmatprep.mubr.f32.mxu0 0.0
      %895 = vmatmul.mubr.f32.gmra.mrb[0].mxu0 %v767
      %v896 = vpop.f32.mrb[0].mxu0
      %v897 = vadd.f32 0.0, %v896
      %v898 = vpop.f32.mrb[0].mxu0
      %899 = vmatprep.mubr.f32.mxu0 0.0
      %900 = vmatmul.mubr.f32.gmra.mrb[0].mxu0 %v770
      %v901 = vpop.f32.mrb[0].mxu0
      %v902 = vadd.f32 0.0, %v901
      %v903 = vpop.f32.mrb[0].mxu0
      %904 = vmatprep.mubr.f32.mxu0 0.0
      %905 = vmatmul.mubr.f32.gmra.mrb[0].mxu0 %v773
      %v906 = vpop.f32.mrb[0].mxu0
      %v907 = vadd.f32 0.0, %v906
      %v908 = vpop.f32.mrb[0].mxu0
      %909 = vmatprep.mubr.f32.mxu0 0.0
      %910 = vmatmul.mubr.f32.gmra.mrb[0].mxu0 %v776
      %v911 = vpop.f32.mrb[0].mxu0
      %v912 = vadd.f32 0.0, %v911
      %v913 = vpop.f32.mrb[0].mxu0
      %914 = vmatprep.mubr.f32.mxu0 0.0
      %915 = vmatmul.mubr.f32.gmra.mrb[0].mxu0 %v779
      %v916 = vpop.f32.mrb[0].mxu0
      %v917 = vadd.f32 0.0, %v916
      %v918 = vpop.f32.mrb[0].mxu0
      %919 = vmatprep.mubr.f32.mxu0 0.0
      %920 = vmatmul.mubr.f32.gmra.mrb[0].mxu0 %v782
      %v921 = vpop.f32.mrb[0].mxu0
      %v922 = vadd.f32 0.0, %v921
      %v923 = vpop.f32.mrb[0].mxu0
      %924 = vmatprep.mubr.f32.mxu0 0.0
      %925 = vmatmul.mubr.f32.gmra.mrb[0].mxu0 %v785
      %v926 = vpop.f32.mrb[0].mxu0
      %v927 = vadd.f32 0.0, %v926
      %v928 = vpop.f32.mrb[0].mxu0
      %929 = vmatprep.mubr.f32.mxu0 0.0
      %930 = vmatmul.mubr.f32.gmra.mrb[0].mxu0 %v788
      %v931 = vpop.f32.mrb[0].mxu0
      %v932 = vadd.f32 0.0, %v931
      %v933 = vpop.f32.mrb[0].mxu0
      %934 = vdwg.mxu0
      %vm935 = vcmask 261120
      %v937 = vsel %vm935, %v641, 0
      %v940 = vsel %vm935, %v646, 0
      %v943 = vsel %vm935, %v651, 0
      %v946 = vsel %vm935, %v656, 0
      %v949 = vsel %vm935, %v661, 0
      %v952 = vsel %vm935, %v666, 0
      %v955 = vsel %vm935, %v671, 0
      %v958 = vsel %vm935, %v676, 0
      %v961 = vsel %vm935, %v681, 0
      %v964 = vsel %vm935, %v686, 0
      %v967 = vsel %vm935, %v691, 0
      %v970 = vsel %vm935, %v696, 0
      %v973 = vsel %vm935, %v701, 0
      %v976 = vsel %vm935, %v706, 0
      %v979 = vsel %vm935, %v711, 0
      %v982 = vsel %vm935, %v716, 0
      %984 = vmatprep.subr.mxu0 0.0
      %985 = vmatpush1.msra.mxu0 %v719
      %986 = vmatprep.subr.mxu0 0.0
      %987 = vmatpush1.msra.mxu0 %v720
      %988 = vmatprep.subr.mxu0 0.0
      %989 = vmatpush1.msra.mxu0 %v721
      %990 = vmatprep.subr.mxu0 0.0
      %991 = vmatpush1.msra.mxu0 %v722
      %992 = vmatprep.subr.mxu0 0.0
      %993 = vmatpush1.msra.mxu0 0.0
      %994 = vmatprep.subr.mxu0 0.0
      %995 = vmatpush1.msra.mxu0 0.0
      %996 = vmatprep.subr.mxu0 0.0
      %997 = vmatpush1.msra.mxu0 0.0
      %998 = vmatprep.subr.mxu0 0.0
      %999 = vmatpush1.msra.mxu0 0.0
      %1000 = vmatprep.subr.mxu0 0.0
      %1001 = vmatpush1.msra.mxu0 0.0
      %1002 = vmatprep.subr.mxu0 0.0
      %1003 = vmatpush1.msra.mxu0 0.0
      %1004 = vmatprep.subr.mxu0 0.0
      %1005 = vmatpush1.msra.mxu0 0.0
      %1006 = vmatprep.subr.mxu0 0.0
      %1007 = vmatpush1.msra.mxu0 0.0
      %1008 = vmatprep.subr.mxu0 0.0
      %1009 = vmatpush1.msra.mxu0 0.0
      %1010 = vmatprep.subr.mxu0 0.0
      %1011 = vmatpush1.msra.mxu0 0.0
      %1012 = vmatprep.subr.mxu0 0.0
      %1013 = vmatpush1.msra.mxu0 0.0
      %1014 = vmatprep.subr.mxu0 0.0
      %1015 = vmatpush1.msra.mxu0 0.0
      %1016 = vmatprep.subr.mxu0 0.0
      %1017 = vmatpush1.msra.mxu0 0.0
      %1018 = vmatprep.subr.mxu0 0.0
      %1019 = vmatpush1.msra.mxu0 0.0
      %1020 = vmatprep.subr.mxu0 0.0
      %1021 = vmatpush1.msra.mxu0 0.0
      %1022 = vmatprep.subr.mxu0 0.0
      %1023 = vmatpush1.msra.mxu0 0.0
      %1024 = vmatprep.subr.mxu0 0.0
      %1025 = vmatpush1.msra.mxu0 0.0
      %1026 = vmatprep.subr.mxu0 0.0
      %1027 = vmatpush1.msra.mxu0 0.0
      %1028 = vmatprep.subr.mxu0 0.0
      %1029 = vmatpush1.msra.mxu0 0.0
      %1030 = vmatprep.subr.mxu0 0.0
      %1031 = vmatpush1.msra.mxu0 0.0
      %1032 = vmatprep.subr.mxu0 0.0
      %1033 = vmatpush1.msra.mxu0 0.0
      %1034 = vmatprep.subr.mxu0 0.0
      %1035 = vmatpush1.msra.mxu0 0.0
      %1036 = vmatprep.subr.mxu0 0.0
      %1037 = vmatpush1.msra.mxu0 0.0
      %1038 = vmatprep.subr.mxu0 0.0
      %1039 = vmatpush1.msra.mxu0 0.0
      %1040 = vmatprep.subr.mxu0 0.0
      %1041 = vmatpush1.msra.mxu0 0.0
      %1042 = vmatprep.subr.mxu0 0.0
      %1043 = vmatpush1.msra.mxu0 0.0
      %1044 = vmatprep.subr.mxu0 0.0
      %1045 = vmatpush1.msra.mxu0 0.0
      %1046 = vmatprep.subr.mxu0 0.0
      %1047 = vmatpush1.msra.mxu0 0.0
      %1048 = vmatprep.mubr.f32.mxu0 0.0
      %1049 = vmatmul.mubr.f32.gmra.mrb[0].mxu0 %v937
      %v1050 = vpop.f32.mrb[0].mxu0
      %v1051 = vadd.f32 %v857, %v1050
      %v1052 = vpop.f32.mrb[0].mxu0
      %1053 = vmatprep.mubr.f32.mxu0 0.0
      %1054 = vmatmul.mubr.f32.gmra.mrb[0].mxu0 %v940
      %v1055 = vpop.f32.mrb[0].mxu0
      %v1056 = vadd.f32 %v862, %v1055
      %v1057 = vpop.f32.mrb[0].mxu0
      %1058 = vmatprep.mubr.f32.mxu0 0.0
      %1059 = vmatmul.mubr.f32.gmra.mrb[0].mxu0 %v943
      %v1060 = vpop.f32.mrb[0].mxu0
      %v1061 = vadd.f32 %v867, %v1060
      %v1062 = vpop.f32.mrb[0].mxu0
      %1063 = vmatprep.mubr.f32.mxu0 0.0
      %1064 = vmatmul.mubr.f32.gmra.mrb[0].mxu0 %v946
      %v1065 = vpop.f32.mrb[0].mxu0
      %v1066 = vadd.f32 %v872, %v1065
      %v1067 = vpop.f32.mrb[0].mxu0
      %1068 = vmatprep.mubr.f32.mxu0 0.0
      %1069 = vmatmul.mubr.f32.gmra.mrb[0].mxu0 %v949
      %v1070 = vpop.f32.mrb[0].mxu0
      %v1071 = vadd.f32 %v877, %v1070
      %v1072 = vpop.f32.mrb[0].mxu0
      %1073 = vmatprep.mubr.f32.mxu0 0.0
      %1074 = vmatmul.mubr.f32.gmra.mrb[0].mxu0 %v952
      %v1075 = vpop.f32.mrb[0].mxu0
      %v1076 = vadd.f32 %v882, %v1075
      %v1077 = vpop.f32.mrb[0].mxu0
      %1078 = vmatprep.mubr.f32.mxu0 0.0
      %1079 = vmatmul.mubr.f32.gmra.mrb[0].mxu0 %v955
      %v1080 = vpop.f32.mrb[0].mxu0
      %v1081 = vadd.f32 %v887, %v1080
      %v1082 = vpop.f32.mrb[0].mxu0
      %1083 = vmatprep.mubr.f32.mxu0 0.0
      %1084 = vmatmul.mubr.f32.gmra.mrb[0].mxu0 %v958
      %v1085 = vpop.f32.mrb[0].mxu0
      %v1086 = vadd.f32 %v892, %v1085
      %v1087 = vpop.f32.mrb[0].mxu0
      %1088 = vmatprep.mubr.f32.mxu0 0.0
      %1089 = vmatmul.mubr.f32.gmra.mrb[0].mxu0 %v961
      %v1090 = vpop.f32.mrb[0].mxu0
      %v1091 = vadd.f32 %v897, %v1090
      %v1092 = vpop.f32.mrb[0].mxu0
      %1093 = vmatprep.mubr.f32.mxu0 0.0
      %1094 = vmatmul.mubr.f32.gmra.mrb[0].mxu0 %v964
      %v1095 = vpop.f32.mrb[0].mxu0
      %v1096 = vadd.f32 %v902, %v1095
      %v1097 = vpop.f32.mrb[0].mxu0
      %1098 = vmatprep.mubr.f32.mxu0 0.0
      %1099 = vmatmul.mubr.f32.gmra.mrb[0].mxu0 %v967
      %v1100 = vpop.f32.mrb[0].mxu0
      %v1101 = vadd.f32 %v907, %v1100
      %v1102 = vpop.f32.mrb[0].mxu0
      %1103 = vmatprep.mubr.f32.mxu0 0.0
      %1104 = vmatmul.mubr.f32.gmra.mrb[0].mxu0 %v970
      %v1105 = vpop.f32.mrb[0].mxu0
      %v1106 = vadd.f32 %v912, %v1105
      %v1107 = vpop.f32.mrb[0].mxu0
      %1108 = vmatprep.mubr.f32.mxu0 0.0
      %1109 = vmatmul.mubr.f32.gmra.mrb[0].mxu0 %v973
      %v1110 = vpop.f32.mrb[0].mxu0
      %v1111 = vadd.f32 %v917, %v1110
      %v1112 = vpop.f32.mrb[0].mxu0
      %1113 = vmatprep.mubr.f32.mxu0 0.0
      %1114 = vmatmul.mubr.f32.gmra.mrb[0].mxu0 %v976
      %v1115 = vpop.f32.mrb[0].mxu0
      %v1116 = vadd.f32 %v922, %v1115
      %v1117 = vpop.f32.mrb[0].mxu0
      %1118 = vmatprep.mubr.f32.mxu0 0.0
      %1119 = vmatmul.mubr.f32.gmra.mrb[0].mxu0 %v979
      %v1120 = vpop.f32.mrb[0].mxu0
      %v1121 = vadd.f32 %v927, %v1120
      %v1122 = vpop.f32.mrb[0].mxu0
      %1123 = vmatprep.mubr.f32.mxu0 0.0
      %1124 = vmatmul.mubr.f32.gmra.mrb[0].mxu0 %v982
      %v1125 = vpop.f32.mrb[0].mxu0
      %v1126 = vadd.f32 %v932, %v1125
      %v1127 = vpop.f32.mrb[0].mxu0
      %1128 = vdwg.mxu0
      %v1129 = vld [vmem:[%s6] sm:$0x1]
      %v1131 = vlaneseq
      %v1132 = vshrl.u32 %v1131, 7
      %v1133 = vsub.s32 0, %v1132
      %v1134 = vrot.slane %v1129, %v1133
      %v1136 = vadd.f32 %v1051, %v1134
      %v1137 = vadd.f32 %v1056, %v1134
      %v1138 = vadd.f32 %v1061, %v1134
      %v1139 = vadd.f32 %v1066, %v1134
      %v1140 = vadd.f32 %v1071, %v1134
      %v1141 = vadd.f32 %v1076, %v1134
      %v1142 = vadd.f32 %v1081, %v1134
      %v1143 = vadd.f32 %v1086, %v1134
      %v1144 = vadd.f32 %v1091, %v1134
      %v1145 = vadd.f32 %v1096, %v1134
      %v1146 = vadd.f32 %v1101, %v1134
      %v1147 = vadd.f32 %v1106, %v1134
      %v1148 = vadd.f32 %v1111, %v1134
      %v1149 = vadd.f32 %v1116, %v1134
      %v1150 = vadd.f32 %v1121, %v1134
      %v1151 = vadd.f32 %v1126, %v1134
      %v1152 = vld [vmem:[%s403] sm:$0x1]
      %v1153 = vlaneseq
      %v1154 = vshrl.u32 %v1153, 7
      %v1155 = vadd.s32 %v1154, 8
      %v1156 = vadd.s32 %v1154, 16
      %v1157 = vadd.s32 %v1154, 24
      %v1158 = vadd.s32 %v1154, 32
      %v1159 = vadd.s32 %v1154, 40
      %v1160 = vlaneseq
      %v1161 = vshrl.u32 %v1160, 7
      %v1162 = vsub.s32 0, %v1161
      %v1163 = vrot.slane %v1152, %v1162
      %vm1164 = vcmp.eq.s32.totalorder %v1154, %v1163
      %vm1165 = vcmp.eq.s32.totalorder %v1155, %v1163
      %vm1166 = vcmp.eq.s32.totalorder %v1156, %v1163
      %vm1167 = vcmp.eq.s32.totalorder %v1157, %v1163
      %vm1168 = vcmp.eq.s32.totalorder %v1158, %v1163
      %vm1169 = vcmp.eq.s32.totalorder %v1159, %v1163
      %v1170 = vsel %vm1164, 1.0, 0.0
      %v1171 = vsel %vm1165, 1.0, 0.0
      %v1172 = vsel %vm1166, 1.0, 0.0
      %v1173 = vsel %vm1167, 1.0, 0.0
      %v1174 = vsel %vm1168, 1.0, 0.0
      %v1175 = vsel %vm1169, 1.0, 0.0
      %v1176 = vld [vmem:[#allocation2] sm:$0xff]
      %v1177 = vld [vmem:[#allocation2 + $0x8] sm:$0xff]
      %v1178 = vld [vmem:[#allocation2 + $0x10] sm:$0xff]
      %v1179 = vld [vmem:[#allocation2 + $0x18] sm:$0xff]
      %v1180 = vld [vmem:[#allocation2 + $0x20] sm:$0xff]
      %v1181 = vld [vmem:[#allocation2 + $0x28] sm:$0x1]
      %1182 = vmatprep.subr.mxu0 0.0
      %1183 = vmatpush1.msra.mxu0 %v1136
      %1184 = vmatprep.subr.mxu0 0.0
      %1185 = vmatpush1.msra.mxu0 %v1137
      %1186 = vmatprep.subr.mxu0 0.0
      %1187 = vmatpush1.msra.mxu0 %v1138
      %1188 = vmatprep.subr.mxu0 0.0
      %1189 = vmatpush1.msra.mxu0 %v1139
      %1190 = vmatprep.subr.mxu0 0.0
      %1191 = vmatpush1.msra.mxu0 %v1140
      %1192 = vmatprep.subr.mxu0 0.0
      %1193 = vmatpush1.msra.mxu0 %v1141
      %1194 = vmatprep.subr.mxu0 0.0
      %1195 = vmatpush1.msra.mxu0 %v1142
      %1196 = vmatprep.subr.mxu0 0.0
      %1197 = vmatpush1.msra.mxu0 %v1143
      %1198 = vmatprep.subr.mxu0 0.0
      %1199 = vmatpush1.msra.mxu0 %v1144
      %1200 = vmatprep.subr.mxu0 0.0
      %1201 = vmatpush1.msra.mxu0 %v1145
      %1202 = vmatprep.subr.mxu0 0.0
      %1203 = vmatpush1.msra.mxu0 %v1146
      %1204 = vmatprep.subr.mxu0 0.0
      %1205 = vmatpush1.msra.mxu0 %v1147
      %1206 = vmatprep.subr.mxu0 0.0
      %1207 = vmatpush1.msra.mxu0 %v1148
      %1208 = vmatprep.subr.mxu0 0.0
      %1209 = vmatpush1.msra.mxu0 %v1149
      %1210 = vmatprep.subr.mxu0 0.0
      %1211 = vmatpush1.msra.mxu0 %v1150
      %1212 = vmatprep.subr.mxu0 0.0
      %1213 = vmatpush1.msra.mxu0 %v1151
      %1214 = vmatprep.subr.mxu0 0.0
      %1215 = vmatpush1.msra.mxu0 0.0
      %1216 = vmatprep.subr.mxu0 0.0
      %1217 = vmatpush1.msra.mxu0 0.0
      %1218 = vmatprep.subr.mxu0 0.0
      %1219 = vmatpush1.msra.mxu0 0.0
      %1220 = vmatprep.subr.mxu0 0.0
      %1221 = vmatpush1.msra.mxu0 0.0
      %1222 = vmatprep.subr.mxu0 0.0
      %1223 = vmatpush1.msra.mxu0 0.0
      %1224 = vmatprep.subr.mxu0 0.0
      %1225 = vmatpush1.msra.mxu0 0.0
      %1226 = vmatprep.subr.mxu0 0.0
      %1227 = vmatpush1.msra.mxu0 0.0
      %1228 = vmatprep.subr.mxu0 0.0
      %1229 = vmatpush1.msra.mxu0 0.0
      %1230 = vmatprep.subr.mxu0 0.0
      %1231 = vmatpush1.msra.mxu0 0.0
      %1232 = vmatprep.subr.mxu0 0.0
      %1233 = vmatpush1.msra.mxu0 0.0
      %1234 = vmatprep.subr.mxu0 0.0
      %1235 = vmatpush1.msra.mxu0 0.0
      %1236 = vmatprep.subr.mxu0 0.0
      %1237 = vmatpush1.msra.mxu0 0.0
      %1238 = vmatprep.subr.mxu0 0.0
      %1239 = vmatpush1.msra.mxu0 0.0
      %1240 = vmatprep.subr.mxu0 0.0
      %1241 = vmatpush1.msra.mxu0 0.0
      %1242 = vmatprep.subr.mxu0 0.0
      %1243 = vmatpush1.msra.mxu0 0.0
      %1244 = vmatprep.subr.mxu0 0.0
      %1245 = vmatpush1.msra.mxu0 0.0
      %1246 = vmatprep.mubr.f32.mxu0 0.0
      %1247 = vmatmul.mubr.f32.gmra.mrb[0].mxu0 %v1170
      %v1248 = vpop.f32.mrb[0].mxu0
      %v1249 = vadd.f32 0.0, %v1248
      %v1250 = vpop.f32.mrb[0].mxu0
      %1251 = vmatprep.mubr.f32.mxu0 0.0
      %1252 = vmatmul.mubr.f32.gmra.mrb[0].mxu0 %v1171
      %v1253 = vpop.f32.mrb[0].mxu0
      %v1254 = vadd.f32 0.0, %v1253
      %v1255 = vpop.f32.mrb[0].mxu0
      %1256 = vmatprep.mubr.f32.mxu0 0.0
      %1257 = vmatmul.mubr.f32.gmra.mrb[0].mxu0 %v1172
      %v1258 = vpop.f32.mrb[0].mxu0
      %v1259 = vadd.f32 0.0, %v1258
      %v1260 = vpop.f32.mrb[0].mxu0
      %1261 = vmatprep.mubr.f32.mxu0 0.0
      %1262 = vmatmul.mubr.f32.gmra.mrb[0].mxu0 %v1173
      %v1263 = vpop.f32.mrb[0].mxu0
      %v1264 = vadd.f32 0.0, %v1263
      %v1265 = vpop.f32.mrb[0].mxu0
      %1266 = vmatprep.mubr.f32.mxu0 0.0
      %1267 = vmatmul.mubr.f32.gmra.mrb[0].mxu0 %v1174
      %v1268 = vpop.f32.mrb[0].mxu0
      %v1269 = vadd.f32 0.0, %v1268
      %v1270 = vpop.f32.mrb[0].mxu0
      %1271 = vmatprep.mubr.f32.mxu0 0.0
      %1272 = vmatmul.mubr.f32.gmra.mrb[0].mxu0 %v1175
      %v1273 = vpop.f32.mrb[0].mxu0
      %v1274 = vadd.f32 0.0, %v1273
      %v1275 = vpop.f32.mrb[0].mxu0
      %1276 = vdwg.mxu0
      %v1277 = vadd.f32 %v1176, %v1249
      %v1278 = vadd.f32 %v1177, %v1254
      %v1279 = vadd.f32 %v1178, %v1259
      %v1280 = vadd.f32 %v1179, %v1264
      %v1281 = vadd.f32 %v1180, %v1269
      %v1282 = vadd.f32 %v1181, %v1274
      %1283 = vst.msk [vmem:[#allocation2] sm:$0xff] %vm741, %v1277
      %1284 = vst.msk [vmem:[#allocation2 + $0x8] sm:$0xff] %vm741, %v1278
      %1285 = vst.msk [vmem:[#allocation2 + $0x10] sm:$0xff] %vm741, %v1279
      %1286 = vst.msk [vmem:[#allocation2 + $0x18] sm:$0xff] %vm741, %v1280
      %1287 = vst.msk [vmem:[#allocation2 + $0x20] sm:$0xff] %vm741, %v1281
      %vm1288 = vcmask 122880
      %1289 = vst.msk [vmem:[#allocation2 + $0x28] sm:$0x1] %vm1288, %v1282
      %p1290 = scmp.eq.s32.totalorder %s22, 2
      // Predicated region
      $region69: #{model_forward.6} parent=63 // pred_check
        %p1291 = pneg %p1290
      $region70: #{model_forward.6} parent=63 // pred_check_branch
        %1293 = sbr.rel (%p1291) target = $region72
      $region71: #{model_forward.6} parent=63 // pred_region
        %v1294 = vld [vmem:[#allocation2] sm:$0xff]
        %v1295 = vld [vmem:[#allocation2 + $0x8] sm:$0xff]
        %v1296 = vld [vmem:[#allocation2 + $0x10] sm:$0xff]
        %v1297 = vld [vmem:[#allocation2 + $0x18] sm:$0xff]
        %v1298 = vld [vmem:[#allocation2 + $0x20] sm:$0xff]
        %v1299 = vld [vmem:[%s10] sm:$0xff]
        %v1300 = vld [vmem:[%s10 + $0x8] sm:$0xff]
        %v1301 = vld [vmem:[%s10 + $0x10] sm:$0xff]
        %v1302 = vld [vmem:[%s10 + $0x18] sm:$0xff]
        %v1303 = vld [vmem:[%s10 + $0x20] sm:$0xff]
        %1305 = vset.pattern.permute.xlu0 0
        %1306 = vperm.xlu0 %1305, %v1299
        %v1307 = vpop.permute.xlu0 %1306
        %1310 = vset.pattern.permute.xlu0 0
        %1311 = vperm.xlu0 %1310, %v1300
        %v1312 = vpop.permute.xlu0 %1311
        %1315 = vset.pattern.permute.xlu0 0
        %1316 = vperm.xlu0 %1315, %v1301
        %v1317 = vpop.permute.xlu0 %1316
        %1320 = vset.pattern.permute.xlu0 0
        %1321 = vperm.xlu0 %1320, %v1302
        %v1322 = vpop.permute.xlu0 %1321
        %1325 = vset.pattern.permute.xlu0 0
        %1326 = vperm.xlu0 %1325, %v1303
        %v1327 = vpop.permute.xlu0 %1326
        %v1329 = vmul.f32 %v1294, %v1307
        %v1330 = vmul.f32 %v1295, %v1312
        %v1331 = vmul.f32 %v1296, %v1317
        %v1332 = vmul.f32 %v1297, %v1322
        %v1333 = vmul.f32 %v1298, %v1327
        %v1334 = vld [vmem:[%s3] sm:$0xff]
        %v1335 = vld [vmem:[%s3 + $0x8] sm:$0xff]
        %v1336 = vld [vmem:[%s3 + $0x10] sm:$0xff]
        %v1337 = vld [vmem:[%s3 + $0x18] sm:$0xff]
        %v1338 = vld [vmem:[%s3 + $0x20] sm:$0xff]
        %v1339 = vld [vmem:[%s7] sm:$0xff]
        %v1340 = vld [vmem:[%s7 + $0x8] sm:$0xff]
        %v1341 = vld [vmem:[%s7 + $0x10] sm:$0xff]
        %v1342 = vld [vmem:[%s7 + $0x18] sm:$0xff]
        %v1343 = vld [vmem:[%s8] sm:$0xff]
        %v1344 = vld [vmem:[%s8 + $0x8] sm:$0xff]
        %v1346 = vsel %vm741, %v1329, 0
        %v1349 = vsel %vm741, %v1330, 0
        %v1352 = vsel %vm741, %v1331, 0
        %v1355 = vsel %vm741, %v1332, 0
        %v1358 = vsel %vm741, %v1333, 0
        %1360 = vmatprep.subr.mxu0 0.0
        %1361 = vmatpush1.msra.mxu0 %v1343
        %1362 = vmatprep.subr.mxu0 0.0
        %1363 = vmatpush1.msra.mxu0 %v1344
        %1364 = vmatprep.subr.mxu0 0.0
        %1365 = vmatpush1.msra.mxu0 0.0
        %1366 = vmatprep.subr.mxu0 0.0
        %1367 = vmatpush1.msra.mxu0 0.0
        %1368 = vmatprep.subr.mxu0 0.0
        %1369 = vmatpush1.msra.mxu0 0.0
        %1370 = vmatprep.subr.mxu0 0.0
        %1371 = vmatpush1.msra.mxu0 0.0
        %1372 = vmatprep.subr.mxu0 0.0
        %1373 = vmatpush1.msra.mxu0 0.0
        %1374 = vmatprep.subr.mxu0 0.0
        %1375 = vmatpush1.msra.mxu0 0.0
        %1376 = vmatprep.subr.mxu0 0.0
        %1377 = vmatpush1.msra.mxu0 0.0
        %1378 = vmatprep.subr.mxu0 0.0
        %1379 = vmatpush1.msra.mxu0 0.0
        %1380 = vmatprep.subr.mxu0 0.0
        %1381 = vmatpush1.msra.mxu0 0.0
        %1382 = vmatprep.subr.mxu0 0.0
        %1383 = vmatpush1.msra.mxu0 0.0
        %1384 = vmatprep.subr.mxu0 0.0
        %1385 = vmatpush1.msra.mxu0 0.0
        %1386 = vmatprep.subr.mxu0 0.0
        %1387 = vmatpush1.msra.mxu0 0.0
        %1388 = vmatprep.subr.mxu0 0.0
        %1389 = vmatpush1.msra.mxu0 0.0
        %1390 = vmatprep.subr.mxu0 0.0
        %1391 = vmatpush1.msra.mxu0 0.0
        %1392 = vmatprep.subr.mxu0 0.0
        %1393 = vmatpush1.msra.mxu0 0.0
        %1394 = vmatprep.subr.mxu0 0.0
        %1395 = vmatpush1.msra.mxu0 0.0
        %1396 = vmatprep.subr.mxu0 0.0
        %1397 = vmatpush1.msra.mxu0 0.0
        %1398 = vmatprep.subr.mxu0 0.0
        %1399 = vmatpush1.msra.mxu0 0.0
        %1400 = vmatprep.subr.mxu0 0.0
        %1401 = vmatpush1.msra.mxu0 0.0
        %1402 = vmatprep.subr.mxu0 0.0
        %1403 = vmatpush1.msra.mxu0 0.0
        %1404 = vmatprep.subr.mxu0 0.0
        %1405 = vmatpush1.msra.mxu0 0.0
        %1406 = vmatprep.subr.mxu0 0.0
        %1407 = vmatpush1.msra.mxu0 0.0
        %1408 = vmatprep.subr.mxu0 0.0
        %1409 = vmatpush1.msra.mxu0 0.0
        %1410 = vmatprep.subr.mxu0 0.0
        %1411 = vmatpush1.msra.mxu0 0.0
        %1412 = vmatprep.subr.mxu0 0.0
        %1413 = vmatpush1.msra.mxu0 0.0
        %1414 = vmatprep.subr.mxu0 0.0
        %1415 = vmatpush1.msra.mxu0 0.0
        %1416 = vmatprep.subr.mxu0 0.0
        %1417 = vmatpush1.msra.mxu0 0.0
        %1418 = vmatprep.subr.mxu0 0.0
        %1419 = vmatpush1.msra.mxu0 0.0
        %1420 = vmatprep.subr.mxu0 0.0
        %1421 = vmatpush1.msra.mxu0 0.0
        %1422 = vmatprep.subr.mxu0 0.0
        %1423 = vmatpush1.msra.mxu0 0.0
        %1424 = vmatprep.mubr.f32.mxu0 0.0
        %1425 = vmatmul.mubr.f32.gmra.mrb[0].mxu0 %v1346
        %v1426 = vpop.f32.mrb[0].mxu0
        %v1427 = vadd.f32 0.0, %v1426
        %v1428 = vpop.f32.mrb[0].mxu0
        %1429 = vmatprep.mubr.f32.mxu0 0.0
        %1430 = vmatmul.mubr.f32.gmra.mrb[0].mxu0 %v1349
        %v1431 = vpop.f32.mrb[0].mxu0
        %v1432 = vadd.f32 0.0, %v1431
        %v1433 = vpop.f32.mrb[0].mxu0
        %1434 = vmatprep.mubr.f32.mxu0 0.0
        %1435 = vmatmul.mubr.f32.gmra.mrb[0].mxu0 %v1352
        %v1436 = vpop.f32.mrb[0].mxu0
        %v1437 = vadd.f32 0.0, %v1436
        %v1438 = vpop.f32.mrb[0].mxu0
        %1439 = vmatprep.mubr.f32.mxu0 0.0
        %1440 = vmatmul.mubr.f32.gmra.mrb[0].mxu0 %v1355
        %v1441 = vpop.f32.mrb[0].mxu0
        %v1442 = vadd.f32 0.0, %v1441
        %v1443 = vpop.f32.mrb[0].mxu0
        %1444 = vmatprep.mubr.f32.mxu0 0.0
        %1445 = vmatmul.mubr.f32.gmra.mrb[0].mxu0 %v1358
        %v1446 = vpop.f32.mrb[0].mxu0
        %v1447 = vadd.f32 0.0, %v1446
        %v1448 = vpop.f32.mrb[0].mxu0
        %1449 = vdwg.mxu0
        %v1451 = vsel %vm935, %v1334, 0
        %v1454 = vsel %vm935, %v1335, 0
        %v1457 = vsel %vm935, %v1336, 0
        %v1460 = vsel %vm935, %v1337, 0
        %v1463 = vsel %vm935, %v1338, 0
        %1465 = vmatprep.subr.mxu0 0.0
        %1466 = vmatpush1.msra.mxu0 %v1339
        %1467 = vmatprep.subr.mxu0 0.0
        %1468 = vmatpush1.msra.mxu0 %v1340
        %1469 = vmatprep.subr.mxu0 0.0
        %1470 = vmatpush1.msra.mxu0 %v1341
        %1471 = vmatprep.subr.mxu0 0.0
        %1472 = vmatpush1.msra.mxu0 %v1342
        %1473 = vmatprep.subr.mxu0 0.0
        %1474 = vmatpush1.msra.mxu0 0.0
        %1475 = vmatprep.subr.mxu0 0.0
        %1476 = vmatpush1.msra.mxu0 0.0
        %1477 = vmatprep.subr.mxu0 0.0
        %1478 = vmatpush1.msra.mxu0 0.0
        %1479 = vmatprep.subr.mxu0 0.0
        %1480 = vmatpush1.msra.mxu0 0.0
        %1481 = vmatprep.subr.mxu0 0.0
        %1482 = vmatpush1.msra.mxu0 0.0
        %1483 = vmatprep.subr.mxu0 0.0
        %1484 = vmatpush1.msra.mxu0 0.0
        %1485 = vmatprep.subr.mxu0 0.0
        %1486 = vmatpush1.msra.mxu0 0.0
        %1487 = vmatprep.subr.mxu0 0.0
        %1488 = vmatpush1.msra.mxu0 0.0
        %1489 = vmatprep.subr.mxu0 0.0
        %1490 = vmatpush1.msra.mxu0 0.0
        %1491 = vmatprep.subr.mxu0 0.0
        %1492 = vmatpush1.msra.mxu0 0.0
        %1493 = vmatprep.subr.mxu0 0.0
        %1494 = vmatpush1.msra.mxu0 0.0
        %1495 = vmatprep.subr.mxu0 0.0
        %1496 = vmatpush1.msra.mxu0 0.0
        %1497 = vmatprep.subr.mxu0 0.0
        %1498 = vmatpush1.msra.mxu0 0.0
        %1499 = vmatprep.subr.mxu0 0.0
        %1500 = vmatpush1.msra.mxu0 0.0
        %1501 = vmatprep.subr.mxu0 0.0
        %1502 = vmatpush1.msra.mxu0 0.0
        %1503 = vmatprep.subr.mxu0 0.0
        %1504 = vmatpush1.msra.mxu0 0.0
        %1505 = vmatprep.subr.mxu0 0.0
        %1506 = vmatpush1.msra.mxu0 0.0
        %1507 = vmatprep.subr.mxu0 0.0
        %1508 = vmatpush1.msra.mxu0 0.0
        %1509 = vmatprep.subr.mxu0 0.0
        %1510 = vmatpush1.msra.mxu0 0.0
        %1511 = vmatprep.subr.mxu0 0.0
        %1512 = vmatpush1.msra.mxu0 0.0
        %1513 = vmatprep.subr.mxu0 0.0
        %1514 = vmatpush1.msra.mxu0 0.0
        %1515 = vmatprep.subr.mxu0 0.0
        %1516 = vmatpush1.msra.mxu0 0.0
        %1517 = vmatprep.subr.mxu0 0.0
        %1518 = vmatpush1.msra.mxu0 0.0
        %1519 = vmatprep.subr.mxu0 0.0
        %1520 = vmatpush1.msra.mxu0 0.0
        %1521 = vmatprep.subr.mxu0 0.0
        %1522 = vmatpush1.msra.mxu0 0.0
        %1523 = vmatprep.subr.mxu0 0.0
        %1524 = vmatpush1.msra.mxu0 0.0
        %1525 = vmatprep.subr.mxu0 0.0
        %1526 = vmatpush1.msra.mxu0 0.0
        %1527 = vmatprep.subr.mxu0 0.0
        %1528 = vmatpush1.msra.mxu0 0.0
        %1529 = vmatprep.mubr.f32.mxu0 0.0
        %1530 = vmatmul.mubr.f32.gmra.mrb[0].mxu0 %v1451
        %v1531 = vpop.f32.mrb[0].mxu0
        %v1532 = vadd.f32 %v1427, %v1531
        %v1533 = vpop.f32.mrb[0].mxu0
        %1534 = vmatprep.mubr.f32.mxu0 0.0
        %1535 = vmatmul.mubr.f32.gmra.mrb[0].mxu0 %v1454
        %v1536 = vpop.f32.mrb[0].mxu0
        %v1537 = vadd.f32 %v1432, %v1536
        %v1538 = vpop.f32.mrb[0].mxu0
        %1539 = vmatprep.mubr.f32.mxu0 0.0
        %1540 = vmatmul.mubr.f32.gmra.mrb[0].mxu0 %v1457
        %v1541 = vpop.f32.mrb[0].mxu0
        %v1542 = vadd.f32 %v1437, %v1541
        %v1543 = vpop.f32.mrb[0].mxu0
        %1544 = vmatprep.mubr.f32.mxu0 0.0
        %1545 = vmatmul.mubr.f32.gmra.mrb[0].mxu0 %v1460
        %v1546 = vpop.f32.mrb[0].mxu0
        %v1547 = vadd.f32 %v1442, %v1546
        %v1548 = vpop.f32.mrb[0].mxu0
        %1549 = vmatprep.mubr.f32.mxu0 0.0
        %1550 = vmatmul.mubr.f32.gmra.mrb[0].mxu0 %v1463
        %v1551 = vpop.f32.mrb[0].mxu0
        %v1552 = vadd.f32 %v1447, %v1551
        %v1553 = vpop.f32.mrb[0].mxu0
        %1554 = vdwg.mxu0
        %v1555 = vld [vmem:[%s9] sm:$0x1]
        %v1557 = vlaneseq
        %v1558 = vshrl.u32 %v1557, 7
        %v1559 = vsub.s32 0, %v1558
        %v1560 = vrot.slane %v1555, %v1559
        %v1562 = vadd.f32 %v1532, %v1560
        %v1563 = vadd.f32 %v1537, %v1560
        %v1564 = vadd.f32 %v1542, %v1560
        %v1565 = vadd.f32 %v1547, %v1560
        %v1566 = vadd.f32 %v1552, %v1560
        %v1567 = vmax.f32 %v1562, 0.0
        %v1568 = vmax.f32 %v1563, 0.0
        %v1569 = vmax.f32 %v1564, 0.0
        %v1570 = vmax.f32 %v1565, 0.0
        %v1571 = vmax.f32 %v1566, 0.0
        %1572 = vst.msk [vmem:[%s11] sm:$0xff] %vm741, %v1567
        %1573 = vst.msk [vmem:[%s11 + $0x8] sm:$0xff] %vm741, %v1568
        %1574 = vst.msk [vmem:[%s11 + $0x10] sm:$0xff] %vm741, %v1569
        %1575 = vst.msk [vmem:[%s11 + $0x18] sm:$0xff] %vm741, %v1570
        %1576 = vst.msk [vmem:[%s11 + $0x20] sm:$0xff] %vm741, %v1571
      $region72: #{model_forward.6} parent=63 // pred_fallthru
        _
      // Predicated region
      $region73: #{model_forward.6} parent=63 // pred_check
        %p1577 = pneg %p281
      $region74: #{model_forward.6} parent=63 // pred_check_branch
        %1579 = sbr.rel (%p1577) target = $region76
      $region75: #{model_forward.6} parent=63 // pred_region
        _
      $region76: #{model_forward.6} parent=63 // pred_fallthru
        _
      // Predicated region
      $region77: #{model_forward.6} parent=63 // pred_check
        %p1580 = pneg %p281
      $region78: #{model_forward.6} parent=63 // pred_check_branch
        %1582 = sbr.rel (%p1580) target = $region80
      $region79: #{model_forward.6} parent=63 // pred_region
        _
      $region80: #{model_forward.6} parent=63 // pred_fallthru
        _
    $region64: #{model_forward.6} parent=5 // pred_fallthru
      _
    %p1583 = scmp.le.s32.totalorder 2, %s17
    // Predicated region
    $region81: #{model_forward.6} parent=5 // pred_check
      %p1584 = pneg %p1583
    $region82: #{model_forward.6} parent=5 // pred_check_branch
      %1586 = sbr.rel (%p1584) target = $region84
    $region83: #{model_forward.6} parent=5 // pred_region
      %s1587 = ssub.s32 %s17, 2
    $region84: #{model_forward.6} parent=5 // pred_fallthru
      _
  $region6: #{model_forward.6} parent=0 // loop_footer
    %s21 = sadd.s32 1, %s17
  $region7: #{model_forward.6} parent=0 // loop_footer_branch
    %16 = sbr.rel target = $region3
  $region8: #{model_forward.6} parent=0 // loop_exit
    _

// kernel: model_forward.5
$region0: #{model_forward.5}
  #allocation0 [shape = 'u32[]', space=smem, size = 0x4, offset = 0x4, fixed_abs, tag = 'smem constant byte address 0x4 - core index']
  #allocation1 [shape = 'u32[144,128]{1,0:T(1,128)}', space=vmem, size = 0x12000, scoped, tag = 'internal scratch']
  #allocation2 [shape = 'f32[41,32]{1,0:T(8,128)}', space=vmem, size = 0x6000, scoped, tag = 'scratch operand']
  %s0 = inlined_call_operand.vmem [shape: s32[384,1], index: 0, kind: input, shape index: {}]
  %s1 = inlined_call_operand.vmem [shape: s32[1,384], index: 1, kind: input, shape index: {}]
  %s2 = inlined_call_operand.vmem [shape: f32[384,16], index: 2, kind: input, shape index: {}]
  %s3 = inlined_call_operand.vmem [shape: f32[40,32], index: 3, kind: input, shape index: {}]
  %s4 = inlined_call_operand.vmem [shape: f32[32,32], index: 4, kind: input, shape index: {}]
  %s5 = inlined_call_operand.vmem [shape: f32[16,32], index: 5, kind: input, shape index: {}]
  %s6 = inlined_call_operand.vmem [shape: f32[1,32], index: 6, kind: input, shape index: {}]
  %s7 = inlined_call_operand.vmem [shape: f32[32,32], index: 7, kind: input, shape index: {}]
  %s8 = inlined_call_operand.vmem [shape: f32[32,32], index: 8, kind: input, shape index: {}]
  %s9 = inlined_call_operand.vmem [shape: f32[1,32], index: 9, kind: input, shape index: {}]
  %s10 = inlined_call_operand.vmem [shape: f32[40,1], index: 10, kind: input, shape index: {}]
  %s11 = inlined_call_operand.vmem [shape: f32[40,32], index: 11, kind: output, shape index: {}]
  %s12 = sld [smem:[#allocation0]]
  $region85: #{model_forward.5} parent=0
    _
  %s14 = ssub.s32 1, %s12
  %s15 = scalar_select 0, %s14, %s12
  loop: start=0, step=1, limit=5
  $region2: #{model_forward.5} parent=0 // loop_pre_header
    _
  $region3: #{model_forward.5} parent=0 // loop_header
    %s17 = sphi 0, %s21
    %p18 = scmp.ge.s32.totalorder %s17, 5
    %s27 = sphi 0, %s29
    %s30 = sphi 0, %s27
    %s31 = sphi 0, %s30
    %s47 = sphi 0, %s31
    %s53 = sphi 0, %s55
    %s56 = sphi 0, %s53
    %s57 = sphi 0, %s56
    %s73 = sphi 0, %s57
    %s79 = sphi 0, %s81
    %s82 = sphi 0, %s79
    %s83 = sphi 0, %s82
    %s99 = sphi 0, %s83
    %s103 = sphi 0, %s103
    %s105 = sphi 0, %s103
    %s106 = sphi 0, %s105
    %s120 = sphi 0, %s106
    %s124 = sphi 0, %s124
    %s126 = sphi 0, %s124
    %s127 = sphi 0, %s126
    %s141 = sphi 0, %s127
    %s145 = sphi 0, %s145
    %s147 = sphi 0, %s145
    %s148 = sphi 0, %s147
    %s162 = sphi 0, %s148
    %s166 = sphi 0, %s166
    %s168 = sphi 0, %s166
    %s169 = sphi 0, %s168
    %s183 = sphi 0, %s169
    %s187 = sphi 0, %s187
    %s189 = sphi 0, %s187
    %s190 = sphi 0, %s189
    %s204 = sphi 0, %s190
    %s208 = sphi 0, %s208
    %s210 = sphi 0, %s208
    %s211 = sphi 0, %s210
    %s225 = sphi 0, %s211
    %s229 = sphi 0, %s229
    %s231 = sphi 0, %s229
    %s232 = sphi 0, %s231
    %s246 = sphi 0, %s232
    %s250 = sphi 0, %s250
    %s252 = sphi 0, %s250
    %s253 = sphi 0, %s252
    %s267 = sphi 0, %s253
    %s271 = sphi 0, %s271
    %s273 = sphi 0, %s271
    %s274 = sphi 0, %s273
    %s288 = sphi 0, %s274
  $region4: #{model_forward.5} parent=0 // loop_header_branch
    %20 = sbr.rel (%p18) target = $region8
  $region5: #{model_forward.5} parent=0 // loop_body
    %s22 = ssub.s32 %s17, 1
    %s23 = ssub.s32 %s17, 2
    %s24 = sadd.s32 %s17, 1
    %s25 = ssub.s32 %s17, %s24
    %p26 = scmp.eq.s32.totalorder %s25, 0
    %s28 = sadd.s32 %s27, 1
    %s29 = scalar_select %p26, %s27, %s28
    %p32 = pneg %p26
    %p33 = scmp.eq.s32.totalorder %s17, 2
    %p34 = por %p32, %p33
    %p35 = scmp.ne.s32.totalorder %s27, %s30
    %p36 = scmp.eq.s32.totalorder %s17, 0
    %p37 = por %p35, %p36
    %p38 = scmp.ne.s32.totalorder %s27, %s30
    %p39 = scmp.eq.s32.totalorder %s22, 2
    %p40 = por %p38, %p39
    %p41 = scmp.ne.s32.totalorder %s30, %s31
    %p42 = scmp.eq.s32.totalorder %s22, 0
    %p43 = por %p41, %p42
    %p44 = scmp.ne.s32.totalorder %s30, %s31
    %p45 = scmp.eq.s32.totalorder %s23, 2
    %p46 = por %p44, %p45
    %p48 = scmp.ne.s32.totalorder %s31, %s47
    %p49 = scmp.eq.s32.totalorder %s23, 0
    %p50 = por %p48, %p49
    %s51 = ssub.s32 %s17, %s24
    %p52 = scmp.eq.s32.totalorder %s51, 0
    %s54 = sadd.s32 %s53, 1
    %s55 = scalar_select %p52, %s53, %s54
    %p58 = pneg %p52
    %p59 = scmp.eq.s32.totalorder %s17, 2
    %p60 = por %p58, %p59
    %p61 = scmp.ne.s32.totalorder %s53, %s56
    %p62 = scmp.eq.s32.totalorder %s17, 0
    %p63 = por %p61, %p62
    %p64 = scmp.ne.s32.totalorder %s53, %s56
    %p65 = scmp.eq.s32.totalorder %s22, 2
    %p66 = por %p64, %p65
    %p67 = scmp.ne.s32.totalorder %s56, %s57
    %p68 = scmp.eq.s32.totalorder %s22, 0
    %p69 = por %p67, %p68
    %p70 = scmp.ne.s32.totalorder %s56, %s57
    %p71 = scmp.eq.s32.totalorder %s23, 2
    %p72 = por %p70, %p71
    %p74 = scmp.ne.s32.totalorder %s57, %s73
    %p75 = scmp.eq.s32.totalorder %s23, 0
    %p76 = por %p74, %p75
    %s77 = ssub.s32 %s17, %s24
    %p78 = scmp.eq.s32.totalorder %s77, 0
    %s80 = sadd.s32 %s79, 1
    %s81 = scalar_select %p78, %s79, %s80
    %p84 = pneg %p78
    %p85 = scmp.eq.s32.totalorder %s17, 2
    %p86 = por %p84, %p85
    %p87 = scmp.ne.s32.totalorder %s79, %s82
    %p88 = scmp.eq.s32.totalorder %s17, 0
    %p89 = por %p87, %p88
    %p90 = scmp.ne.s32.totalorder %s79, %s82
    %p91 = scmp.eq.s32.totalorder %s22, 2
    %p92 = por %p90, %p91
    %p93 = scmp.ne.s32.totalorder %s82, %s83
    %p94 = scmp.eq.s32.totalorder %s22, 0
    %p95 = por %p93, %p94
    %p96 = scmp.ne.s32.totalorder %s82, %s83
    %p97 = scmp.eq.s32.totalorder %s23, 2
    %p98 = por %p96, %p97
    %p100 = scmp.ne.s32.totalorder %s83, %s99
    %p101 = scmp.eq.s32.totalorder %s23, 0
    %p102 = por %p100, %p101
    %s104 = sadd.s32 %s103, 1
    %p107 = scmp.eq.s32.totalorder %s17, 2
    %p108 = scmp.ne.s32.totalorder %s103, %s105
    %p109 = scmp.eq.s32.totalorder %s17, 0
    %p110 = por %p108, %p109
    %p111 = scmp.ne.s32.totalorder %s103, %s105
    %p112 = scmp.eq.s32.totalorder %s22, 2
    %p113 = por %p111, %p112
    %p114 = scmp.ne.s32.totalorder %s105, %s106
    %p115 = scmp.eq.s32.totalorder %s22, 0
    %p116 = por %p114, %p115
    %p117 = scmp.ne.s32.totalorder %s105, %s106
    %p118 = scmp.eq.s32.totalorder %s23, 2
    %p119 = por %p117, %p118
    %p121 = scmp.ne.s32.totalorder %s106, %s120
    %p122 = scmp.eq.s32.totalorder %s23, 0
    %p123 = por %p121, %p122
    %s125 = sadd.s32 %s124, 1
    %p128 = scmp.eq.s32.totalorder %s17, 2
    %p129 = scmp.ne.s32.totalorder %s124, %s126
    %p130 = scmp.eq.s32.totalorder %s17, 0
    %p131 = por %p129, %p130
    %p132 = scmp.ne.s32.totalorder %s124, %s126
    %p133 = scmp.eq.s32.totalorder %s22, 2
    %p134 = por %p132, %p133
    %p135 = scmp.ne.s32.totalorder %s126, %s127
    %p136 = scmp.eq.s32.totalorder %s22, 0
    %p137 = por %p135, %p136
    %p138 = scmp.ne.s32.totalorder %s126, %s127
    %p139 = scmp.eq.s32.totalorder %s23, 2
    %p140 = por %p138, %p139
    %p142 = scmp.ne.s32.totalorder %s127, %s141
    %p143 = scmp.eq.s32.totalorder %s23, 0
    %p144 = por %p142, %p143
    %s146 = sadd.s32 %s145, 1
    %p149 = scmp.eq.s32.totalorder %s17, 2
    %p150 = scmp.ne.s32.totalorder %s145, %s147
    %p151 = scmp.eq.s32.totalorder %s17, 0
    %p152 = por %p150, %p151
    %p153 = scmp.ne.s32.totalorder %s145, %s147
    %p154 = scmp.eq.s32.totalorder %s22, 2
    %p155 = por %p153, %p154
    %p156 = scmp.ne.s32.totalorder %s147, %s148
    %p157 = scmp.eq.s32.totalorder %s22, 0
    %p158 = por %p156, %p157
    %p159 = scmp.ne.s32.totalorder %s147, %s148
    %p160 = scmp.eq.s32.totalorder %s23, 2
    %p161 = por %p159, %p160
    %p163 = scmp.ne.s32.totalorder %s148, %s162
    %p164 = scmp.eq.s32.totalorder %s23, 0
    %p165 = por %p163, %p164
    %s167 = sadd.s32 %s166, 1
    %p170 = scmp.eq.s32.totalorder %s17, 2
    %p171 = scmp.ne.s32.totalorder %s166, %s168
    %p172 = scmp.eq.s32.totalorder %s17, 0
    %p173 = por %p171, %p172
    %p174 = scmp.ne.s32.totalorder %s166, %s168
    %p175 = scmp.eq.s32.totalorder %s22, 2
    %p176 = por %p174, %p175
    %p177 = scmp.ne.s32.totalorder %s168, %s169
    %p178 = scmp.eq.s32.totalorder %s22, 0
    %p179 = por %p177, %p178
    %p180 = scmp.ne.s32.totalorder %s168, %s169
    %p181 = scmp.eq.s32.totalorder %s23, 2
    %p182 = por %p180, %p181
    %p184 = scmp.ne.s32.totalorder %s169, %s183
    %p185 = scmp.eq.s32.totalorder %s23, 0
    %p186 = por %p184, %p185
    %s188 = sadd.s32 %s187, 1
    %p191 = scmp.eq.s32.totalorder %s17, 2
    %p192 = scmp.ne.s32.totalorder %s187, %s189
    %p193 = scmp.eq.s32.totalorder %s17, 0
    %p194 = por %p192, %p193
    %p195 = scmp.ne.s32.totalorder %s187, %s189
    %p196 = scmp.eq.s32.totalorder %s22, 2
    %p197 = por %p195, %p196
    %p198 = scmp.ne.s32.totalorder %s189, %s190
    %p199 = scmp.eq.s32.totalorder %s22, 0
    %p200 = por %p198, %p199
    %p201 = scmp.ne.s32.totalorder %s189, %s190
    %p202 = scmp.eq.s32.totalorder %s23, 2
    %p203 = por %p201, %p202
    %p205 = scmp.ne.s32.totalorder %s190, %s204
    %p206 = scmp.eq.s32.totalorder %s23, 0
    %p207 = por %p205, %p206
    %s209 = sadd.s32 %s208, 1
    %p212 = scmp.eq.s32.totalorder %s17, 2
    %p213 = scmp.ne.s32.totalorder %s208, %s210
    %p214 = scmp.eq.s32.totalorder %s17, 0
    %p215 = por %p213, %p214
    %p216 = scmp.ne.s32.totalorder %s208, %s210
    %p217 = scmp.eq.s32.totalorder %s22, 2
    %p218 = por %p216, %p217
    %p219 = scmp.ne.s32.totalorder %s210, %s211
    %p220 = scmp.eq.s32.totalorder %s22, 0
    %p221 = por %p219, %p220
    %p222 = scmp.ne.s32.totalorder %s210, %s211
    %p223 = scmp.eq.s32.totalorder %s23, 2
    %p224 = por %p222, %p223
    %p226 = scmp.ne.s32.totalorder %s211, %s225
    %p227 = scmp.eq.s32.totalorder %s23, 0
    %p228 = por %p226, %p227
    %s230 = sadd.s32 %s229, 1
    %p233 = scmp.eq.s32.totalorder %s17, 2
    %p234 = scmp.ne.s32.totalorder %s229, %s231
    %p235 = scmp.eq.s32.totalorder %s17, 0
    %p236 = por %p234, %p235
    %p237 = scmp.ne.s32.totalorder %s229, %s231
    %p238 = scmp.eq.s32.totalorder %s22, 2
    %p239 = por %p237, %p238
    %p240 = scmp.ne.s32.totalorder %s231, %s232
    %p241 = scmp.eq.s32.totalorder %s22, 0
    %p242 = por %p240, %p241
    %p243 = scmp.ne.s32.totalorder %s231, %s232
    %p244 = scmp.eq.s32.totalorder %s23, 2
    %p245 = por %p243, %p244
    %p247 = scmp.ne.s32.totalorder %s232, %s246
    %p248 = scmp.eq.s32.totalorder %s23, 0
    %p249 = por %p247, %p248
    %s251 = sadd.s32 %s250, 1
    %p254 = scmp.eq.s32.totalorder %s17, 2
    %p255 = scmp.ne.s32.totalorder %s250, %s252
    %p256 = scmp.eq.s32.totalorder %s17, 0
    %p257 = por %p255, %p256
    %p258 = scmp.ne.s32.totalorder %s250, %s252
    %p259 = scmp.eq.s32.totalorder %s22, 2
    %p260 = por %p258, %p259
    %p261 = scmp.ne.s32.totalorder %s252, %s253
    %p262 = scmp.eq.s32.totalorder %s22, 0
    %p263 = por %p261, %p262
    %p264 = scmp.ne.s32.totalorder %s252, %s253
    %p265 = scmp.eq.s32.totalorder %s23, 2
    %p266 = por %p264, %p265
    %p268 = scmp.ne.s32.totalorder %s253, %s267
    %p269 = scmp.eq.s32.totalorder %s23, 0
    %p270 = por %p268, %p269
    %s272 = sadd.s32 %s271, 1
    %p275 = scmp.eq.s32.totalorder %s17, 2
    %p276 = scmp.ne.s32.totalorder %s271, %s273
    %p277 = scmp.eq.s32.totalorder %s17, 0
    %p278 = por %p276, %p277
    %p279 = scmp.ne.s32.totalorder %s271, %s273
    %p280 = scmp.eq.s32.totalorder %s22, 2
    %p281 = por %p279, %p280
    %p282 = scmp.ne.s32.totalorder %s273, %s274
    %p283 = scmp.eq.s32.totalorder %s22, 0
    %p284 = por %p282, %p283
    %p285 = scmp.ne.s32.totalorder %s273, %s274
    %p286 = scmp.eq.s32.totalorder %s23, 2
    %p287 = por %p285, %p286
    %p289 = scmp.ne.s32.totalorder %s274, %s288
    %p290 = scmp.eq.s32.totalorder %s23, 0
    %p291 = por %p289, %p290
    %p292 = scmp.le.s32.totalorder 1, %s17
    %p293 = scmp.lt.s32.totalorder %s17, 4
    %p294 = pnand %p292, %p293
    %p295 = pneg %p294
    // Predicated region
    $region9: #{model_forward.5} parent=5 // pred_check
      _
    $region10: #{model_forward.5} parent=5 // pred_check_branch
      %297 = sbr.rel (%p294) target = $region12
    $region11: #{model_forward.5} parent=5 // pred_region
      %s298 = ssub.s32 %s17, 1
      // Predicated region
      $region13: #{model_forward.5} parent=11 // pred_check
        %p299 = pneg %p116
      $region14: #{model_forward.5} parent=11 // pred_check_branch
        %301 = sbr.rel (%p299) target = $region16
      $region15: #{model_forward.5} parent=11 // pred_region
        _
      $region16: #{model_forward.5} parent=11 // pred_fallthru
        _
      // Predicated region
      $region17: #{model_forward.5} parent=11 // pred_check
        %p302 = pneg %p137
      $region18: #{model_forward.5} parent=11 // pred_check_branch
        %304 = sbr.rel (%p302) target = $region20
      $region19: #{model_forward.5} parent=11 // pred_region
        _
      $region20: #{model_forward.5} parent=11 // pred_fallthru
        _
      // Predicated region
      $region21: #{model_forward.5} parent=11 // pred_check
        %p305 = pneg %p158
      $region22: #{model_forward.5} parent=11 // pred_check_branch
        %307 = sbr.rel (%p305) target = $region24
      $region23: #{model_forward.5} parent=11 // pred_region
        _
      $region24: #{model_forward.5} parent=11 // pred_fallthru
        _
      // Predicated region
      $region25: #{model_forward.5} parent=11 // pred_check
        %p308 = pneg %p179
      $region26: #{model_forward.5} parent=11 // pred_check_branch
        %310 = sbr.rel (%p308) target = $region28
      $region27: #{model_forward.5} parent=11 // pred_region
        _
      $region28: #{model_forward.5} parent=11 // pred_fallthru
        _
      // Predicated region
      $region29: #{model_forward.5} parent=11 // pred_check
        %p311 = pneg %p200
      $region30: #{model_forward.5} parent=11 // pred_check_branch
        %313 = sbr.rel (%p311) target = $region32
      $region31: #{model_forward.5} parent=11 // pred_region
        _
      $region32: #{model_forward.5} parent=11 // pred_fallthru
        _
      // Predicated region
      $region33: #{model_forward.5} parent=11 // pred_check
        %p314 = pneg %p221
      $region34: #{model_forward.5} parent=11 // pred_check_branch
        %316 = sbr.rel (%p314) target = $region36
      $region35: #{model_forward.5} parent=11 // pred_region
        _
      $region36: #{model_forward.5} parent=11 // pred_fallthru
        _
      // Predicated region
      $region37: #{model_forward.5} parent=11 // pred_check
        %p317 = pneg %p242
      $region38: #{model_forward.5} parent=11 // pred_check_branch
        %319 = sbr.rel (%p317) target = $region40
      $region39: #{model_forward.5} parent=11 // pred_region
        _
      $region40: #{model_forward.5} parent=11 // pred_fallthru
        _
      // Predicated region
      $region41: #{model_forward.5} parent=11 // pred_check
        %p320 = pneg %p263
      $region42: #{model_forward.5} parent=11 // pred_check_branch
        %322 = sbr.rel (%p320) target = $region44
      $region43: #{model_forward.5} parent=11 // pred_region
        _
      $region44: #{model_forward.5} parent=11 // pred_fallthru
        _
    $region12: #{model_forward.5} parent=5 // pred_fallthru
      _
    %p323 = scmp.lt.s32.totalorder %s17, 3
    // Predicated region
    $region45: #{model_forward.5} parent=5 // pred_check
      %p324 = pneg %p323
    $region46: #{model_forward.5} parent=5 // pred_check_branch
      %326 = sbr.rel (%p324) target = $region48
    $region47: #{model_forward.5} parent=5 // pred_region
      // Predicated region
      $region49: #{model_forward.5} parent=47 // pred_check
        %p327 = pneg %p37
      $region50: #{model_forward.5} parent=47 // pred_check_branch
        %329 = sbr.rel (%p327) target = $region52
      $region51: #{model_forward.5} parent=47 // pred_region
        %s330 = smul.u32 16, %s17
        %p331 = scmp.lt.s32.totalorder %s330, 47
        %s332 = scalar_select %p331, %s330, 47
        %s333 = smul.addr %s332, 8
        %s334 = scalar_lea.vmem %s0, %s333
        %s335 = smul.u32 16, %s17
      $region52: #{model_forward.5} parent=47 // pred_fallthru
        _
      // Predicated region
      $region53: #{model_forward.5} parent=47 // pred_check
        %p336 = pneg %p63
      $region54: #{model_forward.5} parent=47 // pred_check_branch
        %338 = sbr.rel (%p336) target = $region56
      $region55: #{model_forward.5} parent=47 // pred_region
        %p339 = scmp.lt.s32.totalorder %s17, 2
        %s340 = scalar_select %p339, %s17, 2
        %s341 = scalar_lea.vmem %s1, %s340
      $region56: #{model_forward.5} parent=47 // pred_fallthru
        _
      // Predicated region
      $region57: #{model_forward.5} parent=47 // pred_check
        %p342 = pneg %p89
      $region58: #{model_forward.5} parent=47 // pred_check_branch
        %344 = sbr.rel (%p342) target = $region60
      $region59: #{model_forward.5} parent=47 // pred_region
        %s345 = smul.u32 16, %s17
        %p346 = scmp.lt.s32.totalorder %s345, 47
        %s347 = scalar_select %p346, %s345, 47
        %s348 = smul.addr %s347, 8
        %s349 = scalar_lea.vmem %s2, %s348
        %s350 = smul.u32 16, %s17
      $region60: #{model_forward.5} parent=47 // pred_fallthru
        _
    $region48: #{model_forward.5} parent=5 // pred_fallthru
      _
    %p351 = scmp.le.s32.totalorder 1, %s17
    %p352 = scmp.lt.s32.totalorder %s17, 4
    %p353 = pnand %p351, %p352
    %p354 = pneg %p353
    // Predicated region
    $region61: #{model_forward.5} parent=5 // pred_check
      _
    $region62: #{model_forward.5} parent=5 // pred_check_branch
      %356 = sbr.rel (%p353) target = $region64
    $region63: #{model_forward.5} parent=5 // pred_region
      %s357 = ssub.s32 %s17, 1
      %s358 = smul.u32 16, %s22
      %p359 = scmp.lt.s32.totalorder %s358, 47
      %s360 = scalar_select %p359, %s358, 47
      %s361 = smul.addr %s360, 8
      %s362 = scalar_lea.vmem %s0, %s361
      %p363 = pneg %p43
      %p364 = pneg %p40
      %p365 = scmp.lt.s32.totalorder %s22, 2
      %s366 = scalar_select %p365, %s22, 2
      %s367 = scalar_lea.vmem %s1, %s366
      %p368 = pneg %p69
      %p369 = pneg %p66
      %s370 = smul.u32 16, %s22
      %p371 = scmp.lt.s32.totalorder %s370, 47
      %s372 = scalar_select %p371, %s370, 47
      %s373 = smul.addr %s372, 8
      %s374 = scalar_lea.vmem %s2, %s373
      %p375 = pneg %p95
      %p376 = pneg %p92
      %p377 = pneg %p116
      %p378 = pneg %p113
      %p379 = pneg %p137
      %p380 = pneg %p134
      %p381 = pneg %p158
      %p382 = pneg %p155
      %p383 = pneg %p179
      %p384 = pneg %p176
      %p385 = pneg %p200
      %p386 = pneg %p197
      %p387 = pneg %p221
      %p388 = pneg %p218
      %p389 = pneg %p242
      %p390 = pneg %p239
      %p391 = pneg %p263
      %p392 = pneg %p260
      %p393 = pneg %p284
      %p394 = pneg %p281
      %s395 = smul.u32 16, %s22
      %p396 = scmp.lt.s32.totalorder %s395, 47
      %s397 = scalar_select %p396, %s395, 47
      %s398 = smul.addr %s397, 8
      %s399 = scalar_lea.vmem %s0, %s398
      %s400 = smul.u32 16, %s22
      %p401 = scmp.lt.s32.totalorder %s22, 2
      %s402 = scalar_select %p401, %s22, 2
      %s403 = scalar_lea.vmem %s1, %s402
      %s404 = smul.u32 16, %s22
      %p405 = scmp.lt.s32.totalorder %s404, 47
      %s406 = scalar_select %p405, %s404, 47
      %s407 = smul.addr %s406, 8
      %s408 = scalar_lea.vmem %s2, %s407
      %s409 = smul.u32 16, %s22
      %p410 = scmp.eq.s32.totalorder %s22, 0
      // Predicated region
      $region65: #{model_forward.5} parent=63 // pred_check
        %p411 = pneg %p410
      $region66: #{model_forward.5} parent=63 // pred_check_branch
        %413 = sbr.rel (%p411) target = $region68
      $region67: #{model_forward.5} parent=63 // pred_region
        %vm414 = vcmask 261120
        %415 = vst.msk [vmem:[#allocation2] sm:$0xff] %vm414, 0.0
        %416 = vst.msk [vmem:[#allocation2 + $0x8] sm:$0xff] %vm414, 0.0
        %417 = vst.msk [vmem:[#allocation2 + $0x10] sm:$0xff] %vm414, 0.0
        %418 = vst.msk [vmem:[#allocation2 + $0x18] sm:$0xff] %vm414, 0.0
        %419 = vst.msk [vmem:[#allocation2 + $0x20] sm:$0xff] %vm414, 0.0
        %vm420 = vcmask 253952
        %421 = vst.msk [vmem:[#allocation2 + $0x28] sm:$0x1] %vm420, 0.0
      $region68: #{model_forward.5} parent=63 // pred_fallthru
        _
      %v422 = vld [vmem:[%s399] sm:$0xff]
      %v423 = vld [vmem:[%s399 + $0x8] sm:$0xff]
      %v424 = vld [vmem:[%s399 + $0x10] sm:$0xff]
      %v425 = vld [vmem:[%s399 + $0x18] sm:$0xff]
      %v426 = vld [vmem:[%s399 + $0x20] sm:$0xff]
      %v427 = vld [vmem:[%s399 + $0x28] sm:$0xff]
      %v428 = vld [vmem:[%s399 + $0x30] sm:$0xff]
      %v429 = vld [vmem:[%s399 + $0x38] sm:$0xff]
      %v430 = vld [vmem:[%s399 + $0x40] sm:$0xff]
      %v431 = vld [vmem:[%s399 + $0x48] sm:$0xff]
      %v432 = vld [vmem:[%s399 + $0x50] sm:$0xff]
      %v433 = vld [vmem:[%s399 + $0x58] sm:$0xff]
      %v434 = vld [vmem:[%s399 + $0x60] sm:$0xff]
      %v435 = vld [vmem:[%s399 + $0x68] sm:$0xff]
      %v436 = vld [vmem:[%s399 + $0x70] sm:$0xff]
      %v437 = vld [vmem:[%s399 + $0x78] sm:$0xff]
      %v438 = vlaneseq
      %v439 = vand.u32 %v438, 127
      %440 = vset.pattern.permute.xlu0 0
      %441 = vperm.xlu0 %440, %v422
      %v442 = vpop.permute.xlu0 %441
      %443 = vset.pattern.permute.xlu0 0
      %444 = vperm.xlu0 %443, %v423
      %v445 = vpop.permute.xlu0 %444
      %446 = vset.pattern.permute.xlu0 0
      %447 = vperm.xlu0 %446, %v424
      %v448 = vpop.permute.xlu0 %447
      %449 = vset.pattern.permute.xlu0 0
      %450 = vperm.xlu0 %449, %v425
      %v451 = vpop.permute.xlu0 %450
      %452 = vset.pattern.permute.xlu0 0
      %453 = vperm.xlu0 %452, %v426
      %v454 = vpop.permute.xlu0 %453
      %455 = vset.pattern.permute.xlu0 0
      %456 = vperm.xlu0 %455, %v427
      %v457 = vpop.permute.xlu0 %456
      %458 = vset.pattern.permute.xlu0 0
      %459 = vperm.xlu0 %458, %v428
      %v460 = vpop.permute.xlu0 %459
      %461 = vset.pattern.permute.xlu0 0
      %462 = vperm.xlu0 %461, %v429
      %v463 = vpop.permute.xlu0 %462
      %464 = vset.pattern.permute.xlu0 0
      %465 = vperm.xlu0 %464, %v430
      %v466 = vpop.permute.xlu0 %465
      %467 = vset.pattern.permute.xlu0 0
      %468 = vperm.xlu0 %467, %v431
      %v469 = vpop.permute.xlu0 %468
      %470 = vset.pattern.permute.xlu0 0
      %471 = vperm.xlu0 %470, %v432
      %v472 = vpop.permute.xlu0 %471
      %473 = vset.pattern.permute.xlu0 0
      %474 = vperm.xlu0 %473, %v433
      %v475 = vpop.permute.xlu0 %474
      %476 = vset.pattern.permute.xlu0 0
      %477 = vperm.xlu0 %476, %v434
      %v478 = vpop.permute.xlu0 %477
      %479 = vset.pattern.permute.xlu0 0
      %480 = vperm.xlu0 %479, %v435
      %v481 = vpop.permute.xlu0 %480
      %482 = vset.pattern.permute.xlu0 0
      %483 = vperm.xlu0 %482, %v436
      %v484 = vpop.permute.xlu0 %483
      %485 = vset.pattern.permute.xlu0 0
      %486 = vperm.xlu0 %485, %v437
      %v487 = vpop.permute.xlu0 %486
      %vm488 = vcmp.eq.s32.totalorder %v442, %v439
      %vm489 = vcmp.eq.s32.totalorder %v445, %v439
      %vm490 = vcmp.eq.s32.totalorder %v448, %v439
      %vm491 = vcmp.eq.s32.totalorder %v451, %v439
      %vm492 = vcmp.eq.s32.totalorder %v454, %v439
      %vm493 = vcmp.eq.s32.totalorder %v457, %v439
      %vm494 = vcmp.eq.s32.totalorder %v460, %v439
      %vm495 = vcmp.eq.s32.totalorder %v463, %v439
      %vm496 = vcmp.eq.s32.totalorder %v466, %v439
      %vm497 = vcmp.eq.s32.totalorder %v469, %v439
      %vm498 = vcmp.eq.s32.totalorder %v472, %v439
      %vm499 = vcmp.eq.s32.totalorder %v475, %v439
      %vm500 = vcmp.eq.s32.totalorder %v478, %v439
      %vm501 = vcmp.eq.s32.totalorder %v481, %v439
      %vm502 = vcmp.eq.s32.totalorder %v484, %v439
      %vm503 = vcmp.eq.s32.totalorder %v487, %v439
      %v504 = vsel %vm488, 1.0, 0.0
      %v505 = vsel %vm489, 1.0, 0.0
      %v506 = vsel %vm490, 1.0, 0.0
      %v507 = vsel %vm491, 1.0, 0.0
      %v508 = vsel %vm492, 1.0, 0.0
      %v509 = vsel %vm493, 1.0, 0.0
      %v510 = vsel %vm494, 1.0, 0.0
      %v511 = vsel %vm495, 1.0, 0.0
      %v512 = vsel %vm496, 1.0, 0.0
      %v513 = vsel %vm497, 1.0, 0.0
      %v514 = vsel %vm498, 1.0, 0.0
      %v515 = vsel %vm499, 1.0, 0.0
      %v516 = vsel %vm500, 1.0, 0.0
      %v517 = vsel %vm501, 1.0, 0.0
      %v518 = vsel %vm502, 1.0, 0.0
      %v519 = vsel %vm503, 1.0, 0.0
      %v520 = vld [vmem:[%s3] sm:$0xff]
      %v521 = vld [vmem:[%s3 + $0x8] sm:$0xff]
      %v522 = vld [vmem:[%s3 + $0x10] sm:$0xff]
      %v523 = vld [vmem:[%s3 + $0x18] sm:$0xff]
      %v524 = vld [vmem:[%s3 + $0x20] sm:$0xff]
      %vm525 = vcmask 326656
      %v527 = vsel %vm525, %v504, 0
      %v530 = vsel %vm525, %v505, 0
      %v533 = vsel %vm525, %v506, 0
      %v536 = vsel %vm525, %v507, 0
      %v539 = vsel %vm525, %v508, 0
      %v542 = vsel %vm525, %v509, 0
      %v545 = vsel %vm525, %v510, 0
      %v548 = vsel %vm525, %v511, 0
      %v551 = vsel %vm525, %v512, 0
      %v554 = vsel %vm525, %v513, 0
      %v557 = vsel %vm525, %v514, 0
      %v560 = vsel %vm525, %v515, 0
      %v563 = vsel %vm525, %v516, 0
      %v566 = vsel %vm525, %v517, 0
      %v569 = vsel %vm525, %v518, 0
      %v572 = vsel %vm525, %v519, 0
      %574 = vmatprep.subr.mxu0 0.0
      %575 = vmatpush1.msra.mxu0 %v520
      %576 = vmatprep.subr.mxu0 0.0
      %577 = vmatpush1.msra.mxu0 %v521
      %578 = vmatprep.subr.mxu0 0.0
      %579 = vmatpush1.msra.mxu0 %v522
      %580 = vmatprep.subr.mxu0 0.0
      %581 = vmatpush1.msra.mxu0 %v523
      %582 = vmatprep.subr.mxu0 0.0
      %583 = vmatpush1.msra.mxu0 %v524
      %584 = vmatprep.subr.mxu0 0.0
      %585 = vmatpush1.msra.mxu0 0.0
      %586 = vmatprep.subr.mxu0 0.0
      %587 = vmatpush1.msra.mxu0 0.0
      %588 = vmatprep.subr.mxu0 0.0
      %589 = vmatpush1.msra.mxu0 0.0
      %590 = vmatprep.subr.mxu0 0.0
      %591 = vmatpush1.msra.mxu0 0.0
      %592 = vmatprep.subr.mxu0 0.0
      %593 = vmatpush1.msra.mxu0 0.0
      %594 = vmatprep.subr.mxu0 0.0
      %595 = vmatpush1.msra.mxu0 0.0
      %596 = vmatprep.subr.mxu0 0.0
      %597 = vmatpush1.msra.mxu0 0.0
      %598 = vmatprep.subr.mxu0 0.0
      %599 = vmatpush1.msra.mxu0 0.0
      %600 = vmatprep.subr.mxu0 0.0
      %601 = vmatpush1.msra.mxu0 0.0
      %602 = vmatprep.subr.mxu0 0.0
      %603 = vmatpush1.msra.mxu0 0.0
      %604 = vmatprep.subr.mxu0 0.0
      %605 = vmatpush1.msra.mxu0 0.0
      %606 = vmatprep.subr.mxu0 0.0
      %607 = vmatpush1.msra.mxu0 0.0
      %608 = vmatprep.subr.mxu0 0.0
      %609 = vmatpush1.msra.mxu0 0.0
      %610 = vmatprep.subr.mxu0 0.0
      %611 = vmatpush1.msra.mxu0 0.0
      %612 = vmatprep.subr.mxu0 0.0
      %613 = vmatpush1.msra.mxu0 0.0
      %614 = vmatprep.subr.mxu0 0.0
      %615 = vmatpush1.msra.mxu0 0.0
      %616 = vmatprep.subr.mxu0 0.0
      %617 = vmatpush1.msra.mxu0 0.0
      %618 = vmatprep.subr.mxu0 0.0
      %619 = vmatpush1.msra.mxu0 0.0
      %620 = vmatprep.subr.mxu0 0.0
      %621 = vmatpush1.msra.mxu0 0.0
      %622 = vmatprep.subr.mxu0 0.0
      %623 = vmatpush1.msra.mxu0 0.0
      %624 = vmatprep.subr.mxu0 0.0
      %625 = vmatpush1.msra.mxu0 0.0
      %626 = vmatprep.subr.mxu0 0.0
      %627 = vmatpush1.msra.mxu0 0.0
      %628 = vmatprep.subr.mxu0 0.0
      %629 = vmatpush1.msra.mxu0 0.0
      %630 = vmatprep.subr.mxu0 0.0
      %631 = vmatpush1.msra.mxu0 0.0
      %632 = vmatprep.subr.mxu0 0.0
      %633 = vmatpush1.msra.mxu0 0.0
      %634 = vmatprep.subr.mxu0 0.0
      %635 = vmatpush1.msra.mxu0 0.0
      %636 = vmatprep.subr.mxu0 0.0
      %637 = vmatpush1.msra.mxu0 0.0
      %638 = vmatprep.mubr.f32.mxu0 0.0
      %639 = vmatmul.mubr.f32.gmra.mrb[0].mxu0 %v527
      %v640 = vpop.f32.mrb[0].mxu0
      %v641 = vadd.f32 0.0, %v640
      %v642 = vpop.f32.mrb[0].mxu0
      %643 = vmatprep.mubr.f32.mxu0 0.0
      %644 = vmatmul.mubr.f32.gmra.mrb[0].mxu0 %v530
      %v645 = vpop.f32.mrb[0].mxu0
      %v646 = vadd.f32 0.0, %v645
      %v647 = vpop.f32.mrb[0].mxu0
      %648 = vmatprep.mubr.f32.mxu0 0.0
      %649 = vmatmul.mubr.f32.gmra.mrb[0].mxu0 %v533
      %v650 = vpop.f32.mrb[0].mxu0
      %v651 = vadd.f32 0.0, %v650
      %v652 = vpop.f32.mrb[0].mxu0
      %653 = vmatprep.mubr.f32.mxu0 0.0
      %654 = vmatmul.mubr.f32.gmra.mrb[0].mxu0 %v536
      %v655 = vpop.f32.mrb[0].mxu0
      %v656 = vadd.f32 0.0, %v655
      %v657 = vpop.f32.mrb[0].mxu0
      %658 = vmatprep.mubr.f32.mxu0 0.0
      %659 = vmatmul.mubr.f32.gmra.mrb[0].mxu0 %v539
      %v660 = vpop.f32.mrb[0].mxu0
      %v661 = vadd.f32 0.0, %v660
      %v662 = vpop.f32.mrb[0].mxu0
      %663 = vmatprep.mubr.f32.mxu0 0.0
      %664 = vmatmul.mubr.f32.gmra.mrb[0].mxu0 %v542
      %v665 = vpop.f32.mrb[0].mxu0
      %v666 = vadd.f32 0.0, %v665
      %v667 = vpop.f32.mrb[0].mxu0
      %668 = vmatprep.mubr.f32.mxu0 0.0
      %669 = vmatmul.mubr.f32.gmra.mrb[0].mxu0 %v545
      %v670 = vpop.f32.mrb[0].mxu0
      %v671 = vadd.f32 0.0, %v670
      %v672 = vpop.f32.mrb[0].mxu0
      %673 = vmatprep.mubr.f32.mxu0 0.0
      %674 = vmatmul.mubr.f32.gmra.mrb[0].mxu0 %v548
      %v675 = vpop.f32.mrb[0].mxu0
      %v676 = vadd.f32 0.0, %v675
      %v677 = vpop.f32.mrb[0].mxu0
      %678 = vmatprep.mubr.f32.mxu0 0.0
      %679 = vmatmul.mubr.f32.gmra.mrb[0].mxu0 %v551
      %v680 = vpop.f32.mrb[0].mxu0
      %v681 = vadd.f32 0.0, %v680
      %v682 = vpop.f32.mrb[0].mxu0
      %683 = vmatprep.mubr.f32.mxu0 0.0
      %684 = vmatmul.mubr.f32.gmra.mrb[0].mxu0 %v554
      %v685 = vpop.f32.mrb[0].mxu0
      %v686 = vadd.f32 0.0, %v685
      %v687 = vpop.f32.mrb[0].mxu0
      %688 = vmatprep.mubr.f32.mxu0 0.0
      %689 = vmatmul.mubr.f32.gmra.mrb[0].mxu0 %v557
      %v690 = vpop.f32.mrb[0].mxu0
      %v691 = vadd.f32 0.0, %v690
      %v692 = vpop.f32.mrb[0].mxu0
      %693 = vmatprep.mubr.f32.mxu0 0.0
      %694 = vmatmul.mubr.f32.gmra.mrb[0].mxu0 %v560
      %v695 = vpop.f32.mrb[0].mxu0
      %v696 = vadd.f32 0.0, %v695
      %v697 = vpop.f32.mrb[0].mxu0
      %698 = vmatprep.mubr.f32.mxu0 0.0
      %699 = vmatmul.mubr.f32.gmra.mrb[0].mxu0 %v563
      %v700 = vpop.f32.mrb[0].mxu0
      %v701 = vadd.f32 0.0, %v700
      %v702 = vpop.f32.mrb[0].mxu0
      %703 = vmatprep.mubr.f32.mxu0 0.0
      %704 = vmatmul.mubr.f32.gmra.mrb[0].mxu0 %v566
      %v705 = vpop.f32.mrb[0].mxu0
      %v706 = vadd.f32 0.0, %v705
      %v707 = vpop.f32.mrb[0].mxu0
      %708 = vmatprep.mubr.f32.mxu0 0.0
      %709 = vmatmul.mubr.f32.gmra.mrb[0].mxu0 %v569
      %v710 = vpop.f32.mrb[0].mxu0
      %v711 = vadd.f32 0.0, %v710
      %v712 = vpop.f32.mrb[0].mxu0
      %713 = vmatprep.mubr.f32.mxu0 0.0
      %714 = vmatmul.mubr.f32.gmra.mrb[0].mxu0 %v572
      %v715 = vpop.f32.mrb[0].mxu0
      %v716 = vadd.f32 0.0, %v715
      %v717 = vpop.f32.mrb[0].mxu0
      %718 = vdwg.mxu0
      %v719 = vld [vmem:[%s4] sm:$0xff]
      %v720 = vld [vmem:[%s4 + $0x8] sm:$0xff]
      %v721 = vld [vmem:[%s4 + $0x10] sm:$0xff]
      %v722 = vld [vmem:[%s4 + $0x18] sm:$0xff]
      %v723 = vld [vmem:[%s408] sm:$0xff]
      %v724 = vld [vmem:[%s408 + $0x8] sm:$0xff]
      %v725 = vld [vmem:[%s408 + $0x10] sm:$0xff]
      %v726 = vld [vmem:[%s408 + $0x18] sm:$0xff]
      %v727 = vld [vmem:[%s408 + $0x20] sm:$0xff]
      %v728 = vld [vmem:[%s408 + $0x28] sm:$0xff]
      %v729 = vld [vmem:[%s408 + $0x30] sm:$0xff]
      %v730 = vld [vmem:[%s408 + $0x38] sm:$0xff]
      %v731 = vld [vmem:[%s408 + $0x40] sm:$0xff]
      %v732 = vld [vmem:[%s408 + $0x48] sm:$0xff]
      %v733 = vld [vmem:[%s408 + $0x50] sm:$0xff]
      %v734 = vld [vmem:[%s408 + $0x58] sm:$0xff]
      %v735 = vld [vmem:[%s408 + $0x60] sm:$0xff]
      %v736 = vld [vmem:[%s408 + $0x68] sm:$0xff]
      %v737 = vld [vmem:[%s408 + $0x70] sm:$0xff]
      %v738 = vld [vmem:[%s408 + $0x78] sm:$0xff]
      %v739 = vld [vmem:[%s5] sm:$0xff]
      %v740 = vld [vmem:[%s5 + $0x8] sm:$0xff]
      %vm741 = vcmask 130048
      %v743 = vsel %vm741, %v723, 0
      %v746 = vsel %vm741, %v724, 0
      %v749 = vsel %vm741, %v725, 0
      %v752 = vsel %vm741, %v726, 0
      %v755 = vsel %vm741, %v727, 0
      %v758 = vsel %vm741, %v728, 0
      %v761 = vsel %vm741, %v729, 0
      %v764 = vsel %vm741, %v730, 0
      %v767 = vsel %vm741, %v731, 0
      %v770 = vsel %vm741, %v732, 0
      %v773 = vsel %vm741, %v733, 0
      %v776 = vsel %vm741, %v734, 0
      %v779 = vsel %vm741, %v735, 0
      %v782 = vsel %vm741, %v736, 0
      %v785 = vsel %vm741, %v737, 0
      %v788 = vsel %vm741, %v738, 0
      %790 = vmatprep.subr.mxu0 0.0
      %791 = vmatpush1.msra.mxu0 %v739
      %792 = vmatprep.subr.mxu0 0.0
      %793 = vmatpush1.msra.mxu0 %v740
      %794 = vmatprep.subr.mxu0 0.0
      %795 = vmatpush1.msra.mxu0 0.0
      %796 = vmatprep.subr.mxu0 0.0
      %797 = vmatpush1.msra.mxu0 0.0
      %798 = vmatprep.subr.mxu0 0.0
      %799 = vmatpush1.msra.mxu0 0.0
      %800 = vmatprep.subr.mxu0 0.0
      %801 = vmatpush1.msra.mxu0 0.0
      %802 = vmatprep.subr.mxu0 0.0
      %803 = vmatpush1.msra.mxu0 0.0
      %804 = vmatprep.subr.mxu0 0.0
      %805 = vmatpush1.msra.mxu0 0.0
      %806 = vmatprep.subr.mxu0 0.0
      %807 = vmatpush1.msra.mxu0 0.0
      %808 = vmatprep.subr.mxu0 0.0
      %809 = vmatpush1.msra.mxu0 0.0
      %810 = vmatprep.subr.mxu0 0.0
      %811 = vmatpush1.msra.mxu0 0.0
      %812 = vmatprep.subr.mxu0 0.0
      %813 = vmatpush1.msra.mxu0 0.0
      %814 = vmatprep.subr.mxu0 0.0
      %815 = vmatpush1.msra.mxu0 0.0
      %816 = vmatprep.subr.mxu0 0.0
      %817 = vmatpush1.msra.mxu0 0.0
      %818 = vmatprep.subr.mxu0 0.0
      %819 = vmatpush1.msra.mxu0 0.0
      %820 = vmatprep.subr.mxu0 0.0
      %821 = vmatpush1.msra.mxu0 0.0
      %822 = vmatprep.subr.mxu0 0.0
      %823 = vmatpush1.msra.mxu0 0.0
      %824 = vmatprep.subr.mxu0 0.0
      %825 = vmatpush1.msra.mxu0 0.0
      %826 = vmatprep.subr.mxu0 0.0
      %827 = vmatpush1.msra.mxu0 0.0
      %828 = vmatprep.subr.mxu0 0.0
      %829 = vmatpush1.msra.mxu0 0.0
      %830 = vmatprep.subr.mxu0 0.0
      %831 = vmatpush1.msra.mxu0 0.0
      %832 = vmatprep.subr.mxu0 0.0
      %833 = vmatpush1.msra.mxu0 0.0
      %834 = vmatprep.subr.mxu0 0.0
      %835 = vmatpush1.msra.mxu0 0.0
      %836 = vmatprep.subr.mxu0 0.0
      %837 = vmatpush1.msra.mxu0 0.0
      %838 = vmatprep.subr.mxu0 0.0
      %839 = vmatpush1.msra.mxu0 0.0
      %840 = vmatprep.subr.mxu0 0.0
      %841 = vmatpush1.msra.mxu0 0.0
      %842 = vmatprep.subr.mxu0 0.0
      %843 = vmatpush1.msra.mxu0 0.0
      %844 = vmatprep.subr.mxu0 0.0
      %845 = vmatpush1.msra.mxu0 0.0
      %846 = vmatprep.subr.mxu0 0.0
      %847 = vmatpush1.msra.mxu0 0.0
      %848 = vmatprep.subr.mxu0 0.0
      %849 = vmatpush1.msra.mxu0 0.0
      %850 = vmatprep.subr.mxu0 0.0
      %851 = vmatpush1.msra.mxu0 0.0
      %852 = vmatprep.subr.mxu0 0.0
      %853 = vmatpush1.msra.mxu0 0.0
      %854 = vmatprep.mubr.f32.mxu0 0.0
      %855 = vmatmul.mubr.f32.gmra.mrb[0].mxu0 %v743
      %v856 = vpop.f32.mrb[0].mxu0
      %v857 = vadd.f32 0.0, %v856
      %v858 = vpop.f32.mrb[0].mxu0
      %859 = vmatprep.mubr.f32.mxu0 0.0
      %860 = vmatmul.mubr.f32.gmra.mrb[0].mxu0 %v746
      %v861 = vpop.f32.mrb[0].mxu0
      %v862 = vadd.f32 0.0, %v861
      %v863 = vpop.f32.mrb[0].mxu0
      %864 = vmatprep.mubr.f32.mxu0 0.0
      %865 = vmatmul.mubr.f32.gmra.mrb[0].mxu0 %v749
      %v866 = vpop.f32.mrb[0].mxu0
      %v867 = vadd.f32 0.0, %v866
      %v868 = vpop.f32.mrb[0].mxu0
      %869 = vmatprep.mubr.f32.mxu0 0.0
      %870 = vmatmul.mubr.f32.gmra.mrb[0].mxu0 %v752
      %v871 = vpop.f32.mrb[0].mxu0
      %v872 = vadd.f32 0.0, %v871
      %v873 = vpop.f32.mrb[0].mxu0
      %874 = vmatprep.mubr.f32.mxu0 0.0
      %875 = vmatmul.mubr.f32.gmra.mrb[0].mxu0 %v755
      %v876 = vpop.f32.mrb[0].mxu0
      %v877 = vadd.f32 0.0, %v876
      %v878 = vpop.f32.mrb[0].mxu0
      %879 = vmatprep.mubr.f32.mxu0 0.0
      %880 = vmatmul.mubr.f32.gmra.mrb[0].mxu0 %v758
      %v881 = vpop.f32.mrb[0].mxu0
      %v882 = vadd.f32 0.0, %v881
      %v883 = vpop.f32.mrb[0].mxu0
      %884 = vmatprep.mubr.f32.mxu0 0.0
      %885 = vmatmul.mubr.f32.gmra.mrb[0].mxu0 %v761
      %v886 = vpop.f32.mrb[0].mxu0
      %v887 = vadd.f32 0.0, %v886
      %v888 = vpop.f32.mrb[0].mxu0
      %889 = vmatprep.mubr.f32.mxu0 0.0
      %890 = vmatmul.mubr.f32.gmra.mrb[0].mxu0 %v764
      %v891 = vpop.f32.mrb[0].mxu0
      %v892 = vadd.f32 0.0, %v891
      %v893 = vpop.f32.mrb[0].mxu0
      %894 = vmatprep.mubr.f32.mxu0 0.0
      %895 = vmatmul.mubr.f32.gmra.mrb[0].mxu0 %v767
      %v896 = vpop.f32.mrb[0].mxu0
      %v897 = vadd.f32 0.0, %v896
      %v898 = vpop.f32.mrb[0].mxu0
      %899 = vmatprep.mubr.f32.mxu0 0.0
      %900 = vmatmul.mubr.f32.gmra.mrb[0].mxu0 %v770
      %v901 = vpop.f32.mrb[0].mxu0
      %v902 = vadd.f32 0.0, %v901
      %v903 = vpop.f32.mrb[0].mxu0
      %904 = vmatprep.mubr.f32.mxu0 0.0
      %905 = vmatmul.mubr.f32.gmra.mrb[0].mxu0 %v773
      %v906 = vpop.f32.mrb[0].mxu0
      %v907 = vadd.f32 0.0, %v906
      %v908 = vpop.f32.mrb[0].mxu0
      %909 = vmatprep.mubr.f32.mxu0 0.0
      %910 = vmatmul.mubr.f32.gmra.mrb[0].mxu0 %v776
      %v911 = vpop.f32.mrb[0].mxu0
      %v912 = vadd.f32 0.0, %v911
      %v913 = vpop.f32.mrb[0].mxu0
      %914 = vmatprep.mubr.f32.mxu0 0.0
      %915 = vmatmul.mubr.f32.gmra.mrb[0].mxu0 %v779
      %v916 = vpop.f32.mrb[0].mxu0
      %v917 = vadd.f32 0.0, %v916
      %v918 = vpop.f32.mrb[0].mxu0
      %919 = vmatprep.mubr.f32.mxu0 0.0
      %920 = vmatmul.mubr.f32.gmra.mrb[0].mxu0 %v782
      %v921 = vpop.f32.mrb[0].mxu0
      %v922 = vadd.f32 0.0, %v921
      %v923 = vpop.f32.mrb[0].mxu0
      %924 = vmatprep.mubr.f32.mxu0 0.0
      %925 = vmatmul.mubr.f32.gmra.mrb[0].mxu0 %v785
      %v926 = vpop.f32.mrb[0].mxu0
      %v927 = vadd.f32 0.0, %v926
      %v928 = vpop.f32.mrb[0].mxu0
      %929 = vmatprep.mubr.f32.mxu0 0.0
      %930 = vmatmul.mubr.f32.gmra.mrb[0].mxu0 %v788
      %v931 = vpop.f32.mrb[0].mxu0
      %v932 = vadd.f32 0.0, %v931
      %v933 = vpop.f32.mrb[0].mxu0
      %934 = vdwg.mxu0
      %vm935 = vcmask 261120
      %v937 = vsel %vm935, %v641, 0
      %v940 = vsel %vm935, %v646, 0
      %v943 = vsel %vm935, %v651, 0
      %v946 = vsel %vm935, %v656, 0
      %v949 = vsel %vm935, %v661, 0
      %v952 = vsel %vm935, %v666, 0
      %v955 = vsel %vm935, %v671, 0
      %v958 = vsel %vm935, %v676, 0
      %v961 = vsel %vm935, %v681, 0
      %v964 = vsel %vm935, %v686, 0
      %v967 = vsel %vm935, %v691, 0
      %v970 = vsel %vm935, %v696, 0
      %v973 = vsel %vm935, %v701, 0
      %v976 = vsel %vm935, %v706, 0
      %v979 = vsel %vm935, %v711, 0
      %v982 = vsel %vm935, %v716, 0
      %984 = vmatprep.subr.mxu0 0.0
      %985 = vmatpush1.msra.mxu0 %v719
      %986 = vmatprep.subr.mxu0 0.0
      %987 = vmatpush1.msra.mxu0 %v720
      %988 = vmatprep.subr.mxu0 0.0
      %989 = vmatpush1.msra.mxu0 %v721
      %990 = vmatprep.subr.mxu0 0.0
      %991 = vmatpush1.msra.mxu0 %v722
      %992 = vmatprep.subr.mxu0 0.0
      %993 = vmatpush1.msra.mxu0 0.0
      %994 = vmatprep.subr.mxu0 0.0
      %995 = vmatpush1.msra.mxu0 0.0
      %996 = vmatprep.subr.mxu0 0.0
      %997 = vmatpush1.msra.mxu0 0.0
      %998 = vmatprep.subr.mxu0 0.0
      %999 = vmatpush1.msra.mxu0 0.0
      %1000 = vmatprep.subr.mxu0 0.0
      %1001 = vmatpush1.msra.mxu0 0.0
      %1002 = vmatprep.subr.mxu0 0.0
      %1003 = vmatpush1.msra.mxu0 0.0
      %1004 = vmatprep.subr.mxu0 0.0
      %1005 = vmatpush1.msra.mxu0 0.0
      %1006 = vmatprep.subr.mxu0 0.0
      %1007 = vmatpush1.msra.mxu0 0.0
      %1008 = vmatprep.subr.mxu0 0.0
      %1009 = vmatpush1.msra.mxu0 0.0
      %1010 = vmatprep.subr.mxu0 0.0
      %1011 = vmatpush1.msra.mxu0 0.0
      %1012 = vmatprep.subr.mxu0 0.0
      %1013 = vmatpush1.msra.mxu0 0.0
      %1014 = vmatprep.subr.mxu0 0.0
      %1015 = vmatpush1.msra.mxu0 0.0
      %1016 = vmatprep.subr.mxu0 0.0
      %1017 = vmatpush1.msra.mxu0 0.0
      %1018 = vmatprep.subr.mxu0 0.0
      %1019 = vmatpush1.msra.mxu0 0.0
      %1020 = vmatprep.subr.mxu0 0.0
      %1021 = vmatpush1.msra.mxu0 0.0
      %1022 = vmatprep.subr.mxu0 0.0
      %1023 = vmatpush1.msra.mxu0 0.0
      %1024 = vmatprep.subr.mxu0 0.0
      %1025 = vmatpush1.msra.mxu0 0.0
      %1026 = vmatprep.subr.mxu0 0.0
      %1027 = vmatpush1.msra.mxu0 0.0
      %1028 = vmatprep.subr.mxu0 0.0
      %1029 = vmatpush1.msra.mxu0 0.0
      %1030 = vmatprep.subr.mxu0 0.0
      %1031 = vmatpush1.msra.mxu0 0.0
      %1032 = vmatprep.subr.mxu0 0.0
      %1033 = vmatpush1.msra.mxu0 0.0
      %1034 = vmatprep.subr.mxu0 0.0
      %1035 = vmatpush1.msra.mxu0 0.0
      %1036 = vmatprep.subr.mxu0 0.0
      %1037 = vmatpush1.msra.mxu0 0.0
      %1038 = vmatprep.subr.mxu0 0.0
      %1039 = vmatpush1.msra.mxu0 0.0
      %1040 = vmatprep.subr.mxu0 0.0
      %1041 = vmatpush1.msra.mxu0 0.0
      %1042 = vmatprep.subr.mxu0 0.0
      %1043 = vmatpush1.msra.mxu0 0.0
      %1044 = vmatprep.subr.mxu0 0.0
      %1045 = vmatpush1.msra.mxu0 0.0
      %1046 = vmatprep.subr.mxu0 0.0
      %1047 = vmatpush1.msra.mxu0 0.0
      %1048 = vmatprep.mubr.f32.mxu0 0.0
      %1049 = vmatmul.mubr.f32.gmra.mrb[0].mxu0 %v937
      %v1050 = vpop.f32.mrb[0].mxu0
      %v1051 = vadd.f32 %v857, %v1050
      %v1052 = vpop.f32.mrb[0].mxu0
      %1053 = vmatprep.mubr.f32.mxu0 0.0
      %1054 = vmatmul.mubr.f32.gmra.mrb[0].mxu0 %v940
      %v1055 = vpop.f32.mrb[0].mxu0
      %v1056 = vadd.f32 %v862, %v1055
      %v1057 = vpop.f32.mrb[0].mxu0
      %1058 = vmatprep.mubr.f32.mxu0 0.0
      %1059 = vmatmul.mubr.f32.gmra.mrb[0].mxu0 %v943
      %v1060 = vpop.f32.mrb[0].mxu0
      %v1061 = vadd.f32 %v867, %v1060
      %v1062 = vpop.f32.mrb[0].mxu0
      %1063 = vmatprep.mubr.f32.mxu0 0.0
      %1064 = vmatmul.mubr.f32.gmra.mrb[0].mxu0 %v946
      %v1065 = vpop.f32.mrb[0].mxu0
      %v1066 = vadd.f32 %v872, %v1065
      %v1067 = vpop.f32.mrb[0].mxu0
      %1068 = vmatprep.mubr.f32.mxu0 0.0
      %1069 = vmatmul.mubr.f32.gmra.mrb[0].mxu0 %v949
      %v1070 = vpop.f32.mrb[0].mxu0
      %v1071 = vadd.f32 %v877, %v1070
      %v1072 = vpop.f32.mrb[0].mxu0
      %1073 = vmatprep.mubr.f32.mxu0 0.0
      %1074 = vmatmul.mubr.f32.gmra.mrb[0].mxu0 %v952
      %v1075 = vpop.f32.mrb[0].mxu0
      %v1076 = vadd.f32 %v882, %v1075
      %v1077 = vpop.f32.mrb[0].mxu0
      %1078 = vmatprep.mubr.f32.mxu0 0.0
      %1079 = vmatmul.mubr.f32.gmra.mrb[0].mxu0 %v955
      %v1080 = vpop.f32.mrb[0].mxu0
      %v1081 = vadd.f32 %v887, %v1080
      %v1082 = vpop.f32.mrb[0].mxu0
      %1083 = vmatprep.mubr.f32.mxu0 0.0
      %1084 = vmatmul.mubr.f32.gmra.mrb[0].mxu0 %v958
      %v1085 = vpop.f32.mrb[0].mxu0
      %v1086 = vadd.f32 %v892, %v1085
      %v1087 = vpop.f32.mrb[0].mxu0
      %1088 = vmatprep.mubr.f32.mxu0 0.0
      %1089 = vmatmul.mubr.f32.gmra.mrb[0].mxu0 %v961
      %v1090 = vpop.f32.mrb[0].mxu0
      %v1091 = vadd.f32 %v897, %v1090
      %v1092 = vpop.f32.mrb[0].mxu0
      %1093 = vmatprep.mubr.f32.mxu0 0.0
      %1094 = vmatmul.mubr.f32.gmra.mrb[0].mxu0 %v964
      %v1095 = vpop.f32.mrb[0].mxu0
      %v1096 = vadd.f32 %v902, %v1095
      %v1097 = vpop.f32.mrb[0].mxu0
      %1098 = vmatprep.mubr.f32.mxu0 0.0
      %1099 = vmatmul.mubr.f32.gmra.mrb[0].mxu0 %v967
      %v1100 = vpop.f32.mrb[0].mxu0
      %v1101 = vadd.f32 %v907, %v1100
      %v1102 = vpop.f32.mrb[0].mxu0
      %1103 = vmatprep.mubr.f32.mxu0 0.0
      %1104 = vmatmul.mubr.f32.gmra.mrb[0].mxu0 %v970
      %v1105 = vpop.f32.mrb[0].mxu0
      %v1106 = vadd.f32 %v912, %v1105
      %v1107 = vpop.f32.mrb[0].mxu0
      %1108 = vmatprep.mubr.f32.mxu0 0.0
      %1109 = vmatmul.mubr.f32.gmra.mrb[0].mxu0 %v973
      %v1110 = vpop.f32.mrb[0].mxu0
      %v1111 = vadd.f32 %v917, %v1110
      %v1112 = vpop.f32.mrb[0].mxu0
      %1113 = vmatprep.mubr.f32.mxu0 0.0
      %1114 = vmatmul.mubr.f32.gmra.mrb[0].mxu0 %v976
      %v1115 = vpop.f32.mrb[0].mxu0
      %v1116 = vadd.f32 %v922, %v1115
      %v1117 = vpop.f32.mrb[0].mxu0
      %1118 = vmatprep.mubr.f32.mxu0 0.0
      %1119 = vmatmul.mubr.f32.gmra.mrb[0].mxu0 %v979
      %v1120 = vpop.f32.mrb[0].mxu0
      %v1121 = vadd.f32 %v927, %v1120
      %v1122 = vpop.f32.mrb[0].mxu0
      %1123 = vmatprep.mubr.f32.mxu0 0.0
      %1124 = vmatmul.mubr.f32.gmra.mrb[0].mxu0 %v982
      %v1125 = vpop.f32.mrb[0].mxu0
      %v1126 = vadd.f32 %v932, %v1125
      %v1127 = vpop.f32.mrb[0].mxu0
      %1128 = vdwg.mxu0
      %v1129 = vld [vmem:[%s6] sm:$0x1]
      %v1131 = vlaneseq
      %v1132 = vshrl.u32 %v1131, 7
      %v1133 = vsub.s32 0, %v1132
      %v1134 = vrot.slane %v1129, %v1133
      %v1136 = vadd.f32 %v1051, %v1134
      %v1137 = vadd.f32 %v1056, %v1134
      %v1138 = vadd.f32 %v1061, %v1134
      %v1139 = vadd.f32 %v1066, %v1134
      %v1140 = vadd.f32 %v1071, %v1134
      %v1141 = vadd.f32 %v1076, %v1134
      %v1142 = vadd.f32 %v1081, %v1134
      %v1143 = vadd.f32 %v1086, %v1134
      %v1144 = vadd.f32 %v1091, %v1134
      %v1145 = vadd.f32 %v1096, %v1134
      %v1146 = vadd.f32 %v1101, %v1134
      %v1147 = vadd.f32 %v1106, %v1134
      %v1148 = vadd.f32 %v1111, %v1134
      %v1149 = vadd.f32 %v1116, %v1134
      %v1150 = vadd.f32 %v1121, %v1134
      %v1151 = vadd.f32 %v1126, %v1134
      %v1152 = vld [vmem:[%s403] sm:$0x1]
      %v1153 = vlaneseq
      %v1154 = vshrl.u32 %v1153, 7
      %v1155 = vadd.s32 %v1154, 8
      %v1156 = vadd.s32 %v1154, 16
      %v1157 = vadd.s32 %v1154, 24
      %v1158 = vadd.s32 %v1154, 32
      %v1159 = vadd.s32 %v1154, 40
      %v1160 = vlaneseq
      %v1161 = vshrl.u32 %v1160, 7
      %v1162 = vsub.s32 0, %v1161
      %v1163 = vrot.slane %v1152, %v1162
      %vm1164 = vcmp.eq.s32.totalorder %v1154, %v1163
      %vm1165 = vcmp.eq.s32.totalorder %v1155, %v1163
      %vm1166 = vcmp.eq.s32.totalorder %v1156, %v1163
      %vm1167 = vcmp.eq.s32.totalorder %v1157, %v1163
      %vm1168 = vcmp.eq.s32.totalorder %v1158, %v1163
      %vm1169 = vcmp.eq.s32.totalorder %v1159, %v1163
      %v1170 = vsel %vm1164, 1.0, 0.0
      %v1171 = vsel %vm1165, 1.0, 0.0
      %v1172 = vsel %vm1166, 1.0, 0.0
      %v1173 = vsel %vm1167, 1.0, 0.0
      %v1174 = vsel %vm1168, 1.0, 0.0
      %v1175 = vsel %vm1169, 1.0, 0.0
      %v1176 = vld [vmem:[#allocation2] sm:$0xff]
      %v1177 = vld [vmem:[#allocation2 + $0x8] sm:$0xff]
      %v1178 = vld [vmem:[#allocation2 + $0x10] sm:$0xff]
      %v1179 = vld [vmem:[#allocation2 + $0x18] sm:$0xff]
      %v1180 = vld [vmem:[#allocation2 + $0x20] sm:$0xff]
      %v1181 = vld [vmem:[#allocation2 + $0x28] sm:$0x1]
      %1182 = vmatprep.subr.mxu0 0.0
      %1183 = vmatpush1.msra.mxu0 %v1136
      %1184 = vmatprep.subr.mxu0 0.0
      %1185 = vmatpush1.msra.mxu0 %v1137
      %1186 = vmatprep.subr.mxu0 0.0
      %1187 = vmatpush1.msra.mxu0 %v1138
      %1188 = vmatprep.subr.mxu0 0.0
      %1189 = vmatpush1.msra.mxu0 %v1139
      %1190 = vmatprep.subr.mxu0 0.0
      %1191 = vmatpush1.msra.mxu0 %v1140
      %1192 = vmatprep.subr.mxu0 0.0
      %1193 = vmatpush1.msra.mxu0 %v1141
      %1194 = vmatprep.subr.mxu0 0.0
      %1195 = vmatpush1.msra.mxu0 %v1142
      %1196 = vmatprep.subr.mxu0 0.0
      %1197 = vmatpush1.msra.mxu0 %v1143
      %1198 = vmatprep.subr.mxu0 0.0
      %1199 = vmatpush1.msra.mxu0 %v1144
      %1200 = vmatprep.subr.mxu0 0.0
      %1201 = vmatpush1.msra.mxu0 %v1145
      %1202 = vmatprep.subr.mxu0 0.0
      %1203 = vmatpush1.msra.mxu0 %v1146
      %1204 = vmatprep.subr.mxu0 0.0
      %1205 = vmatpush1.msra.mxu0 %v1147
      %1206 = vmatprep.subr.mxu0 0.0
      %1207 = vmatpush1.msra.mxu0 %v1148
      %1208 = vmatprep.subr.mxu0 0.0
      %1209 = vmatpush1.msra.mxu0 %v1149
      %1210 = vmatprep.subr.mxu0 0.0
      %1211 = vmatpush1.msra.mxu0 %v1150
      %1212 = vmatprep.subr.mxu0 0.0
      %1213 = vmatpush1.msra.mxu0 %v1151
      %1214 = vmatprep.subr.mxu0 0.0
      %1215 = vmatpush1.msra.mxu0 0.0
      %1216 = vmatprep.subr.mxu0 0.0
      %1217 = vmatpush1.msra.mxu0 0.0
      %1218 = vmatprep.subr.mxu0 0.0
      %1219 = vmatpush1.msra.mxu0 0.0
      %1220 = vmatprep.subr.mxu0 0.0
      %1221 = vmatpush1.msra.mxu0 0.0
      %1222 = vmatprep.subr.mxu0 0.0
      %1223 = vmatpush1.msra.mxu0 0.0
      %1224 = vmatprep.subr.mxu0 0.0
      %1225 = vmatpush1.msra.mxu0 0.0
      %1226 = vmatprep.subr.mxu0 0.0
      %1227 = vmatpush1.msra.mxu0 0.0
      %1228 = vmatprep.subr.mxu0 0.0
      %1229 = vmatpush1.msra.mxu0 0.0
      %1230 = vmatprep.subr.mxu0 0.0
      %1231 = vmatpush1.msra.mxu0 0.0
      %1232 = vmatprep.subr.mxu0 0.0
      %1233 = vmatpush1.msra.mxu0 0.0
      %1234 = vmatprep.subr.mxu0 0.0
      %1235 = vmatpush1.msra.mxu0 0.0
      %1236 = vmatprep.subr.mxu0 0.0
      %1237 = vmatpush1.msra.mxu0 0.0
      %1238 = vmatprep.subr.mxu0 0.0
      %1239 = vmatpush1.msra.mxu0 0.0
      %1240 = vmatprep.subr.mxu0 0.0
      %1241 = vmatpush1.msra.mxu0 0.0
      %1242 = vmatprep.subr.mxu0 0.0
      %1243 = vmatpush1.msra.mxu0 0.0
      %1244 = vmatprep.subr.mxu0 0.0
      %1245 = vmatpush1.msra.mxu0 0.0
      %1246 = vmatprep.mubr.f32.mxu0 0.0
      %1247 = vmatmul.mubr.f32.gmra.mrb[0].mxu0 %v1170
      %v1248 = vpop.f32.mrb[0].mxu0
      %v1249 = vadd.f32 0.0, %v1248
      %v1250 = vpop.f32.mrb[0].mxu0
      %1251 = vmatprep.mubr.f32.mxu0 0.0
      %1252 = vmatmul.mubr.f32.gmra.mrb[0].mxu0 %v1171
      %v1253 = vpop.f32.mrb[0].mxu0
      %v1254 = vadd.f32 0.0, %v1253
      %v1255 = vpop.f32.mrb[0].mxu0
      %1256 = vmatprep.mubr.f32.mxu0 0.0
      %1257 = vmatmul.mubr.f32.gmra.mrb[0].mxu0 %v1172
      %v1258 = vpop.f32.mrb[0].mxu0
      %v1259 = vadd.f32 0.0, %v1258
      %v1260 = vpop.f32.mrb[0].mxu0
      %1261 = vmatprep.mubr.f32.mxu0 0.0
      %1262 = vmatmul.mubr.f32.gmra.mrb[0].mxu0 %v1173
      %v1263 = vpop.f32.mrb[0].mxu0
      %v1264 = vadd.f32 0.0, %v1263
      %v1265 = vpop.f32.mrb[0].mxu0
      %1266 = vmatprep.mubr.f32.mxu0 0.0
      %1267 = vmatmul.mubr.f32.gmra.mrb[0].mxu0 %v1174
      %v1268 = vpop.f32.mrb[0].mxu0
      %v1269 = vadd.f32 0.0, %v1268
      %v1270 = vpop.f32.mrb[0].mxu0
      %1271 = vmatprep.mubr.f32.mxu0 0.0
      %1272 = vmatmul.mubr.f32.gmra.mrb[0].mxu0 %v1175
      %v1273 = vpop.f32.mrb[0].mxu0
      %v1274 = vadd.f32 0.0, %v1273
      %v1275 = vpop.f32.mrb[0].mxu0
      %1276 = vdwg.mxu0
      %v1277 = vadd.f32 %v1176, %v1249
      %v1278 = vadd.f32 %v1177, %v1254
      %v1279 = vadd.f32 %v1178, %v1259
      %v1280 = vadd.f32 %v1179, %v1264
      %v1281 = vadd.f32 %v1180, %v1269
      %v1282 = vadd.f32 %v1181, %v1274
      %1283 = vst.msk [vmem:[#allocation2] sm:$0xff] %vm935, %v1277
      %1284 = vst.msk [vmem:[#allocation2 + $0x8] sm:$0xff] %vm935, %v1278
      %1285 = vst.msk [vmem:[#allocation2 + $0x10] sm:$0xff] %vm935, %v1279
      %1286 = vst.msk [vmem:[#allocation2 + $0x18] sm:$0xff] %vm935, %v1280
      %1287 = vst.msk [vmem:[#allocation2 + $0x20] sm:$0xff] %vm935, %v1281
      %vm1288 = vcmask 253952
      %1289 = vst.msk [vmem:[#allocation2 + $0x28] sm:$0x1] %vm1288, %v1282
      %p1290 = scmp.eq.s32.totalorder %s22, 2
      // Predicated region
      $region69: #{model_forward.5} parent=63 // pred_check
        %p1291 = pneg %p1290
      $region70: #{model_forward.5} parent=63 // pred_check_branch
        %1293 = sbr.rel (%p1291) target = $region72
      $region71: #{model_forward.5} parent=63 // pred_region
        %v1294 = vld [vmem:[#allocation2] sm:$0xff]
        %v1295 = vld [vmem:[#allocation2 + $0x8] sm:$0xff]
        %v1296 = vld [vmem:[#allocation2 + $0x10] sm:$0xff]
        %v1297 = vld [vmem:[#allocation2 + $0x18] sm:$0xff]
        %v1298 = vld [vmem:[#allocation2 + $0x20] sm:$0xff]
        %v1299 = vld [vmem:[%s10] sm:$0xff]
        %v1300 = vld [vmem:[%s10 + $0x8] sm:$0xff]
        %v1301 = vld [vmem:[%s10 + $0x10] sm:$0xff]
        %v1302 = vld [vmem:[%s10 + $0x18] sm:$0xff]
        %v1303 = vld [vmem:[%s10 + $0x20] sm:$0xff]
        %1305 = vset.pattern.permute.xlu0 0
        %1306 = vperm.xlu0 %1305, %v1299
        %v1307 = vpop.permute.xlu0 %1306
        %1310 = vset.pattern.permute.xlu0 0
        %1311 = vperm.xlu0 %1310, %v1300
        %v1312 = vpop.permute.xlu0 %1311
        %1315 = vset.pattern.permute.xlu0 0
        %1316 = vperm.xlu0 %1315, %v1301
        %v1317 = vpop.permute.xlu0 %1316
        %1320 = vset.pattern.permute.xlu0 0
        %1321 = vperm.xlu0 %1320, %v1302
        %v1322 = vpop.permute.xlu0 %1321
        %1325 = vset.pattern.permute.xlu0 0
        %1326 = vperm.xlu0 %1325, %v1303
        %v1327 = vpop.permute.xlu0 %1326
        %v1329 = vmul.f32 %v1294, %v1307
        %v1330 = vmul.f32 %v1295, %v1312
        %v1331 = vmul.f32 %v1296, %v1317
        %v1332 = vmul.f32 %v1297, %v1322
        %v1333 = vmul.f32 %v1298, %v1327
        %v1334 = vld [vmem:[%s3] sm:$0xff]
        %v1335 = vld [vmem:[%s3 + $0x8] sm:$0xff]
        %v1336 = vld [vmem:[%s3 + $0x10] sm:$0xff]
        %v1337 = vld [vmem:[%s3 + $0x18] sm:$0xff]
        %v1338 = vld [vmem:[%s3 + $0x20] sm:$0xff]
        %v1339 = vld [vmem:[%s7] sm:$0xff]
        %v1340 = vld [vmem:[%s7 + $0x8] sm:$0xff]
        %v1341 = vld [vmem:[%s7 + $0x10] sm:$0xff]
        %v1342 = vld [vmem:[%s7 + $0x18] sm:$0xff]
        %v1343 = vld [vmem:[%s8] sm:$0xff]
        %v1344 = vld [vmem:[%s8 + $0x8] sm:$0xff]
        %v1345 = vld [vmem:[%s8 + $0x10] sm:$0xff]
        %v1346 = vld [vmem:[%s8 + $0x18] sm:$0xff]
        %v1348 = vsel %vm935, %v1329, 0
        %v1351 = vsel %vm935, %v1330, 0
        %v1354 = vsel %vm935, %v1331, 0
        %v1357 = vsel %vm935, %v1332, 0
        %v1360 = vsel %vm935, %v1333, 0
        %1362 = vmatprep.subr.mxu0 0.0
        %1363 = vmatpush1.msra.mxu0 %v1343
        %1364 = vmatprep.subr.mxu0 0.0
        %1365 = vmatpush1.msra.mxu0 %v1344
        %1366 = vmatprep.subr.mxu0 0.0
        %1367 = vmatpush1.msra.mxu0 %v1345
        %1368 = vmatprep.subr.mxu0 0.0
        %1369 = vmatpush1.msra.mxu0 %v1346
        %1370 = vmatprep.subr.mxu0 0.0
        %1371 = vmatpush1.msra.mxu0 0.0
        %1372 = vmatprep.subr.mxu0 0.0
        %1373 = vmatpush1.msra.mxu0 0.0
        %1374 = vmatprep.subr.mxu0 0.0
        %1375 = vmatpush1.msra.mxu0 0.0
        %1376 = vmatprep.subr.mxu0 0.0
        %1377 = vmatpush1.msra.mxu0 0.0
        %1378 = vmatprep.subr.mxu0 0.0
        %1379 = vmatpush1.msra.mxu0 0.0
        %1380 = vmatprep.subr.mxu0 0.0
        %1381 = vmatpush1.msra.mxu0 0.0
        %1382 = vmatprep.subr.mxu0 0.0
        %1383 = vmatpush1.msra.mxu0 0.0
        %1384 = vmatprep.subr.mxu0 0.0
        %1385 = vmatpush1.msra.mxu0 0.0
        %1386 = vmatprep.subr.mxu0 0.0
        %1387 = vmatpush1.msra.mxu0 0.0
        %1388 = vmatprep.subr.mxu0 0.0
        %1389 = vmatpush1.msra.mxu0 0.0
        %1390 = vmatprep.subr.mxu0 0.0
        %1391 = vmatpush1.msra.mxu0 0.0
        %1392 = vmatprep.subr.mxu0 0.0
        %1393 = vmatpush1.msra.mxu0 0.0
        %1394 = vmatprep.subr.mxu0 0.0
        %1395 = vmatpush1.msra.mxu0 0.0
        %1396 = vmatprep.subr.mxu0 0.0
        %1397 = vmatpush1.msra.mxu0 0.0
        %1398 = vmatprep.subr.mxu0 0.0
        %1399 = vmatpush1.msra.mxu0 0.0
        %1400 = vmatprep.subr.mxu0 0.0
        %1401 = vmatpush1.msra.mxu0 0.0
        %1402 = vmatprep.subr.mxu0 0.0
        %1403 = vmatpush1.msra.mxu0 0.0
        %1404 = vmatprep.subr.mxu0 0.0
        %1405 = vmatpush1.msra.mxu0 0.0
        %1406 = vmatprep.subr.mxu0 0.0
        %1407 = vmatpush1.msra.mxu0 0.0
        %1408 = vmatprep.subr.mxu0 0.0
        %1409 = vmatpush1.msra.mxu0 0.0
        %1410 = vmatprep.subr.mxu0 0.0
        %1411 = vmatpush1.msra.mxu0 0.0
        %1412 = vmatprep.subr.mxu0 0.0
        %1413 = vmatpush1.msra.mxu0 0.0
        %1414 = vmatprep.subr.mxu0 0.0
        %1415 = vmatpush1.msra.mxu0 0.0
        %1416 = vmatprep.subr.mxu0 0.0
        %1417 = vmatpush1.msra.mxu0 0.0
        %1418 = vmatprep.subr.mxu0 0.0
        %1419 = vmatpush1.msra.mxu0 0.0
        %1420 = vmatprep.subr.mxu0 0.0
        %1421 = vmatpush1.msra.mxu0 0.0
        %1422 = vmatprep.subr.mxu0 0.0
        %1423 = vmatpush1.msra.mxu0 0.0
        %1424 = vmatprep.subr.mxu0 0.0
        %1425 = vmatpush1.msra.mxu0 0.0
        %1426 = vmatprep.mubr.f32.mxu0 0.0
        %1427 = vmatmul.mubr.f32.gmra.mrb[0].mxu0 %v1348
        %v1428 = vpop.f32.mrb[0].mxu0
        %v1429 = vadd.f32 0.0, %v1428
        %v1430 = vpop.f32.mrb[0].mxu0
        %1431 = vmatprep.mubr.f32.mxu0 0.0
        %1432 = vmatmul.mubr.f32.gmra.mrb[0].mxu0 %v1351
        %v1433 = vpop.f32.mrb[0].mxu0
        %v1434 = vadd.f32 0.0, %v1433
        %v1435 = vpop.f32.mrb[0].mxu0
        %1436 = vmatprep.mubr.f32.mxu0 0.0
        %1437 = vmatmul.mubr.f32.gmra.mrb[0].mxu0 %v1354
        %v1438 = vpop.f32.mrb[0].mxu0
        %v1439 = vadd.f32 0.0, %v1438
        %v1440 = vpop.f32.mrb[0].mxu0
        %1441 = vmatprep.mubr.f32.mxu0 0.0
        %1442 = vmatmul.mubr.f32.gmra.mrb[0].mxu0 %v1357
        %v1443 = vpop.f32.mrb[0].mxu0
        %v1444 = vadd.f32 0.0, %v1443
        %v1445 = vpop.f32.mrb[0].mxu0
        %1446 = vmatprep.mubr.f32.mxu0 0.0
        %1447 = vmatmul.mubr.f32.gmra.mrb[0].mxu0 %v1360
        %v1448 = vpop.f32.mrb[0].mxu0
        %v1449 = vadd.f32 0.0, %v1448
        %v1450 = vpop.f32.mrb[0].mxu0
        %1451 = vdwg.mxu0
        %v1453 = vsel %vm935, %v1334, 0
        %v1456 = vsel %vm935, %v1335, 0
        %v1459 = vsel %vm935, %v1336, 0
        %v1462 = vsel %vm935, %v1337, 0
        %v1465 = vsel %vm935, %v1338, 0
        %1467 = vmatprep.subr.mxu0 0.0
        %1468 = vmatpush1.msra.mxu0 %v1339
        %1469 = vmatprep.subr.mxu0 0.0
        %1470 = vmatpush1.msra.mxu0 %v1340
        %1471 = vmatprep.subr.mxu0 0.0
        %1472 = vmatpush1.msra.mxu0 %v1341
        %1473 = vmatprep.subr.mxu0 0.0
        %1474 = vmatpush1.msra.mxu0 %v1342
        %1475 = vmatprep.subr.mxu0 0.0
        %1476 = vmatpush1.msra.mxu0 0.0
        %1477 = vmatprep.subr.mxu0 0.0
        %1478 = vmatpush1.msra.mxu0 0.0
        %1479 = vmatprep.subr.mxu0 0.0
        %1480 = vmatpush1.msra.mxu0 0.0
        %1481 = vmatprep.subr.mxu0 0.0
        %1482 = vmatpush1.msra.mxu0 0.0
        %1483 = vmatprep.subr.mxu0 0.0
        %1484 = vmatpush1.msra.mxu0 0.0
        %1485 = vmatprep.subr.mxu0 0.0
        %1486 = vmatpush1.msra.mxu0 0.0
        %1487 = vmatprep.subr.mxu0 0.0
        %1488 = vmatpush1.msra.mxu0 0.0
        %1489 = vmatprep.subr.mxu0 0.0
        %1490 = vmatpush1.msra.mxu0 0.0
        %1491 = vmatprep.subr.mxu0 0.0
        %1492 = vmatpush1.msra.mxu0 0.0
        %1493 = vmatprep.subr.mxu0 0.0
        %1494 = vmatpush1.msra.mxu0 0.0
        %1495 = vmatprep.subr.mxu0 0.0
        %1496 = vmatpush1.msra.mxu0 0.0
        %1497 = vmatprep.subr.mxu0 0.0
        %1498 = vmatpush1.msra.mxu0 0.0
        %1499 = vmatprep.subr.mxu0 0.0
        %1500 = vmatpush1.msra.mxu0 0.0
        %1501 = vmatprep.subr.mxu0 0.0
        %1502 = vmatpush1.msra.mxu0 0.0
        %1503 = vmatprep.subr.mxu0 0.0
        %1504 = vmatpush1.msra.mxu0 0.0
        %1505 = vmatprep.subr.mxu0 0.0
        %1506 = vmatpush1.msra.mxu0 0.0
        %1507 = vmatprep.subr.mxu0 0.0
        %1508 = vmatpush1.msra.mxu0 0.0
        %1509 = vmatprep.subr.mxu0 0.0
        %1510 = vmatpush1.msra.mxu0 0.0
        %1511 = vmatprep.subr.mxu0 0.0
        %1512 = vmatpush1.msra.mxu0 0.0
        %1513 = vmatprep.subr.mxu0 0.0
        %1514 = vmatpush1.msra.mxu0 0.0
        %1515 = vmatprep.subr.mxu0 0.0
        %1516 = vmatpush1.msra.mxu0 0.0
        %1517 = vmatprep.subr.mxu0 0.0
        %1518 = vmatpush1.msra.mxu0 0.0
        %1519 = vmatprep.subr.mxu0 0.0
        %1520 = vmatpush1.msra.mxu0 0.0
        %1521 = vmatprep.subr.mxu0 0.0
        %1522 = vmatpush1.msra.mxu0 0.0
        %1523 = vmatprep.subr.mxu0 0.0
        %1524 = vmatpush1.msra.mxu0 0.0
        %1525 = vmatprep.subr.mxu0 0.0
        %1526 = vmatpush1.msra.mxu0 0.0
        %1527 = vmatprep.subr.mxu0 0.0
        %1528 = vmatpush1.msra.mxu0 0.0
        %1529 = vmatprep.subr.mxu0 0.0
        %1530 = vmatpush1.msra.mxu0 0.0
        %1531 = vmatprep.mubr.f32.mxu0 0.0
        %1532 = vmatmul.mubr.f32.gmra.mrb[0].mxu0 %v1453
        %v1533 = vpop.f32.mrb[0].mxu0
        %v1534 = vadd.f32 %v1429, %v1533
        %v1535 = vpop.f32.mrb[0].mxu0
        %1536 = vmatprep.mubr.f32.mxu0 0.0
        %1537 = vmatmul.mubr.f32.gmra.mrb[0].mxu0 %v1456
        %v1538 = vpop.f32.mrb[0].mxu0
        %v1539 = vadd.f32 %v1434, %v1538
        %v1540 = vpop.f32.mrb[0].mxu0
        %1541 = vmatprep.mubr.f32.mxu0 0.0
        %1542 = vmatmul.mubr.f32.gmra.mrb[0].mxu0 %v1459
        %v1543 = vpop.f32.mrb[0].mxu0
        %v1544 = vadd.f32 %v1439, %v1543
        %v1545 = vpop.f32.mrb[0].mxu0
        %1546 = vmatprep.mubr.f32.mxu0 0.0
        %1547 = vmatmul.mubr.f32.gmra.mrb[0].mxu0 %v1462
        %v1548 = vpop.f32.mrb[0].mxu0
        %v1549 = vadd.f32 %v1444, %v1548
        %v1550 = vpop.f32.mrb[0].mxu0
        %1551 = vmatprep.mubr.f32.mxu0 0.0
        %1552 = vmatmul.mubr.f32.gmra.mrb[0].mxu0 %v1465
        %v1553 = vpop.f32.mrb[0].mxu0
        %v1554 = vadd.f32 %v1449, %v1553
        %v1555 = vpop.f32.mrb[0].mxu0
        %1556 = vdwg.mxu0
        %v1557 = vld [vmem:[%s9] sm:$0x1]
        %v1559 = vlaneseq
        %v1560 = vshrl.u32 %v1559, 7
        %v1561 = vsub.s32 0, %v1560
        %v1562 = vrot.slane %v1557, %v1561
        %v1564 = vadd.f32 %v1534, %v1562
        %v1565 = vadd.f32 %v1539, %v1562
        %v1566 = vadd.f32 %v1544, %v1562
        %v1567 = vadd.f32 %v1549, %v1562
        %v1568 = vadd.f32 %v1554, %v1562
        %v1569 = vmax.f32 %v1564, 0.0
        %v1570 = vmax.f32 %v1565, 0.0
        %v1571 = vmax.f32 %v1566, 0.0
        %v1572 = vmax.f32 %v1567, 0.0
        %v1573 = vmax.f32 %v1568, 0.0
        %1574 = vst.msk [vmem:[%s11] sm:$0xff] %vm935, %v1569
        %1575 = vst.msk [vmem:[%s11 + $0x8] sm:$0xff] %vm935, %v1570
        %1576 = vst.msk [vmem:[%s11 + $0x10] sm:$0xff] %vm935, %v1571
        %1577 = vst.msk [vmem:[%s11 + $0x18] sm:$0xff] %vm935, %v1572
        %1578 = vst.msk [vmem:[%s11 + $0x20] sm:$0xff] %vm935, %v1573
      $region72: #{model_forward.5} parent=63 // pred_fallthru
        _
      // Predicated region
      $region73: #{model_forward.5} parent=63 // pred_check
        %p1579 = pneg %p281
      $region74: #{model_forward.5} parent=63 // pred_check_branch
        %1581 = sbr.rel (%p1579) target = $region76
      $region75: #{model_forward.5} parent=63 // pred_region
        _
      $region76: #{model_forward.5} parent=63 // pred_fallthru
        _
      // Predicated region
      $region77: #{model_forward.5} parent=63 // pred_check
        %p1582 = pneg %p281
      $region78: #{model_forward.5} parent=63 // pred_check_branch
        %1584 = sbr.rel (%p1582) target = $region80
      $region79: #{model_forward.5} parent=63 // pred_region
        _
      $region80: #{model_forward.5} parent=63 // pred_fallthru
        _
    $region64: #{model_forward.5} parent=5 // pred_fallthru
      _
    %p1585 = scmp.le.s32.totalorder 2, %s17
    // Predicated region
    $region81: #{model_forward.5} parent=5 // pred_check
      %p1586 = pneg %p1585
    $region82: #{model_forward.5} parent=5 // pred_check_branch
      %1588 = sbr.rel (%p1586) target = $region84
    $region83: #{model_forward.5} parent=5 // pred_region
      %s1589 = ssub.s32 %s17, 2
    $region84: #{model_forward.5} parent=5 // pred_fallthru
      _
  $region6: #{model_forward.5} parent=0 // loop_footer
    %s21 = sadd.s32 1, %s17
  $region7: #{model_forward.5} parent=0 // loop_footer_branch
    %16 = sbr.rel target = $region3
  $region8: #{model_forward.5} parent=0 // loop_exit
    _

// kernel: model_forward.4
$region0: #{model_forward.4}
  #allocation0 [shape = 'u32[]', space=smem, size = 0x4, offset = 0x4, fixed_abs, tag = 'smem constant byte address 0x4 - core index']
  #allocation1 [shape = 'u32[144,128]{1,0:T(1,128)}', space=vmem, size = 0x12000, scoped, tag = 'internal scratch']
  #allocation2 [shape = 'f32[41,32]{1,0:T(8,128)}', space=vmem, size = 0x6000, scoped, tag = 'scratch operand']
  %s0 = inlined_call_operand.vmem [shape: s32[384,1], index: 0, kind: input, shape index: {}]
  %s1 = inlined_call_operand.vmem [shape: s32[1,384], index: 1, kind: input, shape index: {}]
  %s2 = inlined_call_operand.vmem [shape: f32[384,16], index: 2, kind: input, shape index: {}]
  %s3 = inlined_call_operand.vmem [shape: f32[40,16], index: 3, kind: input, shape index: {}]
  %s4 = inlined_call_operand.vmem [shape: f32[16,32], index: 4, kind: input, shape index: {}]
  %s5 = inlined_call_operand.vmem [shape: f32[16,32], index: 5, kind: input, shape index: {}]
  %s6 = inlined_call_operand.vmem [shape: f32[1,32], index: 6, kind: input, shape index: {}]
  %s7 = inlined_call_operand.vmem [shape: f32[16,32], index: 7, kind: input, shape index: {}]
  %s8 = inlined_call_operand.vmem [shape: f32[32,32], index: 8, kind: input, shape index: {}]
  %s9 = inlined_call_operand.vmem [shape: f32[1,32], index: 9, kind: input, shape index: {}]
  %s10 = inlined_call_operand.vmem [shape: f32[40,1], index: 10, kind: input, shape index: {}]
  %s11 = inlined_call_operand.vmem [shape: f32[40,32], index: 11, kind: output, shape index: {}]
  %s12 = sld [smem:[#allocation0]]
  $region85: #{model_forward.4} parent=0
    _
  %s14 = ssub.s32 1, %s12
  %s15 = scalar_select 0, %s14, %s12
  loop: start=0, step=1, limit=5
  $region2: #{model_forward.4} parent=0 // loop_pre_header
    _
  $region3: #{model_forward.4} parent=0 // loop_header
    %s17 = sphi 0, %s21
    %p18 = scmp.ge.s32.totalorder %s17, 5
    %s27 = sphi 0, %s29
    %s30 = sphi 0, %s27
    %s31 = sphi 0, %s30
    %s47 = sphi 0, %s31
    %s53 = sphi 0, %s55
    %s56 = sphi 0, %s53
    %s57 = sphi 0, %s56
    %s73 = sphi 0, %s57
    %s79 = sphi 0, %s81
    %s82 = sphi 0, %s79
    %s83 = sphi 0, %s82
    %s99 = sphi 0, %s83
    %s103 = sphi 0, %s103
    %s105 = sphi 0, %s103
    %s106 = sphi 0, %s105
    %s120 = sphi 0, %s106
    %s124 = sphi 0, %s124
    %s126 = sphi 0, %s124
    %s127 = sphi 0, %s126
    %s141 = sphi 0, %s127
    %s145 = sphi 0, %s145
    %s147 = sphi 0, %s145
    %s148 = sphi 0, %s147
    %s162 = sphi 0, %s148
    %s166 = sphi 0, %s166
    %s168 = sphi 0, %s166
    %s169 = sphi 0, %s168
    %s183 = sphi 0, %s169
    %s187 = sphi 0, %s187
    %s189 = sphi 0, %s187
    %s190 = sphi 0, %s189
    %s204 = sphi 0, %s190
    %s208 = sphi 0, %s208
    %s210 = sphi 0, %s208
    %s211 = sphi 0, %s210
    %s225 = sphi 0, %s211
    %s229 = sphi 0, %s229
    %s231 = sphi 0, %s229
    %s232 = sphi 0, %s231
    %s246 = sphi 0, %s232
    %s250 = sphi 0, %s250
    %s252 = sphi 0, %s250
    %s253 = sphi 0, %s252
    %s267 = sphi 0, %s253
    %s271 = sphi 0, %s271
    %s273 = sphi 0, %s271
    %s274 = sphi 0, %s273
    %s288 = sphi 0, %s274
  $region4: #{model_forward.4} parent=0 // loop_header_branch
    %20 = sbr.rel (%p18) target = $region8
  $region5: #{model_forward.4} parent=0 // loop_body
    %s22 = ssub.s32 %s17, 1
    %s23 = ssub.s32 %s17, 2
    %s24 = sadd.s32 %s17, 1
    %s25 = ssub.s32 %s17, %s24
    %p26 = scmp.eq.s32.totalorder %s25, 0
    %s28 = sadd.s32 %s27, 1
    %s29 = scalar_select %p26, %s27, %s28
    %p32 = pneg %p26
    %p33 = scmp.eq.s32.totalorder %s17, 2
    %p34 = por %p32, %p33
    %p35 = scmp.ne.s32.totalorder %s27, %s30
    %p36 = scmp.eq.s32.totalorder %s17, 0
    %p37 = por %p35, %p36
    %p38 = scmp.ne.s32.totalorder %s27, %s30
    %p39 = scmp.eq.s32.totalorder %s22, 2
    %p40 = por %p38, %p39
    %p41 = scmp.ne.s32.totalorder %s30, %s31
    %p42 = scmp.eq.s32.totalorder %s22, 0
    %p43 = por %p41, %p42
    %p44 = scmp.ne.s32.totalorder %s30, %s31
    %p45 = scmp.eq.s32.totalorder %s23, 2
    %p46 = por %p44, %p45
    %p48 = scmp.ne.s32.totalorder %s31, %s47
    %p49 = scmp.eq.s32.totalorder %s23, 0
    %p50 = por %p48, %p49
    %s51 = ssub.s32 %s17, %s24
    %p52 = scmp.eq.s32.totalorder %s51, 0
    %s54 = sadd.s32 %s53, 1
    %s55 = scalar_select %p52, %s53, %s54
    %p58 = pneg %p52
    %p59 = scmp.eq.s32.totalorder %s17, 2
    %p60 = por %p58, %p59
    %p61 = scmp.ne.s32.totalorder %s53, %s56
    %p62 = scmp.eq.s32.totalorder %s17, 0
    %p63 = por %p61, %p62
    %p64 = scmp.ne.s32.totalorder %s53, %s56
    %p65 = scmp.eq.s32.totalorder %s22, 2
    %p66 = por %p64, %p65
    %p67 = scmp.ne.s32.totalorder %s56, %s57
    %p68 = scmp.eq.s32.totalorder %s22, 0
    %p69 = por %p67, %p68
    %p70 = scmp.ne.s32.totalorder %s56, %s57
    %p71 = scmp.eq.s32.totalorder %s23, 2
    %p72 = por %p70, %p71
    %p74 = scmp.ne.s32.totalorder %s57, %s73
    %p75 = scmp.eq.s32.totalorder %s23, 0
    %p76 = por %p74, %p75
    %s77 = ssub.s32 %s17, %s24
    %p78 = scmp.eq.s32.totalorder %s77, 0
    %s80 = sadd.s32 %s79, 1
    %s81 = scalar_select %p78, %s79, %s80
    %p84 = pneg %p78
    %p85 = scmp.eq.s32.totalorder %s17, 2
    %p86 = por %p84, %p85
    %p87 = scmp.ne.s32.totalorder %s79, %s82
    %p88 = scmp.eq.s32.totalorder %s17, 0
    %p89 = por %p87, %p88
    %p90 = scmp.ne.s32.totalorder %s79, %s82
    %p91 = scmp.eq.s32.totalorder %s22, 2
    %p92 = por %p90, %p91
    %p93 = scmp.ne.s32.totalorder %s82, %s83
    %p94 = scmp.eq.s32.totalorder %s22, 0
    %p95 = por %p93, %p94
    %p96 = scmp.ne.s32.totalorder %s82, %s83
    %p97 = scmp.eq.s32.totalorder %s23, 2
    %p98 = por %p96, %p97
    %p100 = scmp.ne.s32.totalorder %s83, %s99
    %p101 = scmp.eq.s32.totalorder %s23, 0
    %p102 = por %p100, %p101
    %s104 = sadd.s32 %s103, 1
    %p107 = scmp.eq.s32.totalorder %s17, 2
    %p108 = scmp.ne.s32.totalorder %s103, %s105
    %p109 = scmp.eq.s32.totalorder %s17, 0
    %p110 = por %p108, %p109
    %p111 = scmp.ne.s32.totalorder %s103, %s105
    %p112 = scmp.eq.s32.totalorder %s22, 2
    %p113 = por %p111, %p112
    %p114 = scmp.ne.s32.totalorder %s105, %s106
    %p115 = scmp.eq.s32.totalorder %s22, 0
    %p116 = por %p114, %p115
    %p117 = scmp.ne.s32.totalorder %s105, %s106
    %p118 = scmp.eq.s32.totalorder %s23, 2
    %p119 = por %p117, %p118
    %p121 = scmp.ne.s32.totalorder %s106, %s120
    %p122 = scmp.eq.s32.totalorder %s23, 0
    %p123 = por %p121, %p122
    %s125 = sadd.s32 %s124, 1
    %p128 = scmp.eq.s32.totalorder %s17, 2
    %p129 = scmp.ne.s32.totalorder %s124, %s126
    %p130 = scmp.eq.s32.totalorder %s17, 0
    %p131 = por %p129, %p130
    %p132 = scmp.ne.s32.totalorder %s124, %s126
    %p133 = scmp.eq.s32.totalorder %s22, 2
    %p134 = por %p132, %p133
    %p135 = scmp.ne.s32.totalorder %s126, %s127
    %p136 = scmp.eq.s32.totalorder %s22, 0
    %p137 = por %p135, %p136
    %p138 = scmp.ne.s32.totalorder %s126, %s127
    %p139 = scmp.eq.s32.totalorder %s23, 2
    %p140 = por %p138, %p139
    %p142 = scmp.ne.s32.totalorder %s127, %s141
    %p143 = scmp.eq.s32.totalorder %s23, 0
    %p144 = por %p142, %p143
    %s146 = sadd.s32 %s145, 1
    %p149 = scmp.eq.s32.totalorder %s17, 2
    %p150 = scmp.ne.s32.totalorder %s145, %s147
    %p151 = scmp.eq.s32.totalorder %s17, 0
    %p152 = por %p150, %p151
    %p153 = scmp.ne.s32.totalorder %s145, %s147
    %p154 = scmp.eq.s32.totalorder %s22, 2
    %p155 = por %p153, %p154
    %p156 = scmp.ne.s32.totalorder %s147, %s148
    %p157 = scmp.eq.s32.totalorder %s22, 0
    %p158 = por %p156, %p157
    %p159 = scmp.ne.s32.totalorder %s147, %s148
    %p160 = scmp.eq.s32.totalorder %s23, 2
    %p161 = por %p159, %p160
    %p163 = scmp.ne.s32.totalorder %s148, %s162
    %p164 = scmp.eq.s32.totalorder %s23, 0
    %p165 = por %p163, %p164
    %s167 = sadd.s32 %s166, 1
    %p170 = scmp.eq.s32.totalorder %s17, 2
    %p171 = scmp.ne.s32.totalorder %s166, %s168
    %p172 = scmp.eq.s32.totalorder %s17, 0
    %p173 = por %p171, %p172
    %p174 = scmp.ne.s32.totalorder %s166, %s168
    %p175 = scmp.eq.s32.totalorder %s22, 2
    %p176 = por %p174, %p175
    %p177 = scmp.ne.s32.totalorder %s168, %s169
    %p178 = scmp.eq.s32.totalorder %s22, 0
    %p179 = por %p177, %p178
    %p180 = scmp.ne.s32.totalorder %s168, %s169
    %p181 = scmp.eq.s32.totalorder %s23, 2
    %p182 = por %p180, %p181
    %p184 = scmp.ne.s32.totalorder %s169, %s183
    %p185 = scmp.eq.s32.totalorder %s23, 0
    %p186 = por %p184, %p185
    %s188 = sadd.s32 %s187, 1
    %p191 = scmp.eq.s32.totalorder %s17, 2
    %p192 = scmp.ne.s32.totalorder %s187, %s189
    %p193 = scmp.eq.s32.totalorder %s17, 0
    %p194 = por %p192, %p193
    %p195 = scmp.ne.s32.totalorder %s187, %s189
    %p196 = scmp.eq.s32.totalorder %s22, 2
    %p197 = por %p195, %p196
    %p198 = scmp.ne.s32.totalorder %s189, %s190
    %p199 = scmp.eq.s32.totalorder %s22, 0
    %p200 = por %p198, %p199
    %p201 = scmp.ne.s32.totalorder %s189, %s190
    %p202 = scmp.eq.s32.totalorder %s23, 2
    %p203 = por %p201, %p202
    %p205 = scmp.ne.s32.totalorder %s190, %s204
    %p206 = scmp.eq.s32.totalorder %s23, 0
    %p207 = por %p205, %p206
    %s209 = sadd.s32 %s208, 1
    %p212 = scmp.eq.s32.totalorder %s17, 2
    %p213 = scmp.ne.s32.totalorder %s208, %s210
    %p214 = scmp.eq.s32.totalorder %s17, 0
    %p215 = por %p213, %p214
    %p216 = scmp.ne.s32.totalorder %s208, %s210
    %p217 = scmp.eq.s32.totalorder %s22, 2
    %p218 = por %p216, %p217
    %p219 = scmp.ne.s32.totalorder %s210, %s211
    %p220 = scmp.eq.s32.totalorder %s22, 0
    %p221 = por %p219, %p220
    %p222 = scmp.ne.s32.totalorder %s210, %s211
    %p223 = scmp.eq.s32.totalorder %s23, 2
    %p224 = por %p222, %p223
    %p226 = scmp.ne.s32.totalorder %s211, %s225
    %p227 = scmp.eq.s32.totalorder %s23, 0
    %p228 = por %p226, %p227
    %s230 = sadd.s32 %s229, 1
    %p233 = scmp.eq.s32.totalorder %s17, 2
    %p234 = scmp.ne.s32.totalorder %s229, %s231
    %p235 = scmp.eq.s32.totalorder %s17, 0
    %p236 = por %p234, %p235
    %p237 = scmp.ne.s32.totalorder %s229, %s231
    %p238 = scmp.eq.s32.totalorder %s22, 2
    %p239 = por %p237, %p238
    %p240 = scmp.ne.s32.totalorder %s231, %s232
    %p241 = scmp.eq.s32.totalorder %s22, 0
    %p242 = por %p240, %p241
    %p243 = scmp.ne.s32.totalorder %s231, %s232
    %p244 = scmp.eq.s32.totalorder %s23, 2
    %p245 = por %p243, %p244
    %p247 = scmp.ne.s32.totalorder %s232, %s246
    %p248 = scmp.eq.s32.totalorder %s23, 0
    %p249 = por %p247, %p248
    %s251 = sadd.s32 %s250, 1
    %p254 = scmp.eq.s32.totalorder %s17, 2
    %p255 = scmp.ne.s32.totalorder %s250, %s252
    %p256 = scmp.eq.s32.totalorder %s17, 0
    %p257 = por %p255, %p256
    %p258 = scmp.ne.s32.totalorder %s250, %s252
    %p259 = scmp.eq.s32.totalorder %s22, 2
    %p260 = por %p258, %p259
    %p261 = scmp.ne.s32.totalorder %s252, %s253
    %p262 = scmp.eq.s32.totalorder %s22, 0
    %p263 = por %p261, %p262
    %p264 = scmp.ne.s32.totalorder %s252, %s253
    %p265 = scmp.eq.s32.totalorder %s23, 2
    %p266 = por %p264, %p265
    %p268 = scmp.ne.s32.totalorder %s253, %s267
    %p269 = scmp.eq.s32.totalorder %s23, 0
    %p270 = por %p268, %p269
    %s272 = sadd.s32 %s271, 1
    %p275 = scmp.eq.s32.totalorder %s17, 2
    %p276 = scmp.ne.s32.totalorder %s271, %s273
    %p277 = scmp.eq.s32.totalorder %s17, 0
    %p278 = por %p276, %p277
    %p279 = scmp.ne.s32.totalorder %s271, %s273
    %p280 = scmp.eq.s32.totalorder %s22, 2
    %p281 = por %p279, %p280
    %p282 = scmp.ne.s32.totalorder %s273, %s274
    %p283 = scmp.eq.s32.totalorder %s22, 0
    %p284 = por %p282, %p283
    %p285 = scmp.ne.s32.totalorder %s273, %s274
    %p286 = scmp.eq.s32.totalorder %s23, 2
    %p287 = por %p285, %p286
    %p289 = scmp.ne.s32.totalorder %s274, %s288
    %p290 = scmp.eq.s32.totalorder %s23, 0
    %p291 = por %p289, %p290
    %p292 = scmp.le.s32.totalorder 1, %s17
    %p293 = scmp.lt.s32.totalorder %s17, 4
    %p294 = pnand %p292, %p293
    %p295 = pneg %p294
    // Predicated region
    $region9: #{model_forward.4} parent=5 // pred_check
      _
    $region10: #{model_forward.4} parent=5 // pred_check_branch
      %297 = sbr.rel (%p294) target = $region12
    $region11: #{model_forward.4} parent=5 // pred_region
      %s298 = ssub.s32 %s17, 1
      // Predicated region
      $region13: #{model_forward.4} parent=11 // pred_check
        %p299 = pneg %p116
      $region14: #{model_forward.4} parent=11 // pred_check_branch
        %301 = sbr.rel (%p299) target = $region16
      $region15: #{model_forward.4} parent=11 // pred_region
        _
      $region16: #{model_forward.4} parent=11 // pred_fallthru
        _
      // Predicated region
      $region17: #{model_forward.4} parent=11 // pred_check
        %p302 = pneg %p137
      $region18: #{model_forward.4} parent=11 // pred_check_branch
        %304 = sbr.rel (%p302) target = $region20
      $region19: #{model_forward.4} parent=11 // pred_region
        _
      $region20: #{model_forward.4} parent=11 // pred_fallthru
        _
      // Predicated region
      $region21: #{model_forward.4} parent=11 // pred_check
        %p305 = pneg %p158
      $region22: #{model_forward.4} parent=11 // pred_check_branch
        %307 = sbr.rel (%p305) target = $region24
      $region23: #{model_forward.4} parent=11 // pred_region
        _
      $region24: #{model_forward.4} parent=11 // pred_fallthru
        _
      // Predicated region
      $region25: #{model_forward.4} parent=11 // pred_check
        %p308 = pneg %p179
      $region26: #{model_forward.4} parent=11 // pred_check_branch
        %310 = sbr.rel (%p308) target = $region28
      $region27: #{model_forward.4} parent=11 // pred_region
        _
      $region28: #{model_forward.4} parent=11 // pred_fallthru
        _
      // Predicated region
      $region29: #{model_forward.4} parent=11 // pred_check
        %p311 = pneg %p200
      $region30: #{model_forward.4} parent=11 // pred_check_branch
        %313 = sbr.rel (%p311) target = $region32
      $region31: #{model_forward.4} parent=11 // pred_region
        _
      $region32: #{model_forward.4} parent=11 // pred_fallthru
        _
      // Predicated region
      $region33: #{model_forward.4} parent=11 // pred_check
        %p314 = pneg %p221
      $region34: #{model_forward.4} parent=11 // pred_check_branch
        %316 = sbr.rel (%p314) target = $region36
      $region35: #{model_forward.4} parent=11 // pred_region
        _
      $region36: #{model_forward.4} parent=11 // pred_fallthru
        _
      // Predicated region
      $region37: #{model_forward.4} parent=11 // pred_check
        %p317 = pneg %p242
      $region38: #{model_forward.4} parent=11 // pred_check_branch
        %319 = sbr.rel (%p317) target = $region40
      $region39: #{model_forward.4} parent=11 // pred_region
        _
      $region40: #{model_forward.4} parent=11 // pred_fallthru
        _
      // Predicated region
      $region41: #{model_forward.4} parent=11 // pred_check
        %p320 = pneg %p263
      $region42: #{model_forward.4} parent=11 // pred_check_branch
        %322 = sbr.rel (%p320) target = $region44
      $region43: #{model_forward.4} parent=11 // pred_region
        _
      $region44: #{model_forward.4} parent=11 // pred_fallthru
        _
    $region12: #{model_forward.4} parent=5 // pred_fallthru
      _
    %p323 = scmp.lt.s32.totalorder %s17, 3
    // Predicated region
    $region45: #{model_forward.4} parent=5 // pred_check
      %p324 = pneg %p323
    $region46: #{model_forward.4} parent=5 // pred_check_branch
      %326 = sbr.rel (%p324) target = $region48
    $region47: #{model_forward.4} parent=5 // pred_region
      // Predicated region
      $region49: #{model_forward.4} parent=47 // pred_check
        %p327 = pneg %p37
      $region50: #{model_forward.4} parent=47 // pred_check_branch
        %329 = sbr.rel (%p327) target = $region52
      $region51: #{model_forward.4} parent=47 // pred_region
        %s330 = smul.u32 16, %s17
        %p331 = scmp.lt.s32.totalorder %s330, 47
        %s332 = scalar_select %p331, %s330, 47
        %s333 = smul.addr %s332, 8
        %s334 = scalar_lea.vmem %s0, %s333
        %s335 = smul.u32 16, %s17
      $region52: #{model_forward.4} parent=47 // pred_fallthru
        _
      // Predicated region
      $region53: #{model_forward.4} parent=47 // pred_check
        %p336 = pneg %p63
      $region54: #{model_forward.4} parent=47 // pred_check_branch
        %338 = sbr.rel (%p336) target = $region56
      $region55: #{model_forward.4} parent=47 // pred_region
        %p339 = scmp.lt.s32.totalorder %s17, 2
        %s340 = scalar_select %p339, %s17, 2
        %s341 = scalar_lea.vmem %s1, %s340
      $region56: #{model_forward.4} parent=47 // pred_fallthru
        _
      // Predicated region
      $region57: #{model_forward.4} parent=47 // pred_check
        %p342 = pneg %p89
      $region58: #{model_forward.4} parent=47 // pred_check_branch
        %344 = sbr.rel (%p342) target = $region60
      $region59: #{model_forward.4} parent=47 // pred_region
        %s345 = smul.u32 16, %s17
        %p346 = scmp.lt.s32.totalorder %s345, 47
        %s347 = scalar_select %p346, %s345, 47
        %s348 = smul.addr %s347, 8
        %s349 = scalar_lea.vmem %s2, %s348
        %s350 = smul.u32 16, %s17
      $region60: #{model_forward.4} parent=47 // pred_fallthru
        _
    $region48: #{model_forward.4} parent=5 // pred_fallthru
      _
    %p351 = scmp.le.s32.totalorder 1, %s17
    %p352 = scmp.lt.s32.totalorder %s17, 4
    %p353 = pnand %p351, %p352
    %p354 = pneg %p353
    // Predicated region
    $region61: #{model_forward.4} parent=5 // pred_check
      _
    $region62: #{model_forward.4} parent=5 // pred_check_branch
      %356 = sbr.rel (%p353) target = $region64
    $region63: #{model_forward.4} parent=5 // pred_region
      %s357 = ssub.s32 %s17, 1
      %s358 = smul.u32 16, %s22
      %p359 = scmp.lt.s32.totalorder %s358, 47
      %s360 = scalar_select %p359, %s358, 47
      %s361 = smul.addr %s360, 8
      %s362 = scalar_lea.vmem %s0, %s361
      %p363 = pneg %p43
      %p364 = pneg %p40
      %p365 = scmp.lt.s32.totalorder %s22, 2
      %s366 = scalar_select %p365, %s22, 2
      %s367 = scalar_lea.vmem %s1, %s366
      %p368 = pneg %p69
      %p369 = pneg %p66
      %s370 = smul.u32 16, %s22
      %p371 = scmp.lt.s32.totalorder %s370, 47
      %s372 = scalar_select %p371, %s370, 47
      %s373 = smul.addr %s372, 8
      %s374 = scalar_lea.vmem %s2, %s373
      %p375 = pneg %p95
      %p376 = pneg %p92
      %p377 = pneg %p116
      %p378 = pneg %p113
      %p379 = pneg %p137
      %p380 = pneg %p134
      %p381 = pneg %p158
      %p382 = pneg %p155
      %p383 = pneg %p179
      %p384 = pneg %p176
      %p385 = pneg %p200
      %p386 = pneg %p197
      %p387 = pneg %p221
      %p388 = pneg %p218
      %p389 = pneg %p242
      %p390 = pneg %p239
      %p391 = pneg %p263
      %p392 = pneg %p260
      %p393 = pneg %p284
      %p394 = pneg %p281
      %s395 = smul.u32 16, %s22
      %p396 = scmp.lt.s32.totalorder %s395, 47
      %s397 = scalar_select %p396, %s395, 47
      %s398 = smul.addr %s397, 8
      %s399 = scalar_lea.vmem %s0, %s398
      %s400 = smul.u32 16, %s22
      %p401 = scmp.lt.s32.totalorder %s22, 2
      %s402 = scalar_select %p401, %s22, 2
      %s403 = scalar_lea.vmem %s1, %s402
      %s404 = smul.u32 16, %s22
      %p405 = scmp.lt.s32.totalorder %s404, 47
      %s406 = scalar_select %p405, %s404, 47
      %s407 = smul.addr %s406, 8
      %s408 = scalar_lea.vmem %s2, %s407
      %s409 = smul.u32 16, %s22
      %p410 = scmp.eq.s32.totalorder %s22, 0
      // Predicated region
      $region65: #{model_forward.4} parent=63 // pred_check
        %p411 = pneg %p410
      $region66: #{model_forward.4} parent=63 // pred_check_branch
        %413 = sbr.rel (%p411) target = $region68
      $region67: #{model_forward.4} parent=63 // pred_region
        %vm414 = vcmask 261120
        %415 = vst.msk [vmem:[#allocation2] sm:$0xff] %vm414, 0.0
        %416 = vst.msk [vmem:[#allocation2 + $0x8] sm:$0xff] %vm414, 0.0
        %417 = vst.msk [vmem:[#allocation2 + $0x10] sm:$0xff] %vm414, 0.0
        %418 = vst.msk [vmem:[#allocation2 + $0x18] sm:$0xff] %vm414, 0.0
        %419 = vst.msk [vmem:[#allocation2 + $0x20] sm:$0xff] %vm414, 0.0
        %vm420 = vcmask 253952
        %421 = vst.msk [vmem:[#allocation2 + $0x28] sm:$0x1] %vm420, 0.0
      $region68: #{model_forward.4} parent=63 // pred_fallthru
        _
      %v422 = vld [vmem:[%s399] sm:$0xff]
      %v423 = vld [vmem:[%s399 + $0x8] sm:$0xff]
      %v424 = vld [vmem:[%s399 + $0x10] sm:$0xff]
      %v425 = vld [vmem:[%s399 + $0x18] sm:$0xff]
      %v426 = vld [vmem:[%s399 + $0x20] sm:$0xff]
      %v427 = vld [vmem:[%s399 + $0x28] sm:$0xff]
      %v428 = vld [vmem:[%s399 + $0x30] sm:$0xff]
      %v429 = vld [vmem:[%s399 + $0x38] sm:$0xff]
      %v430 = vld [vmem:[%s399 + $0x40] sm:$0xff]
      %v431 = vld [vmem:[%s399 + $0x48] sm:$0xff]
      %v432 = vld [vmem:[%s399 + $0x50] sm:$0xff]
      %v433 = vld [vmem:[%s399 + $0x58] sm:$0xff]
      %v434 = vld [vmem:[%s399 + $0x60] sm:$0xff]
      %v435 = vld [vmem:[%s399 + $0x68] sm:$0xff]
      %v436 = vld [vmem:[%s399 + $0x70] sm:$0xff]
      %v437 = vld [vmem:[%s399 + $0x78] sm:$0xff]
      %v438 = vlaneseq
      %v439 = vand.u32 %v438, 127
      %440 = vset.pattern.permute.xlu0 0
      %441 = vperm.xlu0 %440, %v422
      %v442 = vpop.permute.xlu0 %441
      %443 = vset.pattern.permute.xlu0 0
      %444 = vperm.xlu0 %443, %v423
      %v445 = vpop.permute.xlu0 %444
      %446 = vset.pattern.permute.xlu0 0
      %447 = vperm.xlu0 %446, %v424
      %v448 = vpop.permute.xlu0 %447
      %449 = vset.pattern.permute.xlu0 0
      %450 = vperm.xlu0 %449, %v425
      %v451 = vpop.permute.xlu0 %450
      %452 = vset.pattern.permute.xlu0 0
      %453 = vperm.xlu0 %452, %v426
      %v454 = vpop.permute.xlu0 %453
      %455 = vset.pattern.permute.xlu0 0
      %456 = vperm.xlu0 %455, %v427
      %v457 = vpop.permute.xlu0 %456
      %458 = vset.pattern.permute.xlu0 0
      %459 = vperm.xlu0 %458, %v428
      %v460 = vpop.permute.xlu0 %459
      %461 = vset.pattern.permute.xlu0 0
      %462 = vperm.xlu0 %461, %v429
      %v463 = vpop.permute.xlu0 %462
      %464 = vset.pattern.permute.xlu0 0
      %465 = vperm.xlu0 %464, %v430
      %v466 = vpop.permute.xlu0 %465
      %467 = vset.pattern.permute.xlu0 0
      %468 = vperm.xlu0 %467, %v431
      %v469 = vpop.permute.xlu0 %468
      %470 = vset.pattern.permute.xlu0 0
      %471 = vperm.xlu0 %470, %v432
      %v472 = vpop.permute.xlu0 %471
      %473 = vset.pattern.permute.xlu0 0
      %474 = vperm.xlu0 %473, %v433
      %v475 = vpop.permute.xlu0 %474
      %476 = vset.pattern.permute.xlu0 0
      %477 = vperm.xlu0 %476, %v434
      %v478 = vpop.permute.xlu0 %477
      %479 = vset.pattern.permute.xlu0 0
      %480 = vperm.xlu0 %479, %v435
      %v481 = vpop.permute.xlu0 %480
      %482 = vset.pattern.permute.xlu0 0
      %483 = vperm.xlu0 %482, %v436
      %v484 = vpop.permute.xlu0 %483
      %485 = vset.pattern.permute.xlu0 0
      %486 = vperm.xlu0 %485, %v437
      %v487 = vpop.permute.xlu0 %486
      %vm488 = vcmp.eq.s32.totalorder %v442, %v439
      %vm489 = vcmp.eq.s32.totalorder %v445, %v439
      %vm490 = vcmp.eq.s32.totalorder %v448, %v439
      %vm491 = vcmp.eq.s32.totalorder %v451, %v439
      %vm492 = vcmp.eq.s32.totalorder %v454, %v439
      %vm493 = vcmp.eq.s32.totalorder %v457, %v439
      %vm494 = vcmp.eq.s32.totalorder %v460, %v439
      %vm495 = vcmp.eq.s32.totalorder %v463, %v439
      %vm496 = vcmp.eq.s32.totalorder %v466, %v439
      %vm497 = vcmp.eq.s32.totalorder %v469, %v439
      %vm498 = vcmp.eq.s32.totalorder %v472, %v439
      %vm499 = vcmp.eq.s32.totalorder %v475, %v439
      %vm500 = vcmp.eq.s32.totalorder %v478, %v439
      %vm501 = vcmp.eq.s32.totalorder %v481, %v439
      %vm502 = vcmp.eq.s32.totalorder %v484, %v439
      %vm503 = vcmp.eq.s32.totalorder %v487, %v439
      %v504 = vsel %vm488, 1.0, 0.0
      %v505 = vsel %vm489, 1.0, 0.0
      %v506 = vsel %vm490, 1.0, 0.0
      %v507 = vsel %vm491, 1.0, 0.0
      %v508 = vsel %vm492, 1.0, 0.0
      %v509 = vsel %vm493, 1.0, 0.0
      %v510 = vsel %vm494, 1.0, 0.0
      %v511 = vsel %vm495, 1.0, 0.0
      %v512 = vsel %vm496, 1.0, 0.0
      %v513 = vsel %vm497, 1.0, 0.0
      %v514 = vsel %vm498, 1.0, 0.0
      %v515 = vsel %vm499, 1.0, 0.0
      %v516 = vsel %vm500, 1.0, 0.0
      %v517 = vsel %vm501, 1.0, 0.0
      %v518 = vsel %vm502, 1.0, 0.0
      %v519 = vsel %vm503, 1.0, 0.0
      %v520 = vld [vmem:[%s3] sm:$0xff]
      %v521 = vld [vmem:[%s3 + $0x8] sm:$0xff]
      %v522 = vld [vmem:[%s3 + $0x10] sm:$0xff]
      %v523 = vld [vmem:[%s3 + $0x18] sm:$0xff]
      %v524 = vld [vmem:[%s3 + $0x20] sm:$0xff]
      %vm525 = vcmask 326656
      %v527 = vsel %vm525, %v504, 0
      %v530 = vsel %vm525, %v505, 0
      %v533 = vsel %vm525, %v506, 0
      %v536 = vsel %vm525, %v507, 0
      %v539 = vsel %vm525, %v508, 0
      %v542 = vsel %vm525, %v509, 0
      %v545 = vsel %vm525, %v510, 0
      %v548 = vsel %vm525, %v511, 0
      %v551 = vsel %vm525, %v512, 0
      %v554 = vsel %vm525, %v513, 0
      %v557 = vsel %vm525, %v514, 0
      %v560 = vsel %vm525, %v515, 0
      %v563 = vsel %vm525, %v516, 0
      %v566 = vsel %vm525, %v517, 0
      %v569 = vsel %vm525, %v518, 0
      %v572 = vsel %vm525, %v519, 0
      %574 = vmatprep.subr.mxu0 0.0
      %575 = vmatpush1.msra.mxu0 %v520
      %576 = vmatprep.subr.mxu0 0.0
      %577 = vmatpush1.msra.mxu0 %v521
      %578 = vmatprep.subr.mxu0 0.0
      %579 = vmatpush1.msra.mxu0 %v522
      %580 = vmatprep.subr.mxu0 0.0
      %581 = vmatpush1.msra.mxu0 %v523
      %582 = vmatprep.subr.mxu0 0.0
      %583 = vmatpush1.msra.mxu0 %v524
      %584 = vmatprep.subr.mxu0 0.0
      %585 = vmatpush1.msra.mxu0 0.0
      %586 = vmatprep.subr.mxu0 0.0
      %587 = vmatpush1.msra.mxu0 0.0
      %588 = vmatprep.subr.mxu0 0.0
      %589 = vmatpush1.msra.mxu0 0.0
      %590 = vmatprep.subr.mxu0 0.0
      %591 = vmatpush1.msra.mxu0 0.0
      %592 = vmatprep.subr.mxu0 0.0
      %593 = vmatpush1.msra.mxu0 0.0
      %594 = vmatprep.subr.mxu0 0.0
      %595 = vmatpush1.msra.mxu0 0.0
      %596 = vmatprep.subr.mxu0 0.0
      %597 = vmatpush1.msra.mxu0 0.0
      %598 = vmatprep.subr.mxu0 0.0
      %599 = vmatpush1.msra.mxu0 0.0
      %600 = vmatprep.subr.mxu0 0.0
      %601 = vmatpush1.msra.mxu0 0.0
      %602 = vmatprep.subr.mxu0 0.0
      %603 = vmatpush1.msra.mxu0 0.0
      %604 = vmatprep.subr.mxu0 0.0
      %605 = vmatpush1.msra.mxu0 0.0
      %606 = vmatprep.subr.mxu0 0.0
      %607 = vmatpush1.msra.mxu0 0.0
      %608 = vmatprep.subr.mxu0 0.0
      %609 = vmatpush1.msra.mxu0 0.0
      %610 = vmatprep.subr.mxu0 0.0
      %611 = vmatpush1.msra.mxu0 0.0
      %612 = vmatprep.subr.mxu0 0.0
      %613 = vmatpush1.msra.mxu0 0.0
      %614 = vmatprep.subr.mxu0 0.0
      %615 = vmatpush1.msra.mxu0 0.0
      %616 = vmatprep.subr.mxu0 0.0
      %617 = vmatpush1.msra.mxu0 0.0
      %618 = vmatprep.subr.mxu0 0.0
      %619 = vmatpush1.msra.mxu0 0.0
      %620 = vmatprep.subr.mxu0 0.0
      %621 = vmatpush1.msra.mxu0 0.0
      %622 = vmatprep.subr.mxu0 0.0
      %623 = vmatpush1.msra.mxu0 0.0
      %624 = vmatprep.subr.mxu0 0.0
      %625 = vmatpush1.msra.mxu0 0.0
      %626 = vmatprep.subr.mxu0 0.0
      %627 = vmatpush1.msra.mxu0 0.0
      %628 = vmatprep.subr.mxu0 0.0
      %629 = vmatpush1.msra.mxu0 0.0
      %630 = vmatprep.subr.mxu0 0.0
      %631 = vmatpush1.msra.mxu0 0.0
      %632 = vmatprep.subr.mxu0 0.0
      %633 = vmatpush1.msra.mxu0 0.0
      %634 = vmatprep.subr.mxu0 0.0
      %635 = vmatpush1.msra.mxu0 0.0
      %636 = vmatprep.subr.mxu0 0.0
      %637 = vmatpush1.msra.mxu0 0.0
      %638 = vmatprep.mubr.f32.mxu0 0.0
      %639 = vmatmul.mubr.f32.gmra.mrb[0].mxu0 %v527
      %v640 = vpop.f32.mrb[0].mxu0
      %v641 = vadd.f32 0.0, %v640
      %v642 = vpop.f32.mrb[0].mxu0
      %643 = vmatprep.mubr.f32.mxu0 0.0
      %644 = vmatmul.mubr.f32.gmra.mrb[0].mxu0 %v530
      %v645 = vpop.f32.mrb[0].mxu0
      %v646 = vadd.f32 0.0, %v645
      %v647 = vpop.f32.mrb[0].mxu0
      %648 = vmatprep.mubr.f32.mxu0 0.0
      %649 = vmatmul.mubr.f32.gmra.mrb[0].mxu0 %v533
      %v650 = vpop.f32.mrb[0].mxu0
      %v651 = vadd.f32 0.0, %v650
      %v652 = vpop.f32.mrb[0].mxu0
      %653 = vmatprep.mubr.f32.mxu0 0.0
      %654 = vmatmul.mubr.f32.gmra.mrb[0].mxu0 %v536
      %v655 = vpop.f32.mrb[0].mxu0
      %v656 = vadd.f32 0.0, %v655
      %v657 = vpop.f32.mrb[0].mxu0
      %658 = vmatprep.mubr.f32.mxu0 0.0
      %659 = vmatmul.mubr.f32.gmra.mrb[0].mxu0 %v539
      %v660 = vpop.f32.mrb[0].mxu0
      %v661 = vadd.f32 0.0, %v660
      %v662 = vpop.f32.mrb[0].mxu0
      %663 = vmatprep.mubr.f32.mxu0 0.0
      %664 = vmatmul.mubr.f32.gmra.mrb[0].mxu0 %v542
      %v665 = vpop.f32.mrb[0].mxu0
      %v666 = vadd.f32 0.0, %v665
      %v667 = vpop.f32.mrb[0].mxu0
      %668 = vmatprep.mubr.f32.mxu0 0.0
      %669 = vmatmul.mubr.f32.gmra.mrb[0].mxu0 %v545
      %v670 = vpop.f32.mrb[0].mxu0
      %v671 = vadd.f32 0.0, %v670
      %v672 = vpop.f32.mrb[0].mxu0
      %673 = vmatprep.mubr.f32.mxu0 0.0
      %674 = vmatmul.mubr.f32.gmra.mrb[0].mxu0 %v548
      %v675 = vpop.f32.mrb[0].mxu0
      %v676 = vadd.f32 0.0, %v675
      %v677 = vpop.f32.mrb[0].mxu0
      %678 = vmatprep.mubr.f32.mxu0 0.0
      %679 = vmatmul.mubr.f32.gmra.mrb[0].mxu0 %v551
      %v680 = vpop.f32.mrb[0].mxu0
      %v681 = vadd.f32 0.0, %v680
      %v682 = vpop.f32.mrb[0].mxu0
      %683 = vmatprep.mubr.f32.mxu0 0.0
      %684 = vmatmul.mubr.f32.gmra.mrb[0].mxu0 %v554
      %v685 = vpop.f32.mrb[0].mxu0
      %v686 = vadd.f32 0.0, %v685
      %v687 = vpop.f32.mrb[0].mxu0
      %688 = vmatprep.mubr.f32.mxu0 0.0
      %689 = vmatmul.mubr.f32.gmra.mrb[0].mxu0 %v557
      %v690 = vpop.f32.mrb[0].mxu0
      %v691 = vadd.f32 0.0, %v690
      %v692 = vpop.f32.mrb[0].mxu0
      %693 = vmatprep.mubr.f32.mxu0 0.0
      %694 = vmatmul.mubr.f32.gmra.mrb[0].mxu0 %v560
      %v695 = vpop.f32.mrb[0].mxu0
      %v696 = vadd.f32 0.0, %v695
      %v697 = vpop.f32.mrb[0].mxu0
      %698 = vmatprep.mubr.f32.mxu0 0.0
      %699 = vmatmul.mubr.f32.gmra.mrb[0].mxu0 %v563
      %v700 = vpop.f32.mrb[0].mxu0
      %v701 = vadd.f32 0.0, %v700
      %v702 = vpop.f32.mrb[0].mxu0
      %703 = vmatprep.mubr.f32.mxu0 0.0
      %704 = vmatmul.mubr.f32.gmra.mrb[0].mxu0 %v566
      %v705 = vpop.f32.mrb[0].mxu0
      %v706 = vadd.f32 0.0, %v705
      %v707 = vpop.f32.mrb[0].mxu0
      %708 = vmatprep.mubr.f32.mxu0 0.0
      %709 = vmatmul.mubr.f32.gmra.mrb[0].mxu0 %v569
      %v710 = vpop.f32.mrb[0].mxu0
      %v711 = vadd.f32 0.0, %v710
      %v712 = vpop.f32.mrb[0].mxu0
      %713 = vmatprep.mubr.f32.mxu0 0.0
      %714 = vmatmul.mubr.f32.gmra.mrb[0].mxu0 %v572
      %v715 = vpop.f32.mrb[0].mxu0
      %v716 = vadd.f32 0.0, %v715
      %v717 = vpop.f32.mrb[0].mxu0
      %718 = vdwg.mxu0
      %v719 = vld [vmem:[%s4] sm:$0xff]
      %v720 = vld [vmem:[%s4 + $0x8] sm:$0xff]
      %v721 = vld [vmem:[%s408] sm:$0xff]
      %v722 = vld [vmem:[%s408 + $0x8] sm:$0xff]
      %v723 = vld [vmem:[%s408 + $0x10] sm:$0xff]
      %v724 = vld [vmem:[%s408 + $0x18] sm:$0xff]
      %v725 = vld [vmem:[%s408 + $0x20] sm:$0xff]
      %v726 = vld [vmem:[%s408 + $0x28] sm:$0xff]
      %v727 = vld [vmem:[%s408 + $0x30] sm:$0xff]
      %v728 = vld [vmem:[%s408 + $0x38] sm:$0xff]
      %v729 = vld [vmem:[%s408 + $0x40] sm:$0xff]
      %v730 = vld [vmem:[%s408 + $0x48] sm:$0xff]
      %v731 = vld [vmem:[%s408 + $0x50] sm:$0xff]
      %v732 = vld [vmem:[%s408 + $0x58] sm:$0xff]
      %v733 = vld [vmem:[%s408 + $0x60] sm:$0xff]
      %v734 = vld [vmem:[%s408 + $0x68] sm:$0xff]
      %v735 = vld [vmem:[%s408 + $0x70] sm:$0xff]
      %v736 = vld [vmem:[%s408 + $0x78] sm:$0xff]
      %v737 = vld [vmem:[%s5] sm:$0xff]
      %v738 = vld [vmem:[%s5 + $0x8] sm:$0xff]
      %vm739 = vcmask 130048
      %v741 = vsel %vm739, %v721, 0
      %v744 = vsel %vm739, %v722, 0
      %v747 = vsel %vm739, %v723, 0
      %v750 = vsel %vm739, %v724, 0
      %v753 = vsel %vm739, %v725, 0
      %v756 = vsel %vm739, %v726, 0
      %v759 = vsel %vm739, %v727, 0
      %v762 = vsel %vm739, %v728, 0
      %v765 = vsel %vm739, %v729, 0
      %v768 = vsel %vm739, %v730, 0
      %v771 = vsel %vm739, %v731, 0
      %v774 = vsel %vm739, %v732, 0
      %v777 = vsel %vm739, %v733, 0
      %v780 = vsel %vm739, %v734, 0
      %v783 = vsel %vm739, %v735, 0
      %v786 = vsel %vm739, %v736, 0
      %788 = vmatprep.subr.mxu0 0.0
      %789 = vmatpush1.msra.mxu0 %v737
      %790 = vmatprep.subr.mxu0 0.0
      %791 = vmatpush1.msra.mxu0 %v738
      %792 = vmatprep.subr.mxu0 0.0
      %793 = vmatpush1.msra.mxu0 0.0
      %794 = vmatprep.subr.mxu0 0.0
      %795 = vmatpush1.msra.mxu0 0.0
      %796 = vmatprep.subr.mxu0 0.0
      %797 = vmatpush1.msra.mxu0 0.0
      %798 = vmatprep.subr.mxu0 0.0
      %799 = vmatpush1.msra.mxu0 0.0
      %800 = vmatprep.subr.mxu0 0.0
      %801 = vmatpush1.msra.mxu0 0.0
      %802 = vmatprep.subr.mxu0 0.0
      %803 = vmatpush1.msra.mxu0 0.0
      %804 = vmatprep.subr.mxu0 0.0
      %805 = vmatpush1.msra.mxu0 0.0
      %806 = vmatprep.subr.mxu0 0.0
      %807 = vmatpush1.msra.mxu0 0.0
      %808 = vmatprep.subr.mxu0 0.0
      %809 = vmatpush1.msra.mxu0 0.0
      %810 = vmatprep.subr.mxu0 0.0
      %811 = vmatpush1.msra.mxu0 0.0
      %812 = vmatprep.subr.mxu0 0.0
      %813 = vmatpush1.msra.mxu0 0.0
      %814 = vmatprep.subr.mxu0 0.0
      %815 = vmatpush1.msra.mxu0 0.0
      %816 = vmatprep.subr.mxu0 0.0
      %817 = vmatpush1.msra.mxu0 0.0
      %818 = vmatprep.subr.mxu0 0.0
      %819 = vmatpush1.msra.mxu0 0.0
      %820 = vmatprep.subr.mxu0 0.0
      %821 = vmatpush1.msra.mxu0 0.0
      %822 = vmatprep.subr.mxu0 0.0
      %823 = vmatpush1.msra.mxu0 0.0
      %824 = vmatprep.subr.mxu0 0.0
      %825 = vmatpush1.msra.mxu0 0.0
      %826 = vmatprep.subr.mxu0 0.0
      %827 = vmatpush1.msra.mxu0 0.0
      %828 = vmatprep.subr.mxu0 0.0
      %829 = vmatpush1.msra.mxu0 0.0
      %830 = vmatprep.subr.mxu0 0.0
      %831 = vmatpush1.msra.mxu0 0.0
      %832 = vmatprep.subr.mxu0 0.0
      %833 = vmatpush1.msra.mxu0 0.0
      %834 = vmatprep.subr.mxu0 0.0
      %835 = vmatpush1.msra.mxu0 0.0
      %836 = vmatprep.subr.mxu0 0.0
      %837 = vmatpush1.msra.mxu0 0.0
      %838 = vmatprep.subr.mxu0 0.0
      %839 = vmatpush1.msra.mxu0 0.0
      %840 = vmatprep.subr.mxu0 0.0
      %841 = vmatpush1.msra.mxu0 0.0
      %842 = vmatprep.subr.mxu0 0.0
      %843 = vmatpush1.msra.mxu0 0.0
      %844 = vmatprep.subr.mxu0 0.0
      %845 = vmatpush1.msra.mxu0 0.0
      %846 = vmatprep.subr.mxu0 0.0
      %847 = vmatpush1.msra.mxu0 0.0
      %848 = vmatprep.subr.mxu0 0.0
      %849 = vmatpush1.msra.mxu0 0.0
      %850 = vmatprep.subr.mxu0 0.0
      %851 = vmatpush1.msra.mxu0 0.0
      %852 = vmatprep.mubr.f32.mxu0 0.0
      %853 = vmatmul.mubr.f32.gmra.mrb[0].mxu0 %v741
      %v854 = vpop.f32.mrb[0].mxu0
      %v855 = vadd.f32 0.0, %v854
      %v856 = vpop.f32.mrb[0].mxu0
      %857 = vmatprep.mubr.f32.mxu0 0.0
      %858 = vmatmul.mubr.f32.gmra.mrb[0].mxu0 %v744
      %v859 = vpop.f32.mrb[0].mxu0
      %v860 = vadd.f32 0.0, %v859
      %v861 = vpop.f32.mrb[0].mxu0
      %862 = vmatprep.mubr.f32.mxu0 0.0
      %863 = vmatmul.mubr.f32.gmra.mrb[0].mxu0 %v747
      %v864 = vpop.f32.mrb[0].mxu0
      %v865 = vadd.f32 0.0, %v864
      %v866 = vpop.f32.mrb[0].mxu0
      %867 = vmatprep.mubr.f32.mxu0 0.0
      %868 = vmatmul.mubr.f32.gmra.mrb[0].mxu0 %v750
      %v869 = vpop.f32.mrb[0].mxu0
      %v870 = vadd.f32 0.0, %v869
      %v871 = vpop.f32.mrb[0].mxu0
      %872 = vmatprep.mubr.f32.mxu0 0.0
      %873 = vmatmul.mubr.f32.gmra.mrb[0].mxu0 %v753
      %v874 = vpop.f32.mrb[0].mxu0
      %v875 = vadd.f32 0.0, %v874
      %v876 = vpop.f32.mrb[0].mxu0
      %877 = vmatprep.mubr.f32.mxu0 0.0
      %878 = vmatmul.mubr.f32.gmra.mrb[0].mxu0 %v756
      %v879 = vpop.f32.mrb[0].mxu0
      %v880 = vadd.f32 0.0, %v879
      %v881 = vpop.f32.mrb[0].mxu0
      %882 = vmatprep.mubr.f32.mxu0 0.0
      %883 = vmatmul.mubr.f32.gmra.mrb[0].mxu0 %v759
      %v884 = vpop.f32.mrb[0].mxu0
      %v885 = vadd.f32 0.0, %v884
      %v886 = vpop.f32.mrb[0].mxu0
      %887 = vmatprep.mubr.f32.mxu0 0.0
      %888 = vmatmul.mubr.f32.gmra.mrb[0].mxu0 %v762
      %v889 = vpop.f32.mrb[0].mxu0
      %v890 = vadd.f32 0.0, %v889
      %v891 = vpop.f32.mrb[0].mxu0
      %892 = vmatprep.mubr.f32.mxu0 0.0
      %893 = vmatmul.mubr.f32.gmra.mrb[0].mxu0 %v765
      %v894 = vpop.f32.mrb[0].mxu0
      %v895 = vadd.f32 0.0, %v894
      %v896 = vpop.f32.mrb[0].mxu0
      %897 = vmatprep.mubr.f32.mxu0 0.0
      %898 = vmatmul.mubr.f32.gmra.mrb[0].mxu0 %v768
      %v899 = vpop.f32.mrb[0].mxu0
      %v900 = vadd.f32 0.0, %v899
      %v901 = vpop.f32.mrb[0].mxu0
      %902 = vmatprep.mubr.f32.mxu0 0.0
      %903 = vmatmul.mubr.f32.gmra.mrb[0].mxu0 %v771
      %v904 = vpop.f32.mrb[0].mxu0
      %v905 = vadd.f32 0.0, %v904
      %v906 = vpop.f32.mrb[0].mxu0
      %907 = vmatprep.mubr.f32.mxu0 0.0
      %908 = vmatmul.mubr.f32.gmra.mrb[0].mxu0 %v774
      %v909 = vpop.f32.mrb[0].mxu0
      %v910 = vadd.f32 0.0, %v909
      %v911 = vpop.f32.mrb[0].mxu0
      %912 = vmatprep.mubr.f32.mxu0 0.0
      %913 = vmatmul.mubr.f32.gmra.mrb[0].mxu0 %v777
      %v914 = vpop.f32.mrb[0].mxu0
      %v915 = vadd.f32 0.0, %v914
      %v916 = vpop.f32.mrb[0].mxu0
      %917 = vmatprep.mubr.f32.mxu0 0.0
      %918 = vmatmul.mubr.f32.gmra.mrb[0].mxu0 %v780
      %v919 = vpop.f32.mrb[0].mxu0
      %v920 = vadd.f32 0.0, %v919
      %v921 = vpop.f32.mrb[0].mxu0
      %922 = vmatprep.mubr.f32.mxu0 0.0
      %923 = vmatmul.mubr.f32.gmra.mrb[0].mxu0 %v783
      %v924 = vpop.f32.mrb[0].mxu0
      %v925 = vadd.f32 0.0, %v924
      %v926 = vpop.f32.mrb[0].mxu0
      %927 = vmatprep.mubr.f32.mxu0 0.0
      %928 = vmatmul.mubr.f32.gmra.mrb[0].mxu0 %v786
      %v929 = vpop.f32.mrb[0].mxu0
      %v930 = vadd.f32 0.0, %v929
      %v931 = vpop.f32.mrb[0].mxu0
      %932 = vdwg.mxu0
      %v934 = vsel %vm739, %v641, 0
      %v937 = vsel %vm739, %v646, 0
      %v940 = vsel %vm739, %v651, 0
      %v943 = vsel %vm739, %v656, 0
      %v946 = vsel %vm739, %v661, 0
      %v949 = vsel %vm739, %v666, 0
      %v952 = vsel %vm739, %v671, 0
      %v955 = vsel %vm739, %v676, 0
      %v958 = vsel %vm739, %v681, 0
      %v961 = vsel %vm739, %v686, 0
      %v964 = vsel %vm739, %v691, 0
      %v967 = vsel %vm739, %v696, 0
      %v970 = vsel %vm739, %v701, 0
      %v973 = vsel %vm739, %v706, 0
      %v976 = vsel %vm739, %v711, 0
      %v979 = vsel %vm739, %v716, 0
      %981 = vmatprep.subr.mxu0 0.0
      %982 = vmatpush1.msra.mxu0 %v719
      %983 = vmatprep.subr.mxu0 0.0
      %984 = vmatpush1.msra.mxu0 %v720
      %985 = vmatprep.subr.mxu0 0.0
      %986 = vmatpush1.msra.mxu0 0.0
      %987 = vmatprep.subr.mxu0 0.0
      %988 = vmatpush1.msra.mxu0 0.0
      %989 = vmatprep.subr.mxu0 0.0
      %990 = vmatpush1.msra.mxu0 0.0
      %991 = vmatprep.subr.mxu0 0.0
      %992 = vmatpush1.msra.mxu0 0.0
      %993 = vmatprep.subr.mxu0 0.0
      %994 = vmatpush1.msra.mxu0 0.0
      %995 = vmatprep.subr.mxu0 0.0
      %996 = vmatpush1.msra.mxu0 0.0
      %997 = vmatprep.subr.mxu0 0.0
      %998 = vmatpush1.msra.mxu0 0.0
      %999 = vmatprep.subr.mxu0 0.0
      %1000 = vmatpush1.msra.mxu0 0.0
      %1001 = vmatprep.subr.mxu0 0.0
      %1002 = vmatpush1.msra.mxu0 0.0
      %1003 = vmatprep.subr.mxu0 0.0
      %1004 = vmatpush1.msra.mxu0 0.0
      %1005 = vmatprep.subr.mxu0 0.0
      %1006 = vmatpush1.msra.mxu0 0.0
      %1007 = vmatprep.subr.mxu0 0.0
      %1008 = vmatpush1.msra.mxu0 0.0
      %1009 = vmatprep.subr.mxu0 0.0
      %1010 = vmatpush1.msra.mxu0 0.0
      %1011 = vmatprep.subr.mxu0 0.0
      %1012 = vmatpush1.msra.mxu0 0.0
      %1013 = vmatprep.subr.mxu0 0.0
      %1014 = vmatpush1.msra.mxu0 0.0
      %1015 = vmatprep.subr.mxu0 0.0
      %1016 = vmatpush1.msra.mxu0 0.0
      %1017 = vmatprep.subr.mxu0 0.0
      %1018 = vmatpush1.msra.mxu0 0.0
      %1019 = vmatprep.subr.mxu0 0.0
      %1020 = vmatpush1.msra.mxu0 0.0
      %1021 = vmatprep.subr.mxu0 0.0
      %1022 = vmatpush1.msra.mxu0 0.0
      %1023 = vmatprep.subr.mxu0 0.0
      %1024 = vmatpush1.msra.mxu0 0.0
      %1025 = vmatprep.subr.mxu0 0.0
      %1026 = vmatpush1.msra.mxu0 0.0
      %1027 = vmatprep.subr.mxu0 0.0
      %1028 = vmatpush1.msra.mxu0 0.0
      %1029 = vmatprep.subr.mxu0 0.0
      %1030 = vmatpush1.msra.mxu0 0.0
      %1031 = vmatprep.subr.mxu0 0.0
      %1032 = vmatpush1.msra.mxu0 0.0
      %1033 = vmatprep.subr.mxu0 0.0
      %1034 = vmatpush1.msra.mxu0 0.0
      %1035 = vmatprep.subr.mxu0 0.0
      %1036 = vmatpush1.msra.mxu0 0.0
      %1037 = vmatprep.subr.mxu0 0.0
      %1038 = vmatpush1.msra.mxu0 0.0
      %1039 = vmatprep.subr.mxu0 0.0
      %1040 = vmatpush1.msra.mxu0 0.0
      %1041 = vmatprep.subr.mxu0 0.0
      %1042 = vmatpush1.msra.mxu0 0.0
      %1043 = vmatprep.subr.mxu0 0.0
      %1044 = vmatpush1.msra.mxu0 0.0
      %1045 = vmatprep.mubr.f32.mxu0 0.0
      %1046 = vmatmul.mubr.f32.gmra.mrb[0].mxu0 %v934
      %v1047 = vpop.f32.mrb[0].mxu0
      %v1048 = vadd.f32 %v855, %v1047
      %v1049 = vpop.f32.mrb[0].mxu0
      %1050 = vmatprep.mubr.f32.mxu0 0.0
      %1051 = vmatmul.mubr.f32.gmra.mrb[0].mxu0 %v937
      %v1052 = vpop.f32.mrb[0].mxu0
      %v1053 = vadd.f32 %v860, %v1052
      %v1054 = vpop.f32.mrb[0].mxu0
      %1055 = vmatprep.mubr.f32.mxu0 0.0
      %1056 = vmatmul.mubr.f32.gmra.mrb[0].mxu0 %v940
      %v1057 = vpop.f32.mrb[0].mxu0
      %v1058 = vadd.f32 %v865, %v1057
      %v1059 = vpop.f32.mrb[0].mxu0
      %1060 = vmatprep.mubr.f32.mxu0 0.0
      %1061 = vmatmul.mubr.f32.gmra.mrb[0].mxu0 %v943
      %v1062 = vpop.f32.mrb[0].mxu0
      %v1063 = vadd.f32 %v870, %v1062
      %v1064 = vpop.f32.mrb[0].mxu0
      %1065 = vmatprep.mubr.f32.mxu0 0.0
      %1066 = vmatmul.mubr.f32.gmra.mrb[0].mxu0 %v946
      %v1067 = vpop.f32.mrb[0].mxu0
      %v1068 = vadd.f32 %v875, %v1067
      %v1069 = vpop.f32.mrb[0].mxu0
      %1070 = vmatprep.mubr.f32.mxu0 0.0
      %1071 = vmatmul.mubr.f32.gmra.mrb[0].mxu0 %v949
      %v1072 = vpop.f32.mrb[0].mxu0
      %v1073 = vadd.f32 %v880, %v1072
      %v1074 = vpop.f32.mrb[0].mxu0
      %1075 = vmatprep.mubr.f32.mxu0 0.0
      %1076 = vmatmul.mubr.f32.gmra.mrb[0].mxu0 %v952
      %v1077 = vpop.f32.mrb[0].mxu0
      %v1078 = vadd.f32 %v885, %v1077
      %v1079 = vpop.f32.mrb[0].mxu0
      %1080 = vmatprep.mubr.f32.mxu0 0.0
      %1081 = vmatmul.mubr.f32.gmra.mrb[0].mxu0 %v955
      %v1082 = vpop.f32.mrb[0].mxu0
      %v1083 = vadd.f32 %v890, %v1082
      %v1084 = vpop.f32.mrb[0].mxu0
      %1085 = vmatprep.mubr.f32.mxu0 0.0
      %1086 = vmatmul.mubr.f32.gmra.mrb[0].mxu0 %v958
      %v1087 = vpop.f32.mrb[0].mxu0
      %v1088 = vadd.f32 %v895, %v1087
      %v1089 = vpop.f32.mrb[0].mxu0
      %1090 = vmatprep.mubr.f32.mxu0 0.0
      %1091 = vmatmul.mubr.f32.gmra.mrb[0].mxu0 %v961
      %v1092 = vpop.f32.mrb[0].mxu0
      %v1093 = vadd.f32 %v900, %v1092
      %v1094 = vpop.f32.mrb[0].mxu0
      %1095 = vmatprep.mubr.f32.mxu0 0.0
      %1096 = vmatmul.mubr.f32.gmra.mrb[0].mxu0 %v964
      %v1097 = vpop.f32.mrb[0].mxu0
      %v1098 = vadd.f32 %v905, %v1097
      %v1099 = vpop.f32.mrb[0].mxu0
      %1100 = vmatprep.mubr.f32.mxu0 0.0
      %1101 = vmatmul.mubr.f32.gmra.mrb[0].mxu0 %v967
      %v1102 = vpop.f32.mrb[0].mxu0
      %v1103 = vadd.f32 %v910, %v1102
      %v1104 = vpop.f32.mrb[0].mxu0
      %1105 = vmatprep.mubr.f32.mxu0 0.0
      %1106 = vmatmul.mubr.f32.gmra.mrb[0].mxu0 %v970
      %v1107 = vpop.f32.mrb[0].mxu0
      %v1108 = vadd.f32 %v915, %v1107
      %v1109 = vpop.f32.mrb[0].mxu0
      %1110 = vmatprep.mubr.f32.mxu0 0.0
      %1111 = vmatmul.mubr.f32.gmra.mrb[0].mxu0 %v973
      %v1112 = vpop.f32.mrb[0].mxu0
      %v1113 = vadd.f32 %v920, %v1112
      %v1114 = vpop.f32.mrb[0].mxu0
      %1115 = vmatprep.mubr.f32.mxu0 0.0
      %1116 = vmatmul.mubr.f32.gmra.mrb[0].mxu0 %v976
      %v1117 = vpop.f32.mrb[0].mxu0
      %v1118 = vadd.f32 %v925, %v1117
      %v1119 = vpop.f32.mrb[0].mxu0
      %1120 = vmatprep.mubr.f32.mxu0 0.0
      %1121 = vmatmul.mubr.f32.gmra.mrb[0].mxu0 %v979
      %v1122 = vpop.f32.mrb[0].mxu0
      %v1123 = vadd.f32 %v930, %v1122
      %v1124 = vpop.f32.mrb[0].mxu0
      %1125 = vdwg.mxu0
      %v1126 = vld [vmem:[%s6] sm:$0x1]
      %v1128 = vlaneseq
      %v1129 = vshrl.u32 %v1128, 7
      %v1130 = vsub.s32 0, %v1129
      %v1131 = vrot.slane %v1126, %v1130
      %v1133 = vadd.f32 %v1048, %v1131
      %v1134 = vadd.f32 %v1053, %v1131
      %v1135 = vadd.f32 %v1058, %v1131
      %v1136 = vadd.f32 %v1063, %v1131
      %v1137 = vadd.f32 %v1068, %v1131
      %v1138 = vadd.f32 %v1073, %v1131
      %v1139 = vadd.f32 %v1078, %v1131
      %v1140 = vadd.f32 %v1083, %v1131
      %v1141 = vadd.f32 %v1088, %v1131
      %v1142 = vadd.f32 %v1093, %v1131
      %v1143 = vadd.f32 %v1098, %v1131
      %v1144 = vadd.f32 %v1103, %v1131
      %v1145 = vadd.f32 %v1108, %v1131
      %v1146 = vadd.f32 %v1113, %v1131
      %v1147 = vadd.f32 %v1118, %v1131
      %v1148 = vadd.f32 %v1123, %v1131
      %v1149 = vld [vmem:[%s403] sm:$0x1]
      %v1150 = vlaneseq
      %v1151 = vshrl.u32 %v1150, 7
      %v1152 = vadd.s32 %v1151, 8
      %v1153 = vadd.s32 %v1151, 16
      %v1154 = vadd.s32 %v1151, 24
      %v1155 = vadd.s32 %v1151, 32
      %v1156 = vadd.s32 %v1151, 40
      %v1157 = vlaneseq
      %v1158 = vshrl.u32 %v1157, 7
      %v1159 = vsub.s32 0, %v1158
      %v1160 = vrot.slane %v1149, %v1159
      %vm1161 = vcmp.eq.s32.totalorder %v1151, %v1160
      %vm1162 = vcmp.eq.s32.totalorder %v1152, %v1160
      %vm1163 = vcmp.eq.s32.totalorder %v1153, %v1160
      %vm1164 = vcmp.eq.s32.totalorder %v1154, %v1160
      %vm1165 = vcmp.eq.s32.totalorder %v1155, %v1160
      %vm1166 = vcmp.eq.s32.totalorder %v1156, %v1160
      %v1167 = vsel %vm1161, 1.0, 0.0
      %v1168 = vsel %vm1162, 1.0, 0.0
      %v1169 = vsel %vm1163, 1.0, 0.0
      %v1170 = vsel %vm1164, 1.0, 0.0
      %v1171 = vsel %vm1165, 1.0, 0.0
      %v1172 = vsel %vm1166, 1.0, 0.0
      %v1173 = vld [vmem:[#allocation2] sm:$0xff]
      %v1174 = vld [vmem:[#allocation2 + $0x8] sm:$0xff]
      %v1175 = vld [vmem:[#allocation2 + $0x10] sm:$0xff]
      %v1176 = vld [vmem:[#allocation2 + $0x18] sm:$0xff]
      %v1177 = vld [vmem:[#allocation2 + $0x20] sm:$0xff]
      %v1178 = vld [vmem:[#allocation2 + $0x28] sm:$0x1]
      %1179 = vmatprep.subr.mxu0 0.0
      %1180 = vmatpush1.msra.mxu0 %v1133
      %1181 = vmatprep.subr.mxu0 0.0
      %1182 = vmatpush1.msra.mxu0 %v1134
      %1183 = vmatprep.subr.mxu0 0.0
      %1184 = vmatpush1.msra.mxu0 %v1135
      %1185 = vmatprep.subr.mxu0 0.0
      %1186 = vmatpush1.msra.mxu0 %v1136
      %1187 = vmatprep.subr.mxu0 0.0
      %1188 = vmatpush1.msra.mxu0 %v1137
      %1189 = vmatprep.subr.mxu0 0.0
      %1190 = vmatpush1.msra.mxu0 %v1138
      %1191 = vmatprep.subr.mxu0 0.0
      %1192 = vmatpush1.msra.mxu0 %v1139
      %1193 = vmatprep.subr.mxu0 0.0
      %1194 = vmatpush1.msra.mxu0 %v1140
      %1195 = vmatprep.subr.mxu0 0.0
      %1196 = vmatpush1.msra.mxu0 %v1141
      %1197 = vmatprep.subr.mxu0 0.0
      %1198 = vmatpush1.msra.mxu0 %v1142
      %1199 = vmatprep.subr.mxu0 0.0
      %1200 = vmatpush1.msra.mxu0 %v1143
      %1201 = vmatprep.subr.mxu0 0.0
      %1202 = vmatpush1.msra.mxu0 %v1144
      %1203 = vmatprep.subr.mxu0 0.0
      %1204 = vmatpush1.msra.mxu0 %v1145
      %1205 = vmatprep.subr.mxu0 0.0
      %1206 = vmatpush1.msra.mxu0 %v1146
      %1207 = vmatprep.subr.mxu0 0.0
      %1208 = vmatpush1.msra.mxu0 %v1147
      %1209 = vmatprep.subr.mxu0 0.0
      %1210 = vmatpush1.msra.mxu0 %v1148
      %1211 = vmatprep.subr.mxu0 0.0
      %1212 = vmatpush1.msra.mxu0 0.0
      %1213 = vmatprep.subr.mxu0 0.0
      %1214 = vmatpush1.msra.mxu0 0.0
      %1215 = vmatprep.subr.mxu0 0.0
      %1216 = vmatpush1.msra.mxu0 0.0
      %1217 = vmatprep.subr.mxu0 0.0
      %1218 = vmatpush1.msra.mxu0 0.0
      %1219 = vmatprep.subr.mxu0 0.0
      %1220 = vmatpush1.msra.mxu0 0.0
      %1221 = vmatprep.subr.mxu0 0.0
      %1222 = vmatpush1.msra.mxu0 0.0
      %1223 = vmatprep.subr.mxu0 0.0
      %1224 = vmatpush1.msra.mxu0 0.0
      %1225 = vmatprep.subr.mxu0 0.0
      %1226 = vmatpush1.msra.mxu0 0.0
      %1227 = vmatprep.subr.mxu0 0.0
      %1228 = vmatpush1.msra.mxu0 0.0
      %1229 = vmatprep.subr.mxu0 0.0
      %1230 = vmatpush1.msra.mxu0 0.0
      %1231 = vmatprep.subr.mxu0 0.0
      %1232 = vmatpush1.msra.mxu0 0.0
      %1233 = vmatprep.subr.mxu0 0.0
      %1234 = vmatpush1.msra.mxu0 0.0
      %1235 = vmatprep.subr.mxu0 0.0
      %1236 = vmatpush1.msra.mxu0 0.0
      %1237 = vmatprep.subr.mxu0 0.0
      %1238 = vmatpush1.msra.mxu0 0.0
      %1239 = vmatprep.subr.mxu0 0.0
      %1240 = vmatpush1.msra.mxu0 0.0
      %1241 = vmatprep.subr.mxu0 0.0
      %1242 = vmatpush1.msra.mxu0 0.0
      %1243 = vmatprep.mubr.f32.mxu0 0.0
      %1244 = vmatmul.mubr.f32.gmra.mrb[0].mxu0 %v1167
      %v1245 = vpop.f32.mrb[0].mxu0
      %v1246 = vadd.f32 0.0, %v1245
      %v1247 = vpop.f32.mrb[0].mxu0
      %1248 = vmatprep.mubr.f32.mxu0 0.0
      %1249 = vmatmul.mubr.f32.gmra.mrb[0].mxu0 %v1168
      %v1250 = vpop.f32.mrb[0].mxu0
      %v1251 = vadd.f32 0.0, %v1250
      %v1252 = vpop.f32.mrb[0].mxu0
      %1253 = vmatprep.mubr.f32.mxu0 0.0
      %1254 = vmatmul.mubr.f32.gmra.mrb[0].mxu0 %v1169
      %v1255 = vpop.f32.mrb[0].mxu0
      %v1256 = vadd.f32 0.0, %v1255
      %v1257 = vpop.f32.mrb[0].mxu0
      %1258 = vmatprep.mubr.f32.mxu0 0.0
      %1259 = vmatmul.mubr.f32.gmra.mrb[0].mxu0 %v1170
      %v1260 = vpop.f32.mrb[0].mxu0
      %v1261 = vadd.f32 0.0, %v1260
      %v1262 = vpop.f32.mrb[0].mxu0
      %1263 = vmatprep.mubr.f32.mxu0 0.0
      %1264 = vmatmul.mubr.f32.gmra.mrb[0].mxu0 %v1171
      %v1265 = vpop.f32.mrb[0].mxu0
      %v1266 = vadd.f32 0.0, %v1265
      %v1267 = vpop.f32.mrb[0].mxu0
      %1268 = vmatprep.mubr.f32.mxu0 0.0
      %1269 = vmatmul.mubr.f32.gmra.mrb[0].mxu0 %v1172
      %v1270 = vpop.f32.mrb[0].mxu0
      %v1271 = vadd.f32 0.0, %v1270
      %v1272 = vpop.f32.mrb[0].mxu0
      %1273 = vdwg.mxu0
      %v1274 = vadd.f32 %v1173, %v1246
      %v1275 = vadd.f32 %v1174, %v1251
      %v1276 = vadd.f32 %v1175, %v1256
      %v1277 = vadd.f32 %v1176, %v1261
      %v1278 = vadd.f32 %v1177, %v1266
      %v1279 = vadd.f32 %v1178, %v1271
      %vm1280 = vcmask 261120
      %1281 = vst.msk [vmem:[#allocation2] sm:$0xff] %vm1280, %v1274
      %1282 = vst.msk [vmem:[#allocation2 + $0x8] sm:$0xff] %vm1280, %v1275
      %1283 = vst.msk [vmem:[#allocation2 + $0x10] sm:$0xff] %vm1280, %v1276
      %1284 = vst.msk [vmem:[#allocation2 + $0x18] sm:$0xff] %vm1280, %v1277
      %1285 = vst.msk [vmem:[#allocation2 + $0x20] sm:$0xff] %vm1280, %v1278
      %vm1286 = vcmask 253952
      %1287 = vst.msk [vmem:[#allocation2 + $0x28] sm:$0x1] %vm1286, %v1279
      %p1288 = scmp.eq.s32.totalorder %s22, 2
      // Predicated region
      $region69: #{model_forward.4} parent=63 // pred_check
        %p1289 = pneg %p1288
      $region70: #{model_forward.4} parent=63 // pred_check_branch
        %1291 = sbr.rel (%p1289) target = $region72
      $region71: #{model_forward.4} parent=63 // pred_region
        %v1292 = vld [vmem:[#allocation2] sm:$0xff]
        %v1293 = vld [vmem:[#allocation2 + $0x8] sm:$0xff]
        %v1294 = vld [vmem:[#allocation2 + $0x10] sm:$0xff]
        %v1295 = vld [vmem:[#allocation2 + $0x18] sm:$0xff]
        %v1296 = vld [vmem:[#allocation2 + $0x20] sm:$0xff]
        %v1297 = vld [vmem:[%s10] sm:$0xff]
        %v1298 = vld [vmem:[%s10 + $0x8] sm:$0xff]
        %v1299 = vld [vmem:[%s10 + $0x10] sm:$0xff]
        %v1300 = vld [vmem:[%s10 + $0x18] sm:$0xff]
        %v1301 = vld [vmem:[%s10 + $0x20] sm:$0xff]
        %1303 = vset.pattern.permute.xlu0 0
        %1304 = vperm.xlu0 %1303, %v1297
        %v1305 = vpop.permute.xlu0 %1304
        %1308 = vset.pattern.permute.xlu0 0
        %1309 = vperm.xlu0 %1308, %v1298
        %v1310 = vpop.permute.xlu0 %1309
        %1313 = vset.pattern.permute.xlu0 0
        %1314 = vperm.xlu0 %1313, %v1299
        %v1315 = vpop.permute.xlu0 %1314
        %1318 = vset.pattern.permute.xlu0 0
        %1319 = vperm.xlu0 %1318, %v1300
        %v1320 = vpop.permute.xlu0 %1319
        %1323 = vset.pattern.permute.xlu0 0
        %1324 = vperm.xlu0 %1323, %v1301
        %v1325 = vpop.permute.xlu0 %1324
        %v1327 = vmul.f32 %v1292, %v1305
        %v1328 = vmul.f32 %v1293, %v1310
        %v1329 = vmul.f32 %v1294, %v1315
        %v1330 = vmul.f32 %v1295, %v1320
        %v1331 = vmul.f32 %v1296, %v1325
        %v1332 = vld [vmem:[%s3] sm:$0xff]
        %v1333 = vld [vmem:[%s3 + $0x8] sm:$0xff]
        %v1334 = vld [vmem:[%s3 + $0x10] sm:$0xff]
        %v1335 = vld [vmem:[%s3 + $0x18] sm:$0xff]
        %v1336 = vld [vmem:[%s3 + $0x20] sm:$0xff]
        %v1337 = vld [vmem:[%s7] sm:$0xff]
        %v1338 = vld [vmem:[%s7 + $0x8] sm:$0xff]
        %v1339 = vld [vmem:[%s8] sm:$0xff]
        %v1340 = vld [vmem:[%s8 + $0x8] sm:$0xff]
        %v1341 = vld [vmem:[%s8 + $0x10] sm:$0xff]
        %v1342 = vld [vmem:[%s8 + $0x18] sm:$0xff]
        %v1344 = vsel %vm1280, %v1327, 0
        %v1347 = vsel %vm1280, %v1328, 0
        %v1350 = vsel %vm1280, %v1329, 0
        %v1353 = vsel %vm1280, %v1330, 0
        %v1356 = vsel %vm1280, %v1331, 0
        %1358 = vmatprep.subr.mxu0 0.0
        %1359 = vmatpush1.msra.mxu0 %v1339
        %1360 = vmatprep.subr.mxu0 0.0
        %1361 = vmatpush1.msra.mxu0 %v1340
        %1362 = vmatprep.subr.mxu0 0.0
        %1363 = vmatpush1.msra.mxu0 %v1341
        %1364 = vmatprep.subr.mxu0 0.0
        %1365 = vmatpush1.msra.mxu0 %v1342
        %1366 = vmatprep.subr.mxu0 0.0
        %1367 = vmatpush1.msra.mxu0 0.0
        %1368 = vmatprep.subr.mxu0 0.0
        %1369 = vmatpush1.msra.mxu0 0.0
        %1370 = vmatprep.subr.mxu0 0.0
        %1371 = vmatpush1.msra.mxu0 0.0
        %1372 = vmatprep.subr.mxu0 0.0
        %1373 = vmatpush1.msra.mxu0 0.0
        %1374 = vmatprep.subr.mxu0 0.0
        %1375 = vmatpush1.msra.mxu0 0.0
        %1376 = vmatprep.subr.mxu0 0.0
        %1377 = vmatpush1.msra.mxu0 0.0
        %1378 = vmatprep.subr.mxu0 0.0
        %1379 = vmatpush1.msra.mxu0 0.0
        %1380 = vmatprep.subr.mxu0 0.0
        %1381 = vmatpush1.msra.mxu0 0.0
        %1382 = vmatprep.subr.mxu0 0.0
        %1383 = vmatpush1.msra.mxu0 0.0
        %1384 = vmatprep.subr.mxu0 0.0
        %1385 = vmatpush1.msra.mxu0 0.0
        %1386 = vmatprep.subr.mxu0 0.0
        %1387 = vmatpush1.msra.mxu0 0.0
        %1388 = vmatprep.subr.mxu0 0.0
        %1389 = vmatpush1.msra.mxu0 0.0
        %1390 = vmatprep.subr.mxu0 0.0
        %1391 = vmatpush1.msra.mxu0 0.0
        %1392 = vmatprep.subr.mxu0 0.0
        %1393 = vmatpush1.msra.mxu0 0.0
        %1394 = vmatprep.subr.mxu0 0.0
        %1395 = vmatpush1.msra.mxu0 0.0
        %1396 = vmatprep.subr.mxu0 0.0
        %1397 = vmatpush1.msra.mxu0 0.0
        %1398 = vmatprep.subr.mxu0 0.0
        %1399 = vmatpush1.msra.mxu0 0.0
        %1400 = vmatprep.subr.mxu0 0.0
        %1401 = vmatpush1.msra.mxu0 0.0
        %1402 = vmatprep.subr.mxu0 0.0
        %1403 = vmatpush1.msra.mxu0 0.0
        %1404 = vmatprep.subr.mxu0 0.0
        %1405 = vmatpush1.msra.mxu0 0.0
        %1406 = vmatprep.subr.mxu0 0.0
        %1407 = vmatpush1.msra.mxu0 0.0
        %1408 = vmatprep.subr.mxu0 0.0
        %1409 = vmatpush1.msra.mxu0 0.0
        %1410 = vmatprep.subr.mxu0 0.0
        %1411 = vmatpush1.msra.mxu0 0.0
        %1412 = vmatprep.subr.mxu0 0.0
        %1413 = vmatpush1.msra.mxu0 0.0
        %1414 = vmatprep.subr.mxu0 0.0
        %1415 = vmatpush1.msra.mxu0 0.0
        %1416 = vmatprep.subr.mxu0 0.0
        %1417 = vmatpush1.msra.mxu0 0.0
        %1418 = vmatprep.subr.mxu0 0.0
        %1419 = vmatpush1.msra.mxu0 0.0
        %1420 = vmatprep.subr.mxu0 0.0
        %1421 = vmatpush1.msra.mxu0 0.0
        %1422 = vmatprep.mubr.f32.mxu0 0.0
        %1423 = vmatmul.mubr.f32.gmra.mrb[0].mxu0 %v1344
        %v1424 = vpop.f32.mrb[0].mxu0
        %v1425 = vadd.f32 0.0, %v1424
        %v1426 = vpop.f32.mrb[0].mxu0
        %1427 = vmatprep.mubr.f32.mxu0 0.0
        %1428 = vmatmul.mubr.f32.gmra.mrb[0].mxu0 %v1347
        %v1429 = vpop.f32.mrb[0].mxu0
        %v1430 = vadd.f32 0.0, %v1429
        %v1431 = vpop.f32.mrb[0].mxu0
        %1432 = vmatprep.mubr.f32.mxu0 0.0
        %1433 = vmatmul.mubr.f32.gmra.mrb[0].mxu0 %v1350
        %v1434 = vpop.f32.mrb[0].mxu0
        %v1435 = vadd.f32 0.0, %v1434
        %v1436 = vpop.f32.mrb[0].mxu0
        %1437 = vmatprep.mubr.f32.mxu0 0.0
        %1438 = vmatmul.mubr.f32.gmra.mrb[0].mxu0 %v1353
        %v1439 = vpop.f32.mrb[0].mxu0
        %v1440 = vadd.f32 0.0, %v1439
        %v1441 = vpop.f32.mrb[0].mxu0
        %1442 = vmatprep.mubr.f32.mxu0 0.0
        %1443 = vmatmul.mubr.f32.gmra.mrb[0].mxu0 %v1356
        %v1444 = vpop.f32.mrb[0].mxu0
        %v1445 = vadd.f32 0.0, %v1444
        %v1446 = vpop.f32.mrb[0].mxu0
        %1447 = vdwg.mxu0
        %v1449 = vsel %vm739, %v1332, 0
        %v1452 = vsel %vm739, %v1333, 0
        %v1455 = vsel %vm739, %v1334, 0
        %v1458 = vsel %vm739, %v1335, 0
        %v1461 = vsel %vm739, %v1336, 0
        %1463 = vmatprep.subr.mxu0 0.0
        %1464 = vmatpush1.msra.mxu0 %v1337
        %1465 = vmatprep.subr.mxu0 0.0
        %1466 = vmatpush1.msra.mxu0 %v1338
        %1467 = vmatprep.subr.mxu0 0.0
        %1468 = vmatpush1.msra.mxu0 0.0
        %1469 = vmatprep.subr.mxu0 0.0
        %1470 = vmatpush1.msra.mxu0 0.0
        %1471 = vmatprep.subr.mxu0 0.0
        %1472 = vmatpush1.msra.mxu0 0.0
        %1473 = vmatprep.subr.mxu0 0.0
        %1474 = vmatpush1.msra.mxu0 0.0
        %1475 = vmatprep.subr.mxu0 0.0
        %1476 = vmatpush1.msra.mxu0 0.0
        %1477 = vmatprep.subr.mxu0 0.0
        %1478 = vmatpush1.msra.mxu0 0.0
        %1479 = vmatprep.subr.mxu0 0.0
        %1480 = vmatpush1.msra.mxu0 0.0
        %1481 = vmatprep.subr.mxu0 0.0
        %1482 = vmatpush1.msra.mxu0 0.0
        %1483 = vmatprep.subr.mxu0 0.0
        %1484 = vmatpush1.msra.mxu0 0.0
        %1485 = vmatprep.subr.mxu0 0.0
        %1486 = vmatpush1.msra.mxu0 0.0
        %1487 = vmatprep.subr.mxu0 0.0
        %1488 = vmatpush1.msra.mxu0 0.0
        %1489 = vmatprep.subr.mxu0 0.0
        %1490 = vmatpush1.msra.mxu0 0.0
        %1491 = vmatprep.subr.mxu0 0.0
        %1492 = vmatpush1.msra.mxu0 0.0
        %1493 = vmatprep.subr.mxu0 0.0
        %1494 = vmatpush1.msra.mxu0 0.0
        %1495 = vmatprep.subr.mxu0 0.0
        %1496 = vmatpush1.msra.mxu0 0.0
        %1497 = vmatprep.subr.mxu0 0.0
        %1498 = vmatpush1.msra.mxu0 0.0
        %1499 = vmatprep.subr.mxu0 0.0
        %1500 = vmatpush1.msra.mxu0 0.0
        %1501 = vmatprep.subr.mxu0 0.0
        %1502 = vmatpush1.msra.mxu0 0.0
        %1503 = vmatprep.subr.mxu0 0.0
        %1504 = vmatpush1.msra.mxu0 0.0
        %1505 = vmatprep.subr.mxu0 0.0
        %1506 = vmatpush1.msra.mxu0 0.0
        %1507 = vmatprep.subr.mxu0 0.0
        %1508 = vmatpush1.msra.mxu0 0.0
        %1509 = vmatprep.subr.mxu0 0.0
        %1510 = vmatpush1.msra.mxu0 0.0
        %1511 = vmatprep.subr.mxu0 0.0
        %1512 = vmatpush1.msra.mxu0 0.0
        %1513 = vmatprep.subr.mxu0 0.0
        %1514 = vmatpush1.msra.mxu0 0.0
        %1515 = vmatprep.subr.mxu0 0.0
        %1516 = vmatpush1.msra.mxu0 0.0
        %1517 = vmatprep.subr.mxu0 0.0
        %1518 = vmatpush1.msra.mxu0 0.0
        %1519 = vmatprep.subr.mxu0 0.0
        %1520 = vmatpush1.msra.mxu0 0.0
        %1521 = vmatprep.subr.mxu0 0.0
        %1522 = vmatpush1.msra.mxu0 0.0
        %1523 = vmatprep.subr.mxu0 0.0
        %1524 = vmatpush1.msra.mxu0 0.0
        %1525 = vmatprep.subr.mxu0 0.0
        %1526 = vmatpush1.msra.mxu0 0.0
        %1527 = vmatprep.mubr.f32.mxu0 0.0
        %1528 = vmatmul.mubr.f32.gmra.mrb[0].mxu0 %v1449
        %v1529 = vpop.f32.mrb[0].mxu0
        %v1530 = vadd.f32 %v1425, %v1529
        %v1531 = vpop.f32.mrb[0].mxu0
        %1532 = vmatprep.mubr.f32.mxu0 0.0
        %1533 = vmatmul.mubr.f32.gmra.mrb[0].mxu0 %v1452
        %v1534 = vpop.f32.mrb[0].mxu0
        %v1535 = vadd.f32 %v1430, %v1534
        %v1536 = vpop.f32.mrb[0].mxu0
        %1537 = vmatprep.mubr.f32.mxu0 0.0
        %1538 = vmatmul.mubr.f32.gmra.mrb[0].mxu0 %v1455
        %v1539 = vpop.f32.mrb[0].mxu0
        %v1540 = vadd.f32 %v1435, %v1539
        %v1541 = vpop.f32.mrb[0].mxu0
        %1542 = vmatprep.mubr.f32.mxu0 0.0
        %1543 = vmatmul.mubr.f32.gmra.mrb[0].mxu0 %v1458
        %v1544 = vpop.f32.mrb[0].mxu0
        %v1545 = vadd.f32 %v1440, %v1544
        %v1546 = vpop.f32.mrb[0].mxu0
        %1547 = vmatprep.mubr.f32.mxu0 0.0
        %1548 = vmatmul.mubr.f32.gmra.mrb[0].mxu0 %v1461
        %v1549 = vpop.f32.mrb[0].mxu0
        %v1550 = vadd.f32 %v1445, %v1549
        %v1551 = vpop.f32.mrb[0].mxu0
        %1552 = vdwg.mxu0
        %v1553 = vld [vmem:[%s9] sm:$0x1]
        %v1555 = vlaneseq
        %v1556 = vshrl.u32 %v1555, 7
        %v1557 = vsub.s32 0, %v1556
        %v1558 = vrot.slane %v1553, %v1557
        %v1560 = vadd.f32 %v1530, %v1558
        %v1561 = vadd.f32 %v1535, %v1558
        %v1562 = vadd.f32 %v1540, %v1558
        %v1563 = vadd.f32 %v1545, %v1558
        %v1564 = vadd.f32 %v1550, %v1558
        %v1565 = vmax.f32 %v1560, 0.0
        %v1566 = vmax.f32 %v1561, 0.0
        %v1567 = vmax.f32 %v1562, 0.0
        %v1568 = vmax.f32 %v1563, 0.0
        %v1569 = vmax.f32 %v1564, 0.0
        %1570 = vst.msk [vmem:[%s11] sm:$0xff] %vm1280, %v1565
        %1571 = vst.msk [vmem:[%s11 + $0x8] sm:$0xff] %vm1280, %v1566
        %1572 = vst.msk [vmem:[%s11 + $0x10] sm:$0xff] %vm1280, %v1567
        %1573 = vst.msk [vmem:[%s11 + $0x18] sm:$0xff] %vm1280, %v1568
        %1574 = vst.msk [vmem:[%s11 + $0x20] sm:$0xff] %vm1280, %v1569
      $region72: #{model_forward.4} parent=63 // pred_fallthru
        _
      // Predicated region
      $region73: #{model_forward.4} parent=63 // pred_check
        %p1575 = pneg %p281
      $region74: #{model_forward.4} parent=63 // pred_check_branch
        %1577 = sbr.rel (%p1575) target = $region76
      $region75: #{model_forward.4} parent=63 // pred_region
        _
      $region76: #{model_forward.4} parent=63 // pred_fallthru
        _
      // Predicated region
      $region77: #{model_forward.4} parent=63 // pred_check
        %p1578 = pneg %p281
      $region78: #{model_forward.4} parent=63 // pred_check_branch
        %1580 = sbr.rel (%p1578) target = $region80
      $region79: #{model_forward.4} parent=63 // pred_region
        _
      $region80: #{model_forward.4} parent=63 // pred_fallthru
        _
    $region64: #{model_forward.4} parent=5 // pred_fallthru
      _
    %p1581 = scmp.le.s32.totalorder 2, %s17
    // Predicated region
    $region81: #{model_forward.4} parent=5 // pred_check
      %p1582 = pneg %p1581
    $region82: #{model_forward.4} parent=5 // pred_check_branch
      %1584 = sbr.rel (%p1582) target = $region84
    $region83: #{model_forward.4} parent=5 // pred_region
      %s1585 = ssub.s32 %s17, 2
    $region84: #{model_forward.4} parent=5 // pred_fallthru
      _
  $region6: #{model_forward.4} parent=0 // loop_footer
    %s21 = sadd.s32 1, %s17
  $region7: #{model_forward.4} parent=0 // loop_footer_branch
    %16 = sbr.rel target = $region3
  $region8: #{model_forward.4} parent=0 // loop_exit
    _

// kernel: model_forward.7
$region0: #{model_forward.7}
  #allocation0 [shape = 'u32[]', space=smem, size = 0x4, offset = 0x4, fixed_abs, tag = 'smem constant byte address 0x4 - core index']
  #allocation1 [shape = 'u32[144,128]{1,0:T(1,128)}', space=vmem, size = 0x12000, scoped, tag = 'internal scratch']
  %s0 = inlined_call_operand.vmem [shape: s32[384,1], index: 0, kind: input, shape index: {}]
  %s1 = inlined_call_operand.vmem [shape: s32[384,1], index: 1, kind: input, shape index: {}]
  %s2 = inlined_call_operand.vmem [shape: f32[40,8], index: 2, kind: input, shape index: {}]
  %s3 = inlined_call_operand.vmem [shape: f32[8,128], index: 3, kind: input, shape index: {}]
  %s4 = inlined_call_operand.vmem [shape: f32[8,128], index: 4, kind: input, shape index: {}]
  %s5 = inlined_call_operand.vmem [shape: f32[1,128], index: 5, kind: input, shape index: {}]
  %s6 = inlined_call_operand.vmem [shape: f32[384,2], index: 6, kind: output, shape index: {}]
  %s7 = sld [smem:[#allocation0]]
  $region57: #{model_forward.7} parent=0
    _
  %s9 = ssub.s32 1, %s7
  %s10 = scalar_select 0, %s9, %s7
  loop: start=0, step=1, limit=5
  $region2: #{model_forward.7} parent=0 // loop_pre_header
    _
  $region3: #{model_forward.7} parent=0 // loop_header
    %s12 = sphi 0, %s16
    %p13 = scmp.ge.s32.totalorder %s12, 5
    %s22 = sphi 0, %s24
    %s25 = sphi 0, %s22
    %s26 = sphi 0, %s25
    %s42 = sphi 0, %s26
    %s48 = sphi 0, %s50
    %s51 = sphi 0, %s48
    %s52 = sphi 0, %s51
    %s68 = sphi 0, %s52
    %s72 = sphi 0, %s72
    %s74 = sphi 0, %s72
    %s75 = sphi 0, %s74
    %s89 = sphi 0, %s75
    %s93 = sphi 0, %s93
    %s95 = sphi 0, %s93
    %s96 = sphi 0, %s95
    %s110 = sphi 0, %s96
    %s114 = sphi 0, %s114
    %s116 = sphi 0, %s114
    %s117 = sphi 0, %s116
    %s131 = sphi 0, %s117
    %s135 = sphi 0, %s135
    %s137 = sphi 0, %s135
    %s138 = sphi 0, %s137
    %s152 = sphi 0, %s138
    %s158 = sphi 0, %s160
    %s161 = sphi 0, %s158
    %s162 = sphi 0, %s161
    %s178 = sphi 0, %s162
  $region4: #{model_forward.7} parent=0 // loop_header_branch
    %15 = sbr.rel (%p13) target = $region8
  $region5: #{model_forward.7} parent=0 // loop_body
    %s17 = ssub.s32 %s12, 1
    %s18 = ssub.s32 %s12, 2
    %s19 = sadd.s32 %s12, 1
    %s20 = ssub.s32 %s12, %s19
    %p21 = scmp.eq.s32.totalorder %s20, 0
    %s23 = sadd.s32 %s22, 1
    %s24 = scalar_select %p21, %s22, %s23
    %p27 = pneg %p21
    %p28 = scmp.eq.s32.totalorder %s12, 2
    %p29 = por %p27, %p28
    %p30 = scmp.ne.s32.totalorder %s22, %s25
    %p31 = scmp.eq.s32.totalorder %s12, 0
    %p32 = por %p30, %p31
    %p33 = scmp.ne.s32.totalorder %s22, %s25
    %p34 = scmp.eq.s32.totalorder %s17, 2
    %p35 = por %p33, %p34
    %p36 = scmp.ne.s32.totalorder %s25, %s26
    %p37 = scmp.eq.s32.totalorder %s17, 0
    %p38 = por %p36, %p37
    %p39 = scmp.ne.s32.totalorder %s25, %s26
    %p40 = scmp.eq.s32.totalorder %s18, 2
    %p41 = por %p39, %p40
    %p43 = scmp.ne.s32.totalorder %s26, %s42
    %p44 = scmp.eq.s32.totalorder %s18, 0
    %p45 = por %p43, %p44
    %s46 = ssub.s32 %s12, %s19
    %p47 = scmp.eq.s32.totalorder %s46, 0
    %s49 = sadd.s32 %s48, 1
    %s50 = scalar_select %p47, %s48, %s49
    %p53 = pneg %p47
    %p54 = scmp.eq.s32.totalorder %s12, 2
    %p55 = por %p53, %p54
    %p56 = scmp.ne.s32.totalorder %s48, %s51
    %p57 = scmp.eq.s32.totalorder %s12, 0
    %p58 = por %p56, %p57
    %p59 = scmp.ne.s32.totalorder %s48, %s51
    %p60 = scmp.eq.s32.totalorder %s17, 2
    %p61 = por %p59, %p60
    %p62 = scmp.ne.s32.totalorder %s51, %s52
    %p63 = scmp.eq.s32.totalorder %s17, 0
    %p64 = por %p62, %p63
    %p65 = scmp.ne.s32.totalorder %s51, %s52
    %p66 = scmp.eq.s32.totalorder %s18, 2
    %p67 = por %p65, %p66
    %p69 = scmp.ne.s32.totalorder %s52, %s68
    %p70 = scmp.eq.s32.totalorder %s18, 0
    %p71 = por %p69, %p70
    %s73 = sadd.s32 %s72, 1
    %p76 = scmp.eq.s32.totalorder %s12, 2
    %p77 = scmp.ne.s32.totalorder %s72, %s74
    %p78 = scmp.eq.s32.totalorder %s12, 0
    %p79 = por %p77, %p78
    %p80 = scmp.ne.s32.totalorder %s72, %s74
    %p81 = scmp.eq.s32.totalorder %s17, 2
    %p82 = por %p80, %p81
    %p83 = scmp.ne.s32.totalorder %s74, %s75
    %p84 = scmp.eq.s32.totalorder %s17, 0
    %p85 = por %p83, %p84
    %p86 = scmp.ne.s32.totalorder %s74, %s75
    %p87 = scmp.eq.s32.totalorder %s18, 2
    %p88 = por %p86, %p87
    %p90 = scmp.ne.s32.totalorder %s75, %s89
    %p91 = scmp.eq.s32.totalorder %s18, 0
    %p92 = por %p90, %p91
    %s94 = sadd.s32 %s93, 1
    %p97 = scmp.eq.s32.totalorder %s12, 2
    %p98 = scmp.ne.s32.totalorder %s93, %s95
    %p99 = scmp.eq.s32.totalorder %s12, 0
    %p100 = por %p98, %p99
    %p101 = scmp.ne.s32.totalorder %s93, %s95
    %p102 = scmp.eq.s32.totalorder %s17, 2
    %p103 = por %p101, %p102
    %p104 = scmp.ne.s32.totalorder %s95, %s96
    %p105 = scmp.eq.s32.totalorder %s17, 0
    %p106 = por %p104, %p105
    %p107 = scmp.ne.s32.totalorder %s95, %s96
    %p108 = scmp.eq.s32.totalorder %s18, 2
    %p109 = por %p107, %p108
    %p111 = scmp.ne.s32.totalorder %s96, %s110
    %p112 = scmp.eq.s32.totalorder %s18, 0
    %p113 = por %p111, %p112
    %s115 = sadd.s32 %s114, 1
    %p118 = scmp.eq.s32.totalorder %s12, 2
    %p119 = scmp.ne.s32.totalorder %s114, %s116
    %p120 = scmp.eq.s32.totalorder %s12, 0
    %p121 = por %p119, %p120
    %p122 = scmp.ne.s32.totalorder %s114, %s116
    %p123 = scmp.eq.s32.totalorder %s17, 2
    %p124 = por %p122, %p123
    %p125 = scmp.ne.s32.totalorder %s116, %s117
    %p126 = scmp.eq.s32.totalorder %s17, 0
    %p127 = por %p125, %p126
    %p128 = scmp.ne.s32.totalorder %s116, %s117
    %p129 = scmp.eq.s32.totalorder %s18, 2
    %p130 = por %p128, %p129
    %p132 = scmp.ne.s32.totalorder %s117, %s131
    %p133 = scmp.eq.s32.totalorder %s18, 0
    %p134 = por %p132, %p133
    %s136 = sadd.s32 %s135, 1
    %p139 = scmp.eq.s32.totalorder %s12, 2
    %p140 = scmp.ne.s32.totalorder %s135, %s137
    %p141 = scmp.eq.s32.totalorder %s12, 0
    %p142 = por %p140, %p141
    %p143 = scmp.ne.s32.totalorder %s135, %s137
    %p144 = scmp.eq.s32.totalorder %s17, 2
    %p145 = por %p143, %p144
    %p146 = scmp.ne.s32.totalorder %s137, %s138
    %p147 = scmp.eq.s32.totalorder %s17, 0
    %p148 = por %p146, %p147
    %p149 = scmp.ne.s32.totalorder %s137, %s138
    %p150 = scmp.eq.s32.totalorder %s18, 2
    %p151 = por %p149, %p150
    %p153 = scmp.ne.s32.totalorder %s138, %s152
    %p154 = scmp.eq.s32.totalorder %s18, 0
    %p155 = por %p153, %p154
    %s156 = ssub.s32 %s12, %s19
    %p157 = scmp.eq.s32.totalorder %s156, 0
    %s159 = sadd.s32 %s158, 1
    %s160 = scalar_select %p157, %s158, %s159
    %p163 = pneg %p157
    %p164 = scmp.eq.s32.totalorder %s12, 2
    %p165 = por %p163, %p164
    %p166 = scmp.ne.s32.totalorder %s158, %s161
    %p167 = scmp.eq.s32.totalorder %s12, 0
    %p168 = por %p166, %p167
    %p169 = scmp.ne.s32.totalorder %s158, %s161
    %p170 = scmp.eq.s32.totalorder %s17, 2
    %p171 = por %p169, %p170
    %p172 = scmp.ne.s32.totalorder %s161, %s162
    %p173 = scmp.eq.s32.totalorder %s17, 0
    %p174 = por %p172, %p173
    %p175 = scmp.ne.s32.totalorder %s161, %s162
    %p176 = scmp.eq.s32.totalorder %s18, 2
    %p177 = por %p175, %p176
    %p179 = scmp.ne.s32.totalorder %s162, %s178
    %p180 = scmp.eq.s32.totalorder %s18, 0
    %p181 = por %p179, %p180
    %p182 = scmp.le.s32.totalorder 1, %s12
    %p183 = scmp.lt.s32.totalorder %s12, 4
    %p184 = pnand %p182, %p183
    %p185 = pneg %p184
    // Predicated region
    $region9: #{model_forward.7} parent=5 // pred_check
      _
    $region10: #{model_forward.7} parent=5 // pred_check_branch
      %187 = sbr.rel (%p184) target = $region12
    $region11: #{model_forward.7} parent=5 // pred_region
      %s188 = ssub.s32 %s12, 1
      // Predicated region
      $region13: #{model_forward.7} parent=11 // pred_check
        %p189 = pneg %p85
      $region14: #{model_forward.7} parent=11 // pred_check_branch
        %191 = sbr.rel (%p189) target = $region16
      $region15: #{model_forward.7} parent=11 // pred_region
        _
      $region16: #{model_forward.7} parent=11 // pred_fallthru
        _
      // Predicated region
      $region17: #{model_forward.7} parent=11 // pred_check
        %p192 = pneg %p106
      $region18: #{model_forward.7} parent=11 // pred_check_branch
        %194 = sbr.rel (%p192) target = $region20
      $region19: #{model_forward.7} parent=11 // pred_region
        _
      $region20: #{model_forward.7} parent=11 // pred_fallthru
        _
      // Predicated region
      $region21: #{model_forward.7} parent=11 // pred_check
        %p195 = pneg %p127
      $region22: #{model_forward.7} parent=11 // pred_check_branch
        %197 = sbr.rel (%p195) target = $region24
      $region23: #{model_forward.7} parent=11 // pred_region
        _
      $region24: #{model_forward.7} parent=11 // pred_fallthru
        _
      // Predicated region
      $region25: #{model_forward.7} parent=11 // pred_check
        %p198 = pneg %p148
      $region26: #{model_forward.7} parent=11 // pred_check_branch
        %200 = sbr.rel (%p198) target = $region28
      $region27: #{model_forward.7} parent=11 // pred_region
        _
      $region28: #{model_forward.7} parent=11 // pred_fallthru
        _
    $region12: #{model_forward.7} parent=5 // pred_fallthru
      _
    %p201 = scmp.lt.s32.totalorder %s12, 3
    // Predicated region
    $region29: #{model_forward.7} parent=5 // pred_check
      %p202 = pneg %p201
    $region30: #{model_forward.7} parent=5 // pred_check_branch
      %204 = sbr.rel (%p202) target = $region32
    $region31: #{model_forward.7} parent=5 // pred_region
      // Predicated region
      $region33: #{model_forward.7} parent=31 // pred_check
        %p205 = pneg %p32
      $region34: #{model_forward.7} parent=31 // pred_check_branch
        %207 = sbr.rel (%p205) target = $region36
      $region35: #{model_forward.7} parent=31 // pred_region
        %s208 = smul.u32 16, %s12
        %p209 = scmp.lt.s32.totalorder %s208, 47
        %s210 = scalar_select %p209, %s208, 47
        %s211 = smul.addr %s210, 8
        %s212 = scalar_lea.vmem %s0, %s211
        %s213 = smul.u32 16, %s12
      $region36: #{model_forward.7} parent=31 // pred_fallthru
        _
      // Predicated region
      $region37: #{model_forward.7} parent=31 // pred_check
        %p214 = pneg %p58
      $region38: #{model_forward.7} parent=31 // pred_check_branch
        %216 = sbr.rel (%p214) target = $region40
      $region39: #{model_forward.7} parent=31 // pred_region
        %s217 = smul.u32 16, %s12
        %p218 = scmp.lt.s32.totalorder %s217, 47
        %s219 = scalar_select %p218, %s217, 47
        %s220 = smul.addr %s219, 8
        %s221 = scalar_lea.vmem %s1, %s220
        %s222 = smul.u32 16, %s12
      $region40: #{model_forward.7} parent=31 // pred_fallthru
        _
    $region32: #{model_forward.7} parent=5 // pred_fallthru
      _
    %p223 = scmp.le.s32.totalorder 1, %s12
    %p224 = scmp.lt.s32.totalorder %s12, 4
    %p225 = pnand %p223, %p224
    %p226 = pneg %p225
    // Predicated region
    $region41: #{model_forward.7} parent=5 // pred_check
      _
    $region42: #{model_forward.7} parent=5 // pred_check_branch
      %228 = sbr.rel (%p225) target = $region44
    $region43: #{model_forward.7} parent=5 // pred_region
      %s229 = ssub.s32 %s12, 1
      %s230 = smul.u32 16, %s17
      %p231 = scmp.lt.s32.totalorder %s230, 47
      %s232 = scalar_select %p231, %s230, 47
      %s233 = smul.addr %s232, 8
      %s234 = scalar_lea.vmem %s0, %s233
      %p235 = pneg %p38
      %p236 = pneg %p35
      %s237 = smul.u32 16, %s17
      %p238 = scmp.lt.s32.totalorder %s237, 47
      %s239 = scalar_select %p238, %s237, 47
      %s240 = smul.addr %s239, 8
      %s241 = scalar_lea.vmem %s1, %s240
      %p242 = pneg %p64
      %p243 = pneg %p61
      %p244 = pneg %p85
      %p245 = pneg %p82
      %p246 = pneg %p106
      %p247 = pneg %p103
      %p248 = pneg %p127
      %p249 = pneg %p124
      %p250 = pneg %p148
      %p251 = pneg %p145
      %p252 = pneg %p174
      %p253 = pneg %p171
      %s254 = smul.u32 16, %s17
      %p255 = scmp.lt.s32.totalorder %s254, 47
      %s256 = scalar_select %p255, %s254, 47
      %s257 = smul.addr %s256, 8
      %s258 = scalar_lea.vmem %s6, %s257
      %s259 = smul.u32 16, %s17
      %p260 = scmp.lt.s32.totalorder %s259, 47
      %s261 = scalar_select %p260, %s259, 47
      %s262 = smul.addr %s261, 8
      %s263 = scalar_lea.vmem %s0, %s262
      %s264 = smul.u32 16, %s17
      %s265 = smul.u32 16, %s17
      %p266 = scmp.lt.s32.totalorder %s265, 47
      %s267 = scalar_select %p266, %s265, 47
      %s268 = smul.addr %s267, 8
      %s269 = scalar_lea.vmem %s1, %s268
      %s270 = smul.u32 16, %s17
      %s271 = smul.u32 16, %s17
      %p272 = scmp.lt.s32.totalorder %s271, 47
      %s273 = scalar_select %p272, %s271, 47
      %s274 = smul.addr %s273, 8
      %s275 = scalar_lea.vmem %s6, %s274
      %s276 = smul.u32 16, %s17
      %v277 = vlaneseq
      %v278 = vand.u32 %v277, 127
      %v279 = vld [vmem:[%s263] sm:$0xff]
      %v280 = vld [vmem:[%s263 + $0x8] sm:$0xff]
      %v281 = vld [vmem:[%s263 + $0x10] sm:$0xff]
      %v282 = vld [vmem:[%s263 + $0x18] sm:$0xff]
      %v283 = vld [vmem:[%s263 + $0x20] sm:$0xff]
      %v284 = vld [vmem:[%s263 + $0x28] sm:$0xff]
      %v285 = vld [vmem:[%s263 + $0x30] sm:$0xff]
      %v286 = vld [vmem:[%s263 + $0x38] sm:$0xff]
      %v287 = vld [vmem:[%s263 + $0x40] sm:$0xff]
      %v288 = vld [vmem:[%s263 + $0x48] sm:$0xff]
      %v289 = vld [vmem:[%s263 + $0x50] sm:$0xff]
      %v290 = vld [vmem:[%s263 + $0x58] sm:$0xff]
      %v291 = vld [vmem:[%s263 + $0x60] sm:$0xff]
      %v292 = vld [vmem:[%s263 + $0x68] sm:$0xff]
      %v293 = vld [vmem:[%s263 + $0x70] sm:$0xff]
      %v294 = vld [vmem:[%s263 + $0x78] sm:$0xff]
      %295 = vset.pattern.permute.xlu0 0
      %296 = vperm.xlu0 %295, %v279
      %v297 = vpop.permute.xlu0 %296
      %298 = vset.pattern.permute.xlu0 0
      %299 = vperm.xlu0 %298, %v280
      %v300 = vpop.permute.xlu0 %299
      %301 = vset.pattern.permute.xlu0 0
      %302 = vperm.xlu0 %301, %v281
      %v303 = vpop.permute.xlu0 %302
      %304 = vset.pattern.permute.xlu0 0
      %305 = vperm.xlu0 %304, %v282
      %v306 = vpop.permute.xlu0 %305
      %307 = vset.pattern.permute.xlu0 0
      %308 = vperm.xlu0 %307, %v283
      %v309 = vpop.permute.xlu0 %308
      %310 = vset.pattern.permute.xlu0 0
      %311 = vperm.xlu0 %310, %v284
      %v312 = vpop.permute.xlu0 %311
      %313 = vset.pattern.permute.xlu0 0
      %314 = vperm.xlu0 %313, %v285
      %v315 = vpop.permute.xlu0 %314
      %316 = vset.pattern.permute.xlu0 0
      %317 = vperm.xlu0 %316, %v286
      %v318 = vpop.permute.xlu0 %317
      %319 = vset.pattern.permute.xlu0 0
      %320 = vperm.xlu0 %319, %v287
      %v321 = vpop.permute.xlu0 %320
      %322 = vset.pattern.permute.xlu0 0
      %323 = vperm.xlu0 %322, %v288
      %v324 = vpop.permute.xlu0 %323
      %325 = vset.pattern.permute.xlu0 0
      %326 = vperm.xlu0 %325, %v289
      %v327 = vpop.permute.xlu0 %326
      %328 = vset.pattern.permute.xlu0 0
      %329 = vperm.xlu0 %328, %v290
      %v330 = vpop.permute.xlu0 %329
      %331 = vset.pattern.permute.xlu0 0
      %332 = vperm.xlu0 %331, %v291
      %v333 = vpop.permute.xlu0 %332
      %334 = vset.pattern.permute.xlu0 0
      %335 = vperm.xlu0 %334, %v292
      %v336 = vpop.permute.xlu0 %335
      %337 = vset.pattern.permute.xlu0 0
      %338 = vperm.xlu0 %337, %v293
      %v339 = vpop.permute.xlu0 %338
      %340 = vset.pattern.permute.xlu0 0
      %341 = vperm.xlu0 %340, %v294
      %v342 = vpop.permute.xlu0 %341
      %vm343 = vcmp.eq.s32.totalorder %v297, %v278
      %vm344 = vcmp.eq.s32.totalorder %v300, %v278
      %vm345 = vcmp.eq.s32.totalorder %v303, %v278
      %vm346 = vcmp.eq.s32.totalorder %v306, %v278
      %vm347 = vcmp.eq.s32.totalorder %v309, %v278
      %vm348 = vcmp.eq.s32.totalorder %v312, %v278
      %vm349 = vcmp.eq.s32.totalorder %v315, %v278
      %vm350 = vcmp.eq.s32.totalorder %v318, %v278
      %vm351 = vcmp.eq.s32.totalorder %v321, %v278
      %vm352 = vcmp.eq.s32.totalorder %v324, %v278
      %vm353 = vcmp.eq.s32.totalorder %v327, %v278
      %vm354 = vcmp.eq.s32.totalorder %v330, %v278
      %vm355 = vcmp.eq.s32.totalorder %v333, %v278
      %vm356 = vcmp.eq.s32.totalorder %v336, %v278
      %vm357 = vcmp.eq.s32.totalorder %v339, %v278
      %vm358 = vcmp.eq.s32.totalorder %v342, %v278
      %v359 = vsel %vm343, 1.0, 0.0
      %v360 = vsel %vm344, 1.0, 0.0
      %v361 = vsel %vm345, 1.0, 0.0
      %v362 = vsel %vm346, 1.0, 0.0
      %v363 = vsel %vm347, 1.0, 0.0
      %v364 = vsel %vm348, 1.0, 0.0
      %v365 = vsel %vm349, 1.0, 0.0
      %v366 = vsel %vm350, 1.0, 0.0
      %v367 = vsel %vm351, 1.0, 0.0
      %v368 = vsel %vm352, 1.0, 0.0
      %v369 = vsel %vm353, 1.0, 0.0
      %v370 = vsel %vm354, 1.0, 0.0
      %v371 = vsel %vm355, 1.0, 0.0
      %v372 = vsel %vm356, 1.0, 0.0
      %v373 = vsel %vm357, 1.0, 0.0
      %v374 = vsel %vm358, 1.0, 0.0
      %v375 = vld [vmem:[%s269] sm:$0xff]
      %v376 = vld [vmem:[%s269 + $0x8] sm:$0xff]
      %v377 = vld [vmem:[%s269 + $0x10] sm:$0xff]
      %v378 = vld [vmem:[%s269 + $0x18] sm:$0xff]
      %v379 = vld [vmem:[%s269 + $0x20] sm:$0xff]
      %v380 = vld [vmem:[%s269 + $0x28] sm:$0xff]
      %v381 = vld [vmem:[%s269 + $0x30] sm:$0xff]
      %v382 = vld [vmem:[%s269 + $0x38] sm:$0xff]
      %v383 = vld [vmem:[%s269 + $0x40] sm:$0xff]
      %v384 = vld [vmem:[%s269 + $0x48] sm:$0xff]
      %v385 = vld [vmem:[%s269 + $0x50] sm:$0xff]
      %v386 = vld [vmem:[%s269 + $0x58] sm:$0xff]
      %v387 = vld [vmem:[%s269 + $0x60] sm:$0xff]
      %v388 = vld [vmem:[%s269 + $0x68] sm:$0xff]
      %v389 = vld [vmem:[%s269 + $0x70] sm:$0xff]
      %v390 = vld [vmem:[%s269 + $0x78] sm:$0xff]
      %391 = vset.pattern.permute.xlu0 0
      %392 = vperm.xlu0 %391, %v375
      %v393 = vpop.permute.xlu0 %392
      %394 = vset.pattern.permute.xlu0 0
      %395 = vperm.xlu0 %394, %v376
      %v396 = vpop.permute.xlu0 %395
      %397 = vset.pattern.permute.xlu0 0
      %398 = vperm.xlu0 %397, %v377
      %v399 = vpop.permute.xlu0 %398
      %400 = vset.pattern.permute.xlu0 0
      %401 = vperm.xlu0 %400, %v378
      %v402 = vpop.permute.xlu0 %401
      %403 = vset.pattern.permute.xlu0 0
      %404 = vperm.xlu0 %403, %v379
      %v405 = vpop.permute.xlu0 %404
      %406 = vset.pattern.permute.xlu0 0
      %407 = vperm.xlu0 %406, %v380
      %v408 = vpop.permute.xlu0 %407
      %409 = vset.pattern.permute.xlu0 0
      %410 = vperm.xlu0 %409, %v381
      %v411 = vpop.permute.xlu0 %410
      %412 = vset.pattern.permute.xlu0 0
      %413 = vperm.xlu0 %412, %v382
      %v414 = vpop.permute.xlu0 %413
      %415 = vset.pattern.permute.xlu0 0
      %416 = vperm.xlu0 %415, %v383
      %v417 = vpop.permute.xlu0 %416
      %418 = vset.pattern.permute.xlu0 0
      %419 = vperm.xlu0 %418, %v384
      %v420 = vpop.permute.xlu0 %419
      %421 = vset.pattern.permute.xlu0 0
      %422 = vperm.xlu0 %421, %v385
      %v423 = vpop.permute.xlu0 %422
      %424 = vset.pattern.permute.xlu0 0
      %425 = vperm.xlu0 %424, %v386
      %v426 = vpop.permute.xlu0 %425
      %427 = vset.pattern.permute.xlu0 0
      %428 = vperm.xlu0 %427, %v387
      %v429 = vpop.permute.xlu0 %428
      %430 = vset.pattern.permute.xlu0 0
      %431 = vperm.xlu0 %430, %v388
      %v432 = vpop.permute.xlu0 %431
      %433 = vset.pattern.permute.xlu0 0
      %434 = vperm.xlu0 %433, %v389
      %v435 = vpop.permute.xlu0 %434
      %436 = vset.pattern.permute.xlu0 0
      %437 = vperm.xlu0 %436, %v390
      %v438 = vpop.permute.xlu0 %437
      %vm439 = vcmp.eq.s32.totalorder %v393, %v278
      %vm440 = vcmp.eq.s32.totalorder %v396, %v278
      %vm441 = vcmp.eq.s32.totalorder %v399, %v278
      %vm442 = vcmp.eq.s32.totalorder %v402, %v278
      %vm443 = vcmp.eq.s32.totalorder %v405, %v278
      %vm444 = vcmp.eq.s32.totalorder %v408, %v278
      %vm445 = vcmp.eq.s32.totalorder %v411, %v278
      %vm446 = vcmp.eq.s32.totalorder %v414, %v278
      %vm447 = vcmp.eq.s32.totalorder %v417, %v278
      %vm448 = vcmp.eq.s32.totalorder %v420, %v278
      %vm449 = vcmp.eq.s32.totalorder %v423, %v278
      %vm450 = vcmp.eq.s32.totalorder %v426, %v278
      %vm451 = vcmp.eq.s32.totalorder %v429, %v278
      %vm452 = vcmp.eq.s32.totalorder %v432, %v278
      %vm453 = vcmp.eq.s32.totalorder %v435, %v278
      %vm454 = vcmp.eq.s32.totalorder %v438, %v278
      %v455 = vsel %vm439, 1.0, 0.0
      %v456 = vsel %vm440, 1.0, 0.0
      %v457 = vsel %vm441, 1.0, 0.0
      %v458 = vsel %vm442, 1.0, 0.0
      %v459 = vsel %vm443, 1.0, 0.0
      %v460 = vsel %vm444, 1.0, 0.0
      %v461 = vsel %vm445, 1.0, 0.0
      %v462 = vsel %vm446, 1.0, 0.0
      %v463 = vsel %vm447, 1.0, 0.0
      %v464 = vsel %vm448, 1.0, 0.0
      %v465 = vsel %vm449, 1.0, 0.0
      %v466 = vsel %vm450, 1.0, 0.0
      %v467 = vsel %vm451, 1.0, 0.0
      %v468 = vsel %vm452, 1.0, 0.0
      %v469 = vsel %vm453, 1.0, 0.0
      %v470 = vsel %vm454, 1.0, 0.0
      %v471 = vld [vmem:[%s2] sm:$0xff]
      %v472 = vld [vmem:[%s2 + $0x8] sm:$0xff]
      %v473 = vld [vmem:[%s2 + $0x10] sm:$0xff]
      %v474 = vld [vmem:[%s2 + $0x18] sm:$0xff]
      %v475 = vld [vmem:[%s2 + $0x20] sm:$0xff]
      %vm476 = vcmask 326656
      %v478 = vsel %vm476, %v359, 0
      %v481 = vsel %vm476, %v360, 0
      %v484 = vsel %vm476, %v361, 0
      %v487 = vsel %vm476, %v362, 0
      %v490 = vsel %vm476, %v363, 0
      %v493 = vsel %vm476, %v364, 0
      %v496 = vsel %vm476, %v365, 0
      %v499 = vsel %vm476, %v366, 0
      %v502 = vsel %vm476, %v367, 0
      %v505 = vsel %vm476, %v368, 0
      %v508 = vsel %vm476, %v369, 0
      %v511 = vsel %vm476, %v370, 0
      %v514 = vsel %vm476, %v371, 0
      %v517 = vsel %vm476, %v372, 0
      %v520 = vsel %vm476, %v373, 0
      %v523 = vsel %vm476, %v374, 0
      %525 = vmatprep.subr.mxu0 0.0
      %526 = vmatpush1.msra.mxu0 %v471
      %527 = vmatprep.subr.mxu0 0.0
      %528 = vmatpush1.msra.mxu0 %v472
      %529 = vmatprep.subr.mxu0 0.0
      %530 = vmatpush1.msra.mxu0 %v473
      %531 = vmatprep.subr.mxu0 0.0
      %532 = vmatpush1.msra.mxu0 %v474
      %533 = vmatprep.subr.mxu0 0.0
      %534 = vmatpush1.msra.mxu0 %v475
      %535 = vmatprep.subr.mxu0 0.0
      %536 = vmatpush1.msra.mxu0 0.0
      %537 = vmatprep.subr.mxu0 0.0
      %538 = vmatpush1.msra.mxu0 0.0
      %539 = vmatprep.subr.mxu0 0.0
      %540 = vmatpush1.msra.mxu0 0.0
      %541 = vmatprep.subr.mxu0 0.0
      %542 = vmatpush1.msra.mxu0 0.0
      %543 = vmatprep.subr.mxu0 0.0
      %544 = vmatpush1.msra.mxu0 0.0
      %545 = vmatprep.subr.mxu0 0.0
      %546 = vmatpush1.msra.mxu0 0.0
      %547 = vmatprep.subr.mxu0 0.0
      %548 = vmatpush1.msra.mxu0 0.0
      %549 = vmatprep.subr.mxu0 0.0
      %550 = vmatpush1.msra.mxu0 0.0
      %551 = vmatprep.subr.mxu0 0.0
      %552 = vmatpush1.msra.mxu0 0.0
      %553 = vmatprep.subr.mxu0 0.0
      %554 = vmatpush1.msra.mxu0 0.0
      %555 = vmatprep.subr.mxu0 0.0
      %556 = vmatpush1.msra.mxu0 0.0
      %557 = vmatprep.subr.mxu0 0.0
      %558 = vmatpush1.msra.mxu0 0.0
      %559 = vmatprep.subr.mxu0 0.0
      %560 = vmatpush1.msra.mxu0 0.0
      %561 = vmatprep.subr.mxu0 0.0
      %562 = vmatpush1.msra.mxu0 0.0
      %563 = vmatprep.subr.mxu0 0.0
      %564 = vmatpush1.msra.mxu0 0.0
      %565 = vmatprep.subr.mxu0 0.0
      %566 = vmatpush1.msra.mxu0 0.0
      %567 = vmatprep.subr.mxu0 0.0
      %568 = vmatpush1.msra.mxu0 0.0
      %569 = vmatprep.subr.mxu0 0.0
      %570 = vmatpush1.msra.mxu0 0.0
      %571 = vmatprep.subr.mxu0 0.0
      %572 = vmatpush1.msra.mxu0 0.0
      %573 = vmatprep.subr.mxu0 0.0
      %574 = vmatpush1.msra.mxu0 0.0
      %575 = vmatprep.subr.mxu0 0.0
      %576 = vmatpush1.msra.mxu0 0.0
      %577 = vmatprep.subr.mxu0 0.0
      %578 = vmatpush1.msra.mxu0 0.0
      %579 = vmatprep.subr.mxu0 0.0
      %580 = vmatpush1.msra.mxu0 0.0
      %581 = vmatprep.subr.mxu0 0.0
      %582 = vmatpush1.msra.mxu0 0.0
      %583 = vmatprep.subr.mxu0 0.0
      %584 = vmatpush1.msra.mxu0 0.0
      %585 = vmatprep.subr.mxu0 0.0
      %586 = vmatpush1.msra.mxu0 0.0
      %587 = vmatprep.subr.mxu0 0.0
      %588 = vmatpush1.msra.mxu0 0.0
      %589 = vmatprep.mubr.f32.mxu0 0.0
      %590 = vmatmul.mubr.f32.gmra.mrb[0].mxu0 %v478
      %v591 = vpop.f32.mrb[0].mxu0
      %v592 = vadd.f32 0.0, %v591
      %v593 = vpop.f32.mrb[0].mxu0
      %594 = vmatprep.mubr.f32.mxu0 0.0
      %595 = vmatmul.mubr.f32.gmra.mrb[0].mxu0 %v481
      %v596 = vpop.f32.mrb[0].mxu0
      %v597 = vadd.f32 0.0, %v596
      %v598 = vpop.f32.mrb[0].mxu0
      %599 = vmatprep.mubr.f32.mxu0 0.0
      %600 = vmatmul.mubr.f32.gmra.mrb[0].mxu0 %v484
      %v601 = vpop.f32.mrb[0].mxu0
      %v602 = vadd.f32 0.0, %v601
      %v603 = vpop.f32.mrb[0].mxu0
      %604 = vmatprep.mubr.f32.mxu0 0.0
      %605 = vmatmul.mubr.f32.gmra.mrb[0].mxu0 %v487
      %v606 = vpop.f32.mrb[0].mxu0
      %v607 = vadd.f32 0.0, %v606
      %v608 = vpop.f32.mrb[0].mxu0
      %609 = vmatprep.mubr.f32.mxu0 0.0
      %610 = vmatmul.mubr.f32.gmra.mrb[0].mxu0 %v490
      %v611 = vpop.f32.mrb[0].mxu0
      %v612 = vadd.f32 0.0, %v611
      %v613 = vpop.f32.mrb[0].mxu0
      %614 = vmatprep.mubr.f32.mxu0 0.0
      %615 = vmatmul.mubr.f32.gmra.mrb[0].mxu0 %v493
      %v616 = vpop.f32.mrb[0].mxu0
      %v617 = vadd.f32 0.0, %v616
      %v618 = vpop.f32.mrb[0].mxu0
      %619 = vmatprep.mubr.f32.mxu0 0.0
      %620 = vmatmul.mubr.f32.gmra.mrb[0].mxu0 %v496
      %v621 = vpop.f32.mrb[0].mxu0
      %v622 = vadd.f32 0.0, %v621
      %v623 = vpop.f32.mrb[0].mxu0
      %624 = vmatprep.mubr.f32.mxu0 0.0
      %625 = vmatmul.mubr.f32.gmra.mrb[0].mxu0 %v499
      %v626 = vpop.f32.mrb[0].mxu0
      %v627 = vadd.f32 0.0, %v626
      %v628 = vpop.f32.mrb[0].mxu0
      %629 = vmatprep.mubr.f32.mxu0 0.0
      %630 = vmatmul.mubr.f32.gmra.mrb[0].mxu0 %v502
      %v631 = vpop.f32.mrb[0].mxu0
      %v632 = vadd.f32 0.0, %v631
      %v633 = vpop.f32.mrb[0].mxu0
      %634 = vmatprep.mubr.f32.mxu0 0.0
      %635 = vmatmul.mubr.f32.gmra.mrb[0].mxu0 %v505
      %v636 = vpop.f32.mrb[0].mxu0
      %v637 = vadd.f32 0.0, %v636
      %v638 = vpop.f32.mrb[0].mxu0
      %639 = vmatprep.mubr.f32.mxu0 0.0
      %640 = vmatmul.mubr.f32.gmra.mrb[0].mxu0 %v508
      %v641 = vpop.f32.mrb[0].mxu0
      %v642 = vadd.f32 0.0, %v641
      %v643 = vpop.f32.mrb[0].mxu0
      %644 = vmatprep.mubr.f32.mxu0 0.0
      %645 = vmatmul.mubr.f32.gmra.mrb[0].mxu0 %v511
      %v646 = vpop.f32.mrb[0].mxu0
      %v647 = vadd.f32 0.0, %v646
      %v648 = vpop.f32.mrb[0].mxu0
      %649 = vmatprep.mubr.f32.mxu0 0.0
      %650 = vmatmul.mubr.f32.gmra.mrb[0].mxu0 %v514
      %v651 = vpop.f32.mrb[0].mxu0
      %v652 = vadd.f32 0.0, %v651
      %v653 = vpop.f32.mrb[0].mxu0
      %654 = vmatprep.mubr.f32.mxu0 0.0
      %655 = vmatmul.mubr.f32.gmra.mrb[0].mxu0 %v517
      %v656 = vpop.f32.mrb[0].mxu0
      %v657 = vadd.f32 0.0, %v656
      %v658 = vpop.f32.mrb[0].mxu0
      %659 = vmatprep.mubr.f32.mxu0 0.0
      %660 = vmatmul.mubr.f32.gmra.mrb[0].mxu0 %v520
      %v661 = vpop.f32.mrb[0].mxu0
      %v662 = vadd.f32 0.0, %v661
      %v663 = vpop.f32.mrb[0].mxu0
      %664 = vmatprep.mubr.f32.mxu0 0.0
      %665 = vmatmul.mubr.f32.gmra.mrb[0].mxu0 %v523
      %v666 = vpop.f32.mrb[0].mxu0
      %v667 = vadd.f32 0.0, %v666
      %v668 = vpop.f32.mrb[0].mxu0
      %669 = vdwg.mxu0
      %v671 = vsel %vm476, %v455, 0
      %v674 = vsel %vm476, %v456, 0
      %v677 = vsel %vm476, %v457, 0
      %v680 = vsel %vm476, %v458, 0
      %v683 = vsel %vm476, %v459, 0
      %v686 = vsel %vm476, %v460, 0
      %v689 = vsel %vm476, %v461, 0
      %v692 = vsel %vm476, %v462, 0
      %v695 = vsel %vm476, %v463, 0
      %v698 = vsel %vm476, %v464, 0
      %v701 = vsel %vm476, %v465, 0
      %v704 = vsel %vm476, %v466, 0
      %v707 = vsel %vm476, %v467, 0
      %v710 = vsel %vm476, %v468, 0
      %v713 = vsel %vm476, %v469, 0
      %v716 = vsel %vm476, %v470, 0
      %718 = vmatprep.subr.mxu0 0.0
      %719 = vmatpush1.msra.mxu0 %v471
      %720 = vmatprep.subr.mxu0 0.0
      %721 = vmatpush1.msra.mxu0 %v472
      %722 = vmatprep.subr.mxu0 0.0
      %723 = vmatpush1.msra.mxu0 %v473
      %724 = vmatprep.subr.mxu0 0.0
      %725 = vmatpush1.msra.mxu0 %v474
      %726 = vmatprep.subr.mxu0 0.0
      %727 = vmatpush1.msra.mxu0 %v475
      %728 = vmatprep.subr.mxu0 0.0
      %729 = vmatpush1.msra.mxu0 0.0
      %730 = vmatprep.subr.mxu0 0.0
      %731 = vmatpush1.msra.mxu0 0.0
      %732 = vmatprep.subr.mxu0 0.0
      %733 = vmatpush1.msra.mxu0 0.0
      %734 = vmatprep.subr.mxu0 0.0
      %735 = vmatpush1.msra.mxu0 0.0
      %736 = vmatprep.subr.mxu0 0.0
      %737 = vmatpush1.msra.mxu0 0.0
      %738 = vmatprep.subr.mxu0 0.0
      %739 = vmatpush1.msra.mxu0 0.0
      %740 = vmatprep.subr.mxu0 0.0
      %741 = vmatpush1.msra.mxu0 0.0
      %742 = vmatprep.subr.mxu0 0.0
      %743 = vmatpush1.msra.mxu0 0.0
      %744 = vmatprep.subr.mxu0 0.0
      %745 = vmatpush1.msra.mxu0 0.0
      %746 = vmatprep.subr.mxu0 0.0
      %747 = vmatpush1.msra.mxu0 0.0
      %748 = vmatprep.subr.mxu0 0.0
      %749 = vmatpush1.msra.mxu0 0.0
      %750 = vmatprep.subr.mxu0 0.0
      %751 = vmatpush1.msra.mxu0 0.0
      %752 = vmatprep.subr.mxu0 0.0
      %753 = vmatpush1.msra.mxu0 0.0
      %754 = vmatprep.subr.mxu0 0.0
      %755 = vmatpush1.msra.mxu0 0.0
      %756 = vmatprep.subr.mxu0 0.0
      %757 = vmatpush1.msra.mxu0 0.0
      %758 = vmatprep.subr.mxu0 0.0
      %759 = vmatpush1.msra.mxu0 0.0
      %760 = vmatprep.subr.mxu0 0.0
      %761 = vmatpush1.msra.mxu0 0.0
      %762 = vmatprep.subr.mxu0 0.0
      %763 = vmatpush1.msra.mxu0 0.0
      %764 = vmatprep.subr.mxu0 0.0
      %765 = vmatpush1.msra.mxu0 0.0
      %766 = vmatprep.subr.mxu0 0.0
      %767 = vmatpush1.msra.mxu0 0.0
      %768 = vmatprep.subr.mxu0 0.0
      %769 = vmatpush1.msra.mxu0 0.0
      %770 = vmatprep.subr.mxu0 0.0
      %771 = vmatpush1.msra.mxu0 0.0
      %772 = vmatprep.subr.mxu0 0.0
      %773 = vmatpush1.msra.mxu0 0.0
      %774 = vmatprep.subr.mxu0 0.0
      %775 = vmatpush1.msra.mxu0 0.0
      %776 = vmatprep.subr.mxu0 0.0
      %777 = vmatpush1.msra.mxu0 0.0
      %778 = vmatprep.subr.mxu0 0.0
      %779 = vmatpush1.msra.mxu0 0.0
      %780 = vmatprep.subr.mxu0 0.0
      %781 = vmatpush1.msra.mxu0 0.0
      %782 = vmatprep.mubr.f32.mxu0 0.0
      %783 = vmatmul.mubr.f32.gmra.mrb[0].mxu0 %v671
      %v784 = vpop.f32.mrb[0].mxu0
      %v785 = vadd.f32 0.0, %v784
      %v786 = vpop.f32.mrb[0].mxu0
      %787 = vmatprep.mubr.f32.mxu0 0.0
      %788 = vmatmul.mubr.f32.gmra.mrb[0].mxu0 %v674
      %v789 = vpop.f32.mrb[0].mxu0
      %v790 = vadd.f32 0.0, %v789
      %v791 = vpop.f32.mrb[0].mxu0
      %792 = vmatprep.mubr.f32.mxu0 0.0
      %793 = vmatmul.mubr.f32.gmra.mrb[0].mxu0 %v677
      %v794 = vpop.f32.mrb[0].mxu0
      %v795 = vadd.f32 0.0, %v794
      %v796 = vpop.f32.mrb[0].mxu0
      %797 = vmatprep.mubr.f32.mxu0 0.0
      %798 = vmatmul.mubr.f32.gmra.mrb[0].mxu0 %v680
      %v799 = vpop.f32.mrb[0].mxu0
      %v800 = vadd.f32 0.0, %v799
      %v801 = vpop.f32.mrb[0].mxu0
      %802 = vmatprep.mubr.f32.mxu0 0.0
      %803 = vmatmul.mubr.f32.gmra.mrb[0].mxu0 %v683
      %v804 = vpop.f32.mrb[0].mxu0
      %v805 = vadd.f32 0.0, %v804
      %v806 = vpop.f32.mrb[0].mxu0
      %807 = vmatprep.mubr.f32.mxu0 0.0
      %808 = vmatmul.mubr.f32.gmra.mrb[0].mxu0 %v686
      %v809 = vpop.f32.mrb[0].mxu0
      %v810 = vadd.f32 0.0, %v809
      %v811 = vpop.f32.mrb[0].mxu0
      %812 = vmatprep.mubr.f32.mxu0 0.0
      %813 = vmatmul.mubr.f32.gmra.mrb[0].mxu0 %v689
      %v814 = vpop.f32.mrb[0].mxu0
      %v815 = vadd.f32 0.0, %v814
      %v816 = vpop.f32.mrb[0].mxu0
      %817 = vmatprep.mubr.f32.mxu0 0.0
      %818 = vmatmul.mubr.f32.gmra.mrb[0].mxu0 %v692
      %v819 = vpop.f32.mrb[0].mxu0
      %v820 = vadd.f32 0.0, %v819
      %v821 = vpop.f32.mrb[0].mxu0
      %822 = vmatprep.mubr.f32.mxu0 0.0
      %823 = vmatmul.mubr.f32.gmra.mrb[0].mxu0 %v695
      %v824 = vpop.f32.mrb[0].mxu0
      %v825 = vadd.f32 0.0, %v824
      %v826 = vpop.f32.mrb[0].mxu0
      %827 = vmatprep.mubr.f32.mxu0 0.0
      %828 = vmatmul.mubr.f32.gmra.mrb[0].mxu0 %v698
      %v829 = vpop.f32.mrb[0].mxu0
      %v830 = vadd.f32 0.0, %v829
      %v831 = vpop.f32.mrb[0].mxu0
      %832 = vmatprep.mubr.f32.mxu0 0.0
      %833 = vmatmul.mubr.f32.gmra.mrb[0].mxu0 %v701
      %v834 = vpop.f32.mrb[0].mxu0
      %v835 = vadd.f32 0.0, %v834
      %v836 = vpop.f32.mrb[0].mxu0
      %837 = vmatprep.mubr.f32.mxu0 0.0
      %838 = vmatmul.mubr.f32.gmra.mrb[0].mxu0 %v704
      %v839 = vpop.f32.mrb[0].mxu0
      %v840 = vadd.f32 0.0, %v839
      %v841 = vpop.f32.mrb[0].mxu0
      %842 = vmatprep.mubr.f32.mxu0 0.0
      %843 = vmatmul.mubr.f32.gmra.mrb[0].mxu0 %v707
      %v844 = vpop.f32.mrb[0].mxu0
      %v845 = vadd.f32 0.0, %v844
      %v846 = vpop.f32.mrb[0].mxu0
      %847 = vmatprep.mubr.f32.mxu0 0.0
      %848 = vmatmul.mubr.f32.gmra.mrb[0].mxu0 %v710
      %v849 = vpop.f32.mrb[0].mxu0
      %v850 = vadd.f32 0.0, %v849
      %v851 = vpop.f32.mrb[0].mxu0
      %852 = vmatprep.mubr.f32.mxu0 0.0
      %853 = vmatmul.mubr.f32.gmra.mrb[0].mxu0 %v713
      %v854 = vpop.f32.mrb[0].mxu0
      %v855 = vadd.f32 0.0, %v854
      %v856 = vpop.f32.mrb[0].mxu0
      %857 = vmatprep.mubr.f32.mxu0 0.0
      %858 = vmatmul.mubr.f32.gmra.mrb[0].mxu0 %v716
      %v859 = vpop.f32.mrb[0].mxu0
      %v860 = vadd.f32 0.0, %v859
      %v861 = vpop.f32.mrb[0].mxu0
      %862 = vdwg.mxu0
      %v863 = vld [vmem:[%s3] sm:$0xff]
      %v864 = vld [vmem:[%s4] sm:$0xff]
      %vm865 = vcmask 64512
      %v867 = vsel %vm865, %v785, 0
      %v870 = vsel %vm865, %v790, 0
      %v873 = vsel %vm865, %v795, 0
      %v876 = vsel %vm865, %v800, 0
      %v879 = vsel %vm865, %v805, 0
      %v882 = vsel %vm865, %v810, 0
      %v885 = vsel %vm865, %v815, 0
      %v888 = vsel %vm865, %v820, 0
      %v891 = vsel %vm865, %v825, 0
      %v894 = vsel %vm865, %v830, 0
      %v897 = vsel %vm865, %v835, 0
      %v900 = vsel %vm865, %v840, 0
      %v903 = vsel %vm865, %v845, 0
      %v906 = vsel %vm865, %v850, 0
      %v909 = vsel %vm865, %v855, 0
      %v912 = vsel %vm865, %v860, 0
      %914 = vmatprep.subr.mxu0 0.0
      %915 = vmatpush1.msra.mxu0 %v864
      %916 = vmatprep.subr.mxu0 0.0
      %917 = vmatpush1.msra.mxu0 0.0
      %918 = vmatprep.subr.mxu0 0.0
      %919 = vmatpush1.msra.mxu0 0.0
      %920 = vmatprep.subr.mxu0 0.0
      %921 = vmatpush1.msra.mxu0 0.0
      %922 = vmatprep.subr.mxu0 0.0
      %923 = vmatpush1.msra.mxu0 0.0
      %924 = vmatprep.subr.mxu0 0.0
      %925 = vmatpush1.msra.mxu0 0.0
      %926 = vmatprep.subr.mxu0 0.0
      %927 = vmatpush1.msra.mxu0 0.0
      %928 = vmatprep.subr.mxu0 0.0
      %929 = vmatpush1.msra.mxu0 0.0
      %930 = vmatprep.subr.mxu0 0.0
      %931 = vmatpush1.msra.mxu0 0.0
      %932 = vmatprep.subr.mxu0 0.0
      %933 = vmatpush1.msra.mxu0 0.0
      %934 = vmatprep.subr.mxu0 0.0
      %935 = vmatpush1.msra.mxu0 0.0
      %936 = vmatprep.subr.mxu0 0.0
      %937 = vmatpush1.msra.mxu0 0.0
      %938 = vmatprep.subr.mxu0 0.0
      %939 = vmatpush1.msra.mxu0 0.0
      %940 = vmatprep.subr.mxu0 0.0
      %941 = vmatpush1.msra.mxu0 0.0
      %942 = vmatprep.subr.mxu0 0.0
      %943 = vmatpush1.msra.mxu0 0.0
      %944 = vmatprep.subr.mxu0 0.0
      %945 = vmatpush1.msra.mxu0 0.0
      %946 = vmatprep.subr.mxu0 0.0
      %947 = vmatpush1.msra.mxu0 0.0
      %948 = vmatprep.subr.mxu0 0.0
      %949 = vmatpush1.msra.mxu0 0.0
      %950 = vmatprep.subr.mxu0 0.0
      %951 = vmatpush1.msra.mxu0 0.0
      %952 = vmatprep.subr.mxu0 0.0
      %953 = vmatpush1.msra.mxu0 0.0
      %954 = vmatprep.subr.mxu0 0.0
      %955 = vmatpush1.msra.mxu0 0.0
      %956 = vmatprep.subr.mxu0 0.0
      %957 = vmatpush1.msra.mxu0 0.0
      %958 = vmatprep.subr.mxu0 0.0
      %959 = vmatpush1.msra.mxu0 0.0
      %960 = vmatprep.subr.mxu0 0.0
      %961 = vmatpush1.msra.mxu0 0.0
      %962 = vmatprep.subr.mxu0 0.0
      %963 = vmatpush1.msra.mxu0 0.0
      %964 = vmatprep.subr.mxu0 0.0
      %965 = vmatpush1.msra.mxu0 0.0
      %966 = vmatprep.subr.mxu0 0.0
      %967 = vmatpush1.msra.mxu0 0.0
      %968 = vmatprep.subr.mxu0 0.0
      %969 = vmatpush1.msra.mxu0 0.0
      %970 = vmatprep.subr.mxu0 0.0
      %971 = vmatpush1.msra.mxu0 0.0
      %972 = vmatprep.subr.mxu0 0.0
      %973 = vmatpush1.msra.mxu0 0.0
      %974 = vmatprep.subr.mxu0 0.0
      %975 = vmatpush1.msra.mxu0 0.0
      %976 = vmatprep.subr.mxu0 0.0
      %977 = vmatpush1.msra.mxu0 0.0
      %978 = vmatprep.mubr.f32.mxu0 0.0
      %979 = vmatmul.mubr.f32.gmra.mrb[0].mxu0 %v867
      %v980 = vpop.f32.mrb[0].mxu0
      %v981 = vadd.f32 0.0, %v980
      %v982 = vpop.f32.mrb[0].mxu0
      %983 = vmatprep.mubr.f32.mxu0 0.0
      %984 = vmatmul.mubr.f32.gmra.mrb[0].mxu0 %v870
      %v985 = vpop.f32.mrb[0].mxu0
      %v986 = vadd.f32 0.0, %v985
      %v987 = vpop.f32.mrb[0].mxu0
      %988 = vmatprep.mubr.f32.mxu0 0.0
      %989 = vmatmul.mubr.f32.gmra.mrb[0].mxu0 %v873
      %v990 = vpop.f32.mrb[0].mxu0
      %v991 = vadd.f32 0.0, %v990
      %v992 = vpop.f32.mrb[0].mxu0
      %993 = vmatprep.mubr.f32.mxu0 0.0
      %994 = vmatmul.mubr.f32.gmra.mrb[0].mxu0 %v876
      %v995 = vpop.f32.mrb[0].mxu0
      %v996 = vadd.f32 0.0, %v995
      %v997 = vpop.f32.mrb[0].mxu0
      %998 = vmatprep.mubr.f32.mxu0 0.0
      %999 = vmatmul.mubr.f32.gmra.mrb[0].mxu0 %v879
      %v1000 = vpop.f32.mrb[0].mxu0
      %v1001 = vadd.f32 0.0, %v1000
      %v1002 = vpop.f32.mrb[0].mxu0
      %1003 = vmatprep.mubr.f32.mxu0 0.0
      %1004 = vmatmul.mubr.f32.gmra.mrb[0].mxu0 %v882
      %v1005 = vpop.f32.mrb[0].mxu0
      %v1006 = vadd.f32 0.0, %v1005
      %v1007 = vpop.f32.mrb[0].mxu0
      %1008 = vmatprep.mubr.f32.mxu0 0.0
      %1009 = vmatmul.mubr.f32.gmra.mrb[0].mxu0 %v885
      %v1010 = vpop.f32.mrb[0].mxu0
      %v1011 = vadd.f32 0.0, %v1010
      %v1012 = vpop.f32.mrb[0].mxu0
      %1013 = vmatprep.mubr.f32.mxu0 0.0
      %1014 = vmatmul.mubr.f32.gmra.mrb[0].mxu0 %v888
      %v1015 = vpop.f32.mrb[0].mxu0
      %v1016 = vadd.f32 0.0, %v1015
      %v1017 = vpop.f32.mrb[0].mxu0
      %1018 = vmatprep.mubr.f32.mxu0 0.0
      %1019 = vmatmul.mubr.f32.gmra.mrb[0].mxu0 %v891
      %v1020 = vpop.f32.mrb[0].mxu0
      %v1021 = vadd.f32 0.0, %v1020
      %v1022 = vpop.f32.mrb[0].mxu0
      %1023 = vmatprep.mubr.f32.mxu0 0.0
      %1024 = vmatmul.mubr.f32.gmra.mrb[0].mxu0 %v894
      %v1025 = vpop.f32.mrb[0].mxu0
      %v1026 = vadd.f32 0.0, %v1025
      %v1027 = vpop.f32.mrb[0].mxu0
      %1028 = vmatprep.mubr.f32.mxu0 0.0
      %1029 = vmatmul.mubr.f32.gmra.mrb[0].mxu0 %v897
      %v1030 = vpop.f32.mrb[0].mxu0
      %v1031 = vadd.f32 0.0, %v1030
      %v1032 = vpop.f32.mrb[0].mxu0
      %1033 = vmatprep.mubr.f32.mxu0 0.0
      %1034 = vmatmul.mubr.f32.gmra.mrb[0].mxu0 %v900
      %v1035 = vpop.f32.mrb[0].mxu0
      %v1036 = vadd.f32 0.0, %v1035
      %v1037 = vpop.f32.mrb[0].mxu0
      %1038 = vmatprep.mubr.f32.mxu0 0.0
      %1039 = vmatmul.mubr.f32.gmra.mrb[0].mxu0 %v903
      %v1040 = vpop.f32.mrb[0].mxu0
      %v1041 = vadd.f32 0.0, %v1040
      %v1042 = vpop.f32.mrb[0].mxu0
      %1043 = vmatprep.mubr.f32.mxu0 0.0
      %1044 = vmatmul.mubr.f32.gmra.mrb[0].mxu0 %v906
      %v1045 = vpop.f32.mrb[0].mxu0
      %v1046 = vadd.f32 0.0, %v1045
      %v1047 = vpop.f32.mrb[0].mxu0
      %1048 = vmatprep.mubr.f32.mxu0 0.0
      %1049 = vmatmul.mubr.f32.gmra.mrb[0].mxu0 %v909
      %v1050 = vpop.f32.mrb[0].mxu0
      %v1051 = vadd.f32 0.0, %v1050
      %v1052 = vpop.f32.mrb[0].mxu0
      %1053 = vmatprep.mubr.f32.mxu0 0.0
      %1054 = vmatmul.mubr.f32.gmra.mrb[0].mxu0 %v912
      %v1055 = vpop.f32.mrb[0].mxu0
      %v1056 = vadd.f32 0.0, %v1055
      %v1057 = vpop.f32.mrb[0].mxu0
      %1058 = vdwg.mxu0
      %v1060 = vsel %vm865, %v592, 0
      %v1063 = vsel %vm865, %v597, 0
      %v1066 = vsel %vm865, %v602, 0
      %v1069 = vsel %vm865, %v607, 0
      %v1072 = vsel %vm865, %v612, 0
      %v1075 = vsel %vm865, %v617, 0
      %v1078 = vsel %vm865, %v622, 0
      %v1081 = vsel %vm865, %v627, 0
      %v1084 = vsel %vm865, %v632, 0
      %v1087 = vsel %vm865, %v637, 0
      %v1090 = vsel %vm865, %v642, 0
      %v1093 = vsel %vm865, %v647, 0
      %v1096 = vsel %vm865, %v652, 0
      %v1099 = vsel %vm865, %v657, 0
      %v1102 = vsel %vm865, %v662, 0
      %v1105 = vsel %vm865, %v667, 0
      %1107 = vmatprep.subr.mxu0 0.0
      %1108 = vmatpush1.msra.mxu0 %v863
      %1109 = vmatprep.subr.mxu0 0.0
      %1110 = vmatpush1.msra.mxu0 0.0
      %1111 = vmatprep.subr.mxu0 0.0
      %1112 = vmatpush1.msra.mxu0 0.0
      %1113 = vmatprep.subr.mxu0 0.0
      %1114 = vmatpush1.msra.mxu0 0.0
      %1115 = vmatprep.subr.mxu0 0.0
      %1116 = vmatpush1.msra.mxu0 0.0
      %1117 = vmatprep.subr.mxu0 0.0
      %1118 = vmatpush1.msra.mxu0 0.0
      %1119 = vmatprep.subr.mxu0 0.0
      %1120 = vmatpush1.msra.mxu0 0.0
      %1121 = vmatprep.subr.mxu0 0.0
      %1122 = vmatpush1.msra.mxu0 0.0
      %1123 = vmatprep.subr.mxu0 0.0
      %1124 = vmatpush1.msra.mxu0 0.0
      %1125 = vmatprep.subr.mxu0 0.0
      %1126 = vmatpush1.msra.mxu0 0.0
      %1127 = vmatprep.subr.mxu0 0.0
      %1128 = vmatpush1.msra.mxu0 0.0
      %1129 = vmatprep.subr.mxu0 0.0
      %1130 = vmatpush1.msra.mxu0 0.0
      %1131 = vmatprep.subr.mxu0 0.0
      %1132 = vmatpush1.msra.mxu0 0.0
      %1133 = vmatprep.subr.mxu0 0.0
      %1134 = vmatpush1.msra.mxu0 0.0
      %1135 = vmatprep.subr.mxu0 0.0
      %1136 = vmatpush1.msra.mxu0 0.0
      %1137 = vmatprep.subr.mxu0 0.0
      %1138 = vmatpush1.msra.mxu0 0.0
      %1139 = vmatprep.subr.mxu0 0.0
      %1140 = vmatpush1.msra.mxu0 0.0
      %1141 = vmatprep.subr.mxu0 0.0
      %1142 = vmatpush1.msra.mxu0 0.0
      %1143 = vmatprep.subr.mxu0 0.0
      %1144 = vmatpush1.msra.mxu0 0.0
      %1145 = vmatprep.subr.mxu0 0.0
      %1146 = vmatpush1.msra.mxu0 0.0
      %1147 = vmatprep.subr.mxu0 0.0
      %1148 = vmatpush1.msra.mxu0 0.0
      %1149 = vmatprep.subr.mxu0 0.0
      %1150 = vmatpush1.msra.mxu0 0.0
      %1151 = vmatprep.subr.mxu0 0.0
      %1152 = vmatpush1.msra.mxu0 0.0
      %1153 = vmatprep.subr.mxu0 0.0
      %1154 = vmatpush1.msra.mxu0 0.0
      %1155 = vmatprep.subr.mxu0 0.0
      %1156 = vmatpush1.msra.mxu0 0.0
      %1157 = vmatprep.subr.mxu0 0.0
      %1158 = vmatpush1.msra.mxu0 0.0
      %1159 = vmatprep.subr.mxu0 0.0
      %1160 = vmatpush1.msra.mxu0 0.0
      %1161 = vmatprep.subr.mxu0 0.0
      %1162 = vmatpush1.msra.mxu0 0.0
      %1163 = vmatprep.subr.mxu0 0.0
      %1164 = vmatpush1.msra.mxu0 0.0
      %1165 = vmatprep.subr.mxu0 0.0
      %1166 = vmatpush1.msra.mxu0 0.0
      %1167 = vmatprep.subr.mxu0 0.0
      %1168 = vmatpush1.msra.mxu0 0.0
      %1169 = vmatprep.subr.mxu0 0.0
      %1170 = vmatpush1.msra.mxu0 0.0
      %1171 = vmatprep.mubr.f32.mxu0 0.0
      %1172 = vmatmul.mubr.f32.gmra.mrb[0].mxu0 %v1060
      %v1173 = vpop.f32.mrb[0].mxu0
      %v1174 = vadd.f32 %v981, %v1173
      %v1175 = vpop.f32.mrb[0].mxu0
      %1176 = vmatprep.mubr.f32.mxu0 0.0
      %1177 = vmatmul.mubr.f32.gmra.mrb[0].mxu0 %v1063
      %v1178 = vpop.f32.mrb[0].mxu0
      %v1179 = vadd.f32 %v986, %v1178
      %v1180 = vpop.f32.mrb[0].mxu0
      %1181 = vmatprep.mubr.f32.mxu0 0.0
      %1182 = vmatmul.mubr.f32.gmra.mrb[0].mxu0 %v1066
      %v1183 = vpop.f32.mrb[0].mxu0
      %v1184 = vadd.f32 %v991, %v1183
      %v1185 = vpop.f32.mrb[0].mxu0
      %1186 = vmatprep.mubr.f32.mxu0 0.0
      %1187 = vmatmul.mubr.f32.gmra.mrb[0].mxu0 %v1069
      %v1188 = vpop.f32.mrb[0].mxu0
      %v1189 = vadd.f32 %v996, %v1188
      %v1190 = vpop.f32.mrb[0].mxu0
      %1191 = vmatprep.mubr.f32.mxu0 0.0
      %1192 = vmatmul.mubr.f32.gmra.mrb[0].mxu0 %v1072
      %v1193 = vpop.f32.mrb[0].mxu0
      %v1194 = vadd.f32 %v1001, %v1193
      %v1195 = vpop.f32.mrb[0].mxu0
      %1196 = vmatprep.mubr.f32.mxu0 0.0
      %1197 = vmatmul.mubr.f32.gmra.mrb[0].mxu0 %v1075
      %v1198 = vpop.f32.mrb[0].mxu0
      %v1199 = vadd.f32 %v1006, %v1198
      %v1200 = vpop.f32.mrb[0].mxu0
      %1201 = vmatprep.mubr.f32.mxu0 0.0
      %1202 = vmatmul.mubr.f32.gmra.mrb[0].mxu0 %v1078
      %v1203 = vpop.f32.mrb[0].mxu0
      %v1204 = vadd.f32 %v1011, %v1203
      %v1205 = vpop.f32.mrb[0].mxu0
      %1206 = vmatprep.mubr.f32.mxu0 0.0
      %1207 = vmatmul.mubr.f32.gmra.mrb[0].mxu0 %v1081
      %v1208 = vpop.f32.mrb[0].mxu0
      %v1209 = vadd.f32 %v1016, %v1208
      %v1210 = vpop.f32.mrb[0].mxu0
      %1211 = vmatprep.mubr.f32.mxu0 0.0
      %1212 = vmatmul.mubr.f32.gmra.mrb[0].mxu0 %v1084
      %v1213 = vpop.f32.mrb[0].mxu0
      %v1214 = vadd.f32 %v1021, %v1213
      %v1215 = vpop.f32.mrb[0].mxu0
      %1216 = vmatprep.mubr.f32.mxu0 0.0
      %1217 = vmatmul.mubr.f32.gmra.mrb[0].mxu0 %v1087
      %v1218 = vpop.f32.mrb[0].mxu0
      %v1219 = vadd.f32 %v1026, %v1218
      %v1220 = vpop.f32.mrb[0].mxu0
      %1221 = vmatprep.mubr.f32.mxu0 0.0
      %1222 = vmatmul.mubr.f32.gmra.mrb[0].mxu0 %v1090
      %v1223 = vpop.f32.mrb[0].mxu0
      %v1224 = vadd.f32 %v1031, %v1223
      %v1225 = vpop.f32.mrb[0].mxu0
      %1226 = vmatprep.mubr.f32.mxu0 0.0
      %1227 = vmatmul.mubr.f32.gmra.mrb[0].mxu0 %v1093
      %v1228 = vpop.f32.mrb[0].mxu0
      %v1229 = vadd.f32 %v1036, %v1228
      %v1230 = vpop.f32.mrb[0].mxu0
      %1231 = vmatprep.mubr.f32.mxu0 0.0
      %1232 = vmatmul.mubr.f32.gmra.mrb[0].mxu0 %v1096
      %v1233 = vpop.f32.mrb[0].mxu0
      %v1234 = vadd.f32 %v1041, %v1233
      %v1235 = vpop.f32.mrb[0].mxu0
      %1236 = vmatprep.mubr.f32.mxu0 0.0
      %1237 = vmatmul.mubr.f32.gmra.mrb[0].mxu0 %v1099
      %v1238 = vpop.f32.mrb[0].mxu0
      %v1239 = vadd.f32 %v1046, %v1238
      %v1240 = vpop.f32.mrb[0].mxu0
      %1241 = vmatprep.mubr.f32.mxu0 0.0
      %1242 = vmatmul.mubr.f32.gmra.mrb[0].mxu0 %v1102
      %v1243 = vpop.f32.mrb[0].mxu0
      %v1244 = vadd.f32 %v1051, %v1243
      %v1245 = vpop.f32.mrb[0].mxu0
      %1246 = vmatprep.mubr.f32.mxu0 0.0
      %1247 = vmatmul.mubr.f32.gmra.mrb[0].mxu0 %v1105
      %v1248 = vpop.f32.mrb[0].mxu0
      %v1249 = vadd.f32 %v1056, %v1248
      %v1250 = vpop.f32.mrb[0].mxu0
      %1251 = vdwg.mxu0
      %v1252 = vld [vmem:[%s5] sm:$0x1]
      %v1254 = vlaneseq
      %v1255 = vshrl.u32 %v1254, 7
      %v1256 = vsub.s32 0, %v1255
      %v1257 = vrot.slane %v1252, %v1256
      %v1259 = vadd.f32 %v1174, %v1257
      %v1260 = vadd.f32 %v1179, %v1257
      %v1261 = vadd.f32 %v1184, %v1257
      %v1262 = vadd.f32 %v1189, %v1257
      %v1263 = vadd.f32 %v1194, %v1257
      %v1264 = vadd.f32 %v1199, %v1257
      %v1265 = vadd.f32 %v1204, %v1257
      %v1266 = vadd.f32 %v1209, %v1257
      %v1267 = vadd.f32 %v1214, %v1257
      %v1268 = vadd.f32 %v1219, %v1257
      %v1269 = vadd.f32 %v1224, %v1257
      %v1270 = vadd.f32 %v1229, %v1257
      %v1271 = vadd.f32 %v1234, %v1257
      %v1272 = vadd.f32 %v1239, %v1257
      %v1273 = vadd.f32 %v1244, %v1257
      %v1274 = vadd.f32 %v1249, %v1257
      %vm1275 = vcmask 15360
      %1276 = vst.msk [vmem:[%s275] sm:$0xff] %vm1275, %v1259
      %1277 = vst.msk [vmem:[%s275 + $0x8] sm:$0xff] %vm1275, %v1260
      %1278 = vst.msk [vmem:[%s275 + $0x10] sm:$0xff] %vm1275, %v1261
      %1279 = vst.msk [vmem:[%s275 + $0x18] sm:$0xff] %vm1275, %v1262
      %1280 = vst.msk [vmem:[%s275 + $0x20] sm:$0xff] %vm1275, %v1263
      %1281 = vst.msk [vmem:[%s275 + $0x28] sm:$0xff] %vm1275, %v1264
      %1282 = vst.msk [vmem:[%s275 + $0x30] sm:$0xff] %vm1275, %v1265
      %1283 = vst.msk [vmem:[%s275 + $0x38] sm:$0xff] %vm1275, %v1266
      %1284 = vst.msk [vmem:[%s275 + $0x40] sm:$0xff] %vm1275, %v1267
      %1285 = vst.msk [vmem:[%s275 + $0x48] sm:$0xff] %vm1275, %v1268
      %1286 = vst.msk [vmem:[%s275 + $0x50] sm:$0xff] %vm1275, %v1269
      %1287 = vst.msk [vmem:[%s275 + $0x58] sm:$0xff] %vm1275, %v1270
      %1288 = vst.msk [vmem:[%s275 + $0x60] sm:$0xff] %vm1275, %v1271
      %1289 = vst.msk [vmem:[%s275 + $0x68] sm:$0xff] %vm1275, %v1272
      %1290 = vst.msk [vmem:[%s275 + $0x70] sm:$0xff] %vm1275, %v1273
      %1291 = vst.msk [vmem:[%s275 + $0x78] sm:$0xff] %vm1275, %v1274
      %s1292 = smul.u32 16, %s17
      %p1293 = scmp.lt.s32.totalorder %s1292, 47
      %s1294 = scalar_select %p1293, %s1292, 47
      %s1295 = smul.addr %s1294, 8
      %s1296 = scalar_lea.vmem %s6, %s1295
      // Predicated region
      $region45: #{model_forward.7} parent=43 // pred_check
        %p1297 = pneg %p171
      $region46: #{model_forward.7} parent=43 // pred_check_branch
        %1299 = sbr.rel (%p1297) target = $region48
      $region47: #{model_forward.7} parent=43 // pred_region
        %s1300 = smul.u32 16, %s17
      $region48: #{model_forward.7} parent=43 // pred_fallthru
        _
    $region44: #{model_forward.7} parent=5 // pred_fallthru
      _
    %p1301 = scmp.le.s32.totalorder 2, %s12
    // Predicated region
    $region49: #{model_forward.7} parent=5 // pred_check
      %p1302 = pneg %p1301
    $region50: #{model_forward.7} parent=5 // pred_check_branch
      %1304 = sbr.rel (%p1302) target = $region52
    $region51: #{model_forward.7} parent=5 // pred_region
      %s1305 = ssub.s32 %s12, 2
      // Predicated region
      $region53: #{model_forward.7} parent=51 // pred_check
        %p1306 = pneg %p177
      $region54: #{model_forward.7} parent=51 // pred_check_branch
        %1308 = sbr.rel (%p1306) target = $region56
      $region55: #{model_forward.7} parent=51 // pred_region
        %s1309 = smul.u32 16, %s18
        %p1310 = scmp.lt.s32.totalorder %s1309, 47
        %s1311 = scalar_select %p1310, %s1309, 47
        %s1312 = smul.addr %s1311, 8
        %s1313 = scalar_lea.vmem %s6, %s1312
      $region56: #{model_forward.7} parent=51 // pred_fallthru
        _
    $region52: #{model_forward.7} parent=5 // pred_fallthru
      _
  $region6: #{model_forward.7} parent=0 // loop_footer
    %s16 = sadd.s32 1, %s12
  $region7: #{model_forward.7} parent=0 // loop_footer_branch
    %11 = sbr.rel target = $region3
  $region8: #{model_forward.7} parent=0 // loop_exit
    _

</llo_original>
